<compile_context>
chip_gen: v7x
topology: tpu7x:2x2x1
jax: 0.10.0
libtpu: 0.0.40
codegen_flags: <defaults>
</compile_context>

<pallas_src>
import functools
import math

import jax
import jax.numpy as jnp
from jax.experimental import pallas as pl
from jax.experimental.pallas import tpu as pltpu


# --------------------------------------------------------------------------- conv kernel

def _make_conv3x3_kernel(H, W, C, Cout, apply_norm, apply_gelu, add_residual):
    """Fused: [ChannelNorm] -> 3x3 conv (9 shifted MXU matmuls) -> bias -> [GELU] -> [+residual]."""

    def kernel(*refs):
        it = iter(refs)
        xp_ref = next(it)                       # (1, H+2, W+2, C)  bf16, zero-padded
        w_ref = next(it)                        # (9, C, Cout)      bf16, resident
        b_ref = next(it)                        # (1, Cout)         f32, resident
        g_ref = next(it) if apply_norm else None
        bt_ref = next(it) if apply_norm else None
        res_ref = next(it) if add_residual else None
        o_ref = next(it)                        # (1, H, W, Cout)   f32

        xp = xp_ref[0].astype(jnp.float32)      # (H+2, W+2, C)
        if apply_norm:
            # LayerNorm over the channel axis, then re-zero the padded border so the conv
            # still sees zeros there (matches "normalize first, then pad-and-convolve").
            mu = jnp.mean(xp, axis=-1, keepdims=True)
            xc = xp - mu
            var = jnp.mean(xc * xc, axis=-1, keepdims=True)
            xn = xc * jax.lax.rsqrt(var + 1e-5) * g_ref[...] + bt_ref[...]
            rows = jax.lax.broadcasted_iota(jnp.int32, (H + 2, W + 2, C), 0)
            cols = jax.lax.broadcasted_iota(jnp.int32, (H + 2, W + 2, C), 1)
            interior = (rows >= 1) & (rows <= H) & (cols >= 1) & (cols <= W)
            xp = jnp.where(interior, xn, 0.0)

        acc = jnp.zeros((H * W, Cout), jnp.float32)
        for dy in range(3):                     # 9 shifted taps -> 9 bf16 matmuls, f32 acc
            for dx in range(3):
                sl = xp[dy:dy + H, dx:dx + W, :].reshape(H * W, C).astype(jnp.bfloat16)
                acc = acc + jnp.dot(sl, w_ref[dy * 3 + dx],
                                    preferred_element_type=jnp.float32)
        acc = acc + b_ref[...]
        if apply_gelu:                          # exact (erf) GELU == nn.GELU() default
            acc = 0.5 * acc * (1.0 + jax.lax.erf(acc * (1.0 / math.sqrt(2.0))))
        y = acc.reshape(H, W, Cout)
        if add_residual:
            y = y + res_ref[0]
        o_ref[0] = y.astype(o_ref.dtype)

    return kernel


def conv3x3(x_nhwc, w, bias, *, norm=None, gelu=False, residual=None):
    """3x3 conv (padding=1) with optional fused ChannelNorm / GELU / residual add.

    x_nhwc: (B,H,W,C) f32; w: (9,C,Cout) bf16 (tap-major ky*3+kx); bias: (Cout,) f32;
    norm: optional (gamma, beta) each (C,) f32; residual: optional (B,H,W,Cout) f32.
    """
    B, H, W, C = x_nhwc.shape
    Cout = w.shape[-1]
    # Cheap H/W zero-pad + bf16 cast in one fused XLA pass; the 9x im2col expansion only
    # ever exists inside VMEM/vregs, never in HBM.
    xp = jnp.pad(x_nhwc, ((0, 0), (1, 1), (1, 1), (0, 0))).astype(jnp.bfloat16)

    in_specs = [pl.BlockSpec((1, H + 2, W + 2, C), lambda b: (b, 0, 0, 0)),
                pl.BlockSpec((9, C, Cout), lambda b: (0, 0, 0)),     # weights resident
                pl.BlockSpec((1, Cout), lambda b: (0, 0))]           # bias resident
    args = [xp, w, bias.reshape(1, Cout)]
    if norm is not None:
        gamma, beta = norm
        in_specs += [pl.BlockSpec((1, C), lambda b: (0, 0)),
                     pl.BlockSpec((1, C), lambda b: (0, 0))]
        args += [gamma.reshape(1, C), beta.reshape(1, C)]
    if residual is not None:
        in_specs.append(pl.BlockSpec((1, H, W, Cout), lambda b: (b, 0, 0, 0)))
        args.append(residual)

    kernel = _make_conv3x3_kernel(H, W, C, Cout, norm is not None, gelu,
                                  residual is not None)
    # TODO(synk): for large H*W, additionally tile the H axis (halo rows via manual
    # make_async_copy double-buffering) and budget tiles against v7x's 64 MiB VMEM.
    return pl.pallas_call(
        kernel,
        out_shape=jax.ShapeDtypeStruct((B, H, W, Cout), jnp.float32),
        grid=(B,),
        in_specs=in_specs,
        out_specs=pl.BlockSpec((1, H, W, Cout), lambda b: (b, 0, 0, 0)),
        compiler_params=pltpu.CompilerParams(dimension_semantics=("parallel",)),
    )(*args)


# ----------------------------------------------------------------------- attention kernel

def _make_attn_kernel(has_pqk, scale):
    def kernel(*refs):
        if has_pqk:
            q_ref, k_ref, v_ref, pqk_ref, a_ref, qk_ref = refs
        else:
            q_ref, k_ref, v_ref, a_ref, qk_ref = refs
            pqk_ref = None
        q = q_ref[0]                                       # (heads, W, D) f32
        k = k_ref[0]
        v = v_ref[0]
        s = jnp.einsum('hqd,hkd->hqk', q, k,
                       preferred_element_type=jnp.float32) * scale
        if has_pqk:
            s = s + pqk_ref[0]
        qk_ref[0] = s                                      # pre-softmax scores -> new prev_qk
        m = jnp.max(s, axis=-1, keepdims=True)
        p = jnp.exp(s - m)
        p = p * pl.reciprocal(jnp.sum(p, axis=-1, keepdims=True), approx=True)
        a_ref[0] = jnp.einsum('hqk,hkd->hqd', p, v,
                              preferred_element_type=jnp.float32)
    return kernel


def attention(q, k, v, prev_qk, scale):
    """q,k,v: (B, heads, W, D) f32; prev_qk: None or (B, heads, W, W) f32."""
    B, NH, Wn, D = q.shape
    has_pqk = prev_qk is not None
    in_specs = [pl.BlockSpec((1, NH, Wn, D), lambda b: (b, 0, 0, 0)) for _ in range(3)]
    args = [q, k, v]
    if has_pqk:
        in_specs.append(pl.BlockSpec((1, NH, Wn, Wn), lambda b: (b, 0, 0, 0)))
        args.append(prev_qk)
    return pl.pallas_call(
        _make_attn_kernel(has_pqk, scale),
        out_shape=(jax.ShapeDtypeStruct((B, NH, Wn, D), jnp.float32),
                   jax.ShapeDtypeStruct((B, NH, Wn, Wn), jnp.float32)),
        grid=(B,),
        in_specs=in_specs,
        out_specs=(pl.BlockSpec((1, NH, Wn, D), lambda b: (b, 0, 0, 0)),
                   pl.BlockSpec((1, NH, Wn, Wn), lambda b: (b, 0, 0, 0))),
        compiler_params=pltpu.CompilerParams(dimension_semantics=("parallel",)),
    )(*args)


# --------------------------------------------------------------------- head layout (JAX)

def to_heads_qkv(qkv_nhwc, num_heads):
    """(B,H,W,3C) -> three (B, heads, W, D) tensors, D = (C//heads)*H, matching the
    PyTorch reshape (B,C,H,W) -> (B, heads, (C//heads)*H, W) -> transpose(2,3)."""
    B, H, W, C3 = qkv_nhwc.shape
    C = C3 // 3
    cw = C // num_heads
    t = jnp.transpose(qkv_nhwc, (0, 2, 3, 1))              # (B, W, 3C, H)
    t = t.reshape(B, W, 3, num_heads, cw, H)
    t = jnp.transpose(t, (2, 0, 3, 1, 4, 5))               # (3, B, heads, W, cw, H)
    t = t.reshape(3, B, num_heads, W, cw * H)
    return t[0], t[1], t[2]


def from_heads(a, H, C):
    """(B, heads, W, D) -> (B, H, W, C) NHWC."""
    B, NH, W, D = a.shape
    cw = C // NH
    t = a.reshape(B, NH, W, cw, H)
    t = jnp.transpose(t, (0, 4, 2, 1, 3))                  # (B, H, W, heads, cw)
    return t.reshape(B, H, W, C)


# ----------------------------------------------------------------------------- parameters

def _conv_param(key, cin, cout):
    kw, kb = jax.random.split(key)
    w = jax.random.normal(kw, (cout, cin, 3, 3), jnp.float32) * (1.0 / math.sqrt(cin * 9))
    b = jax.random.normal(kb, (cout,), jnp.float32) * 0.01
    # (Cout,Cin,3,3) -> (ky,kx,Cin,Cout) -> (9, Cin, Cout): tap-major, matches kernel taps.
    w_mat = jnp.transpose(w, (2, 3, 1, 0)).reshape(9, cin, cout)
    return w_mat, b


def init_params(key, channels, expansion=4):
    keys = jax.random.split(key, 6)
    p = {}
    p["norm1_g"] = jnp.ones((channels,), jnp.float32)
    p["norm1_b"] = jnp.zeros((channels,), jnp.float32)
    p["norm2_g"] = jnp.ones((channels,), jnp.float32)
    p["norm2_b"] = jnp.zeros((channels,), jnp.float32)
    qw, qb = _conv_param(keys[0], channels, channels)
    kw, kb = _conv_param(keys[1], channels, channels)
    vw, vb = _conv_param(keys[2], channels, channels)
    # Fused q/k/v conv: one (9, C, 3C) weight -> one matmul per tap, lane-denser output.
    p["qkv_w"] = jnp.concatenate([qw, kw, vw], axis=-1).astype(jnp.bfloat16)
    p["qkv_b"] = jnp.concatenate([qb, kb, vb], axis=0)
    ow, ob = _conv_param(keys[3], channels, channels)
    p["o_w"], p["o_b"] = ow.astype(jnp.bfloat16), ob
    c1w, c1b = _conv_param(keys[4], channels, channels * expansion)
    p["c1_w"], p["c1_b"] = c1w.astype(jnp.bfloat16), c1b
    c2w, c2b = _conv_param(keys[5], channels * expansion, channels)
    p["c2_w"], p["c2_b"] = c2w.astype(jnp.bfloat16), c2b
    return p


# ----------------------------------------------------------------------------- forward

def encoder_forward(params, x_nchw, prev_qk=None, num_heads=8):
    B, C, H, W = x_nchw.shape
    x = jnp.transpose(x_nchw, (0, 2, 3, 1)).astype(jnp.float32)       # NHWC, f32

    # --- self-attention branch: norm1 fused into the fused q/k/v conv -------------
    qkv = conv3x3(x, params["qkv_w"], params["qkv_b"],
                  norm=(params["norm1_g"], params["norm1_b"]))        # (B,H,W,3C)
    q, k, v = to_heads_qkv(qkv, num_heads)                            # (B,heads,W,D) each

    pqk = None if prev_qk is None else prev_qk.astype(jnp.float32)    # skip zeros DMA
    a, qk = attention(q, k, v, pqk, scale=1.0 / math.sqrt(C))
    a_nhwc = from_heads(a, H, C)
    # out-conv with the residual (x + attn_out) fused; Dropout2d == identity in eval.
    hres = conv3x3(a_nhwc, params["o_w"], params["o_b"], residual=x)

    # --- convolutional FFN branch: norm2 + GELU fused into conv1, residual into conv2
    z1 = conv3x3(hres, params["c1_w"], params["c1_b"],
                 norm=(params["norm2_g"], params["norm2_b"]), gelu=True)
    out_nhwc = conv3x3(z1, params["c2_w"], params["c2_b"], residual=hres)

    return jnp.transpose(out_nhwc, (0, 3, 1, 2)), qk                  # NCHW, new prev_qk


# ----------------------------------------------------------------------------- demo

if __name__ == "__main__":
    B, C, H, W = 2, 8, 8, 16
    NUM_HEADS = 8
    EXPANSION = 4

    key = jax.random.PRNGKey(0)
    kx, kp = jax.random.split(key)
    x = jax.random.normal(kx, (B, C, H, W), jnp.float32)
    params = init_params(kp, C, expansion=EXPANSION)

    fwd = jax.jit(functools.partial(encoder_forward, num_heads=NUM_HEADS))
    out, prev_qk = fwd(params, x)                 # first layer: prev_qk=None variant
    out2, prev_qk2 = fwd(params, out, prev_qk)    # chained layer: prev_qk variant
    jax.block_until_ready((out, prev_qk, out2, prev_qk2))

    assert out.shape == (B, C, H, W) and out2.shape == (B, C, H, W)
    assert prev_qk.shape == (B, NUM_HEADS, W, W) and prev_qk2.shape == (B, NUM_HEADS, W, W)
    print("KERNEL_OK")
</pallas_src>

<mosaic_0001>
module attributes {stable_mosaic.version = 11 : i64} {
  func.func @kernel(%arg0: i32, %arg1: memref<1x10x18x8xbf16, #tpu.memory_space<vmem>>, %arg2: memref<9x8x24xbf16, #tpu.memory_space<vmem>>, %arg3: memref<1x24xf32, #tpu.memory_space<vmem>>, %arg4: memref<1x8xf32, #tpu.memory_space<vmem>>, %arg5: memref<1x8xf32, #tpu.memory_space<vmem>>, %arg6: memref<1x8x16x24xf32, #tpu.memory_space<vmem>>) attributes {dimension_semantics = [#tpu.dimension_semantics<parallel>], iteration_bounds = array<i64: 2>, scalar_prefetch = 0 : i64, scratch_operands = 0 : i64, tpu.core_type = #tpu.core_type<tc>, window_params = [{transform_indices = @transform_0, window_bounds = array<i64: 1, 10, 18, 8>}, {pipeline_mode = #tpu.pipeline_mode<synchronous>, transform_indices = @transform_1, window_bounds = array<i64: 9, 8, 24>}, {pipeline_mode = #tpu.pipeline_mode<synchronous>, transform_indices = @transform_2, window_bounds = array<i64: 1, 24>}, {pipeline_mode = #tpu.pipeline_mode<synchronous>, transform_indices = @transform_3, window_bounds = array<i64: 1, 8>}, {pipeline_mode = #tpu.pipeline_mode<synchronous>, transform_indices = @transform_4, window_bounds = array<i64: 1, 8>}, {transform_indices = @transform_5, window_bounds = array<i64: 1, 8, 16, 24>}]} {
    %c0 = arith.constant 0 : index
    %c0_0 = arith.constant 0 : index
    %c0_1 = arith.constant 0 : index
    %c0_2 = arith.constant 0 : index
    %0 = vector.load %arg1[%c0, %c0_0, %c0_1, %c0_2] : memref<1x10x18x8xbf16, #tpu.memory_space<vmem>>, vector<1x10x18x8xbf16>
    %1 = vector.shape_cast %0 : vector<1x10x18x8xbf16> to vector<10x18x8xbf16>
    %2 = arith.extf %1 : vector<10x18x8xbf16> to vector<10x18x8xf32>
    %cst = arith.constant dense<0.000000e+00> : vector<10x18xf32>
    %3 = vector.multi_reduction <add>, %2, %cst [2] : vector<10x18x8xf32> to vector<10x18xf32>
    %4 = vector.shape_cast %3 : vector<10x18xf32> to vector<10x18x1xf32>
    %cst_3 = arith.constant 8.000000e+00 : f32
    %5 = vector.broadcast %cst_3 : f32 to vector<10x18x1xf32>
    %6 = arith.divf %4, %5 : vector<10x18x1xf32>
    %7 = vector.broadcast %6 : vector<10x18x1xf32> to vector<10x18x8xf32>
    %8 = arith.subf %2, %7 : vector<10x18x8xf32>
    %9 = arith.mulf %8, %8 : vector<10x18x8xf32>
    %cst_4 = arith.constant dense<0.000000e+00> : vector<10x18xf32>
    %10 = vector.multi_reduction <add>, %9, %cst_4 [2] : vector<10x18x8xf32> to vector<10x18xf32>
    %11 = vector.shape_cast %10 : vector<10x18xf32> to vector<10x18x1xf32>
    %cst_5 = arith.constant 8.000000e+00 : f32
    %12 = vector.broadcast %cst_5 : f32 to vector<10x18x1xf32>
    %13 = arith.divf %11, %12 : vector<10x18x1xf32>
    %cst_6 = arith.constant 9.99999974E-6 : f32
    %14 = vector.broadcast %cst_6 : f32 to vector<10x18x1xf32>
    %15 = arith.addf %13, %14 : vector<10x18x1xf32>
    %16 = math.rsqrt %15 : vector<10x18x1xf32>
    %17 = vector.broadcast %16 : vector<10x18x1xf32> to vector<10x18x8xf32>
    %18 = arith.mulf %8, %17 : vector<10x18x8xf32>
    %c0_7 = arith.constant 0 : index
    %c0_8 = arith.constant 0 : index
    %19 = vector.load %arg4[%c0_7, %c0_8] : memref<1x8xf32, #tpu.memory_space<vmem>>, vector<1x8xf32>
    %20 = vector.shape_cast %19 : vector<1x8xf32> to vector<1x1x8xf32>
    %21 = vector.broadcast %20 : vector<1x1x8xf32> to vector<10x18x8xf32>
    %22 = arith.mulf %18, %21 : vector<10x18x8xf32>
    %c0_9 = arith.constant 0 : index
    %c0_10 = arith.constant 0 : index
    %23 = vector.load %arg5[%c0_9, %c0_10] : memref<1x8xf32, #tpu.memory_space<vmem>>, vector<1x8xf32>
    %24 = vector.shape_cast %23 : vector<1x8xf32> to vector<1x1x8xf32>
    %25 = vector.broadcast %24 : vector<1x1x8xf32> to vector<10x18x8xf32>
    %26 = arith.addf %22, %25 : vector<10x18x8xf32>
    %27 = tpu.iota {dimensions = array<i32: 0>} : vector<10x18x8xi32>
    %28 = tpu.iota {dimensions = array<i32: 1>} : vector<10x18x8xi32>
    %c1_i32 = arith.constant 1 : i32
    %29 = vector.broadcast %c1_i32 : i32 to vector<10x18x8xi32>
    %30 = arith.cmpi sge, %27, %29 : vector<10x18x8xi32>
    %c8_i32 = arith.constant 8 : i32
    %31 = vector.broadcast %c8_i32 : i32 to vector<10x18x8xi32>
    %32 = arith.cmpi sle, %27, %31 : vector<10x18x8xi32>
    %33 = arith.andi %30, %32 : vector<10x18x8xi1>
    %c1_i32_11 = arith.constant 1 : i32
    %34 = vector.broadcast %c1_i32_11 : i32 to vector<10x18x8xi32>
    %35 = arith.cmpi sge, %28, %34 : vector<10x18x8xi32>
    %36 = arith.andi %33, %35 : vector<10x18x8xi1>
    %c16_i32 = arith.constant 16 : i32
    %37 = vector.broadcast %c16_i32 : i32 to vector<10x18x8xi32>
    %38 = arith.cmpi sle, %28, %37 : vector<10x18x8xi32>
    %39 = arith.andi %36, %38 : vector<10x18x8xi1>
    %cst_12 = arith.constant 0.000000e+00 : f32
    %40 = vector.broadcast %cst_12 : f32 to vector<10x18x8xf32>
    %41 = arith.select %39, %26, %40 : vector<10x18x8xi1>, vector<10x18x8xf32>
    %cst_13 = arith.constant 0.000000e+00 : f32
    %42 = vector.broadcast %cst_13 : f32 to vector<128x24xf32>
    %43 = vector.extract_strided_slice %41 {offsets = [0, 0, 0], sizes = [8, 16, 8], strides = [1, 1, 1]} : vector<10x18x8xf32> to vector<8x16x8xf32>
    %44 = vector.shape_cast %43 : vector<8x16x8xf32> to vector<128x8xf32>
    %45 = arith.truncf %44 : vector<128x8xf32> to vector<128x8xbf16>
    %c0_14 = arith.constant 0 : index
    %c0_15 = arith.constant 0 : index
    %c0_16 = arith.constant 0 : index
    %46 = vector.load %arg2[%c0_14, %c0_15, %c0_16] : memref<9x8x24xbf16, #tpu.memory_space<vmem>>, vector<1x8x24xbf16>
    %47 = vector.shape_cast %46 : vector<1x8x24xbf16> to vector<8x24xbf16>
    %cst_17 = arith.constant dense<0.000000e+00> : vector<128x24xf32>
    %48 = tpu.matmul %45, %47, %cst_17 {dimension_numbers = #tpu.dot_dimension_numbers<[1], [0], [0], [1], [0, 0, 1, 1], [], []>} : vector<128x8xbf16>, vector<8x24xbf16>, vector<128x24xf32> -> vector<128x24xf32>
    %49 = arith.addf %42, %48 : vector<128x24xf32>
    %50 = vector.extract_strided_slice %41 {offsets = [0, 1, 0], sizes = [8, 16, 8], strides = [1, 1, 1]} : vector<10x18x8xf32> to vector<8x16x8xf32>
    %51 = vector.shape_cast %50 : vector<8x16x8xf32> to vector<128x8xf32>
    %52 = arith.truncf %51 : vector<128x8xf32> to vector<128x8xbf16>
    %c1 = arith.constant 1 : index
    %c0_18 = arith.constant 0 : index
    %c0_19 = arith.constant 0 : index
    %53 = vector.load %arg2[%c1, %c0_18, %c0_19] : memref<9x8x24xbf16, #tpu.memory_space<vmem>>, vector<1x8x24xbf16>
    %54 = vector.shape_cast %53 : vector<1x8x24xbf16> to vector<8x24xbf16>
    %cst_20 = arith.constant dense<0.000000e+00> : vector<128x24xf32>
    %55 = tpu.matmul %52, %54, %cst_20 {dimension_numbers = #tpu.dot_dimension_numbers<[1], [0], [0], [1], [0, 0, 1, 1], [], []>} : vector<128x8xbf16>, vector<8x24xbf16>, vector<128x24xf32> -> vector<128x24xf32>
    %56 = arith.addf %49, %55 : vector<128x24xf32>
    %57 = vector.extract_strided_slice %41 {offsets = [0, 2, 0], sizes = [8, 16, 8], strides = [1, 1, 1]} : vector<10x18x8xf32> to vector<8x16x8xf32>
    %58 = vector.shape_cast %57 : vector<8x16x8xf32> to vector<128x8xf32>
    %59 = arith.truncf %58 : vector<128x8xf32> to vector<128x8xbf16>
    %c2 = arith.constant 2 : index
    %c0_21 = arith.constant 0 : index
    %c0_22 = arith.constant 0 : index
    %60 = vector.load %arg2[%c2, %c0_21, %c0_22] : memref<9x8x24xbf16, #tpu.memory_space<vmem>>, vector<1x8x24xbf16>
    %61 = vector.shape_cast %60 : vector<1x8x24xbf16> to vector<8x24xbf16>
    %cst_23 = arith.constant dense<0.000000e+00> : vector<128x24xf32>
    %62 = tpu.matmul %59, %61, %cst_23 {dimension_numbers = #tpu.dot_dimension_numbers<[1], [0], [0], [1], [0, 0, 1, 1], [], []>} : vector<128x8xbf16>, vector<8x24xbf16>, vector<128x24xf32> -> vector<128x24xf32>
    %63 = arith.addf %56, %62 : vector<128x24xf32>
    %64 = vector.extract_strided_slice %41 {offsets = [1, 0, 0], sizes = [8, 16, 8], strides = [1, 1, 1]} : vector<10x18x8xf32> to vector<8x16x8xf32>
    %65 = vector.shape_cast %64 : vector<8x16x8xf32> to vector<128x8xf32>
    %66 = arith.truncf %65 : vector<128x8xf32> to vector<128x8xbf16>
    %c3 = arith.constant 3 : index
    %c0_24 = arith.constant 0 : index
    %c0_25 = arith.constant 0 : index
    %67 = vector.load %arg2[%c3, %c0_24, %c0_25] : memref<9x8x24xbf16, #tpu.memory_space<vmem>>, vector<1x8x24xbf16>
    %68 = vector.shape_cast %67 : vector<1x8x24xbf16> to vector<8x24xbf16>
    %cst_26 = arith.constant dense<0.000000e+00> : vector<128x24xf32>
    %69 = tpu.matmul %66, %68, %cst_26 {dimension_numbers = #tpu.dot_dimension_numbers<[1], [0], [0], [1], [0, 0, 1, 1], [], []>} : vector<128x8xbf16>, vector<8x24xbf16>, vector<128x24xf32> -> vector<128x24xf32>
    %70 = arith.addf %63, %69 : vector<128x24xf32>
    %71 = vector.extract_strided_slice %41 {offsets = [1, 1, 0], sizes = [8, 16, 8], strides = [1, 1, 1]} : vector<10x18x8xf32> to vector<8x16x8xf32>
    %72 = vector.shape_cast %71 : vector<8x16x8xf32> to vector<128x8xf32>
    %73 = arith.truncf %72 : vector<128x8xf32> to vector<128x8xbf16>
    %c4 = arith.constant 4 : index
    %c0_27 = arith.constant 0 : index
    %c0_28 = arith.constant 0 : index
    %74 = vector.load %arg2[%c4, %c0_27, %c0_28] : memref<9x8x24xbf16, #tpu.memory_space<vmem>>, vector<1x8x24xbf16>
    %75 = vector.shape_cast %74 : vector<1x8x24xbf16> to vector<8x24xbf16>
    %cst_29 = arith.constant dense<0.000000e+00> : vector<128x24xf32>
    %76 = tpu.matmul %73, %75, %cst_29 {dimension_numbers = #tpu.dot_dimension_numbers<[1], [0], [0], [1], [0, 0, 1, 1], [], []>} : vector<128x8xbf16>, vector<8x24xbf16>, vector<128x24xf32> -> vector<128x24xf32>
    %77 = arith.addf %70, %76 : vector<128x24xf32>
    %78 = vector.extract_strided_slice %41 {offsets = [1, 2, 0], sizes = [8, 16, 8], strides = [1, 1, 1]} : vector<10x18x8xf32> to vector<8x16x8xf32>
    %79 = vector.shape_cast %78 : vector<8x16x8xf32> to vector<128x8xf32>
    %80 = arith.truncf %79 : vector<128x8xf32> to vector<128x8xbf16>
    %c5 = arith.constant 5 : index
    %c0_30 = arith.constant 0 : index
    %c0_31 = arith.constant 0 : index
    %81 = vector.load %arg2[%c5, %c0_30, %c0_31] : memref<9x8x24xbf16, #tpu.memory_space<vmem>>, vector<1x8x24xbf16>
    %82 = vector.shape_cast %81 : vector<1x8x24xbf16> to vector<8x24xbf16>
    %cst_32 = arith.constant dense<0.000000e+00> : vector<128x24xf32>
    %83 = tpu.matmul %80, %82, %cst_32 {dimension_numbers = #tpu.dot_dimension_numbers<[1], [0], [0], [1], [0, 0, 1, 1], [], []>} : vector<128x8xbf16>, vector<8x24xbf16>, vector<128x24xf32> -> vector<128x24xf32>
    %84 = arith.addf %77, %83 : vector<128x24xf32>
    %85 = vector.extract_strided_slice %41 {offsets = [2, 0, 0], sizes = [8, 16, 8], strides = [1, 1, 1]} : vector<10x18x8xf32> to vector<8x16x8xf32>
    %86 = vector.shape_cast %85 : vector<8x16x8xf32> to vector<128x8xf32>
    %87 = arith.truncf %86 : vector<128x8xf32> to vector<128x8xbf16>
    %c6 = arith.constant 6 : index
    %c0_33 = arith.constant 0 : index
    %c0_34 = arith.constant 0 : index
    %88 = vector.load %arg2[%c6, %c0_33, %c0_34] : memref<9x8x24xbf16, #tpu.memory_space<vmem>>, vector<1x8x24xbf16>
    %89 = vector.shape_cast %88 : vector<1x8x24xbf16> to vector<8x24xbf16>
    %cst_35 = arith.constant dense<0.000000e+00> : vector<128x24xf32>
    %90 = tpu.matmul %87, %89, %cst_35 {dimension_numbers = #tpu.dot_dimension_numbers<[1], [0], [0], [1], [0, 0, 1, 1], [], []>} : vector<128x8xbf16>, vector<8x24xbf16>, vector<128x24xf32> -> vector<128x24xf32>
    %91 = arith.addf %84, %90 : vector<128x24xf32>
    %92 = vector.extract_strided_slice %41 {offsets = [2, 1, 0], sizes = [8, 16, 8], strides = [1, 1, 1]} : vector<10x18x8xf32> to vector<8x16x8xf32>
    %93 = vector.shape_cast %92 : vector<8x16x8xf32> to vector<128x8xf32>
    %94 = arith.truncf %93 : vector<128x8xf32> to vector<128x8xbf16>
    %c7 = arith.constant 7 : index
    %c0_36 = arith.constant 0 : index
    %c0_37 = arith.constant 0 : index
    %95 = vector.load %arg2[%c7, %c0_36, %c0_37] : memref<9x8x24xbf16, #tpu.memory_space<vmem>>, vector<1x8x24xbf16>
    %96 = vector.shape_cast %95 : vector<1x8x24xbf16> to vector<8x24xbf16>
    %cst_38 = arith.constant dense<0.000000e+00> : vector<128x24xf32>
    %97 = tpu.matmul %94, %96, %cst_38 {dimension_numbers = #tpu.dot_dimension_numbers<[1], [0], [0], [1], [0, 0, 1, 1], [], []>} : vector<128x8xbf16>, vector<8x24xbf16>, vector<128x24xf32> -> vector<128x24xf32>
    %98 = arith.addf %91, %97 : vector<128x24xf32>
    %99 = vector.extract_strided_slice %41 {offsets = [2, 2, 0], sizes = [8, 16, 8], strides = [1, 1, 1]} : vector<10x18x8xf32> to vector<8x16x8xf32>
    %100 = vector.shape_cast %99 : vector<8x16x8xf32> to vector<128x8xf32>
    %101 = arith.truncf %100 : vector<128x8xf32> to vector<128x8xbf16>
    %c8 = arith.constant 8 : index
    %c0_39 = arith.constant 0 : index
    %c0_40 = arith.constant 0 : index
    %102 = vector.load %arg2[%c8, %c0_39, %c0_40] : memref<9x8x24xbf16, #tpu.memory_space<vmem>>, vector<1x8x24xbf16>
    %103 = vector.shape_cast %102 : vector<1x8x24xbf16> to vector<8x24xbf16>
    %cst_41 = arith.constant dense<0.000000e+00> : vector<128x24xf32>
    %104 = tpu.matmul %101, %103, %cst_41 {dimension_numbers = #tpu.dot_dimension_numbers<[1], [0], [0], [1], [0, 0, 1, 1], [], []>} : vector<128x8xbf16>, vector<8x24xbf16>, vector<128x24xf32> -> vector<128x24xf32>
    %105 = arith.addf %98, %104 : vector<128x24xf32>
    %c0_42 = arith.constant 0 : index
    %c0_43 = arith.constant 0 : index
    %106 = vector.load %arg3[%c0_42, %c0_43] : memref<1x24xf32, #tpu.memory_space<vmem>>, vector<1x24xf32>
    %107 = vector.broadcast %106 : vector<1x24xf32> to vector<128x24xf32>
    %108 = arith.addf %105, %107 : vector<128x24xf32>
    %109 = vector.shape_cast %108 : vector<128x24xf32> to vector<8x16x24xf32>
    %c0_44 = arith.constant 0 : index
    %c0_45 = arith.constant 0 : index
    %c0_46 = arith.constant 0 : index
    %c0_47 = arith.constant 0 : index
    %110 = vector.load %arg6[%c0_44, %c0_45, %c0_46, %c0_47] : memref<1x8x16x24xf32, #tpu.memory_space<vmem>>, vector<1x8x16x24xf32>
    %111 = vector.shape_cast %110 : vector<1x8x16x24xf32> to vector<8x16x24xf32>
    %112 = vector.shape_cast %109 : vector<8x16x24xf32> to vector<1x8x16x24xf32>
    tpu.vector_store %arg6[%c0_44, %c0_45, %c0_46, %c0_47], %112 {strides = array<i32>} : memref<1x8x16x24xf32, #tpu.memory_space<vmem>>, vector<1x8x16x24xf32>,
    return
  }
  func.func @transform_0(%arg0: i32) -> (i32, i32, i32, i32) {
    %c0_i32 = arith.constant 0 : i32
    %c0_i32_0 = arith.constant 0 : i32
    %c0_i32_1 = arith.constant 0 : i32
    %c0_i32_2 = arith.constant 0 : i32
    return %arg0, %c0_i32, %c0_i32_0, %c0_i32_1 : i32, i32, i32, i32
  }
  func.func @transform_1(%arg0: i32) -> (i32, i32, i32) {
    %c0_i32 = arith.constant 0 : i32
    %c0_i32_0 = arith.constant 0 : i32
    %c0_i32_1 = arith.constant 0 : i32
    %c0_i32_2 = arith.constant 0 : i32
    return %c0_i32, %c0_i32_0, %c0_i32_1 : i32, i32, i32
  }
  func.func @transform_2(%arg0: i32) -> (i32, i32) {
    %c0_i32 = arith.constant 0 : i32
    %c0_i32_0 = arith.constant 0 : i32
    %c0_i32_1 = arith.constant 0 : i32
    return %c0_i32, %c0_i32_0 : i32, i32
  }
  func.func @transform_3(%arg0: i32) -> (i32, i32) {
    %c0_i32 = arith.constant 0 : i32
    %c0_i32_0 = arith.constant 0 : i32
    %c0_i32_1 = arith.constant 0 : i32
    return %c0_i32, %c0_i32_0 : i32, i32
  }
  func.func @transform_4(%arg0: i32) -> (i32, i32) {
    %c0_i32 = arith.constant 0 : i32
    %c0_i32_0 = arith.constant 0 : i32
    %c0_i32_1 = arith.constant 0 : i32
    return %c0_i32, %c0_i32_0 : i32, i32
  }
  func.func @transform_5(%arg0: i32) -> (i32, i32, i32, i32) {
    %c0_i32 = arith.constant 0 : i32
    %c0_i32_0 = arith.constant 0 : i32
    %c0_i32_1 = arith.constant 0 : i32
    %c0_i32_2 = arith.constant 0 : i32
    return %arg0, %c0_i32, %c0_i32_0, %c0_i32_1 : i32, i32, i32, i32
  }
}

module attributes {stable_mosaic.version = 11 : i64} {
  func.func @kernel(%arg0: i32, %arg1: memref<1x8x16x8xf32, #tpu.memory_space<vmem>>, %arg2: memref<1x8x16x8xf32, #tpu.memory_space<vmem>>, %arg3: memref<1x8x16x8xf32, #tpu.memory_space<vmem>>, %arg4: memref<1x8x16x8xf32, #tpu.memory_space<vmem>>, %arg5: memref<1x8x16x16xf32, #tpu.memory_space<vmem>>) attributes {dimension_semantics = [#tpu.dimension_semantics<parallel>], iteration_bounds = array<i64: 2>, scalar_prefetch = 0 : i64, scratch_operands = 0 : i64, tpu.core_type = #tpu.core_type<tc>, window_params = [{transform_indices = @transform_0, window_bounds = array<i64: 1, 8, 16, 8>}, {transform_indices = @transform_1, window_bounds = array<i64: 1, 8, 16, 8>}, {transform_indices = @transform_2, window_bounds = array<i64: 1, 8, 16, 8>}, {transform_indices = @transform_3, window_bounds = array<i64: 1, 8, 16, 8>}, {transform_indices = @transform_4, window_bounds = array<i64: 1, 8, 16, 16>}]} {
    %c0 = arith.constant 0 : index
    %c0_0 = arith.constant 0 : index
    %c0_1 = arith.constant 0 : index
    %c0_2 = arith.constant 0 : index
    %0 = vector.load %arg1[%c0, %c0_0, %c0_1, %c0_2] : memref<1x8x16x8xf32, #tpu.memory_space<vmem>>, vector<1x8x16x8xf32>
    %1 = vector.shape_cast %0 : vector<1x8x16x8xf32> to vector<8x16x8xf32>
    %c0_3 = arith.constant 0 : index
    %c0_4 = arith.constant 0 : index
    %c0_5 = arith.constant 0 : index
    %c0_6 = arith.constant 0 : index
    %2 = vector.load %arg2[%c0_3, %c0_4, %c0_5, %c0_6] : memref<1x8x16x8xf32, #tpu.memory_space<vmem>>, vector<1x8x16x8xf32>
    %3 = vector.shape_cast %2 : vector<1x8x16x8xf32> to vector<8x16x8xf32>
    %c0_7 = arith.constant 0 : index
    %c0_8 = arith.constant 0 : index
    %c0_9 = arith.constant 0 : index
    %c0_10 = arith.constant 0 : index
    %4 = vector.load %arg3[%c0_7, %c0_8, %c0_9, %c0_10] : memref<1x8x16x8xf32, #tpu.memory_space<vmem>>, vector<1x8x16x8xf32>
    %5 = vector.shape_cast %4 : vector<1x8x16x8xf32> to vector<8x16x8xf32>
    "tpu.trace_start"() <{level = 10 : i32, message = "hqd,hkd->hqk"}> : () -> ()
    %cst = arith.constant dense<0.000000e+00> : vector<8x16x16xf32>
    %6 = tpu.matmul %1, %3, %cst {dimension_numbers = #tpu.dot_dimension_numbers<[2], [2], [1], [1], [0, 0, 0, 1, 1, 1], [0], [0]>} : vector<8x16x8xf32>, vector<8x16x8xf32>, vector<8x16x16xf32> -> vector<8x16x16xf32>
    "tpu.trace_stop"() : () -> ()
    %cst_11 = arith.constant 0.353553385 : f32
    %7 = vector.broadcast %cst_11 : f32 to vector<8x16x16xf32>
    %8 = arith.mulf %6, %7 : vector<8x16x16xf32>
    %c0_12 = arith.constant 0 : index
    %c0_13 = arith.constant 0 : index
    %c0_14 = arith.constant 0 : index
    %c0_15 = arith.constant 0 : index
    %9 = vector.load %arg5[%c0_12, %c0_13, %c0_14, %c0_15] : memref<1x8x16x16xf32, #tpu.memory_space<vmem>>, vector<1x8x16x16xf32>
    %10 = vector.shape_cast %9 : vector<1x8x16x16xf32> to vector<8x16x16xf32>
    %11 = vector.shape_cast %8 : vector<8x16x16xf32> to vector<1x8x16x16xf32>
    tpu.vector_store %arg5[%c0_12, %c0_13, %c0_14, %c0_15], %11 {strides = array<i32>} : memref<1x8x16x16xf32, #tpu.memory_space<vmem>>, vector<1x8x16x16xf32>,
    %cst_16 = arith.constant dense<0xFF800000> : vector<8x16xf32>
    %12 = vector.multi_reduction <maximumf>, %8, %cst_16 [2] : vector<8x16x16xf32> to vector<8x16xf32>
    %13 = vector.shape_cast %12 : vector<8x16xf32> to vector<8x16x1xf32>
    %14 = vector.broadcast %13 : vector<8x16x1xf32> to vector<8x16x16xf32>
    %15 = arith.subf %8, %14 : vector<8x16x16xf32>
    %16 = math.exp %15 : vector<8x16x16xf32>
    %cst_17 = arith.constant dense<0.000000e+00> : vector<8x16xf32>
    %17 = vector.multi_reduction <add>, %16, %cst_17 [2] : vector<8x16x16xf32> to vector<8x16xf32>
    %18 = vector.shape_cast %17 : vector<8x16xf32> to vector<8x16x1xf32>
    %19 = tpu.reciprocal %18 {approx = true} : vector<8x16x1xf32> -> vector<8x16x1xf32>
    %20 = vector.broadcast %19 : vector<8x16x1xf32> to vector<8x16x16xf32>
    %21 = arith.mulf %16, %20 : vector<8x16x16xf32>
    "tpu.trace_start"() <{level = 10 : i32, message = "hqk,hkd->hqd"}> : () -> ()
    %cst_18 = arith.constant dense<0.000000e+00> : vector<8x16x8xf32>
    %22 = tpu.matmul %21, %5, %cst_18 {dimension_numbers = #tpu.dot_dimension_numbers<[2], [1], [1], [2], [0, 0, 0, 1, 1, 2], [0], [0]>} : vector<8x16x16xf32>, vector<8x16x8xf32>, vector<8x16x8xf32> -> vector<8x16x8xf32>
    "tpu.trace_stop"() : () -> ()
    %c0_19 = arith.constant 0 : index
    %c0_20 = arith.constant 0 : index
    %c0_21 = arith.constant 0 : index
    %c0_22 = arith.constant 0 : index
    %23 = vector.load %arg4[%c0_19, %c0_20, %c0_21, %c0_22] : memref<1x8x16x8xf32, #tpu.memory_space<vmem>>, vector<1x8x16x8xf32>
    %24 = vector.shape_cast %23 : vector<1x8x16x8xf32> to vector<8x16x8xf32>
    %25 = vector.shape_cast %22 : vector<8x16x8xf32> to vector<1x8x16x8xf32>
    tpu.vector_store %arg4[%c0_19, %c0_20, %c0_21, %c0_22], %25 {strides = array<i32>} : memref<1x8x16x8xf32, #tpu.memory_space<vmem>>, vector<1x8x16x8xf32>,
    return
  }
  func.func @transform_0(%arg0: i32) -> (i32, i32, i32, i32) {
    %c0_i32 = arith.constant 0 : i32
    %c0_i32_0 = arith.constant 0 : i32
    %c0_i32_1 = arith.constant 0 : i32
    %c0_i32_2 = arith.constant 0 : i32
    return %arg0, %c0_i32, %c0_i32_0, %c0_i32_1 : i32, i32, i32, i32
  }
  func.func @transform_1(%arg0: i32) -> (i32, i32, i32, i32) {
    %c0_i32 = arith.constant 0 : i32
    %c0_i32_0 = arith.constant 0 : i32
    %c0_i32_1 = arith.constant 0 : i32
    %c0_i32_2 = arith.constant 0 : i32
    return %arg0, %c0_i32, %c0_i32_0, %c0_i32_1 : i32, i32, i32, i32
  }
  func.func @transform_2(%arg0: i32) -> (i32, i32, i32, i32) {
    %c0_i32 = arith.constant 0 : i32
    %c0_i32_0 = arith.constant 0 : i32
    %c0_i32_1 = arith.constant 0 : i32
    %c0_i32_2 = arith.constant 0 : i32
    return %arg0, %c0_i32, %c0_i32_0, %c0_i32_1 : i32, i32, i32, i32
  }
  func.func @transform_3(%arg0: i32) -> (i32, i32, i32, i32) {
    %c0_i32 = arith.constant 0 : i32
    %c0_i32_0 = arith.constant 0 : i32
    %c0_i32_1 = arith.constant 0 : i32
    %c0_i32_2 = arith.constant 0 : i32
    return %arg0, %c0_i32, %c0_i32_0, %c0_i32_1 : i32, i32, i32, i32
  }
  func.func @transform_4(%arg0: i32) -> (i32, i32, i32, i32) {
    %c0_i32 = arith.constant 0 : i32
    %c0_i32_0 = arith.constant 0 : i32
    %c0_i32_1 = arith.constant 0 : i32
    %c0_i32_2 = arith.constant 0 : i32
    return %arg0, %c0_i32, %c0_i32_0, %c0_i32_1 : i32, i32, i32, i32
  }
}

module attributes {stable_mosaic.version = 11 : i64} {
  func.func @kernel(%arg0: i32, %arg1: memref<1x10x18x8xbf16, #tpu.memory_space<vmem>>, %arg2: memref<9x8x8xbf16, #tpu.memory_space<vmem>>, %arg3: memref<1x8xf32, #tpu.memory_space<vmem>>, %arg4: memref<1x8x16x8xf32, #tpu.memory_space<vmem>>, %arg5: memref<1x8x16x8xf32, #tpu.memory_space<vmem>>) attributes {dimension_semantics = [#tpu.dimension_semantics<parallel>], iteration_bounds = array<i64: 2>, scalar_prefetch = 0 : i64, scratch_operands = 0 : i64, tpu.core_type = #tpu.core_type<tc>, window_params = [{transform_indices = @transform_0, window_bounds = array<i64: 1, 10, 18, 8>}, {pipeline_mode = #tpu.pipeline_mode<synchronous>, transform_indices = @transform_1, window_bounds = array<i64: 9, 8, 8>}, {pipeline_mode = #tpu.pipeline_mode<synchronous>, transform_indices = @transform_2, window_bounds = array<i64: 1, 8>}, {transform_indices = @transform_3, window_bounds = array<i64: 1, 8, 16, 8>}, {transform_indices = @transform_4, window_bounds = array<i64: 1, 8, 16, 8>}]} {
    %c0 = arith.constant 0 : index
    %c0_0 = arith.constant 0 : index
    %c0_1 = arith.constant 0 : index
    %c0_2 = arith.constant 0 : index
    %0 = vector.load %arg1[%c0, %c0_0, %c0_1, %c0_2] : memref<1x10x18x8xbf16, #tpu.memory_space<vmem>>, vector<1x10x18x8xbf16>
    %1 = vector.shape_cast %0 : vector<1x10x18x8xbf16> to vector<10x18x8xbf16>
    %2 = arith.extf %1 : vector<10x18x8xbf16> to vector<10x18x8xf32>
    %cst = arith.constant 0.000000e+00 : f32
    %3 = vector.broadcast %cst : f32 to vector<128x8xf32>
    %4 = vector.extract_strided_slice %2 {offsets = [0, 0, 0], sizes = [8, 16, 8], strides = [1, 1, 1]} : vector<10x18x8xf32> to vector<8x16x8xf32>
    %5 = vector.shape_cast %4 : vector<8x16x8xf32> to vector<128x8xf32>
    %6 = arith.truncf %5 : vector<128x8xf32> to vector<128x8xbf16>
    %c0_3 = arith.constant 0 : index
    %c0_4 = arith.constant 0 : index
    %c0_5 = arith.constant 0 : index
    %7 = vector.load %arg2[%c0_3, %c0_4, %c0_5] : memref<9x8x8xbf16, #tpu.memory_space<vmem>>, vector<1x8x8xbf16>
    %8 = vector.shape_cast %7 : vector<1x8x8xbf16> to vector<8x8xbf16>
    %cst_6 = arith.constant dense<0.000000e+00> : vector<128x8xf32>
    %9 = tpu.matmul %6, %8, %cst_6 {dimension_numbers = #tpu.dot_dimension_numbers<[1], [0], [0], [1], [0, 0, 1, 1], [], []>} : vector<128x8xbf16>, vector<8x8xbf16>, vector<128x8xf32> -> vector<128x8xf32>
    %10 = arith.addf %3, %9 : vector<128x8xf32>
    %11 = vector.extract_strided_slice %2 {offsets = [0, 1, 0], sizes = [8, 16, 8], strides = [1, 1, 1]} : vector<10x18x8xf32> to vector<8x16x8xf32>
    %12 = vector.shape_cast %11 : vector<8x16x8xf32> to vector<128x8xf32>
    %13 = arith.truncf %12 : vector<128x8xf32> to vector<128x8xbf16>
    %c1 = arith.constant 1 : index
    %c0_7 = arith.constant 0 : index
    %c0_8 = arith.constant 0 : index
    %14 = vector.load %arg2[%c1, %c0_7, %c0_8] : memref<9x8x8xbf16, #tpu.memory_space<vmem>>, vector<1x8x8xbf16>
    %15 = vector.shape_cast %14 : vector<1x8x8xbf16> to vector<8x8xbf16>
    %cst_9 = arith.constant dense<0.000000e+00> : vector<128x8xf32>
    %16 = tpu.matmul %13, %15, %cst_9 {dimension_numbers = #tpu.dot_dimension_numbers<[1], [0], [0], [1], [0, 0, 1, 1], [], []>} : vector<128x8xbf16>, vector<8x8xbf16>, vector<128x8xf32> -> vector<128x8xf32>
    %17 = arith.addf %10, %16 : vector<128x8xf32>
    %18 = vector.extract_strided_slice %2 {offsets = [0, 2, 0], sizes = [8, 16, 8], strides = [1, 1, 1]} : vector<10x18x8xf32> to vector<8x16x8xf32>
    %19 = vector.shape_cast %18 : vector<8x16x8xf32> to vector<128x8xf32>
    %20 = arith.truncf %19 : vector<128x8xf32> to vector<128x8xbf16>
    %c2 = arith.constant 2 : index
    %c0_10 = arith.constant 0 : index
    %c0_11 = arith.constant 0 : index
    %21 = vector.load %arg2[%c2, %c0_10, %c0_11] : memref<9x8x8xbf16, #tpu.memory_space<vmem>>, vector<1x8x8xbf16>
    %22 = vector.shape_cast %21 : vector<1x8x8xbf16> to vector<8x8xbf16>
    %cst_12 = arith.constant dense<0.000000e+00> : vector<128x8xf32>
    %23 = tpu.matmul %20, %22, %cst_12 {dimension_numbers = #tpu.dot_dimension_numbers<[1], [0], [0], [1], [0, 0, 1, 1], [], []>} : vector<128x8xbf16>, vector<8x8xbf16>, vector<128x8xf32> -> vector<128x8xf32>
    %24 = arith.addf %17, %23 : vector<128x8xf32>
    %25 = vector.extract_strided_slice %2 {offsets = [1, 0, 0], sizes = [8, 16, 8], strides = [1, 1, 1]} : vector<10x18x8xf32> to vector<8x16x8xf32>
    %26 = vector.shape_cast %25 : vector<8x16x8xf32> to vector<128x8xf32>
    %27 = arith.truncf %26 : vector<128x8xf32> to vector<128x8xbf16>
    %c3 = arith.constant 3 : index
    %c0_13 = arith.constant 0 : index
    %c0_14 = arith.constant 0 : index
    %28 = vector.load %arg2[%c3, %c0_13, %c0_14] : memref<9x8x8xbf16, #tpu.memory_space<vmem>>, vector<1x8x8xbf16>
    %29 = vector.shape_cast %28 : vector<1x8x8xbf16> to vector<8x8xbf16>
    %cst_15 = arith.constant dense<0.000000e+00> : vector<128x8xf32>
    %30 = tpu.matmul %27, %29, %cst_15 {dimension_numbers = #tpu.dot_dimension_numbers<[1], [0], [0], [1], [0, 0, 1, 1], [], []>} : vector<128x8xbf16>, vector<8x8xbf16>, vector<128x8xf32> -> vector<128x8xf32>
    %31 = arith.addf %24, %30 : vector<128x8xf32>
    %32 = vector.extract_strided_slice %2 {offsets = [1, 1, 0], sizes = [8, 16, 8], strides = [1, 1, 1]} : vector<10x18x8xf32> to vector<8x16x8xf32>
    %33 = vector.shape_cast %32 : vector<8x16x8xf32> to vector<128x8xf32>
    %34 = arith.truncf %33 : vector<128x8xf32> to vector<128x8xbf16>
    %c4 = arith.constant 4 : index
    %c0_16 = arith.constant 0 : index
    %c0_17 = arith.constant 0 : index
    %35 = vector.load %arg2[%c4, %c0_16, %c0_17] : memref<9x8x8xbf16, #tpu.memory_space<vmem>>, vector<1x8x8xbf16>
    %36 = vector.shape_cast %35 : vector<1x8x8xbf16> to vector<8x8xbf16>
    %cst_18 = arith.constant dense<0.000000e+00> : vector<128x8xf32>
    %37 = tpu.matmul %34, %36, %cst_18 {dimension_numbers = #tpu.dot_dimension_numbers<[1], [0], [0], [1], [0, 0, 1, 1], [], []>} : vector<128x8xbf16>, vector<8x8xbf16>, vector<128x8xf32> -> vector<128x8xf32>
    %38 = arith.addf %31, %37 : vector<128x8xf32>
    %39 = vector.extract_strided_slice %2 {offsets = [1, 2, 0], sizes = [8, 16, 8], strides = [1, 1, 1]} : vector<10x18x8xf32> to vector<8x16x8xf32>
    %40 = vector.shape_cast %39 : vector<8x16x8xf32> to vector<128x8xf32>
    %41 = arith.truncf %40 : vector<128x8xf32> to vector<128x8xbf16>
    %c5 = arith.constant 5 : index
    %c0_19 = arith.constant 0 : index
    %c0_20 = arith.constant 0 : index
    %42 = vector.load %arg2[%c5, %c0_19, %c0_20] : memref<9x8x8xbf16, #tpu.memory_space<vmem>>, vector<1x8x8xbf16>
    %43 = vector.shape_cast %42 : vector<1x8x8xbf16> to vector<8x8xbf16>
    %cst_21 = arith.constant dense<0.000000e+00> : vector<128x8xf32>
    %44 = tpu.matmul %41, %43, %cst_21 {dimension_numbers = #tpu.dot_dimension_numbers<[1], [0], [0], [1], [0, 0, 1, 1], [], []>} : vector<128x8xbf16>, vector<8x8xbf16>, vector<128x8xf32> -> vector<128x8xf32>
    %45 = arith.addf %38, %44 : vector<128x8xf32>
    %46 = vector.extract_strided_slice %2 {offsets = [2, 0, 0], sizes = [8, 16, 8], strides = [1, 1, 1]} : vector<10x18x8xf32> to vector<8x16x8xf32>
    %47 = vector.shape_cast %46 : vector<8x16x8xf32> to vector<128x8xf32>
    %48 = arith.truncf %47 : vector<128x8xf32> to vector<128x8xbf16>
    %c6 = arith.constant 6 : index
    %c0_22 = arith.constant 0 : index
    %c0_23 = arith.constant 0 : index
    %49 = vector.load %arg2[%c6, %c0_22, %c0_23] : memref<9x8x8xbf16, #tpu.memory_space<vmem>>, vector<1x8x8xbf16>
    %50 = vector.shape_cast %49 : vector<1x8x8xbf16> to vector<8x8xbf16>
    %cst_24 = arith.constant dense<0.000000e+00> : vector<128x8xf32>
    %51 = tpu.matmul %48, %50, %cst_24 {dimension_numbers = #tpu.dot_dimension_numbers<[1], [0], [0], [1], [0, 0, 1, 1], [], []>} : vector<128x8xbf16>, vector<8x8xbf16>, vector<128x8xf32> -> vector<128x8xf32>
    %52 = arith.addf %45, %51 : vector<128x8xf32>
    %53 = vector.extract_strided_slice %2 {offsets = [2, 1, 0], sizes = [8, 16, 8], strides = [1, 1, 1]} : vector<10x18x8xf32> to vector<8x16x8xf32>
    %54 = vector.shape_cast %53 : vector<8x16x8xf32> to vector<128x8xf32>
    %55 = arith.truncf %54 : vector<128x8xf32> to vector<128x8xbf16>
    %c7 = arith.constant 7 : index
    %c0_25 = arith.constant 0 : index
    %c0_26 = arith.constant 0 : index
    %56 = vector.load %arg2[%c7, %c0_25, %c0_26] : memref<9x8x8xbf16, #tpu.memory_space<vmem>>, vector<1x8x8xbf16>
    %57 = vector.shape_cast %56 : vector<1x8x8xbf16> to vector<8x8xbf16>
    %cst_27 = arith.constant dense<0.000000e+00> : vector<128x8xf32>
    %58 = tpu.matmul %55, %57, %cst_27 {dimension_numbers = #tpu.dot_dimension_numbers<[1], [0], [0], [1], [0, 0, 1, 1], [], []>} : vector<128x8xbf16>, vector<8x8xbf16>, vector<128x8xf32> -> vector<128x8xf32>
    %59 = arith.addf %52, %58 : vector<128x8xf32>
    %60 = vector.extract_strided_slice %2 {offsets = [2, 2, 0], sizes = [8, 16, 8], strides = [1, 1, 1]} : vector<10x18x8xf32> to vector<8x16x8xf32>
    %61 = vector.shape_cast %60 : vector<8x16x8xf32> to vector<128x8xf32>
    %62 = arith.truncf %61 : vector<128x8xf32> to vector<128x8xbf16>
    %c8 = arith.constant 8 : index
    %c0_28 = arith.constant 0 : index
    %c0_29 = arith.constant 0 : index
    %63 = vector.load %arg2[%c8, %c0_28, %c0_29] : memref<9x8x8xbf16, #tpu.memory_space<vmem>>, vector<1x8x8xbf16>
    %64 = vector.shape_cast %63 : vector<1x8x8xbf16> to vector<8x8xbf16>
    %cst_30 = arith.constant dense<0.000000e+00> : vector<128x8xf32>
    %65 = tpu.matmul %62, %64, %cst_30 {dimension_numbers = #tpu.dot_dimension_numbers<[1], [0], [0], [1], [0, 0, 1, 1], [], []>} : vector<128x8xbf16>, vector<8x8xbf16>, vector<128x8xf32> -> vector<128x8xf32>
    %66 = arith.addf %59, %65 : vector<128x8xf32>
    %c0_31 = arith.constant 0 : index
    %c0_32 = arith.constant 0 : index
    %67 = vector.load %arg3[%c0_31, %c0_32] : memref<1x8xf32, #tpu.memory_space<vmem>>, vector<1x8xf32>
    %68 = vector.broadcast %67 : vector<1x8xf32> to vector<128x8xf32>
    %69 = arith.addf %66, %68 : vector<128x8xf32>
    %70 = vector.shape_cast %69 : vector<128x8xf32> to vector<8x16x8xf32>
    %c0_33 = arith.constant 0 : index
    %c0_34 = arith.constant 0 : index
    %c0_35 = arith.constant 0 : index
    %c0_36 = arith.constant 0 : index
    %71 = vector.load %arg4[%c0_33, %c0_34, %c0_35, %c0_36] : memref<1x8x16x8xf32, #tpu.memory_space<vmem>>, vector<1x8x16x8xf32>
    %72 = vector.shape_cast %71 : vector<1x8x16x8xf32> to vector<8x16x8xf32>
    %73 = arith.addf %70, %72 : vector<8x16x8xf32>
    %c0_37 = arith.constant 0 : index
    %c0_38 = arith.constant 0 : index
    %c0_39 = arith.constant 0 : index
    %c0_40 = arith.constant 0 : index
    %74 = vector.load %arg5[%c0_37, %c0_38, %c0_39, %c0_40] : memref<1x8x16x8xf32, #tpu.memory_space<vmem>>, vector<1x8x16x8xf32>
    %75 = vector.shape_cast %74 : vector<1x8x16x8xf32> to vector<8x16x8xf32>
    %76 = vector.shape_cast %73 : vector<8x16x8xf32> to vector<1x8x16x8xf32>
    tpu.vector_store %arg5[%c0_37, %c0_38, %c0_39, %c0_40], %76 {strides = array<i32>} : memref<1x8x16x8xf32, #tpu.memory_space<vmem>>, vector<1x8x16x8xf32>,
    return
  }
  func.func @transform_0(%arg0: i32) -> (i32, i32, i32, i32) {
    %c0_i32 = arith.constant 0 : i32
    %c0_i32_0 = arith.constant 0 : i32
    %c0_i32_1 = arith.constant 0 : i32
    %c0_i32_2 = arith.constant 0 : i32
    return %arg0, %c0_i32, %c0_i32_0, %c0_i32_1 : i32, i32, i32, i32
  }
  func.func @transform_1(%arg0: i32) -> (i32, i32, i32) {
    %c0_i32 = arith.constant 0 : i32
    %c0_i32_0 = arith.constant 0 : i32
    %c0_i32_1 = arith.constant 0 : i32
    %c0_i32_2 = arith.constant 0 : i32
    return %c0_i32, %c0_i32_0, %c0_i32_1 : i32, i32, i32
  }
  func.func @transform_2(%arg0: i32) -> (i32, i32) {
    %c0_i32 = arith.constant 0 : i32
    %c0_i32_0 = arith.constant 0 : i32
    %c0_i32_1 = arith.constant 0 : i32
    return %c0_i32, %c0_i32_0 : i32, i32
  }
  func.func @transform_3(%arg0: i32) -> (i32, i32, i32, i32) {
    %c0_i32 = arith.constant 0 : i32
    %c0_i32_0 = arith.constant 0 : i32
    %c0_i32_1 = arith.constant 0 : i32
    %c0_i32_2 = arith.constant 0 : i32
    return %arg0, %c0_i32, %c0_i32_0, %c0_i32_1 : i32, i32, i32, i32
  }
  func.func @transform_4(%arg0: i32) -> (i32, i32, i32, i32) {
    %c0_i32 = arith.constant 0 : i32
    %c0_i32_0 = arith.constant 0 : i32
    %c0_i32_1 = arith.constant 0 : i32
    %c0_i32_2 = arith.constant 0 : i32
    return %arg0, %c0_i32, %c0_i32_0, %c0_i32_1 : i32, i32, i32, i32
  }
}

module attributes {stable_mosaic.version = 11 : i64} {
  func.func @kernel(%arg0: i32, %arg1: memref<1x10x18x8xbf16, #tpu.memory_space<vmem>>, %arg2: memref<9x8x32xbf16, #tpu.memory_space<vmem>>, %arg3: memref<1x32xf32, #tpu.memory_space<vmem>>, %arg4: memref<1x8xf32, #tpu.memory_space<vmem>>, %arg5: memref<1x8xf32, #tpu.memory_space<vmem>>, %arg6: memref<1x8x16x32xf32, #tpu.memory_space<vmem>>) attributes {dimension_semantics = [#tpu.dimension_semantics<parallel>], iteration_bounds = array<i64: 2>, scalar_prefetch = 0 : i64, scratch_operands = 0 : i64, tpu.core_type = #tpu.core_type<tc>, window_params = [{transform_indices = @transform_0, window_bounds = array<i64: 1, 10, 18, 8>}, {pipeline_mode = #tpu.pipeline_mode<synchronous>, transform_indices = @transform_1, window_bounds = array<i64: 9, 8, 32>}, {pipeline_mode = #tpu.pipeline_mode<synchronous>, transform_indices = @transform_2, window_bounds = array<i64: 1, 32>}, {pipeline_mode = #tpu.pipeline_mode<synchronous>, transform_indices = @transform_3, window_bounds = array<i64: 1, 8>}, {pipeline_mode = #tpu.pipeline_mode<synchronous>, transform_indices = @transform_4, window_bounds = array<i64: 1, 8>}, {transform_indices = @transform_5, window_bounds = array<i64: 1, 8, 16, 32>}]} {
    %c0 = arith.constant 0 : index
    %c0_0 = arith.constant 0 : index
    %c0_1 = arith.constant 0 : index
    %c0_2 = arith.constant 0 : index
    %0 = vector.load %arg1[%c0, %c0_0, %c0_1, %c0_2] : memref<1x10x18x8xbf16, #tpu.memory_space<vmem>>, vector<1x10x18x8xbf16>
    %1 = vector.shape_cast %0 : vector<1x10x18x8xbf16> to vector<10x18x8xbf16>
    %2 = arith.extf %1 : vector<10x18x8xbf16> to vector<10x18x8xf32>
    %cst = arith.constant dense<0.000000e+00> : vector<10x18xf32>
    %3 = vector.multi_reduction <add>, %2, %cst [2] : vector<10x18x8xf32> to vector<10x18xf32>
    %4 = vector.shape_cast %3 : vector<10x18xf32> to vector<10x18x1xf32>
    %cst_3 = arith.constant 8.000000e+00 : f32
    %5 = vector.broadcast %cst_3 : f32 to vector<10x18x1xf32>
    %6 = arith.divf %4, %5 : vector<10x18x1xf32>
    %7 = vector.broadcast %6 : vector<10x18x1xf32> to vector<10x18x8xf32>
    %8 = arith.subf %2, %7 : vector<10x18x8xf32>
    %9 = arith.mulf %8, %8 : vector<10x18x8xf32>
    %cst_4 = arith.constant dense<0.000000e+00> : vector<10x18xf32>
    %10 = vector.multi_reduction <add>, %9, %cst_4 [2] : vector<10x18x8xf32> to vector<10x18xf32>
    %11 = vector.shape_cast %10 : vector<10x18xf32> to vector<10x18x1xf32>
    %cst_5 = arith.constant 8.000000e+00 : f32
    %12 = vector.broadcast %cst_5 : f32 to vector<10x18x1xf32>
    %13 = arith.divf %11, %12 : vector<10x18x1xf32>
    %cst_6 = arith.constant 9.99999974E-6 : f32
    %14 = vector.broadcast %cst_6 : f32 to vector<10x18x1xf32>
    %15 = arith.addf %13, %14 : vector<10x18x1xf32>
    %16 = math.rsqrt %15 : vector<10x18x1xf32>
    %17 = vector.broadcast %16 : vector<10x18x1xf32> to vector<10x18x8xf32>
    %18 = arith.mulf %8, %17 : vector<10x18x8xf32>
    %c0_7 = arith.constant 0 : index
    %c0_8 = arith.constant 0 : index
    %19 = vector.load %arg4[%c0_7, %c0_8] : memref<1x8xf32, #tpu.memory_space<vmem>>, vector<1x8xf32>
    %20 = vector.shape_cast %19 : vector<1x8xf32> to vector<1x1x8xf32>
    %21 = vector.broadcast %20 : vector<1x1x8xf32> to vector<10x18x8xf32>
    %22 = arith.mulf %18, %21 : vector<10x18x8xf32>
    %c0_9 = arith.constant 0 : index
    %c0_10 = arith.constant 0 : index
    %23 = vector.load %arg5[%c0_9, %c0_10] : memref<1x8xf32, #tpu.memory_space<vmem>>, vector<1x8xf32>
    %24 = vector.shape_cast %23 : vector<1x8xf32> to vector<1x1x8xf32>
    %25 = vector.broadcast %24 : vector<1x1x8xf32> to vector<10x18x8xf32>
    %26 = arith.addf %22, %25 : vector<10x18x8xf32>
    %27 = tpu.iota {dimensions = array<i32: 0>} : vector<10x18x8xi32>
    %28 = tpu.iota {dimensions = array<i32: 1>} : vector<10x18x8xi32>
    %c1_i32 = arith.constant 1 : i32
    %29 = vector.broadcast %c1_i32 : i32 to vector<10x18x8xi32>
    %30 = arith.cmpi sge, %27, %29 : vector<10x18x8xi32>
    %c8_i32 = arith.constant 8 : i32
    %31 = vector.broadcast %c8_i32 : i32 to vector<10x18x8xi32>
    %32 = arith.cmpi sle, %27, %31 : vector<10x18x8xi32>
    %33 = arith.andi %30, %32 : vector<10x18x8xi1>
    %c1_i32_11 = arith.constant 1 : i32
    %34 = vector.broadcast %c1_i32_11 : i32 to vector<10x18x8xi32>
    %35 = arith.cmpi sge, %28, %34 : vector<10x18x8xi32>
    %36 = arith.andi %33, %35 : vector<10x18x8xi1>
    %c16_i32 = arith.constant 16 : i32
    %37 = vector.broadcast %c16_i32 : i32 to vector<10x18x8xi32>
    %38 = arith.cmpi sle, %28, %37 : vector<10x18x8xi32>
    %39 = arith.andi %36, %38 : vector<10x18x8xi1>
    %cst_12 = arith.constant 0.000000e+00 : f32
    %40 = vector.broadcast %cst_12 : f32 to vector<10x18x8xf32>
    %41 = arith.select %39, %26, %40 : vector<10x18x8xi1>, vector<10x18x8xf32>
    %cst_13 = arith.constant 0.000000e+00 : f32
    %42 = vector.broadcast %cst_13 : f32 to vector<128x32xf32>
    %43 = vector.extract_strided_slice %41 {offsets = [0, 0, 0], sizes = [8, 16, 8], strides = [1, 1, 1]} : vector<10x18x8xf32> to vector<8x16x8xf32>
    %44 = vector.shape_cast %43 : vector<8x16x8xf32> to vector<128x8xf32>
    %45 = arith.truncf %44 : vector<128x8xf32> to vector<128x8xbf16>
    %c0_14 = arith.constant 0 : index
    %c0_15 = arith.constant 0 : index
    %c0_16 = arith.constant 0 : index
    %46 = vector.load %arg2[%c0_14, %c0_15, %c0_16] : memref<9x8x32xbf16, #tpu.memory_space<vmem>>, vector<1x8x32xbf16>
    %47 = vector.shape_cast %46 : vector<1x8x32xbf16> to vector<8x32xbf16>
    %cst_17 = arith.constant dense<0.000000e+00> : vector<128x32xf32>
    %48 = tpu.matmul %45, %47, %cst_17 {dimension_numbers = #tpu.dot_dimension_numbers<[1], [0], [0], [1], [0, 0, 1, 1], [], []>} : vector<128x8xbf16>, vector<8x32xbf16>, vector<128x32xf32> -> vector<128x32xf32>
    %49 = arith.addf %42, %48 : vector<128x32xf32>
    %50 = vector.extract_strided_slice %41 {offsets = [0, 1, 0], sizes = [8, 16, 8], strides = [1, 1, 1]} : vector<10x18x8xf32> to vector<8x16x8xf32>
    %51 = vector.shape_cast %50 : vector<8x16x8xf32> to vector<128x8xf32>
    %52 = arith.truncf %51 : vector<128x8xf32> to vector<128x8xbf16>
    %c1 = arith.constant 1 : index
    %c0_18 = arith.constant 0 : index
    %c0_19 = arith.constant 0 : index
    %53 = vector.load %arg2[%c1, %c0_18, %c0_19] : memref<9x8x32xbf16, #tpu.memory_space<vmem>>, vector<1x8x32xbf16>
    %54 = vector.shape_cast %53 : vector<1x8x32xbf16> to vector<8x32xbf16>
    %cst_20 = arith.constant dense<0.000000e+00> : vector<128x32xf32>
    %55 = tpu.matmul %52, %54, %cst_20 {dimension_numbers = #tpu.dot_dimension_numbers<[1], [0], [0], [1], [0, 0, 1, 1], [], []>} : vector<128x8xbf16>, vector<8x32xbf16>, vector<128x32xf32> -> vector<128x32xf32>
    %56 = arith.addf %49, %55 : vector<128x32xf32>
    %57 = vector.extract_strided_slice %41 {offsets = [0, 2, 0], sizes = [8, 16, 8], strides = [1, 1, 1]} : vector<10x18x8xf32> to vector<8x16x8xf32>
    %58 = vector.shape_cast %57 : vector<8x16x8xf32> to vector<128x8xf32>
    %59 = arith.truncf %58 : vector<128x8xf32> to vector<128x8xbf16>
    %c2 = arith.constant 2 : index
    %c0_21 = arith.constant 0 : index
    %c0_22 = arith.constant 0 : index
    %60 = vector.load %arg2[%c2, %c0_21, %c0_22] : memref<9x8x32xbf16, #tpu.memory_space<vmem>>, vector<1x8x32xbf16>
    %61 = vector.shape_cast %60 : vector<1x8x32xbf16> to vector<8x32xbf16>
    %cst_23 = arith.constant dense<0.000000e+00> : vector<128x32xf32>
    %62 = tpu.matmul %59, %61, %cst_23 {dimension_numbers = #tpu.dot_dimension_numbers<[1], [0], [0], [1], [0, 0, 1, 1], [], []>} : vector<128x8xbf16>, vector<8x32xbf16>, vector<128x32xf32> -> vector<128x32xf32>
    %63 = arith.addf %56, %62 : vector<128x32xf32>
    %64 = vector.extract_strided_slice %41 {offsets = [1, 0, 0], sizes = [8, 16, 8], strides = [1, 1, 1]} : vector<10x18x8xf32> to vector<8x16x8xf32>
    %65 = vector.shape_cast %64 : vector<8x16x8xf32> to vector<128x8xf32>
    %66 = arith.truncf %65 : vector<128x8xf32> to vector<128x8xbf16>
    %c3 = arith.constant 3 : index
    %c0_24 = arith.constant 0 : index
    %c0_25 = arith.constant 0 : index
    %67 = vector.load %arg2[%c3, %c0_24, %c0_25] : memref<9x8x32xbf16, #tpu.memory_space<vmem>>, vector<1x8x32xbf16>
    %68 = vector.shape_cast %67 : vector<1x8x32xbf16> to vector<8x32xbf16>
    %cst_26 = arith.constant dense<0.000000e+00> : vector<128x32xf32>
    %69 = tpu.matmul %66, %68, %cst_26 {dimension_numbers = #tpu.dot_dimension_numbers<[1], [0], [0], [1], [0, 0, 1, 1], [], []>} : vector<128x8xbf16>, vector<8x32xbf16>, vector<128x32xf32> -> vector<128x32xf32>
    %70 = arith.addf %63, %69 : vector<128x32xf32>
    %71 = vector.extract_strided_slice %41 {offsets = [1, 1, 0], sizes = [8, 16, 8], strides = [1, 1, 1]} : vector<10x18x8xf32> to vector<8x16x8xf32>
    %72 = vector.shape_cast %71 : vector<8x16x8xf32> to vector<128x8xf32>
    %73 = arith.truncf %72 : vector<128x8xf32> to vector<128x8xbf16>
    %c4 = arith.constant 4 : index
    %c0_27 = arith.constant 0 : index
    %c0_28 = arith.constant 0 : index
    %74 = vector.load %arg2[%c4, %c0_27, %c0_28] : memref<9x8x32xbf16, #tpu.memory_space<vmem>>, vector<1x8x32xbf16>
    %75 = vector.shape_cast %74 : vector<1x8x32xbf16> to vector<8x32xbf16>
    %cst_29 = arith.constant dense<0.000000e+00> : vector<128x32xf32>
    %76 = tpu.matmul %73, %75, %cst_29 {dimension_numbers = #tpu.dot_dimension_numbers<[1], [0], [0], [1], [0, 0, 1, 1], [], []>} : vector<128x8xbf16>, vector<8x32xbf16>, vector<128x32xf32> -> vector<128x32xf32>
    %77 = arith.addf %70, %76 : vector<128x32xf32>
    %78 = vector.extract_strided_slice %41 {offsets = [1, 2, 0], sizes = [8, 16, 8], strides = [1, 1, 1]} : vector<10x18x8xf32> to vector<8x16x8xf32>
    %79 = vector.shape_cast %78 : vector<8x16x8xf32> to vector<128x8xf32>
    %80 = arith.truncf %79 : vector<128x8xf32> to vector<128x8xbf16>
    %c5 = arith.constant 5 : index
    %c0_30 = arith.constant 0 : index
    %c0_31 = arith.constant 0 : index
    %81 = vector.load %arg2[%c5, %c0_30, %c0_31] : memref<9x8x32xbf16, #tpu.memory_space<vmem>>, vector<1x8x32xbf16>
    %82 = vector.shape_cast %81 : vector<1x8x32xbf16> to vector<8x32xbf16>
    %cst_32 = arith.constant dense<0.000000e+00> : vector<128x32xf32>
    %83 = tpu.matmul %80, %82, %cst_32 {dimension_numbers = #tpu.dot_dimension_numbers<[1], [0], [0], [1], [0, 0, 1, 1], [], []>} : vector<128x8xbf16>, vector<8x32xbf16>, vector<128x32xf32> -> vector<128x32xf32>
    %84 = arith.addf %77, %83 : vector<128x32xf32>
    %85 = vector.extract_strided_slice %41 {offsets = [2, 0, 0], sizes = [8, 16, 8], strides = [1, 1, 1]} : vector<10x18x8xf32> to vector<8x16x8xf32>
    %86 = vector.shape_cast %85 : vector<8x16x8xf32> to vector<128x8xf32>
    %87 = arith.truncf %86 : vector<128x8xf32> to vector<128x8xbf16>
    %c6 = arith.constant 6 : index
    %c0_33 = arith.constant 0 : index
    %c0_34 = arith.constant 0 : index
    %88 = vector.load %arg2[%c6, %c0_33, %c0_34] : memref<9x8x32xbf16, #tpu.memory_space<vmem>>, vector<1x8x32xbf16>
    %89 = vector.shape_cast %88 : vector<1x8x32xbf16> to vector<8x32xbf16>
    %cst_35 = arith.constant dense<0.000000e+00> : vector<128x32xf32>
    %90 = tpu.matmul %87, %89, %cst_35 {dimension_numbers = #tpu.dot_dimension_numbers<[1], [0], [0], [1], [0, 0, 1, 1], [], []>} : vector<128x8xbf16>, vector<8x32xbf16>, vector<128x32xf32> -> vector<128x32xf32>
    %91 = arith.addf %84, %90 : vector<128x32xf32>
    %92 = vector.extract_strided_slice %41 {offsets = [2, 1, 0], sizes = [8, 16, 8], strides = [1, 1, 1]} : vector<10x18x8xf32> to vector<8x16x8xf32>
    %93 = vector.shape_cast %92 : vector<8x16x8xf32> to vector<128x8xf32>
    %94 = arith.truncf %93 : vector<128x8xf32> to vector<128x8xbf16>
    %c7 = arith.constant 7 : index
    %c0_36 = arith.constant 0 : index
    %c0_37 = arith.constant 0 : index
    %95 = vector.load %arg2[%c7, %c0_36, %c0_37] : memref<9x8x32xbf16, #tpu.memory_space<vmem>>, vector<1x8x32xbf16>
    %96 = vector.shape_cast %95 : vector<1x8x32xbf16> to vector<8x32xbf16>
    %cst_38 = arith.constant dense<0.000000e+00> : vector<128x32xf32>
    %97 = tpu.matmul %94, %96, %cst_38 {dimension_numbers = #tpu.dot_dimension_numbers<[1], [0], [0], [1], [0, 0, 1, 1], [], []>} : vector<128x8xbf16>, vector<8x32xbf16>, vector<128x32xf32> -> vector<128x32xf32>
    %98 = arith.addf %91, %97 : vector<128x32xf32>
    %99 = vector.extract_strided_slice %41 {offsets = [2, 2, 0], sizes = [8, 16, 8], strides = [1, 1, 1]} : vector<10x18x8xf32> to vector<8x16x8xf32>
    %100 = vector.shape_cast %99 : vector<8x16x8xf32> to vector<128x8xf32>
    %101 = arith.truncf %100 : vector<128x8xf32> to vector<128x8xbf16>
    %c8 = arith.constant 8 : index
    %c0_39 = arith.constant 0 : index
    %c0_40 = arith.constant 0 : index
    %102 = vector.load %arg2[%c8, %c0_39, %c0_40] : memref<9x8x32xbf16, #tpu.memory_space<vmem>>, vector<1x8x32xbf16>
    %103 = vector.shape_cast %102 : vector<1x8x32xbf16> to vector<8x32xbf16>
    %cst_41 = arith.constant dense<0.000000e+00> : vector<128x32xf32>
    %104 = tpu.matmul %101, %103, %cst_41 {dimension_numbers = #tpu.dot_dimension_numbers<[1], [0], [0], [1], [0, 0, 1, 1], [], []>} : vector<128x8xbf16>, vector<8x32xbf16>, vector<128x32xf32> -> vector<128x32xf32>
    %105 = arith.addf %98, %104 : vector<128x32xf32>
    %c0_42 = arith.constant 0 : index
    %c0_43 = arith.constant 0 : index
    %106 = vector.load %arg3[%c0_42, %c0_43] : memref<1x32xf32, #tpu.memory_space<vmem>>, vector<1x32xf32>
    %107 = vector.broadcast %106 : vector<1x32xf32> to vector<128x32xf32>
    %108 = arith.addf %105, %107 : vector<128x32xf32>
    %cst_44 = arith.constant 5.000000e-01 : f32
    %109 = vector.broadcast %cst_44 : f32 to vector<128x32xf32>
    %110 = arith.mulf %109, %108 : vector<128x32xf32>
    %cst_45 = arith.constant 0.707106769 : f32
    %111 = vector.broadcast %cst_45 : f32 to vector<128x32xf32>
    %112 = arith.mulf %108, %111 : vector<128x32xf32>
    %113 = math.erf %112 : vector<128x32xf32>
    %cst_46 = arith.constant 1.000000e+00 : f32
    %114 = vector.broadcast %cst_46 : f32 to vector<128x32xf32>
    %115 = arith.addf %114, %113 : vector<128x32xf32>
    %116 = arith.mulf %110, %115 : vector<128x32xf32>
    %117 = vector.shape_cast %116 : vector<128x32xf32> to vector<8x16x32xf32>
    %c0_47 = arith.constant 0 : index
    %c0_48 = arith.constant 0 : index
    %c0_49 = arith.constant 0 : index
    %c0_50 = arith.constant 0 : index
    %118 = vector.load %arg6[%c0_47, %c0_48, %c0_49, %c0_50] : memref<1x8x16x32xf32, #tpu.memory_space<vmem>>, vector<1x8x16x32xf32>
    %119 = vector.shape_cast %118 : vector<1x8x16x32xf32> to vector<8x16x32xf32>
    %120 = vector.shape_cast %117 : vector<8x16x32xf32> to vector<1x8x16x32xf32>
    tpu.vector_store %arg6[%c0_47, %c0_48, %c0_49, %c0_50], %120 {strides = array<i32>} : memref<1x8x16x32xf32, #tpu.memory_space<vmem>>, vector<1x8x16x32xf32>,
    return
  }
  func.func @transform_0(%arg0: i32) -> (i32, i32, i32, i32) {
    %c0_i32 = arith.constant 0 : i32
    %c0_i32_0 = arith.constant 0 : i32
    %c0_i32_1 = arith.constant 0 : i32
    %c0_i32_2 = arith.constant 0 : i32
    return %arg0, %c0_i32, %c0_i32_0, %c0_i32_1 : i32, i32, i32, i32
  }
  func.func @transform_1(%arg0: i32) -> (i32, i32, i32) {
    %c0_i32 = arith.constant 0 : i32
    %c0_i32_0 = arith.constant 0 : i32
    %c0_i32_1 = arith.constant 0 : i32
    %c0_i32_2 = arith.constant 0 : i32
    return %c0_i32, %c0_i32_0, %c0_i32_1 : i32, i32, i32
  }
  func.func @transform_2(%arg0: i32) -> (i32, i32) {
    %c0_i32 = arith.constant 0 : i32
    %c0_i32_0 = arith.constant 0 : i32
    %c0_i32_1 = arith.constant 0 : i32
    return %c0_i32, %c0_i32_0 : i32, i32
  }
  func.func @transform_3(%arg0: i32) -> (i32, i32) {
    %c0_i32 = arith.constant 0 : i32
    %c0_i32_0 = arith.constant 0 : i32
    %c0_i32_1 = arith.constant 0 : i32
    return %c0_i32, %c0_i32_0 : i32, i32
  }
  func.func @transform_4(%arg0: i32) -> (i32, i32) {
    %c0_i32 = arith.constant 0 : i32
    %c0_i32_0 = arith.constant 0 : i32
    %c0_i32_1 = arith.constant 0 : i32
    return %c0_i32, %c0_i32_0 : i32, i32
  }
  func.func @transform_5(%arg0: i32) -> (i32, i32, i32, i32) {
    %c0_i32 = arith.constant 0 : i32
    %c0_i32_0 = arith.constant 0 : i32
    %c0_i32_1 = arith.constant 0 : i32
    %c0_i32_2 = arith.constant 0 : i32
    return %arg0, %c0_i32, %c0_i32_0, %c0_i32_1 : i32, i32, i32, i32
  }
}

module attributes {stable_mosaic.version = 11 : i64} {
  func.func @kernel(%arg0: i32, %arg1: memref<1x10x18x32xbf16, #tpu.memory_space<vmem>>, %arg2: memref<9x32x8xbf16, #tpu.memory_space<vmem>>, %arg3: memref<1x8xf32, #tpu.memory_space<vmem>>, %arg4: memref<1x8x16x8xf32, #tpu.memory_space<vmem>>, %arg5: memref<1x8x16x8xf32, #tpu.memory_space<vmem>>) attributes {dimension_semantics = [#tpu.dimension_semantics<parallel>], iteration_bounds = array<i64: 2>, scalar_prefetch = 0 : i64, scratch_operands = 0 : i64, tpu.core_type = #tpu.core_type<tc>, window_params = [{transform_indices = @transform_0, window_bounds = array<i64: 1, 10, 18, 32>}, {pipeline_mode = #tpu.pipeline_mode<synchronous>, transform_indices = @transform_1, window_bounds = array<i64: 9, 32, 8>}, {pipeline_mode = #tpu.pipeline_mode<synchronous>, transform_indices = @transform_2, window_bounds = array<i64: 1, 8>}, {transform_indices = @transform_3, window_bounds = array<i64: 1, 8, 16, 8>}, {transform_indices = @transform_4, window_bounds = array<i64: 1, 8, 16, 8>}]} {
    %c0 = arith.constant 0 : index
    %c0_0 = arith.constant 0 : index
    %c0_1 = arith.constant 0 : index
    %c0_2 = arith.constant 0 : index
    %0 = vector.load %arg1[%c0, %c0_0, %c0_1, %c0_2] : memref<1x10x18x32xbf16, #tpu.memory_space<vmem>>, vector<1x10x18x32xbf16>
    %1 = vector.shape_cast %0 : vector<1x10x18x32xbf16> to vector<10x18x32xbf16>
    %2 = arith.extf %1 : vector<10x18x32xbf16> to vector<10x18x32xf32>
    %cst = arith.constant 0.000000e+00 : f32
    %3 = vector.broadcast %cst : f32 to vector<128x8xf32>
    %4 = vector.extract_strided_slice %2 {offsets = [0, 0, 0], sizes = [8, 16, 32], strides = [1, 1, 1]} : vector<10x18x32xf32> to vector<8x16x32xf32>
    %5 = vector.shape_cast %4 : vector<8x16x32xf32> to vector<128x32xf32>
    %6 = arith.truncf %5 : vector<128x32xf32> to vector<128x32xbf16>
    %c0_3 = arith.constant 0 : index
    %c0_4 = arith.constant 0 : index
    %c0_5 = arith.constant 0 : index
    %7 = vector.load %arg2[%c0_3, %c0_4, %c0_5] : memref<9x32x8xbf16, #tpu.memory_space<vmem>>, vector<1x32x8xbf16>
    %8 = vector.shape_cast %7 : vector<1x32x8xbf16> to vector<32x8xbf16>
    %cst_6 = arith.constant dense<0.000000e+00> : vector<128x8xf32>
    %9 = tpu.matmul %6, %8, %cst_6 {dimension_numbers = #tpu.dot_dimension_numbers<[1], [0], [0], [1], [0, 0, 1, 1], [], []>} : vector<128x32xbf16>, vector<32x8xbf16>, vector<128x8xf32> -> vector<128x8xf32>
    %10 = arith.addf %3, %9 : vector<128x8xf32>
    %11 = vector.extract_strided_slice %2 {offsets = [0, 1, 0], sizes = [8, 16, 32], strides = [1, 1, 1]} : vector<10x18x32xf32> to vector<8x16x32xf32>
    %12 = vector.shape_cast %11 : vector<8x16x32xf32> to vector<128x32xf32>
    %13 = arith.truncf %12 : vector<128x32xf32> to vector<128x32xbf16>
    %c1 = arith.constant 1 : index
    %c0_7 = arith.constant 0 : index
    %c0_8 = arith.constant 0 : index
    %14 = vector.load %arg2[%c1, %c0_7, %c0_8] : memref<9x32x8xbf16, #tpu.memory_space<vmem>>, vector<1x32x8xbf16>
    %15 = vector.shape_cast %14 : vector<1x32x8xbf16> to vector<32x8xbf16>
    %cst_9 = arith.constant dense<0.000000e+00> : vector<128x8xf32>
    %16 = tpu.matmul %13, %15, %cst_9 {dimension_numbers = #tpu.dot_dimension_numbers<[1], [0], [0], [1], [0, 0, 1, 1], [], []>} : vector<128x32xbf16>, vector<32x8xbf16>, vector<128x8xf32> -> vector<128x8xf32>
    %17 = arith.addf %10, %16 : vector<128x8xf32>
    %18 = vector.extract_strided_slice %2 {offsets = [0, 2, 0], sizes = [8, 16, 32], strides = [1, 1, 1]} : vector<10x18x32xf32> to vector<8x16x32xf32>
    %19 = vector.shape_cast %18 : vector<8x16x32xf32> to vector<128x32xf32>
    %20 = arith.truncf %19 : vector<128x32xf32> to vector<128x32xbf16>
    %c2 = arith.constant 2 : index
    %c0_10 = arith.constant 0 : index
    %c0_11 = arith.constant 0 : index
    %21 = vector.load %arg2[%c2, %c0_10, %c0_11] : memref<9x32x8xbf16, #tpu.memory_space<vmem>>, vector<1x32x8xbf16>
    %22 = vector.shape_cast %21 : vector<1x32x8xbf16> to vector<32x8xbf16>
    %cst_12 = arith.constant dense<0.000000e+00> : vector<128x8xf32>
    %23 = tpu.matmul %20, %22, %cst_12 {dimension_numbers = #tpu.dot_dimension_numbers<[1], [0], [0], [1], [0, 0, 1, 1], [], []>} : vector<128x32xbf16>, vector<32x8xbf16>, vector<128x8xf32> -> vector<128x8xf32>
    %24 = arith.addf %17, %23 : vector<128x8xf32>
    %25 = vector.extract_strided_slice %2 {offsets = [1, 0, 0], sizes = [8, 16, 32], strides = [1, 1, 1]} : vector<10x18x32xf32> to vector<8x16x32xf32>
    %26 = vector.shape_cast %25 : vector<8x16x32xf32> to vector<128x32xf32>
    %27 = arith.truncf %26 : vector<128x32xf32> to vector<128x32xbf16>
    %c3 = arith.constant 3 : index
    %c0_13 = arith.constant 0 : index
    %c0_14 = arith.constant 0 : index
    %28 = vector.load %arg2[%c3, %c0_13, %c0_14] : memref<9x32x8xbf16, #tpu.memory_space<vmem>>, vector<1x32x8xbf16>
    %29 = vector.shape_cast %28 : vector<1x32x8xbf16> to vector<32x8xbf16>
    %cst_15 = arith.constant dense<0.000000e+00> : vector<128x8xf32>
    %30 = tpu.matmul %27, %29, %cst_15 {dimension_numbers = #tpu.dot_dimension_numbers<[1], [0], [0], [1], [0, 0, 1, 1], [], []>} : vector<128x32xbf16>, vector<32x8xbf16>, vector<128x8xf32> -> vector<128x8xf32>
    %31 = arith.addf %24, %30 : vector<128x8xf32>
    %32 = vector.extract_strided_slice %2 {offsets = [1, 1, 0], sizes = [8, 16, 32], strides = [1, 1, 1]} : vector<10x18x32xf32> to vector<8x16x32xf32>
    %33 = vector.shape_cast %32 : vector<8x16x32xf32> to vector<128x32xf32>
    %34 = arith.truncf %33 : vector<128x32xf32> to vector<128x32xbf16>
    %c4 = arith.constant 4 : index
    %c0_16 = arith.constant 0 : index
    %c0_17 = arith.constant 0 : index
    %35 = vector.load %arg2[%c4, %c0_16, %c0_17] : memref<9x32x8xbf16, #tpu.memory_space<vmem>>, vector<1x32x8xbf16>
    %36 = vector.shape_cast %35 : vector<1x32x8xbf16> to vector<32x8xbf16>
    %cst_18 = arith.constant dense<0.000000e+00> : vector<128x8xf32>
    %37 = tpu.matmul %34, %36, %cst_18 {dimension_numbers = #tpu.dot_dimension_numbers<[1], [0], [0], [1], [0, 0, 1, 1], [], []>} : vector<128x32xbf16>, vector<32x8xbf16>, vector<128x8xf32> -> vector<128x8xf32>
    %38 = arith.addf %31, %37 : vector<128x8xf32>
    %39 = vector.extract_strided_slice %2 {offsets = [1, 2, 0], sizes = [8, 16, 32], strides = [1, 1, 1]} : vector<10x18x32xf32> to vector<8x16x32xf32>
    %40 = vector.shape_cast %39 : vector<8x16x32xf32> to vector<128x32xf32>
    %41 = arith.truncf %40 : vector<128x32xf32> to vector<128x32xbf16>
    %c5 = arith.constant 5 : index
    %c0_19 = arith.constant 0 : index
    %c0_20 = arith.constant 0 : index
    %42 = vector.load %arg2[%c5, %c0_19, %c0_20] : memref<9x32x8xbf16, #tpu.memory_space<vmem>>, vector<1x32x8xbf16>
    %43 = vector.shape_cast %42 : vector<1x32x8xbf16> to vector<32x8xbf16>
    %cst_21 = arith.constant dense<0.000000e+00> : vector<128x8xf32>
    %44 = tpu.matmul %41, %43, %cst_21 {dimension_numbers = #tpu.dot_dimension_numbers<[1], [0], [0], [1], [0, 0, 1, 1], [], []>} : vector<128x32xbf16>, vector<32x8xbf16>, vector<128x8xf32> -> vector<128x8xf32>
    %45 = arith.addf %38, %44 : vector<128x8xf32>
    %46 = vector.extract_strided_slice %2 {offsets = [2, 0, 0], sizes = [8, 16, 32], strides = [1, 1, 1]} : vector<10x18x32xf32> to vector<8x16x32xf32>
    %47 = vector.shape_cast %46 : vector<8x16x32xf32> to vector<128x32xf32>
    %48 = arith.truncf %47 : vector<128x32xf32> to vector<128x32xbf16>
    %c6 = arith.constant 6 : index
    %c0_22 = arith.constant 0 : index
    %c0_23 = arith.constant 0 : index
    %49 = vector.load %arg2[%c6, %c0_22, %c0_23] : memref<9x32x8xbf16, #tpu.memory_space<vmem>>, vector<1x32x8xbf16>
    %50 = vector.shape_cast %49 : vector<1x32x8xbf16> to vector<32x8xbf16>
    %cst_24 = arith.constant dense<0.000000e+00> : vector<128x8xf32>
    %51 = tpu.matmul %48, %50, %cst_24 {dimension_numbers = #tpu.dot_dimension_numbers<[1], [0], [0], [1], [0, 0, 1, 1], [], []>} : vector<128x32xbf16>, vector<32x8xbf16>, vector<128x8xf32> -> vector<128x8xf32>
    %52 = arith.addf %45, %51 : vector<128x8xf32>
    %53 = vector.extract_strided_slice %2 {offsets = [2, 1, 0], sizes = [8, 16, 32], strides = [1, 1, 1]} : vector<10x18x32xf32> to vector<8x16x32xf32>
    %54 = vector.shape_cast %53 : vector<8x16x32xf32> to vector<128x32xf32>
    %55 = arith.truncf %54 : vector<128x32xf32> to vector<128x32xbf16>
    %c7 = arith.constant 7 : index
    %c0_25 = arith.constant 0 : index
    %c0_26 = arith.constant 0 : index
    %56 = vector.load %arg2[%c7, %c0_25, %c0_26] : memref<9x32x8xbf16, #tpu.memory_space<vmem>>, vector<1x32x8xbf16>
    %57 = vector.shape_cast %56 : vector<1x32x8xbf16> to vector<32x8xbf16>
    %cst_27 = arith.constant dense<0.000000e+00> : vector<128x8xf32>
    %58 = tpu.matmul %55, %57, %cst_27 {dimension_numbers = #tpu.dot_dimension_numbers<[1], [0], [0], [1], [0, 0, 1, 1], [], []>} : vector<128x32xbf16>, vector<32x8xbf16>, vector<128x8xf32> -> vector<128x8xf32>
    %59 = arith.addf %52, %58 : vector<128x8xf32>
    %60 = vector.extract_strided_slice %2 {offsets = [2, 2, 0], sizes = [8, 16, 32], strides = [1, 1, 1]} : vector<10x18x32xf32> to vector<8x16x32xf32>
    %61 = vector.shape_cast %60 : vector<8x16x32xf32> to vector<128x32xf32>
    %62 = arith.truncf %61 : vector<128x32xf32> to vector<128x32xbf16>
    %c8 = arith.constant 8 : index
    %c0_28 = arith.constant 0 : index
    %c0_29 = arith.constant 0 : index
    %63 = vector.load %arg2[%c8, %c0_28, %c0_29] : memref<9x32x8xbf16, #tpu.memory_space<vmem>>, vector<1x32x8xbf16>
    %64 = vector.shape_cast %63 : vector<1x32x8xbf16> to vector<32x8xbf16>
    %cst_30 = arith.constant dense<0.000000e+00> : vector<128x8xf32>
    %65 = tpu.matmul %62, %64, %cst_30 {dimension_numbers = #tpu.dot_dimension_numbers<[1], [0], [0], [1], [0, 0, 1, 1], [], []>} : vector<128x32xbf16>, vector<32x8xbf16>, vector<128x8xf32> -> vector<128x8xf32>
    %66 = arith.addf %59, %65 : vector<128x8xf32>
    %c0_31 = arith.constant 0 : index
    %c0_32 = arith.constant 0 : index
    %67 = vector.load %arg3[%c0_31, %c0_32] : memref<1x8xf32, #tpu.memory_space<vmem>>, vector<1x8xf32>
    %68 = vector.broadcast %67 : vector<1x8xf32> to vector<128x8xf32>
    %69 = arith.addf %66, %68 : vector<128x8xf32>
    %70 = vector.shape_cast %69 : vector<128x8xf32> to vector<8x16x8xf32>
    %c0_33 = arith.constant 0 : index
    %c0_34 = arith.constant 0 : index
    %c0_35 = arith.constant 0 : index
    %c0_36 = arith.constant 0 : index
    %71 = vector.load %arg4[%c0_33, %c0_34, %c0_35, %c0_36] : memref<1x8x16x8xf32, #tpu.memory_space<vmem>>, vector<1x8x16x8xf32>
    %72 = vector.shape_cast %71 : vector<1x8x16x8xf32> to vector<8x16x8xf32>
    %73 = arith.addf %70, %72 : vector<8x16x8xf32>
    %c0_37 = arith.constant 0 : index
    %c0_38 = arith.constant 0 : index
    %c0_39 = arith.constant 0 : index
    %c0_40 = arith.constant 0 : index
    %74 = vector.load %arg5[%c0_37, %c0_38, %c0_39, %c0_40] : memref<1x8x16x8xf32, #tpu.memory_space<vmem>>, vector<1x8x16x8xf32>
    %75 = vector.shape_cast %74 : vector<1x8x16x8xf32> to vector<8x16x8xf32>
    %76 = vector.shape_cast %73 : vector<8x16x8xf32> to vector<1x8x16x8xf32>
    tpu.vector_store %arg5[%c0_37, %c0_38, %c0_39, %c0_40], %76 {strides = array<i32>} : memref<1x8x16x8xf32, #tpu.memory_space<vmem>>, vector<1x8x16x8xf32>,
    return
  }
  func.func @transform_0(%arg0: i32) -> (i32, i32, i32, i32) {
    %c0_i32 = arith.constant 0 : i32
    %c0_i32_0 = arith.constant 0 : i32
    %c0_i32_1 = arith.constant 0 : i32
    %c0_i32_2 = arith.constant 0 : i32
    return %arg0, %c0_i32, %c0_i32_0, %c0_i32_1 : i32, i32, i32, i32
  }
  func.func @transform_1(%arg0: i32) -> (i32, i32, i32) {
    %c0_i32 = arith.constant 0 : i32
    %c0_i32_0 = arith.constant 0 : i32
    %c0_i32_1 = arith.constant 0 : i32
    %c0_i32_2 = arith.constant 0 : i32
    return %c0_i32, %c0_i32_0, %c0_i32_1 : i32, i32, i32
  }
  func.func @transform_2(%arg0: i32) -> (i32, i32) {
    %c0_i32 = arith.constant 0 : i32
    %c0_i32_0 = arith.constant 0 : i32
    %c0_i32_1 = arith.constant 0 : i32
    return %c0_i32, %c0_i32_0 : i32, i32
  }
  func.func @transform_3(%arg0: i32) -> (i32, i32, i32, i32) {
    %c0_i32 = arith.constant 0 : i32
    %c0_i32_0 = arith.constant 0 : i32
    %c0_i32_1 = arith.constant 0 : i32
    %c0_i32_2 = arith.constant 0 : i32
    return %arg0, %c0_i32, %c0_i32_0, %c0_i32_1 : i32, i32, i32, i32
  }
  func.func @transform_4(%arg0: i32) -> (i32, i32, i32, i32) {
    %c0_i32 = arith.constant 0 : i32
    %c0_i32_0 = arith.constant 0 : i32
    %c0_i32_1 = arith.constant 0 : i32
    %c0_i32_2 = arith.constant 0 : i32
    return %arg0, %c0_i32, %c0_i32_0, %c0_i32_1 : i32, i32, i32, i32
  }
}

</mosaic_0001>

<llo_original>
// kernel: encoder_forward.6
$region0: #{encoder_forward.6}
  #allocation0 [shape = 'u32[]', space=smem, size = 0x4, offset = 0x4, fixed_abs, tag = 'smem constant byte address 0x4 - core index']
  #allocation1 [shape = 'u32[144,128]{1,0:T(1,128)}', space=vmem, size = 0x12000, scoped, tag = 'internal scratch']
  %s0 = inlined_call_operand.vmem [shape: f32[2,8,16,8], index: 0, kind: input, shape index: {}]
  %s1 = inlined_call_operand.vmem [shape: f32[2,8,16,8], index: 1, kind: input, shape index: {}]
  %s2 = inlined_call_operand.vmem [shape: f32[2,8,16,8], index: 2, kind: input, shape index: {}]
  %s3 = inlined_call_operand.vmem [shape: f32[2,8,16,8], index: 3, kind: output, shape index: {0}]
  %s4 = inlined_call_operand.hbm [shape: f32[2,8,16,16], index: 4, kind: output, shape index: {1}]
  %5 = xla_tuple %s3, %s4
  %s6 = sld [smem:[#allocation0]]
  $region53: #{encoder_forward.6} parent=0
    _
  %s8 = ssub.s32 1, %s6
  %s9 = scalar_select 0, %s8, %s6
  $region1: #{encoder_forward.6} parent=0
    #allocation2 [shape = 'u8[131072]{0}', space=vmem, size = 0x20000, scoped, tag = 'output window, operand 1']
    #allocation3 [shape = 's32[2]{0}', space=sflag, size = 0x8, scoped, tag = 'scoped memory for encoder_forward.6']
    %10 = vsyncpa [#allocation3], 0
    %s11 = scalar_lea.sflag [#allocation3], 1
    %12 = vsyncpa %s11, 0
    loop: start=0, step=1, limit=4
    $region2: #{encoder_forward.6} parent=1 // loop_pre_header
      _
    $region3: #{encoder_forward.6} parent=1 // loop_header
      %s14 = sphi 0, %s18
      %p15 = scmp.ge.s32.totalorder %s14, 4
      %s24 = sphi 0, %s26
      %s27 = sphi 0, %s24
      %s28 = sphi 0, %s27
      %s44 = sphi 0, %s28
      %s50 = sphi 0, %s52
      %s53 = sphi 0, %s50
      %s54 = sphi 0, %s53
      %s70 = sphi 0, %s54
      %s76 = sphi 0, %s78
      %s79 = sphi 0, %s76
      %s80 = sphi 0, %s79
      %s96 = sphi 0, %s80
      %s102 = sphi 0, %s104
      %s105 = sphi 0, %s102
      %s106 = sphi 0, %s105
      %s122 = sphi 0, %s106
      %s128 = sphi 0, %s130
      %s131 = sphi 0, %s128
      %s132 = sphi 0, %s131
      %s148 = sphi 0, %s132
    $region4: #{encoder_forward.6} parent=1 // loop_header_branch
      %17 = sbr.rel (%p15) target = $region8
    $region5: #{encoder_forward.6} parent=1 // loop_body
      %s19 = ssub.s32 %s14, 1
      %s20 = ssub.s32 %s14, 2
      %s21 = sadd.s32 %s14, 1
      %s22 = ssub.s32 %s14, %s21
      %p23 = scmp.eq.s32.totalorder %s22, 0
      %s25 = sadd.s32 %s24, 1
      %s26 = scalar_select %p23, %s24, %s25
      %p29 = pneg %p23
      %p30 = scmp.eq.s32.totalorder %s14, 1
      %p31 = por %p29, %p30
      %p32 = scmp.ne.s32.totalorder %s24, %s27
      %p33 = scmp.eq.s32.totalorder %s14, 0
      %p34 = por %p32, %p33
      %p35 = scmp.ne.s32.totalorder %s24, %s27
      %p36 = scmp.eq.s32.totalorder %s19, 1
      %p37 = por %p35, %p36
      %p38 = scmp.ne.s32.totalorder %s27, %s28
      %p39 = scmp.eq.s32.totalorder %s19, 0
      %p40 = por %p38, %p39
      %p41 = scmp.ne.s32.totalorder %s27, %s28
      %p42 = scmp.eq.s32.totalorder %s20, 1
      %p43 = por %p41, %p42
      %p45 = scmp.ne.s32.totalorder %s28, %s44
      %p46 = scmp.eq.s32.totalorder %s20, 0
      %p47 = por %p45, %p46
      %s48 = ssub.s32 %s14, %s21
      %p49 = scmp.eq.s32.totalorder %s48, 0
      %s51 = sadd.s32 %s50, 1
      %s52 = scalar_select %p49, %s50, %s51
      %p55 = pneg %p49
      %p56 = scmp.eq.s32.totalorder %s14, 1
      %p57 = por %p55, %p56
      %p58 = scmp.ne.s32.totalorder %s50, %s53
      %p59 = scmp.eq.s32.totalorder %s14, 0
      %p60 = por %p58, %p59
      %p61 = scmp.ne.s32.totalorder %s50, %s53
      %p62 = scmp.eq.s32.totalorder %s19, 1
      %p63 = por %p61, %p62
      %p64 = scmp.ne.s32.totalorder %s53, %s54
      %p65 = scmp.eq.s32.totalorder %s19, 0
      %p66 = por %p64, %p65
      %p67 = scmp.ne.s32.totalorder %s53, %s54
      %p68 = scmp.eq.s32.totalorder %s20, 1
      %p69 = por %p67, %p68
      %p71 = scmp.ne.s32.totalorder %s54, %s70
      %p72 = scmp.eq.s32.totalorder %s20, 0
      %p73 = por %p71, %p72
      %s74 = ssub.s32 %s14, %s21
      %p75 = scmp.eq.s32.totalorder %s74, 0
      %s77 = sadd.s32 %s76, 1
      %s78 = scalar_select %p75, %s76, %s77
      %p81 = pneg %p75
      %p82 = scmp.eq.s32.totalorder %s14, 1
      %p83 = por %p81, %p82
      %p84 = scmp.ne.s32.totalorder %s76, %s79
      %p85 = scmp.eq.s32.totalorder %s14, 0
      %p86 = por %p84, %p85
      %p87 = scmp.ne.s32.totalorder %s76, %s79
      %p88 = scmp.eq.s32.totalorder %s19, 1
      %p89 = por %p87, %p88
      %p90 = scmp.ne.s32.totalorder %s79, %s80
      %p91 = scmp.eq.s32.totalorder %s19, 0
      %p92 = por %p90, %p91
      %p93 = scmp.ne.s32.totalorder %s79, %s80
      %p94 = scmp.eq.s32.totalorder %s20, 1
      %p95 = por %p93, %p94
      %p97 = scmp.ne.s32.totalorder %s80, %s96
      %p98 = scmp.eq.s32.totalorder %s20, 0
      %p99 = por %p97, %p98
      %s100 = ssub.s32 %s14, %s21
      %p101 = scmp.eq.s32.totalorder %s100, 0
      %s103 = sadd.s32 %s102, 1
      %s104 = scalar_select %p101, %s102, %s103
      %p107 = pneg %p101
      %p108 = scmp.eq.s32.totalorder %s14, 1
      %p109 = por %p107, %p108
      %p110 = scmp.ne.s32.totalorder %s102, %s105
      %p111 = scmp.eq.s32.totalorder %s14, 0
      %p112 = por %p110, %p111
      %p113 = scmp.ne.s32.totalorder %s102, %s105
      %p114 = scmp.eq.s32.totalorder %s19, 1
      %p115 = por %p113, %p114
      %p116 = scmp.ne.s32.totalorder %s105, %s106
      %p117 = scmp.eq.s32.totalorder %s19, 0
      %p118 = por %p116, %p117
      %p119 = scmp.ne.s32.totalorder %s105, %s106
      %p120 = scmp.eq.s32.totalorder %s20, 1
      %p121 = por %p119, %p120
      %p123 = scmp.ne.s32.totalorder %s106, %s122
      %p124 = scmp.eq.s32.totalorder %s20, 0
      %p125 = por %p123, %p124
      %s126 = ssub.s32 %s14, %s21
      %p127 = scmp.eq.s32.totalorder %s126, 0
      %s129 = sadd.s32 %s128, 1
      %s130 = scalar_select %p127, %s128, %s129
      %p133 = pneg %p127
      %p134 = scmp.eq.s32.totalorder %s14, 1
      %p135 = por %p133, %p134
      %p136 = scmp.ne.s32.totalorder %s128, %s131
      %p137 = scmp.eq.s32.totalorder %s14, 0
      %p138 = por %p136, %p137
      %p139 = scmp.ne.s32.totalorder %s128, %s131
      %p140 = scmp.eq.s32.totalorder %s19, 1
      %p141 = por %p139, %p140
      %p142 = scmp.ne.s32.totalorder %s131, %s132
      %p143 = scmp.eq.s32.totalorder %s19, 0
      %p144 = por %p142, %p143
      %p145 = scmp.ne.s32.totalorder %s131, %s132
      %p146 = scmp.eq.s32.totalorder %s20, 1
      %p147 = por %p145, %p146
      %p149 = scmp.ne.s32.totalorder %s132, %s148
      %p150 = scmp.eq.s32.totalorder %s20, 0
      %p151 = por %p149, %p150
      %p152 = scmp.le.s32.totalorder 1, %s14
      %p153 = scmp.lt.s32.totalorder %s14, 3
      %p154 = pnand %p152, %p153
      %p155 = pneg %p154
      // Predicated region
      $region9: #{encoder_forward.6} parent=5 // pred_check
        _
      $region10: #{encoder_forward.6} parent=5 // pred_check_branch
        %157 = sbr.rel (%p154) target = $region12
      $region11: #{encoder_forward.6} parent=5 // pred_region
        %s158 = ssub.s32 %s14, 1
      $region12: #{encoder_forward.6} parent=5 // pred_fallthru
        _
      %p159 = scmp.lt.s32.totalorder %s14, 2
      // Predicated region
      $region13: #{encoder_forward.6} parent=5 // pred_check
        %p160 = pneg %p159
      $region14: #{encoder_forward.6} parent=5 // pred_check_branch
        %162 = sbr.rel (%p160) target = $region16
      $region15: #{encoder_forward.6} parent=5 // pred_region
        // Predicated region
        $region17: #{encoder_forward.6} parent=15 // pred_check
          %p163 = pneg %p34
        $region18: #{encoder_forward.6} parent=15 // pred_check_branch
          %165 = sbr.rel (%p163) target = $region20
        $region19: #{encoder_forward.6} parent=15 // pred_region
          %p166 = scmp.lt.s32.totalorder %s14, 1
          %s167 = scalar_select %p166, %s14, 1
          %s168 = smul.addr %s167, 16
          %s169 = smul.addr %s168, 8
          %s170 = scalar_lea.vmem %s0, %s169
        $region20: #{encoder_forward.6} parent=15 // pred_fallthru
          _
        // Predicated region
        $region21: #{encoder_forward.6} parent=15 // pred_check
          %p171 = pneg %p60
        $region22: #{encoder_forward.6} parent=15 // pred_check_branch
          %173 = sbr.rel (%p171) target = $region24
        $region23: #{encoder_forward.6} parent=15 // pred_region
          %p174 = scmp.lt.s32.totalorder %s14, 1
          %s175 = scalar_select %p174, %s14, 1
          %s176 = smul.addr %s175, 16
          %s177 = smul.addr %s176, 8
          %s178 = scalar_lea.vmem %s1, %s177
        $region24: #{encoder_forward.6} parent=15 // pred_fallthru
          _
        // Predicated region
        $region25: #{encoder_forward.6} parent=15 // pred_check
          %p179 = pneg %p86
        $region26: #{encoder_forward.6} parent=15 // pred_check_branch
          %181 = sbr.rel (%p179) target = $region28
        $region27: #{encoder_forward.6} parent=15 // pred_region
          %p182 = scmp.lt.s32.totalorder %s14, 1
          %s183 = scalar_select %p182, %s14, 1
          %s184 = smul.addr %s183, 16
          %s185 = smul.addr %s184, 8
          %s186 = scalar_lea.vmem %s2, %s185
        $region28: #{encoder_forward.6} parent=15 // pred_fallthru
          _
      $region16: #{encoder_forward.6} parent=5 // pred_fallthru
        _
      %p187 = scmp.le.s32.totalorder 1, %s14
      %p188 = scmp.lt.s32.totalorder %s14, 3
      %p189 = pnand %p187, %p188
      %p190 = pneg %p189
      // Predicated region
      $region29: #{encoder_forward.6} parent=5 // pred_check
        _
      $region30: #{encoder_forward.6} parent=5 // pred_check_branch
        %192 = sbr.rel (%p189) target = $region32
      $region31: #{encoder_forward.6} parent=5 // pred_region
        %s193 = ssub.s32 %s14, 1
        %p194 = scmp.lt.s32.totalorder %s19, 1
        %s195 = scalar_select %p194, %s19, 1
        %s196 = smul.addr %s195, 16
        %s197 = smul.addr %s196, 8
        %s198 = scalar_lea.vmem %s0, %s197
        %p199 = pneg %p40
        %p200 = pneg %p37
        %p201 = scmp.lt.s32.totalorder %s19, 1
        %s202 = scalar_select %p201, %s19, 1
        %s203 = smul.addr %s202, 16
        %s204 = smul.addr %s203, 8
        %s205 = scalar_lea.vmem %s1, %s204
        %p206 = pneg %p66
        %p207 = pneg %p63
        %p208 = scmp.lt.s32.totalorder %s19, 1
        %s209 = scalar_select %p208, %s19, 1
        %s210 = smul.addr %s209, 16
        %s211 = smul.addr %s210, 8
        %s212 = scalar_lea.vmem %s2, %s211
        %p213 = pneg %p92
        %p214 = pneg %p89
        %p215 = pneg %p118
        %p216 = pneg %p115
        %p217 = scmp.lt.s32.totalorder %s19, 1
        %s218 = scalar_select %p217, %s19, 1
        %s219 = smul.addr %s218, 16
        %s220 = smul.addr %s219, 8
        %s221 = scalar_lea.vmem %s3, %s220
        %p222 = pneg %p144
        %p223 = pneg %p141
        %s224 = sand.u32 %s131, 1
        %s225 = scalar_lea.sflag [#allocation3], %s224
        %s226 = sand.u32 %s131, 1
        %s227 = smul.addr %s226, 128
        %s228 = scalar_lea.vmem [#allocation2], %s227
        %p229 = scmp.lt.s32.totalorder %s19, 1
        %s230 = scalar_select %p229, %s19, 1
        %s231 = smul.addr %s230, 16
        %s232 = smul.addr %s231, 8
        %s233 = scalar_lea.vmem %s0, %s232
        %p234 = scmp.lt.s32.totalorder %s19, 1
        %s235 = scalar_select %p234, %s19, 1
        %s236 = smul.addr %s235, 16
        %s237 = smul.addr %s236, 8
        %s238 = scalar_lea.vmem %s1, %s237
        %p239 = scmp.lt.s32.totalorder %s19, 1
        %s240 = scalar_select %p239, %s19, 1
        %s241 = smul.addr %s240, 16
        %s242 = smul.addr %s241, 8
        %s243 = scalar_lea.vmem %s2, %s242
        %p244 = scmp.lt.s32.totalorder %s19, 1
        %s245 = scalar_select %p244, %s19, 1
        %s246 = smul.addr %s245, 16
        %s247 = smul.addr %s246, 8
        %s248 = scalar_lea.vmem %s3, %s247
        %v249 = vld [vmem:[%s233] sm:$0xff]
        %v250 = vld [vmem:[%s233 + $0x8] sm:$0xff]
        %v251 = vld [vmem:[%s233 + $0x10] sm:$0xff]
        %v252 = vld [vmem:[%s233 + $0x18] sm:$0xff]
        %v253 = vld [vmem:[%s233 + $0x20] sm:$0xff]
        %v254 = vld [vmem:[%s233 + $0x28] sm:$0xff]
        %v255 = vld [vmem:[%s233 + $0x30] sm:$0xff]
        %v256 = vld [vmem:[%s233 + $0x38] sm:$0xff]
        %v257 = vld [vmem:[%s233 + $0x40] sm:$0xff]
        %v258 = vld [vmem:[%s233 + $0x48] sm:$0xff]
        %v259 = vld [vmem:[%s233 + $0x50] sm:$0xff]
        %v260 = vld [vmem:[%s233 + $0x58] sm:$0xff]
        %v261 = vld [vmem:[%s233 + $0x60] sm:$0xff]
        %v262 = vld [vmem:[%s233 + $0x68] sm:$0xff]
        %v263 = vld [vmem:[%s233 + $0x70] sm:$0xff]
        %v264 = vld [vmem:[%s233 + $0x78] sm:$0xff]
        %v265 = vld [vmem:[%s238] sm:$0xff]
        %v266 = vld [vmem:[%s238 + $0x8] sm:$0xff]
        %v267 = vld [vmem:[%s238 + $0x10] sm:$0xff]
        %v268 = vld [vmem:[%s238 + $0x18] sm:$0xff]
        %v269 = vld [vmem:[%s238 + $0x20] sm:$0xff]
        %v270 = vld [vmem:[%s238 + $0x28] sm:$0xff]
        %v271 = vld [vmem:[%s238 + $0x30] sm:$0xff]
        %v272 = vld [vmem:[%s238 + $0x38] sm:$0xff]
        %v273 = vld [vmem:[%s238 + $0x40] sm:$0xff]
        %v274 = vld [vmem:[%s238 + $0x48] sm:$0xff]
        %v275 = vld [vmem:[%s238 + $0x50] sm:$0xff]
        %v276 = vld [vmem:[%s238 + $0x58] sm:$0xff]
        %v277 = vld [vmem:[%s238 + $0x60] sm:$0xff]
        %v278 = vld [vmem:[%s238 + $0x68] sm:$0xff]
        %v279 = vld [vmem:[%s238 + $0x70] sm:$0xff]
        %v280 = vld [vmem:[%s238 + $0x78] sm:$0xff]
        %v281 = vld [vmem:[%s243] sm:$0xff]
        %v282 = vld [vmem:[%s243 + $0x8] sm:$0xff]
        %v283 = vld [vmem:[%s243 + $0x10] sm:$0xff]
        %v284 = vld [vmem:[%s243 + $0x18] sm:$0xff]
        %v285 = vld [vmem:[%s243 + $0x20] sm:$0xff]
        %v286 = vld [vmem:[%s243 + $0x28] sm:$0xff]
        %v287 = vld [vmem:[%s243 + $0x30] sm:$0xff]
        %v288 = vld [vmem:[%s243 + $0x38] sm:$0xff]
        %v289 = vld [vmem:[%s243 + $0x40] sm:$0xff]
        %v290 = vld [vmem:[%s243 + $0x48] sm:$0xff]
        %v291 = vld [vmem:[%s243 + $0x50] sm:$0xff]
        %v292 = vld [vmem:[%s243 + $0x58] sm:$0xff]
        %v293 = vld [vmem:[%s243 + $0x60] sm:$0xff]
        %v294 = vld [vmem:[%s243 + $0x68] sm:$0xff]
        %v295 = vld [vmem:[%s243 + $0x70] sm:$0xff]
        %v296 = vld [vmem:[%s243 + $0x78] sm:$0xff]
        %vm297 = vcmask 64512
        %v299 = vsel %vm297, %v249, 0
        %v302 = vsel %vm297, %v250, 0
        %v305 = vsel %vm297, %v265, 0
        %v308 = vsel %vm297, %v266, 0
        %310 = vmatprep.subr.mxu0 0.0
        %311 = vmatpush1.xpose.msra.mxu0 %v305
        %312 = vmatprep.subr.mxu0 0.0
        %313 = vmatpush1.xpose.msra.mxu0 %v308
        %314 = vmatprep.subr.mxu0 0.0
        %315 = vmatpush1.xpose.msra.mxu0 0.0
        %316 = vmatprep.subr.mxu0 0.0
        %317 = vmatpush1.xpose.msra.mxu0 0.0
        %318 = vmatprep.subr.mxu0 0.0
        %319 = vmatpush1.xpose.msra.mxu0 0.0
        %320 = vmatprep.subr.mxu0 0.0
        %321 = vmatpush1.xpose.msra.mxu0 0.0
        %322 = vmatprep.subr.mxu0 0.0
        %323 = vmatpush1.xpose.msra.mxu0 0.0
        %324 = vmatprep.subr.mxu0 0.0
        %325 = vmatpush1.xpose.msra.mxu0 0.0
        %326 = vmatprep.subr.mxu0 0.0
        %327 = vmatpush1.xpose.msra.mxu0 0.0
        %328 = vmatprep.subr.mxu0 0.0
        %329 = vmatpush1.xpose.msra.mxu0 0.0
        %330 = vmatprep.subr.mxu0 0.0
        %331 = vmatpush1.xpose.msra.mxu0 0.0
        %332 = vmatprep.subr.mxu0 0.0
        %333 = vmatpush1.xpose.msra.mxu0 0.0
        %334 = vmatprep.subr.mxu0 0.0
        %335 = vmatpush1.xpose.msra.mxu0 0.0
        %336 = vmatprep.subr.mxu0 0.0
        %337 = vmatpush1.xpose.msra.mxu0 0.0
        %338 = vmatprep.subr.mxu0 0.0
        %339 = vmatpush1.xpose.msra.mxu0 0.0
        %340 = vmatprep.subr.mxu0 0.0
        %341 = vmatpush1.xpose.msra.mxu0 0.0
        %342 = vmatprep.subr.mxu0 0.0
        %343 = vmatpush1.xpose.msra.mxu0 0.0
        %344 = vmatprep.subr.mxu0 0.0
        %345 = vmatpush1.xpose.msra.mxu0 0.0
        %346 = vmatprep.subr.mxu0 0.0
        %347 = vmatpush1.xpose.msra.mxu0 0.0
        %348 = vmatprep.subr.mxu0 0.0
        %349 = vmatpush1.xpose.msra.mxu0 0.0
        %350 = vmatprep.subr.mxu0 0.0
        %351 = vmatpush1.xpose.msra.mxu0 0.0
        %352 = vmatprep.subr.mxu0 0.0
        %353 = vmatpush1.xpose.msra.mxu0 0.0
        %354 = vmatprep.subr.mxu0 0.0
        %355 = vmatpush1.xpose.msra.mxu0 0.0
        %356 = vmatprep.subr.mxu0 0.0
        %357 = vmatpush1.xpose.msra.mxu0 0.0
        %358 = vmatprep.subr.mxu0 0.0
        %359 = vmatpush1.xpose.msra.mxu0 0.0
        %360 = vmatprep.subr.mxu0 0.0
        %361 = vmatpush1.xpose.msra.mxu0 0.0
        %362 = vmatprep.subr.mxu0 0.0
        %363 = vmatpush1.xpose.msra.mxu0 0.0
        %364 = vmatprep.subr.mxu0 0.0
        %365 = vmatpush1.xpose.msra.mxu0 0.0
        %366 = vmatprep.subr.mxu0 0.0
        %367 = vmatpush1.xpose.msra.mxu0 0.0
        %368 = vmatprep.subr.mxu0 0.0
        %369 = vmatpush1.xpose.msra.mxu0 0.0
        %370 = vmatprep.subr.mxu0 0.0
        %371 = vmatpush1.xpose.msra.mxu0 0.0
        %372 = vmatprep.subr.mxu0 0.0
        %373 = vmatpush1.xpose.msra.mxu0 0.0
        %374 = vmatprep.mubr.f32.mxu0 0.0
        %375 = vmatmul.mubr.f32.gmra.mrb[0].mxu0 %v299
        %v376 = vpop.f32.mrb[0].mxu0
        %v377 = vadd.f32 0.0, %v376
        %v378 = vpop.f32.mrb[0].mxu0
        %379 = vmatprep.mubr.f32.mxu0 0.0
        %380 = vmatmul.mubr.f32.gmra.mrb[0].mxu0 %v302
        %v381 = vpop.f32.mrb[0].mxu0
        %v382 = vadd.f32 0.0, %v381
        %v383 = vpop.f32.mrb[0].mxu0
        %384 = vdwg.mxu0
        %v386 = vsel %vm297, %v251, 0
        %v389 = vsel %vm297, %v252, 0
        %v392 = vsel %vm297, %v267, 0
        %v395 = vsel %vm297, %v268, 0
        %397 = vmatprep.subr.mxu0 0.0
        %398 = vmatpush1.xpose.msra.mxu0 %v392
        %399 = vmatprep.subr.mxu0 0.0
        %400 = vmatpush1.xpose.msra.mxu0 %v395
        %401 = vmatprep.subr.mxu0 0.0
        %402 = vmatpush1.xpose.msra.mxu0 0.0
        %403 = vmatprep.subr.mxu0 0.0
        %404 = vmatpush1.xpose.msra.mxu0 0.0
        %405 = vmatprep.subr.mxu0 0.0
        %406 = vmatpush1.xpose.msra.mxu0 0.0
        %407 = vmatprep.subr.mxu0 0.0
        %408 = vmatpush1.xpose.msra.mxu0 0.0
        %409 = vmatprep.subr.mxu0 0.0
        %410 = vmatpush1.xpose.msra.mxu0 0.0
        %411 = vmatprep.subr.mxu0 0.0
        %412 = vmatpush1.xpose.msra.mxu0 0.0
        %413 = vmatprep.subr.mxu0 0.0
        %414 = vmatpush1.xpose.msra.mxu0 0.0
        %415 = vmatprep.subr.mxu0 0.0
        %416 = vmatpush1.xpose.msra.mxu0 0.0
        %417 = vmatprep.subr.mxu0 0.0
        %418 = vmatpush1.xpose.msra.mxu0 0.0
        %419 = vmatprep.subr.mxu0 0.0
        %420 = vmatpush1.xpose.msra.mxu0 0.0
        %421 = vmatprep.subr.mxu0 0.0
        %422 = vmatpush1.xpose.msra.mxu0 0.0
        %423 = vmatprep.subr.mxu0 0.0
        %424 = vmatpush1.xpose.msra.mxu0 0.0
        %425 = vmatprep.subr.mxu0 0.0
        %426 = vmatpush1.xpose.msra.mxu0 0.0
        %427 = vmatprep.subr.mxu0 0.0
        %428 = vmatpush1.xpose.msra.mxu0 0.0
        %429 = vmatprep.subr.mxu0 0.0
        %430 = vmatpush1.xpose.msra.mxu0 0.0
        %431 = vmatprep.subr.mxu0 0.0
        %432 = vmatpush1.xpose.msra.mxu0 0.0
        %433 = vmatprep.subr.mxu0 0.0
        %434 = vmatpush1.xpose.msra.mxu0 0.0
        %435 = vmatprep.subr.mxu0 0.0
        %436 = vmatpush1.xpose.msra.mxu0 0.0
        %437 = vmatprep.subr.mxu0 0.0
        %438 = vmatpush1.xpose.msra.mxu0 0.0
        %439 = vmatprep.subr.mxu0 0.0
        %440 = vmatpush1.xpose.msra.mxu0 0.0
        %441 = vmatprep.subr.mxu0 0.0
        %442 = vmatpush1.xpose.msra.mxu0 0.0
        %443 = vmatprep.subr.mxu0 0.0
        %444 = vmatpush1.xpose.msra.mxu0 0.0
        %445 = vmatprep.subr.mxu0 0.0
        %446 = vmatpush1.xpose.msra.mxu0 0.0
        %447 = vmatprep.subr.mxu0 0.0
        %448 = vmatpush1.xpose.msra.mxu0 0.0
        %449 = vmatprep.subr.mxu0 0.0
        %450 = vmatpush1.xpose.msra.mxu0 0.0
        %451 = vmatprep.subr.mxu0 0.0
        %452 = vmatpush1.xpose.msra.mxu0 0.0
        %453 = vmatprep.subr.mxu0 0.0
        %454 = vmatpush1.xpose.msra.mxu0 0.0
        %455 = vmatprep.subr.mxu0 0.0
        %456 = vmatpush1.xpose.msra.mxu0 0.0
        %457 = vmatprep.subr.mxu0 0.0
        %458 = vmatpush1.xpose.msra.mxu0 0.0
        %459 = vmatprep.subr.mxu0 0.0
        %460 = vmatpush1.xpose.msra.mxu0 0.0
        %461 = vmatprep.mubr.f32.mxu0 0.0
        %462 = vmatmul.mubr.f32.gmra.mrb[0].mxu0 %v386
        %v463 = vpop.f32.mrb[0].mxu0
        %v464 = vadd.f32 0.0, %v463
        %v465 = vpop.f32.mrb[0].mxu0
        %466 = vmatprep.mubr.f32.mxu0 0.0
        %467 = vmatmul.mubr.f32.gmra.mrb[0].mxu0 %v389
        %v468 = vpop.f32.mrb[0].mxu0
        %v469 = vadd.f32 0.0, %v468
        %v470 = vpop.f32.mrb[0].mxu0
        %471 = vdwg.mxu0
        %v473 = vsel %vm297, %v253, 0
        %v476 = vsel %vm297, %v254, 0
        %v479 = vsel %vm297, %v269, 0
        %v482 = vsel %vm297, %v270, 0
        %484 = vmatprep.subr.mxu0 0.0
        %485 = vmatpush1.xpose.msra.mxu0 %v479
        %486 = vmatprep.subr.mxu0 0.0
        %487 = vmatpush1.xpose.msra.mxu0 %v482
        %488 = vmatprep.subr.mxu0 0.0
        %489 = vmatpush1.xpose.msra.mxu0 0.0
        %490 = vmatprep.subr.mxu0 0.0
        %491 = vmatpush1.xpose.msra.mxu0 0.0
        %492 = vmatprep.subr.mxu0 0.0
        %493 = vmatpush1.xpose.msra.mxu0 0.0
        %494 = vmatprep.subr.mxu0 0.0
        %495 = vmatpush1.xpose.msra.mxu0 0.0
        %496 = vmatprep.subr.mxu0 0.0
        %497 = vmatpush1.xpose.msra.mxu0 0.0
        %498 = vmatprep.subr.mxu0 0.0
        %499 = vmatpush1.xpose.msra.mxu0 0.0
        %500 = vmatprep.subr.mxu0 0.0
        %501 = vmatpush1.xpose.msra.mxu0 0.0
        %502 = vmatprep.subr.mxu0 0.0
        %503 = vmatpush1.xpose.msra.mxu0 0.0
        %504 = vmatprep.subr.mxu0 0.0
        %505 = vmatpush1.xpose.msra.mxu0 0.0
        %506 = vmatprep.subr.mxu0 0.0
        %507 = vmatpush1.xpose.msra.mxu0 0.0
        %508 = vmatprep.subr.mxu0 0.0
        %509 = vmatpush1.xpose.msra.mxu0 0.0
        %510 = vmatprep.subr.mxu0 0.0
        %511 = vmatpush1.xpose.msra.mxu0 0.0
        %512 = vmatprep.subr.mxu0 0.0
        %513 = vmatpush1.xpose.msra.mxu0 0.0
        %514 = vmatprep.subr.mxu0 0.0
        %515 = vmatpush1.xpose.msra.mxu0 0.0
        %516 = vmatprep.subr.mxu0 0.0
        %517 = vmatpush1.xpose.msra.mxu0 0.0
        %518 = vmatprep.subr.mxu0 0.0
        %519 = vmatpush1.xpose.msra.mxu0 0.0
        %520 = vmatprep.subr.mxu0 0.0
        %521 = vmatpush1.xpose.msra.mxu0 0.0
        %522 = vmatprep.subr.mxu0 0.0
        %523 = vmatpush1.xpose.msra.mxu0 0.0
        %524 = vmatprep.subr.mxu0 0.0
        %525 = vmatpush1.xpose.msra.mxu0 0.0
        %526 = vmatprep.subr.mxu0 0.0
        %527 = vmatpush1.xpose.msra.mxu0 0.0
        %528 = vmatprep.subr.mxu0 0.0
        %529 = vmatpush1.xpose.msra.mxu0 0.0
        %530 = vmatprep.subr.mxu0 0.0
        %531 = vmatpush1.xpose.msra.mxu0 0.0
        %532 = vmatprep.subr.mxu0 0.0
        %533 = vmatpush1.xpose.msra.mxu0 0.0
        %534 = vmatprep.subr.mxu0 0.0
        %535 = vmatpush1.xpose.msra.mxu0 0.0
        %536 = vmatprep.subr.mxu0 0.0
        %537 = vmatpush1.xpose.msra.mxu0 0.0
        %538 = vmatprep.subr.mxu0 0.0
        %539 = vmatpush1.xpose.msra.mxu0 0.0
        %540 = vmatprep.subr.mxu0 0.0
        %541 = vmatpush1.xpose.msra.mxu0 0.0
        %542 = vmatprep.subr.mxu0 0.0
        %543 = vmatpush1.xpose.msra.mxu0 0.0
        %544 = vmatprep.subr.mxu0 0.0
        %545 = vmatpush1.xpose.msra.mxu0 0.0
        %546 = vmatprep.subr.mxu0 0.0
        %547 = vmatpush1.xpose.msra.mxu0 0.0
        %548 = vmatprep.mubr.f32.mxu0 0.0
        %549 = vmatmul.mubr.f32.gmra.mrb[0].mxu0 %v473
        %v550 = vpop.f32.mrb[0].mxu0
        %v551 = vadd.f32 0.0, %v550
        %v552 = vpop.f32.mrb[0].mxu0
        %553 = vmatprep.mubr.f32.mxu0 0.0
        %554 = vmatmul.mubr.f32.gmra.mrb[0].mxu0 %v476
        %v555 = vpop.f32.mrb[0].mxu0
        %v556 = vadd.f32 0.0, %v555
        %v557 = vpop.f32.mrb[0].mxu0
        %558 = vdwg.mxu0
        %v560 = vsel %vm297, %v255, 0
        %v563 = vsel %vm297, %v256, 0
        %v566 = vsel %vm297, %v271, 0
        %v569 = vsel %vm297, %v272, 0
        %571 = vmatprep.subr.mxu0 0.0
        %572 = vmatpush1.xpose.msra.mxu0 %v566
        %573 = vmatprep.subr.mxu0 0.0
        %574 = vmatpush1.xpose.msra.mxu0 %v569
        %575 = vmatprep.subr.mxu0 0.0
        %576 = vmatpush1.xpose.msra.mxu0 0.0
        %577 = vmatprep.subr.mxu0 0.0
        %578 = vmatpush1.xpose.msra.mxu0 0.0
        %579 = vmatprep.subr.mxu0 0.0
        %580 = vmatpush1.xpose.msra.mxu0 0.0
        %581 = vmatprep.subr.mxu0 0.0
        %582 = vmatpush1.xpose.msra.mxu0 0.0
        %583 = vmatprep.subr.mxu0 0.0
        %584 = vmatpush1.xpose.msra.mxu0 0.0
        %585 = vmatprep.subr.mxu0 0.0
        %586 = vmatpush1.xpose.msra.mxu0 0.0
        %587 = vmatprep.subr.mxu0 0.0
        %588 = vmatpush1.xpose.msra.mxu0 0.0
        %589 = vmatprep.subr.mxu0 0.0
        %590 = vmatpush1.xpose.msra.mxu0 0.0
        %591 = vmatprep.subr.mxu0 0.0
        %592 = vmatpush1.xpose.msra.mxu0 0.0
        %593 = vmatprep.subr.mxu0 0.0
        %594 = vmatpush1.xpose.msra.mxu0 0.0
        %595 = vmatprep.subr.mxu0 0.0
        %596 = vmatpush1.xpose.msra.mxu0 0.0
        %597 = vmatprep.subr.mxu0 0.0
        %598 = vmatpush1.xpose.msra.mxu0 0.0
        %599 = vmatprep.subr.mxu0 0.0
        %600 = vmatpush1.xpose.msra.mxu0 0.0
        %601 = vmatprep.subr.mxu0 0.0
        %602 = vmatpush1.xpose.msra.mxu0 0.0
        %603 = vmatprep.subr.mxu0 0.0
        %604 = vmatpush1.xpose.msra.mxu0 0.0
        %605 = vmatprep.subr.mxu0 0.0
        %606 = vmatpush1.xpose.msra.mxu0 0.0
        %607 = vmatprep.subr.mxu0 0.0
        %608 = vmatpush1.xpose.msra.mxu0 0.0
        %609 = vmatprep.subr.mxu0 0.0
        %610 = vmatpush1.xpose.msra.mxu0 0.0
        %611 = vmatprep.subr.mxu0 0.0
        %612 = vmatpush1.xpose.msra.mxu0 0.0
        %613 = vmatprep.subr.mxu0 0.0
        %614 = vmatpush1.xpose.msra.mxu0 0.0
        %615 = vmatprep.subr.mxu0 0.0
        %616 = vmatpush1.xpose.msra.mxu0 0.0
        %617 = vmatprep.subr.mxu0 0.0
        %618 = vmatpush1.xpose.msra.mxu0 0.0
        %619 = vmatprep.subr.mxu0 0.0
        %620 = vmatpush1.xpose.msra.mxu0 0.0
        %621 = vmatprep.subr.mxu0 0.0
        %622 = vmatpush1.xpose.msra.mxu0 0.0
        %623 = vmatprep.subr.mxu0 0.0
        %624 = vmatpush1.xpose.msra.mxu0 0.0
        %625 = vmatprep.subr.mxu0 0.0
        %626 = vmatpush1.xpose.msra.mxu0 0.0
        %627 = vmatprep.subr.mxu0 0.0
        %628 = vmatpush1.xpose.msra.mxu0 0.0
        %629 = vmatprep.subr.mxu0 0.0
        %630 = vmatpush1.xpose.msra.mxu0 0.0
        %631 = vmatprep.subr.mxu0 0.0
        %632 = vmatpush1.xpose.msra.mxu0 0.0
        %633 = vmatprep.subr.mxu0 0.0
        %634 = vmatpush1.xpose.msra.mxu0 0.0
        %635 = vmatprep.mubr.f32.mxu0 0.0
        %636 = vmatmul.mubr.f32.gmra.mrb[0].mxu0 %v560
        %v637 = vpop.f32.mrb[0].mxu0
        %v638 = vadd.f32 0.0, %v637
        %v639 = vpop.f32.mrb[0].mxu0
        %640 = vmatprep.mubr.f32.mxu0 0.0
        %641 = vmatmul.mubr.f32.gmra.mrb[0].mxu0 %v563
        %v642 = vpop.f32.mrb[0].mxu0
        %v643 = vadd.f32 0.0, %v642
        %v644 = vpop.f32.mrb[0].mxu0
        %645 = vdwg.mxu0
        %v647 = vsel %vm297, %v257, 0
        %v650 = vsel %vm297, %v258, 0
        %v653 = vsel %vm297, %v273, 0
        %v656 = vsel %vm297, %v274, 0
        %658 = vmatprep.subr.mxu0 0.0
        %659 = vmatpush1.xpose.msra.mxu0 %v653
        %660 = vmatprep.subr.mxu0 0.0
        %661 = vmatpush1.xpose.msra.mxu0 %v656
        %662 = vmatprep.subr.mxu0 0.0
        %663 = vmatpush1.xpose.msra.mxu0 0.0
        %664 = vmatprep.subr.mxu0 0.0
        %665 = vmatpush1.xpose.msra.mxu0 0.0
        %666 = vmatprep.subr.mxu0 0.0
        %667 = vmatpush1.xpose.msra.mxu0 0.0
        %668 = vmatprep.subr.mxu0 0.0
        %669 = vmatpush1.xpose.msra.mxu0 0.0
        %670 = vmatprep.subr.mxu0 0.0
        %671 = vmatpush1.xpose.msra.mxu0 0.0
        %672 = vmatprep.subr.mxu0 0.0
        %673 = vmatpush1.xpose.msra.mxu0 0.0
        %674 = vmatprep.subr.mxu0 0.0
        %675 = vmatpush1.xpose.msra.mxu0 0.0
        %676 = vmatprep.subr.mxu0 0.0
        %677 = vmatpush1.xpose.msra.mxu0 0.0
        %678 = vmatprep.subr.mxu0 0.0
        %679 = vmatpush1.xpose.msra.mxu0 0.0
        %680 = vmatprep.subr.mxu0 0.0
        %681 = vmatpush1.xpose.msra.mxu0 0.0
        %682 = vmatprep.subr.mxu0 0.0
        %683 = vmatpush1.xpose.msra.mxu0 0.0
        %684 = vmatprep.subr.mxu0 0.0
        %685 = vmatpush1.xpose.msra.mxu0 0.0
        %686 = vmatprep.subr.mxu0 0.0
        %687 = vmatpush1.xpose.msra.mxu0 0.0
        %688 = vmatprep.subr.mxu0 0.0
        %689 = vmatpush1.xpose.msra.mxu0 0.0
        %690 = vmatprep.subr.mxu0 0.0
        %691 = vmatpush1.xpose.msra.mxu0 0.0
        %692 = vmatprep.subr.mxu0 0.0
        %693 = vmatpush1.xpose.msra.mxu0 0.0
        %694 = vmatprep.subr.mxu0 0.0
        %695 = vmatpush1.xpose.msra.mxu0 0.0
        %696 = vmatprep.subr.mxu0 0.0
        %697 = vmatpush1.xpose.msra.mxu0 0.0
        %698 = vmatprep.subr.mxu0 0.0
        %699 = vmatpush1.xpose.msra.mxu0 0.0
        %700 = vmatprep.subr.mxu0 0.0
        %701 = vmatpush1.xpose.msra.mxu0 0.0
        %702 = vmatprep.subr.mxu0 0.0
        %703 = vmatpush1.xpose.msra.mxu0 0.0
        %704 = vmatprep.subr.mxu0 0.0
        %705 = vmatpush1.xpose.msra.mxu0 0.0
        %706 = vmatprep.subr.mxu0 0.0
        %707 = vmatpush1.xpose.msra.mxu0 0.0
        %708 = vmatprep.subr.mxu0 0.0
        %709 = vmatpush1.xpose.msra.mxu0 0.0
        %710 = vmatprep.subr.mxu0 0.0
        %711 = vmatpush1.xpose.msra.mxu0 0.0
        %712 = vmatprep.subr.mxu0 0.0
        %713 = vmatpush1.xpose.msra.mxu0 0.0
        %714 = vmatprep.subr.mxu0 0.0
        %715 = vmatpush1.xpose.msra.mxu0 0.0
        %716 = vmatprep.subr.mxu0 0.0
        %717 = vmatpush1.xpose.msra.mxu0 0.0
        %718 = vmatprep.subr.mxu0 0.0
        %719 = vmatpush1.xpose.msra.mxu0 0.0
        %720 = vmatprep.subr.mxu0 0.0
        %721 = vmatpush1.xpose.msra.mxu0 0.0
        %722 = vmatprep.mubr.f32.mxu0 0.0
        %723 = vmatmul.mubr.f32.gmra.mrb[0].mxu0 %v647
        %v724 = vpop.f32.mrb[0].mxu0
        %v725 = vadd.f32 0.0, %v724
        %v726 = vpop.f32.mrb[0].mxu0
        %727 = vmatprep.mubr.f32.mxu0 0.0
        %728 = vmatmul.mubr.f32.gmra.mrb[0].mxu0 %v650
        %v729 = vpop.f32.mrb[0].mxu0
        %v730 = vadd.f32 0.0, %v729
        %v731 = vpop.f32.mrb[0].mxu0
        %732 = vdwg.mxu0
        %v734 = vsel %vm297, %v259, 0
        %v737 = vsel %vm297, %v260, 0
        %v740 = vsel %vm297, %v275, 0
        %v743 = vsel %vm297, %v276, 0
        %745 = vmatprep.subr.mxu0 0.0
        %746 = vmatpush1.xpose.msra.mxu0 %v740
        %747 = vmatprep.subr.mxu0 0.0
        %748 = vmatpush1.xpose.msra.mxu0 %v743
        %749 = vmatprep.subr.mxu0 0.0
        %750 = vmatpush1.xpose.msra.mxu0 0.0
        %751 = vmatprep.subr.mxu0 0.0
        %752 = vmatpush1.xpose.msra.mxu0 0.0
        %753 = vmatprep.subr.mxu0 0.0
        %754 = vmatpush1.xpose.msra.mxu0 0.0
        %755 = vmatprep.subr.mxu0 0.0
        %756 = vmatpush1.xpose.msra.mxu0 0.0
        %757 = vmatprep.subr.mxu0 0.0
        %758 = vmatpush1.xpose.msra.mxu0 0.0
        %759 = vmatprep.subr.mxu0 0.0
        %760 = vmatpush1.xpose.msra.mxu0 0.0
        %761 = vmatprep.subr.mxu0 0.0
        %762 = vmatpush1.xpose.msra.mxu0 0.0
        %763 = vmatprep.subr.mxu0 0.0
        %764 = vmatpush1.xpose.msra.mxu0 0.0
        %765 = vmatprep.subr.mxu0 0.0
        %766 = vmatpush1.xpose.msra.mxu0 0.0
        %767 = vmatprep.subr.mxu0 0.0
        %768 = vmatpush1.xpose.msra.mxu0 0.0
        %769 = vmatprep.subr.mxu0 0.0
        %770 = vmatpush1.xpose.msra.mxu0 0.0
        %771 = vmatprep.subr.mxu0 0.0
        %772 = vmatpush1.xpose.msra.mxu0 0.0
        %773 = vmatprep.subr.mxu0 0.0
        %774 = vmatpush1.xpose.msra.mxu0 0.0
        %775 = vmatprep.subr.mxu0 0.0
        %776 = vmatpush1.xpose.msra.mxu0 0.0
        %777 = vmatprep.subr.mxu0 0.0
        %778 = vmatpush1.xpose.msra.mxu0 0.0
        %779 = vmatprep.subr.mxu0 0.0
        %780 = vmatpush1.xpose.msra.mxu0 0.0
        %781 = vmatprep.subr.mxu0 0.0
        %782 = vmatpush1.xpose.msra.mxu0 0.0
        %783 = vmatprep.subr.mxu0 0.0
        %784 = vmatpush1.xpose.msra.mxu0 0.0
        %785 = vmatprep.subr.mxu0 0.0
        %786 = vmatpush1.xpose.msra.mxu0 0.0
        %787 = vmatprep.subr.mxu0 0.0
        %788 = vmatpush1.xpose.msra.mxu0 0.0
        %789 = vmatprep.subr.mxu0 0.0
        %790 = vmatpush1.xpose.msra.mxu0 0.0
        %791 = vmatprep.subr.mxu0 0.0
        %792 = vmatpush1.xpose.msra.mxu0 0.0
        %793 = vmatprep.subr.mxu0 0.0
        %794 = vmatpush1.xpose.msra.mxu0 0.0
        %795 = vmatprep.subr.mxu0 0.0
        %796 = vmatpush1.xpose.msra.mxu0 0.0
        %797 = vmatprep.subr.mxu0 0.0
        %798 = vmatpush1.xpose.msra.mxu0 0.0
        %799 = vmatprep.subr.mxu0 0.0
        %800 = vmatpush1.xpose.msra.mxu0 0.0
        %801 = vmatprep.subr.mxu0 0.0
        %802 = vmatpush1.xpose.msra.mxu0 0.0
        %803 = vmatprep.subr.mxu0 0.0
        %804 = vmatpush1.xpose.msra.mxu0 0.0
        %805 = vmatprep.subr.mxu0 0.0
        %806 = vmatpush1.xpose.msra.mxu0 0.0
        %807 = vmatprep.subr.mxu0 0.0
        %808 = vmatpush1.xpose.msra.mxu0 0.0
        %809 = vmatprep.mubr.f32.mxu0 0.0
        %810 = vmatmul.mubr.f32.gmra.mrb[0].mxu0 %v734
        %v811 = vpop.f32.mrb[0].mxu0
        %v812 = vadd.f32 0.0, %v811
        %v813 = vpop.f32.mrb[0].mxu0
        %814 = vmatprep.mubr.f32.mxu0 0.0
        %815 = vmatmul.mubr.f32.gmra.mrb[0].mxu0 %v737
        %v816 = vpop.f32.mrb[0].mxu0
        %v817 = vadd.f32 0.0, %v816
        %v818 = vpop.f32.mrb[0].mxu0
        %819 = vdwg.mxu0
        %v821 = vsel %vm297, %v261, 0
        %v824 = vsel %vm297, %v262, 0
        %v827 = vsel %vm297, %v277, 0
        %v830 = vsel %vm297, %v278, 0
        %832 = vmatprep.subr.mxu0 0.0
        %833 = vmatpush1.xpose.msra.mxu0 %v827
        %834 = vmatprep.subr.mxu0 0.0
        %835 = vmatpush1.xpose.msra.mxu0 %v830
        %836 = vmatprep.subr.mxu0 0.0
        %837 = vmatpush1.xpose.msra.mxu0 0.0
        %838 = vmatprep.subr.mxu0 0.0
        %839 = vmatpush1.xpose.msra.mxu0 0.0
        %840 = vmatprep.subr.mxu0 0.0
        %841 = vmatpush1.xpose.msra.mxu0 0.0
        %842 = vmatprep.subr.mxu0 0.0
        %843 = vmatpush1.xpose.msra.mxu0 0.0
        %844 = vmatprep.subr.mxu0 0.0
        %845 = vmatpush1.xpose.msra.mxu0 0.0
        %846 = vmatprep.subr.mxu0 0.0
        %847 = vmatpush1.xpose.msra.mxu0 0.0
        %848 = vmatprep.subr.mxu0 0.0
        %849 = vmatpush1.xpose.msra.mxu0 0.0
        %850 = vmatprep.subr.mxu0 0.0
        %851 = vmatpush1.xpose.msra.mxu0 0.0
        %852 = vmatprep.subr.mxu0 0.0
        %853 = vmatpush1.xpose.msra.mxu0 0.0
        %854 = vmatprep.subr.mxu0 0.0
        %855 = vmatpush1.xpose.msra.mxu0 0.0
        %856 = vmatprep.subr.mxu0 0.0
        %857 = vmatpush1.xpose.msra.mxu0 0.0
        %858 = vmatprep.subr.mxu0 0.0
        %859 = vmatpush1.xpose.msra.mxu0 0.0
        %860 = vmatprep.subr.mxu0 0.0
        %861 = vmatpush1.xpose.msra.mxu0 0.0
        %862 = vmatprep.subr.mxu0 0.0
        %863 = vmatpush1.xpose.msra.mxu0 0.0
        %864 = vmatprep.subr.mxu0 0.0
        %865 = vmatpush1.xpose.msra.mxu0 0.0
        %866 = vmatprep.subr.mxu0 0.0
        %867 = vmatpush1.xpose.msra.mxu0 0.0
        %868 = vmatprep.subr.mxu0 0.0
        %869 = vmatpush1.xpose.msra.mxu0 0.0
        %870 = vmatprep.subr.mxu0 0.0
        %871 = vmatpush1.xpose.msra.mxu0 0.0
        %872 = vmatprep.subr.mxu0 0.0
        %873 = vmatpush1.xpose.msra.mxu0 0.0
        %874 = vmatprep.subr.mxu0 0.0
        %875 = vmatpush1.xpose.msra.mxu0 0.0
        %876 = vmatprep.subr.mxu0 0.0
        %877 = vmatpush1.xpose.msra.mxu0 0.0
        %878 = vmatprep.subr.mxu0 0.0
        %879 = vmatpush1.xpose.msra.mxu0 0.0
        %880 = vmatprep.subr.mxu0 0.0
        %881 = vmatpush1.xpose.msra.mxu0 0.0
        %882 = vmatprep.subr.mxu0 0.0
        %883 = vmatpush1.xpose.msra.mxu0 0.0
        %884 = vmatprep.subr.mxu0 0.0
        %885 = vmatpush1.xpose.msra.mxu0 0.0
        %886 = vmatprep.subr.mxu0 0.0
        %887 = vmatpush1.xpose.msra.mxu0 0.0
        %888 = vmatprep.subr.mxu0 0.0
        %889 = vmatpush1.xpose.msra.mxu0 0.0
        %890 = vmatprep.subr.mxu0 0.0
        %891 = vmatpush1.xpose.msra.mxu0 0.0
        %892 = vmatprep.subr.mxu0 0.0
        %893 = vmatpush1.xpose.msra.mxu0 0.0
        %894 = vmatprep.subr.mxu0 0.0
        %895 = vmatpush1.xpose.msra.mxu0 0.0
        %896 = vmatprep.mubr.f32.mxu0 0.0
        %897 = vmatmul.mubr.f32.gmra.mrb[0].mxu0 %v821
        %v898 = vpop.f32.mrb[0].mxu0
        %v899 = vadd.f32 0.0, %v898
        %v900 = vpop.f32.mrb[0].mxu0
        %901 = vmatprep.mubr.f32.mxu0 0.0
        %902 = vmatmul.mubr.f32.gmra.mrb[0].mxu0 %v824
        %v903 = vpop.f32.mrb[0].mxu0
        %v904 = vadd.f32 0.0, %v903
        %v905 = vpop.f32.mrb[0].mxu0
        %906 = vdwg.mxu0
        %v908 = vsel %vm297, %v263, 0
        %v911 = vsel %vm297, %v264, 0
        %v914 = vsel %vm297, %v279, 0
        %v917 = vsel %vm297, %v280, 0
        %919 = vmatprep.subr.mxu0 0.0
        %920 = vmatpush1.xpose.msra.mxu0 %v914
        %921 = vmatprep.subr.mxu0 0.0
        %922 = vmatpush1.xpose.msra.mxu0 %v917
        %923 = vmatprep.subr.mxu0 0.0
        %924 = vmatpush1.xpose.msra.mxu0 0.0
        %925 = vmatprep.subr.mxu0 0.0
        %926 = vmatpush1.xpose.msra.mxu0 0.0
        %927 = vmatprep.subr.mxu0 0.0
        %928 = vmatpush1.xpose.msra.mxu0 0.0
        %929 = vmatprep.subr.mxu0 0.0
        %930 = vmatpush1.xpose.msra.mxu0 0.0
        %931 = vmatprep.subr.mxu0 0.0
        %932 = vmatpush1.xpose.msra.mxu0 0.0
        %933 = vmatprep.subr.mxu0 0.0
        %934 = vmatpush1.xpose.msra.mxu0 0.0
        %935 = vmatprep.subr.mxu0 0.0
        %936 = vmatpush1.xpose.msra.mxu0 0.0
        %937 = vmatprep.subr.mxu0 0.0
        %938 = vmatpush1.xpose.msra.mxu0 0.0
        %939 = vmatprep.subr.mxu0 0.0
        %940 = vmatpush1.xpose.msra.mxu0 0.0
        %941 = vmatprep.subr.mxu0 0.0
        %942 = vmatpush1.xpose.msra.mxu0 0.0
        %943 = vmatprep.subr.mxu0 0.0
        %944 = vmatpush1.xpose.msra.mxu0 0.0
        %945 = vmatprep.subr.mxu0 0.0
        %946 = vmatpush1.xpose.msra.mxu0 0.0
        %947 = vmatprep.subr.mxu0 0.0
        %948 = vmatpush1.xpose.msra.mxu0 0.0
        %949 = vmatprep.subr.mxu0 0.0
        %950 = vmatpush1.xpose.msra.mxu0 0.0
        %951 = vmatprep.subr.mxu0 0.0
        %952 = vmatpush1.xpose.msra.mxu0 0.0
        %953 = vmatprep.subr.mxu0 0.0
        %954 = vmatpush1.xpose.msra.mxu0 0.0
        %955 = vmatprep.subr.mxu0 0.0
        %956 = vmatpush1.xpose.msra.mxu0 0.0
        %957 = vmatprep.subr.mxu0 0.0
        %958 = vmatpush1.xpose.msra.mxu0 0.0
        %959 = vmatprep.subr.mxu0 0.0
        %960 = vmatpush1.xpose.msra.mxu0 0.0
        %961 = vmatprep.subr.mxu0 0.0
        %962 = vmatpush1.xpose.msra.mxu0 0.0
        %963 = vmatprep.subr.mxu0 0.0
        %964 = vmatpush1.xpose.msra.mxu0 0.0
        %965 = vmatprep.subr.mxu0 0.0
        %966 = vmatpush1.xpose.msra.mxu0 0.0
        %967 = vmatprep.subr.mxu0 0.0
        %968 = vmatpush1.xpose.msra.mxu0 0.0
        %969 = vmatprep.subr.mxu0 0.0
        %970 = vmatpush1.xpose.msra.mxu0 0.0
        %971 = vmatprep.subr.mxu0 0.0
        %972 = vmatpush1.xpose.msra.mxu0 0.0
        %973 = vmatprep.subr.mxu0 0.0
        %974 = vmatpush1.xpose.msra.mxu0 0.0
        %975 = vmatprep.subr.mxu0 0.0
        %976 = vmatpush1.xpose.msra.mxu0 0.0
        %977 = vmatprep.subr.mxu0 0.0
        %978 = vmatpush1.xpose.msra.mxu0 0.0
        %979 = vmatprep.subr.mxu0 0.0
        %980 = vmatpush1.xpose.msra.mxu0 0.0
        %981 = vmatprep.subr.mxu0 0.0
        %982 = vmatpush1.xpose.msra.mxu0 0.0
        %983 = vmatprep.mubr.f32.mxu0 0.0
        %984 = vmatmul.mubr.f32.gmra.mrb[0].mxu0 %v908
        %v985 = vpop.f32.mrb[0].mxu0
        %v986 = vadd.f32 0.0, %v985
        %v987 = vpop.f32.mrb[0].mxu0
        %988 = vmatprep.mubr.f32.mxu0 0.0
        %989 = vmatmul.mubr.f32.gmra.mrb[0].mxu0 %v911
        %v990 = vpop.f32.mrb[0].mxu0
        %v991 = vadd.f32 0.0, %v990
        %v992 = vpop.f32.mrb[0].mxu0
        %993 = vdwg.mxu0
        %v994 = vmul.f32 %v377, 0.35355338
        %v995 = vmul.f32 %v382, 0.35355338
        %v996 = vmul.f32 %v464, 0.35355338
        %v997 = vmul.f32 %v469, 0.35355338
        %v998 = vmul.f32 %v551, 0.35355338
        %v999 = vmul.f32 %v556, 0.35355338
        %v1000 = vmul.f32 %v638, 0.35355338
        %v1001 = vmul.f32 %v643, 0.35355338
        %v1002 = vmul.f32 %v725, 0.35355338
        %v1003 = vmul.f32 %v730, 0.35355338
        %v1004 = vmul.f32 %v812, 0.35355338
        %v1005 = vmul.f32 %v817, 0.35355338
        %v1006 = vmul.f32 %v899, 0.35355338
        %v1007 = vmul.f32 %v904, 0.35355338
        %v1008 = vmul.f32 %v986, 0.35355338
        %v1009 = vmul.f32 %v991, 0.35355338
        %vm1010 = vcmask 130048
        %1011 = vst.msk [vmem:[%s228] sm:$0xff] %vm1010, %v994
        %1012 = vst.msk [vmem:[%s228 + $0x8] sm:$0xff] %vm1010, %v995
        %1013 = vst.msk [vmem:[%s228 + $0x10] sm:$0xff] %vm1010, %v996
        %1014 = vst.msk [vmem:[%s228 + $0x18] sm:$0xff] %vm1010, %v997
        %1015 = vst.msk [vmem:[%s228 + $0x20] sm:$0xff] %vm1010, %v998
        %1016 = vst.msk [vmem:[%s228 + $0x28] sm:$0xff] %vm1010, %v999
        %1017 = vst.msk [vmem:[%s228 + $0x30] sm:$0xff] %vm1010, %v1000
        %1018 = vst.msk [vmem:[%s228 + $0x38] sm:$0xff] %vm1010, %v1001
        %1019 = vst.msk [vmem:[%s228 + $0x40] sm:$0xff] %vm1010, %v1002
        %1020 = vst.msk [vmem:[%s228 + $0x48] sm:$0xff] %vm1010, %v1003
        %1021 = vst.msk [vmem:[%s228 + $0x50] sm:$0xff] %vm1010, %v1004
        %1022 = vst.msk [vmem:[%s228 + $0x58] sm:$0xff] %vm1010, %v1005
        %1023 = vst.msk [vmem:[%s228 + $0x60] sm:$0xff] %vm1010, %v1006
        %1024 = vst.msk [vmem:[%s228 + $0x68] sm:$0xff] %vm1010, %v1007
        %1025 = vst.msk [vmem:[%s228 + $0x70] sm:$0xff] %vm1010, %v1008
        %1026 = vst.msk [vmem:[%s228 + $0x78] sm:$0xff] %vm1010, %v1009
        %v1027 = vsel %vm1010, %v994, -inf
        %1028 = vmax.xlane.f32.xlu0 %v1027
        %v1029 = vpop.xlane.xlu0 %1028
        %v1030 = vsel %vm1010, %v995, -inf
        %1031 = vmax.xlane.f32.xlu0 %v1030
        %v1032 = vpop.xlane.xlu0 %1031
        %v1033 = vsel %vm1010, %v996, -inf
        %1034 = vmax.xlane.f32.xlu0 %v1033
        %v1035 = vpop.xlane.xlu0 %1034
        %v1036 = vsel %vm1010, %v997, -inf
        %1037 = vmax.xlane.f32.xlu0 %v1036
        %v1038 = vpop.xlane.xlu0 %1037
        %v1039 = vsel %vm1010, %v998, -inf
        %1040 = vmax.xlane.f32.xlu0 %v1039
        %v1041 = vpop.xlane.xlu0 %1040
        %v1042 = vsel %vm1010, %v999, -inf
        %1043 = vmax.xlane.f32.xlu0 %v1042
        %v1044 = vpop.xlane.xlu0 %1043
        %v1045 = vsel %vm1010, %v1000, -inf
        %1046 = vmax.xlane.f32.xlu0 %v1045
        %v1047 = vpop.xlane.xlu0 %1046
        %v1048 = vsel %vm1010, %v1001, -inf
        %1049 = vmax.xlane.f32.xlu0 %v1048
        %v1050 = vpop.xlane.xlu0 %1049
        %v1051 = vsel %vm1010, %v1002, -inf
        %1052 = vmax.xlane.f32.xlu0 %v1051
        %v1053 = vpop.xlane.xlu0 %1052
        %v1054 = vsel %vm1010, %v1003, -inf
        %1055 = vmax.xlane.f32.xlu0 %v1054
        %v1056 = vpop.xlane.xlu0 %1055
        %v1057 = vsel %vm1010, %v1004, -inf
        %1058 = vmax.xlane.f32.xlu0 %v1057
        %v1059 = vpop.xlane.xlu0 %1058
        %v1060 = vsel %vm1010, %v1005, -inf
        %1061 = vmax.xlane.f32.xlu0 %v1060
        %v1062 = vpop.xlane.xlu0 %1061
        %v1063 = vsel %vm1010, %v1006, -inf
        %1064 = vmax.xlane.f32.xlu0 %v1063
        %v1065 = vpop.xlane.xlu0 %1064
        %v1066 = vsel %vm1010, %v1007, -inf
        %1067 = vmax.xlane.f32.xlu0 %v1066
        %v1068 = vpop.xlane.xlu0 %1067
        %v1069 = vsel %vm1010, %v1008, -inf
        %1070 = vmax.xlane.f32.xlu0 %v1069
        %v1071 = vpop.xlane.xlu0 %1070
        %v1072 = vsel %vm1010, %v1009, -inf
        %1073 = vmax.xlane.f32.xlu0 %v1072
        %v1074 = vpop.xlane.xlu0 %1073
        %v1075 = vsub.f32 %v994, %v1029
        %v1076 = vsub.f32 %v995, %v1032
        %v1077 = vsub.f32 %v996, %v1035
        %v1078 = vsub.f32 %v997, %v1038
        %v1079 = vsub.f32 %v998, %v1041
        %v1080 = vsub.f32 %v999, %v1044
        %v1081 = vsub.f32 %v1000, %v1047
        %v1082 = vsub.f32 %v1001, %v1050
        %v1083 = vsub.f32 %v1002, %v1053
        %v1084 = vsub.f32 %v1003, %v1056
        %v1085 = vsub.f32 %v1004, %v1059
        %v1086 = vsub.f32 %v1005, %v1062
        %v1087 = vsub.f32 %v1006, %v1065
        %v1088 = vsub.f32 %v1007, %v1068
        %v1089 = vsub.f32 %v1008, %v1071
        %v1090 = vsub.f32 %v1009, %v1074
        %v1091 = vmul.f32 %v1075, 1.442695
        %v1092 = vpow.pop %v1091
        %v1093 = vmul.f32 %v1076, 1.442695
        %v1094 = vpow.pop %v1093
        %v1095 = vmul.f32 %v1077, 1.442695
        %v1096 = vpow.pop %v1095
        %v1097 = vmul.f32 %v1078, 1.442695
        %v1098 = vpow.pop %v1097
        %v1099 = vmul.f32 %v1079, 1.442695
        %v1100 = vpow.pop %v1099
        %v1101 = vmul.f32 %v1080, 1.442695
        %v1102 = vpow.pop %v1101
        %v1103 = vmul.f32 %v1081, 1.442695
        %v1104 = vpow.pop %v1103
        %v1105 = vmul.f32 %v1082, 1.442695
        %v1106 = vpow.pop %v1105
        %v1107 = vmul.f32 %v1083, 1.442695
        %v1108 = vpow.pop %v1107
        %v1109 = vmul.f32 %v1084, 1.442695
        %v1110 = vpow.pop %v1109
        %v1111 = vmul.f32 %v1085, 1.442695
        %v1112 = vpow.pop %v1111
        %v1113 = vmul.f32 %v1086, 1.442695
        %v1114 = vpow.pop %v1113
        %v1115 = vmul.f32 %v1087, 1.442695
        %v1116 = vpow.pop %v1115
        %v1117 = vmul.f32 %v1088, 1.442695
        %v1118 = vpow.pop %v1117
        %v1119 = vmul.f32 %v1089, 1.442695
        %v1120 = vpow.pop %v1119
        %v1121 = vmul.f32 %v1090, 1.442695
        %v1122 = vpow.pop %v1121
        %v1123 = vsel %vm1010, %v1092, 0.0
        %1124 = vadd.xlane.f32.xlu0 %v1123
        %v1125 = vpop.xlane.xlu0 %1124
        %v1126 = vsel %vm1010, %v1094, 0.0
        %1127 = vadd.xlane.f32.xlu0 %v1126
        %v1128 = vpop.xlane.xlu0 %1127
        %v1129 = vsel %vm1010, %v1096, 0.0
        %1130 = vadd.xlane.f32.xlu0 %v1129
        %v1131 = vpop.xlane.xlu0 %1130
        %v1132 = vsel %vm1010, %v1098, 0.0
        %1133 = vadd.xlane.f32.xlu0 %v1132
        %v1134 = vpop.xlane.xlu0 %1133
        %v1135 = vsel %vm1010, %v1100, 0.0
        %1136 = vadd.xlane.f32.xlu0 %v1135
        %v1137 = vpop.xlane.xlu0 %1136
        %v1138 = vsel %vm1010, %v1102, 0.0
        %1139 = vadd.xlane.f32.xlu0 %v1138
        %v1140 = vpop.xlane.xlu0 %1139
        %v1141 = vsel %vm1010, %v1104, 0.0
        %1142 = vadd.xlane.f32.xlu0 %v1141
        %v1143 = vpop.xlane.xlu0 %1142
        %v1144 = vsel %vm1010, %v1106, 0.0
        %1145 = vadd.xlane.f32.xlu0 %v1144
        %v1146 = vpop.xlane.xlu0 %1145
        %v1147 = vsel %vm1010, %v1108, 0.0
        %1148 = vadd.xlane.f32.xlu0 %v1147
        %v1149 = vpop.xlane.xlu0 %1148
        %v1150 = vsel %vm1010, %v1110, 0.0
        %1151 = vadd.xlane.f32.xlu0 %v1150
        %v1152 = vpop.xlane.xlu0 %1151
        %v1153 = vsel %vm1010, %v1112, 0.0
        %1154 = vadd.xlane.f32.xlu0 %v1153
        %v1155 = vpop.xlane.xlu0 %1154
        %v1156 = vsel %vm1010, %v1114, 0.0
        %1157 = vadd.xlane.f32.xlu0 %v1156
        %v1158 = vpop.xlane.xlu0 %1157
        %v1159 = vsel %vm1010, %v1116, 0.0
        %1160 = vadd.xlane.f32.xlu0 %v1159
        %v1161 = vpop.xlane.xlu0 %1160
        %v1162 = vsel %vm1010, %v1118, 0.0
        %1163 = vadd.xlane.f32.xlu0 %v1162
        %v1164 = vpop.xlane.xlu0 %1163
        %v1165 = vsel %vm1010, %v1120, 0.0
        %1166 = vadd.xlane.f32.xlu0 %v1165
        %v1167 = vpop.xlane.xlu0 %1166
        %v1168 = vsel %vm1010, %v1122, 0.0
        %1169 = vadd.xlane.f32.xlu0 %v1168
        %v1170 = vpop.xlane.xlu0 %1169
        %v1171 = vrcp.pop %v1125
        %v1172 = vrcp.pop %v1128
        %v1173 = vrcp.pop %v1131
        %v1174 = vrcp.pop %v1134
        %v1175 = vrcp.pop %v1137
        %v1176 = vrcp.pop %v1140
        %v1177 = vrcp.pop %v1143
        %v1178 = vrcp.pop %v1146
        %v1179 = vrcp.pop %v1149
        %v1180 = vrcp.pop %v1152
        %v1181 = vrcp.pop %v1155
        %v1182 = vrcp.pop %v1158
        %v1183 = vrcp.pop %v1161
        %v1184 = vrcp.pop %v1164
        %v1185 = vrcp.pop %v1167
        %v1186 = vrcp.pop %v1170
        %v1187 = vmul.f32 %v1092, %v1171
        %v1188 = vmul.f32 %v1094, %v1172
        %v1189 = vmul.f32 %v1096, %v1173
        %v1190 = vmul.f32 %v1098, %v1174
        %v1191 = vmul.f32 %v1100, %v1175
        %v1192 = vmul.f32 %v1102, %v1176
        %v1193 = vmul.f32 %v1104, %v1177
        %v1194 = vmul.f32 %v1106, %v1178
        %v1195 = vmul.f32 %v1108, %v1179
        %v1196 = vmul.f32 %v1110, %v1180
        %v1197 = vmul.f32 %v1112, %v1181
        %v1198 = vmul.f32 %v1114, %v1182
        %v1199 = vmul.f32 %v1116, %v1183
        %v1200 = vmul.f32 %v1118, %v1184
        %v1201 = vmul.f32 %v1120, %v1185
        %v1202 = vmul.f32 %v1122, %v1186
        %v1204 = vsel %vm1010, %v1187, 0
        %v1207 = vsel %vm1010, %v1188, 0
        %1209 = vmatprep.subr.mxu0 0.0
        %1210 = vmatpush1.msra.mxu0 %v281
        %1211 = vmatprep.subr.mxu0 0.0
        %1212 = vmatpush1.msra.mxu0 %v282
        %1213 = vmatprep.subr.mxu0 0.0
        %1214 = vmatpush1.msra.mxu0 0.0
        %1215 = vmatprep.subr.mxu0 0.0
        %1216 = vmatpush1.msra.mxu0 0.0
        %1217 = vmatprep.subr.mxu0 0.0
        %1218 = vmatpush1.msra.mxu0 0.0
        %1219 = vmatprep.subr.mxu0 0.0
        %1220 = vmatpush1.msra.mxu0 0.0
        %1221 = vmatprep.subr.mxu0 0.0
        %1222 = vmatpush1.msra.mxu0 0.0
        %1223 = vmatprep.subr.mxu0 0.0
        %1224 = vmatpush1.msra.mxu0 0.0
        %1225 = vmatprep.subr.mxu0 0.0
        %1226 = vmatpush1.msra.mxu0 0.0
        %1227 = vmatprep.subr.mxu0 0.0
        %1228 = vmatpush1.msra.mxu0 0.0
        %1229 = vmatprep.subr.mxu0 0.0
        %1230 = vmatpush1.msra.mxu0 0.0
        %1231 = vmatprep.subr.mxu0 0.0
        %1232 = vmatpush1.msra.mxu0 0.0
        %1233 = vmatprep.subr.mxu0 0.0
        %1234 = vmatpush1.msra.mxu0 0.0
        %1235 = vmatprep.subr.mxu0 0.0
        %1236 = vmatpush1.msra.mxu0 0.0
        %1237 = vmatprep.subr.mxu0 0.0
        %1238 = vmatpush1.msra.mxu0 0.0
        %1239 = vmatprep.subr.mxu0 0.0
        %1240 = vmatpush1.msra.mxu0 0.0
        %1241 = vmatprep.subr.mxu0 0.0
        %1242 = vmatpush1.msra.mxu0 0.0
        %1243 = vmatprep.subr.mxu0 0.0
        %1244 = vmatpush1.msra.mxu0 0.0
        %1245 = vmatprep.subr.mxu0 0.0
        %1246 = vmatpush1.msra.mxu0 0.0
        %1247 = vmatprep.subr.mxu0 0.0
        %1248 = vmatpush1.msra.mxu0 0.0
        %1249 = vmatprep.subr.mxu0 0.0
        %1250 = vmatpush1.msra.mxu0 0.0
        %1251 = vmatprep.subr.mxu0 0.0
        %1252 = vmatpush1.msra.mxu0 0.0
        %1253 = vmatprep.subr.mxu0 0.0
        %1254 = vmatpush1.msra.mxu0 0.0
        %1255 = vmatprep.subr.mxu0 0.0
        %1256 = vmatpush1.msra.mxu0 0.0
        %1257 = vmatprep.subr.mxu0 0.0
        %1258 = vmatpush1.msra.mxu0 0.0
        %1259 = vmatprep.subr.mxu0 0.0
        %1260 = vmatpush1.msra.mxu0 0.0
        %1261 = vmatprep.subr.mxu0 0.0
        %1262 = vmatpush1.msra.mxu0 0.0
        %1263 = vmatprep.subr.mxu0 0.0
        %1264 = vmatpush1.msra.mxu0 0.0
        %1265 = vmatprep.subr.mxu0 0.0
        %1266 = vmatpush1.msra.mxu0 0.0
        %1267 = vmatprep.subr.mxu0 0.0
        %1268 = vmatpush1.msra.mxu0 0.0
        %1269 = vmatprep.subr.mxu0 0.0
        %1270 = vmatpush1.msra.mxu0 0.0
        %1271 = vmatprep.subr.mxu0 0.0
        %1272 = vmatpush1.msra.mxu0 0.0
        %1273 = vmatprep.mubr.f32.mxu0 0.0
        %1274 = vmatmul.mubr.f32.gmra.mrb[0].mxu0 %v1204
        %v1275 = vpop.f32.mrb[0].mxu0
        %v1276 = vadd.f32 0.0, %v1275
        %v1277 = vpop.f32.mrb[0].mxu0
        %1278 = vmatprep.mubr.f32.mxu0 0.0
        %1279 = vmatmul.mubr.f32.gmra.mrb[0].mxu0 %v1207
        %v1280 = vpop.f32.mrb[0].mxu0
        %v1281 = vadd.f32 0.0, %v1280
        %v1282 = vpop.f32.mrb[0].mxu0
        %1283 = vdwg.mxu0
        %v1285 = vsel %vm1010, %v1189, 0
        %v1288 = vsel %vm1010, %v1190, 0
        %1290 = vmatprep.subr.mxu0 0.0
        %1291 = vmatpush1.msra.mxu0 %v283
        %1292 = vmatprep.subr.mxu0 0.0
        %1293 = vmatpush1.msra.mxu0 %v284
        %1294 = vmatprep.subr.mxu0 0.0
        %1295 = vmatpush1.msra.mxu0 0.0
        %1296 = vmatprep.subr.mxu0 0.0
        %1297 = vmatpush1.msra.mxu0 0.0
        %1298 = vmatprep.subr.mxu0 0.0
        %1299 = vmatpush1.msra.mxu0 0.0
        %1300 = vmatprep.subr.mxu0 0.0
        %1301 = vmatpush1.msra.mxu0 0.0
        %1302 = vmatprep.subr.mxu0 0.0
        %1303 = vmatpush1.msra.mxu0 0.0
        %1304 = vmatprep.subr.mxu0 0.0
        %1305 = vmatpush1.msra.mxu0 0.0
        %1306 = vmatprep.subr.mxu0 0.0
        %1307 = vmatpush1.msra.mxu0 0.0
        %1308 = vmatprep.subr.mxu0 0.0
        %1309 = vmatpush1.msra.mxu0 0.0
        %1310 = vmatprep.subr.mxu0 0.0
        %1311 = vmatpush1.msra.mxu0 0.0
        %1312 = vmatprep.subr.mxu0 0.0
        %1313 = vmatpush1.msra.mxu0 0.0
        %1314 = vmatprep.subr.mxu0 0.0
        %1315 = vmatpush1.msra.mxu0 0.0
        %1316 = vmatprep.subr.mxu0 0.0
        %1317 = vmatpush1.msra.mxu0 0.0
        %1318 = vmatprep.subr.mxu0 0.0
        %1319 = vmatpush1.msra.mxu0 0.0
        %1320 = vmatprep.subr.mxu0 0.0
        %1321 = vmatpush1.msra.mxu0 0.0
        %1322 = vmatprep.subr.mxu0 0.0
        %1323 = vmatpush1.msra.mxu0 0.0
        %1324 = vmatprep.subr.mxu0 0.0
        %1325 = vmatpush1.msra.mxu0 0.0
        %1326 = vmatprep.subr.mxu0 0.0
        %1327 = vmatpush1.msra.mxu0 0.0
        %1328 = vmatprep.subr.mxu0 0.0
        %1329 = vmatpush1.msra.mxu0 0.0
        %1330 = vmatprep.subr.mxu0 0.0
        %1331 = vmatpush1.msra.mxu0 0.0
        %1332 = vmatprep.subr.mxu0 0.0
        %1333 = vmatpush1.msra.mxu0 0.0
        %1334 = vmatprep.subr.mxu0 0.0
        %1335 = vmatpush1.msra.mxu0 0.0
        %1336 = vmatprep.subr.mxu0 0.0
        %1337 = vmatpush1.msra.mxu0 0.0
        %1338 = vmatprep.subr.mxu0 0.0
        %1339 = vmatpush1.msra.mxu0 0.0
        %1340 = vmatprep.subr.mxu0 0.0
        %1341 = vmatpush1.msra.mxu0 0.0
        %1342 = vmatprep.subr.mxu0 0.0
        %1343 = vmatpush1.msra.mxu0 0.0
        %1344 = vmatprep.subr.mxu0 0.0
        %1345 = vmatpush1.msra.mxu0 0.0
        %1346 = vmatprep.subr.mxu0 0.0
        %1347 = vmatpush1.msra.mxu0 0.0
        %1348 = vmatprep.subr.mxu0 0.0
        %1349 = vmatpush1.msra.mxu0 0.0
        %1350 = vmatprep.subr.mxu0 0.0
        %1351 = vmatpush1.msra.mxu0 0.0
        %1352 = vmatprep.subr.mxu0 0.0
        %1353 = vmatpush1.msra.mxu0 0.0
        %1354 = vmatprep.mubr.f32.mxu0 0.0
        %1355 = vmatmul.mubr.f32.gmra.mrb[0].mxu0 %v1285
        %v1356 = vpop.f32.mrb[0].mxu0
        %v1357 = vadd.f32 0.0, %v1356
        %v1358 = vpop.f32.mrb[0].mxu0
        %1359 = vmatprep.mubr.f32.mxu0 0.0
        %1360 = vmatmul.mubr.f32.gmra.mrb[0].mxu0 %v1288
        %v1361 = vpop.f32.mrb[0].mxu0
        %v1362 = vadd.f32 0.0, %v1361
        %v1363 = vpop.f32.mrb[0].mxu0
        %1364 = vdwg.mxu0
        %v1366 = vsel %vm1010, %v1191, 0
        %v1369 = vsel %vm1010, %v1192, 0
        %1371 = vmatprep.subr.mxu0 0.0
        %1372 = vmatpush1.msra.mxu0 %v285
        %1373 = vmatprep.subr.mxu0 0.0
        %1374 = vmatpush1.msra.mxu0 %v286
        %1375 = vmatprep.subr.mxu0 0.0
        %1376 = vmatpush1.msra.mxu0 0.0
        %1377 = vmatprep.subr.mxu0 0.0
        %1378 = vmatpush1.msra.mxu0 0.0
        %1379 = vmatprep.subr.mxu0 0.0
        %1380 = vmatpush1.msra.mxu0 0.0
        %1381 = vmatprep.subr.mxu0 0.0
        %1382 = vmatpush1.msra.mxu0 0.0
        %1383 = vmatprep.subr.mxu0 0.0
        %1384 = vmatpush1.msra.mxu0 0.0
        %1385 = vmatprep.subr.mxu0 0.0
        %1386 = vmatpush1.msra.mxu0 0.0
        %1387 = vmatprep.subr.mxu0 0.0
        %1388 = vmatpush1.msra.mxu0 0.0
        %1389 = vmatprep.subr.mxu0 0.0
        %1390 = vmatpush1.msra.mxu0 0.0
        %1391 = vmatprep.subr.mxu0 0.0
        %1392 = vmatpush1.msra.mxu0 0.0
        %1393 = vmatprep.subr.mxu0 0.0
        %1394 = vmatpush1.msra.mxu0 0.0
        %1395 = vmatprep.subr.mxu0 0.0
        %1396 = vmatpush1.msra.mxu0 0.0
        %1397 = vmatprep.subr.mxu0 0.0
        %1398 = vmatpush1.msra.mxu0 0.0
        %1399 = vmatprep.subr.mxu0 0.0
        %1400 = vmatpush1.msra.mxu0 0.0
        %1401 = vmatprep.subr.mxu0 0.0
        %1402 = vmatpush1.msra.mxu0 0.0
        %1403 = vmatprep.subr.mxu0 0.0
        %1404 = vmatpush1.msra.mxu0 0.0
        %1405 = vmatprep.subr.mxu0 0.0
        %1406 = vmatpush1.msra.mxu0 0.0
        %1407 = vmatprep.subr.mxu0 0.0
        %1408 = vmatpush1.msra.mxu0 0.0
        %1409 = vmatprep.subr.mxu0 0.0
        %1410 = vmatpush1.msra.mxu0 0.0
        %1411 = vmatprep.subr.mxu0 0.0
        %1412 = vmatpush1.msra.mxu0 0.0
        %1413 = vmatprep.subr.mxu0 0.0
        %1414 = vmatpush1.msra.mxu0 0.0
        %1415 = vmatprep.subr.mxu0 0.0
        %1416 = vmatpush1.msra.mxu0 0.0
        %1417 = vmatprep.subr.mxu0 0.0
        %1418 = vmatpush1.msra.mxu0 0.0
        %1419 = vmatprep.subr.mxu0 0.0
        %1420 = vmatpush1.msra.mxu0 0.0
        %1421 = vmatprep.subr.mxu0 0.0
        %1422 = vmatpush1.msra.mxu0 0.0
        %1423 = vmatprep.subr.mxu0 0.0
        %1424 = vmatpush1.msra.mxu0 0.0
        %1425 = vmatprep.subr.mxu0 0.0
        %1426 = vmatpush1.msra.mxu0 0.0
        %1427 = vmatprep.subr.mxu0 0.0
        %1428 = vmatpush1.msra.mxu0 0.0
        %1429 = vmatprep.subr.mxu0 0.0
        %1430 = vmatpush1.msra.mxu0 0.0
        %1431 = vmatprep.subr.mxu0 0.0
        %1432 = vmatpush1.msra.mxu0 0.0
        %1433 = vmatprep.subr.mxu0 0.0
        %1434 = vmatpush1.msra.mxu0 0.0
        %1435 = vmatprep.mubr.f32.mxu0 0.0
        %1436 = vmatmul.mubr.f32.gmra.mrb[0].mxu0 %v1366
        %v1437 = vpop.f32.mrb[0].mxu0
        %v1438 = vadd.f32 0.0, %v1437
        %v1439 = vpop.f32.mrb[0].mxu0
        %1440 = vmatprep.mubr.f32.mxu0 0.0
        %1441 = vmatmul.mubr.f32.gmra.mrb[0].mxu0 %v1369
        %v1442 = vpop.f32.mrb[0].mxu0
        %v1443 = vadd.f32 0.0, %v1442
        %v1444 = vpop.f32.mrb[0].mxu0
        %1445 = vdwg.mxu0
        %v1447 = vsel %vm1010, %v1193, 0
        %v1450 = vsel %vm1010, %v1194, 0
        %1452 = vmatprep.subr.mxu0 0.0
        %1453 = vmatpush1.msra.mxu0 %v287
        %1454 = vmatprep.subr.mxu0 0.0
        %1455 = vmatpush1.msra.mxu0 %v288
        %1456 = vmatprep.subr.mxu0 0.0
        %1457 = vmatpush1.msra.mxu0 0.0
        %1458 = vmatprep.subr.mxu0 0.0
        %1459 = vmatpush1.msra.mxu0 0.0
        %1460 = vmatprep.subr.mxu0 0.0
        %1461 = vmatpush1.msra.mxu0 0.0
        %1462 = vmatprep.subr.mxu0 0.0
        %1463 = vmatpush1.msra.mxu0 0.0
        %1464 = vmatprep.subr.mxu0 0.0
        %1465 = vmatpush1.msra.mxu0 0.0
        %1466 = vmatprep.subr.mxu0 0.0
        %1467 = vmatpush1.msra.mxu0 0.0
        %1468 = vmatprep.subr.mxu0 0.0
        %1469 = vmatpush1.msra.mxu0 0.0
        %1470 = vmatprep.subr.mxu0 0.0
        %1471 = vmatpush1.msra.mxu0 0.0
        %1472 = vmatprep.subr.mxu0 0.0
        %1473 = vmatpush1.msra.mxu0 0.0
        %1474 = vmatprep.subr.mxu0 0.0
        %1475 = vmatpush1.msra.mxu0 0.0
        %1476 = vmatprep.subr.mxu0 0.0
        %1477 = vmatpush1.msra.mxu0 0.0
        %1478 = vmatprep.subr.mxu0 0.0
        %1479 = vmatpush1.msra.mxu0 0.0
        %1480 = vmatprep.subr.mxu0 0.0
        %1481 = vmatpush1.msra.mxu0 0.0
        %1482 = vmatprep.subr.mxu0 0.0
        %1483 = vmatpush1.msra.mxu0 0.0
        %1484 = vmatprep.subr.mxu0 0.0
        %1485 = vmatpush1.msra.mxu0 0.0
        %1486 = vmatprep.subr.mxu0 0.0
        %1487 = vmatpush1.msra.mxu0 0.0
        %1488 = vmatprep.subr.mxu0 0.0
        %1489 = vmatpush1.msra.mxu0 0.0
        %1490 = vmatprep.subr.mxu0 0.0
        %1491 = vmatpush1.msra.mxu0 0.0
        %1492 = vmatprep.subr.mxu0 0.0
        %1493 = vmatpush1.msra.mxu0 0.0
        %1494 = vmatprep.subr.mxu0 0.0
        %1495 = vmatpush1.msra.mxu0 0.0
        %1496 = vmatprep.subr.mxu0 0.0
        %1497 = vmatpush1.msra.mxu0 0.0
        %1498 = vmatprep.subr.mxu0 0.0
        %1499 = vmatpush1.msra.mxu0 0.0
        %1500 = vmatprep.subr.mxu0 0.0
        %1501 = vmatpush1.msra.mxu0 0.0
        %1502 = vmatprep.subr.mxu0 0.0
        %1503 = vmatpush1.msra.mxu0 0.0
        %1504 = vmatprep.subr.mxu0 0.0
        %1505 = vmatpush1.msra.mxu0 0.0
        %1506 = vmatprep.subr.mxu0 0.0
        %1507 = vmatpush1.msra.mxu0 0.0
        %1508 = vmatprep.subr.mxu0 0.0
        %1509 = vmatpush1.msra.mxu0 0.0
        %1510 = vmatprep.subr.mxu0 0.0
        %1511 = vmatpush1.msra.mxu0 0.0
        %1512 = vmatprep.subr.mxu0 0.0
        %1513 = vmatpush1.msra.mxu0 0.0
        %1514 = vmatprep.subr.mxu0 0.0
        %1515 = vmatpush1.msra.mxu0 0.0
        %1516 = vmatprep.mubr.f32.mxu0 0.0
        %1517 = vmatmul.mubr.f32.gmra.mrb[0].mxu0 %v1447
        %v1518 = vpop.f32.mrb[0].mxu0
        %v1519 = vadd.f32 0.0, %v1518
        %v1520 = vpop.f32.mrb[0].mxu0
        %1521 = vmatprep.mubr.f32.mxu0 0.0
        %1522 = vmatmul.mubr.f32.gmra.mrb[0].mxu0 %v1450
        %v1523 = vpop.f32.mrb[0].mxu0
        %v1524 = vadd.f32 0.0, %v1523
        %v1525 = vpop.f32.mrb[0].mxu0
        %1526 = vdwg.mxu0
        %v1528 = vsel %vm1010, %v1195, 0
        %v1531 = vsel %vm1010, %v1196, 0
        %1533 = vmatprep.subr.mxu0 0.0
        %1534 = vmatpush1.msra.mxu0 %v289
        %1535 = vmatprep.subr.mxu0 0.0
        %1536 = vmatpush1.msra.mxu0 %v290
        %1537 = vmatprep.subr.mxu0 0.0
        %1538 = vmatpush1.msra.mxu0 0.0
        %1539 = vmatprep.subr.mxu0 0.0
        %1540 = vmatpush1.msra.mxu0 0.0
        %1541 = vmatprep.subr.mxu0 0.0
        %1542 = vmatpush1.msra.mxu0 0.0
        %1543 = vmatprep.subr.mxu0 0.0
        %1544 = vmatpush1.msra.mxu0 0.0
        %1545 = vmatprep.subr.mxu0 0.0
        %1546 = vmatpush1.msra.mxu0 0.0
        %1547 = vmatprep.subr.mxu0 0.0
        %1548 = vmatpush1.msra.mxu0 0.0
        %1549 = vmatprep.subr.mxu0 0.0
        %1550 = vmatpush1.msra.mxu0 0.0
        %1551 = vmatprep.subr.mxu0 0.0
        %1552 = vmatpush1.msra.mxu0 0.0
        %1553 = vmatprep.subr.mxu0 0.0
        %1554 = vmatpush1.msra.mxu0 0.0
        %1555 = vmatprep.subr.mxu0 0.0
        %1556 = vmatpush1.msra.mxu0 0.0
        %1557 = vmatprep.subr.mxu0 0.0
        %1558 = vmatpush1.msra.mxu0 0.0
        %1559 = vmatprep.subr.mxu0 0.0
        %1560 = vmatpush1.msra.mxu0 0.0
        %1561 = vmatprep.subr.mxu0 0.0
        %1562 = vmatpush1.msra.mxu0 0.0
        %1563 = vmatprep.subr.mxu0 0.0
        %1564 = vmatpush1.msra.mxu0 0.0
        %1565 = vmatprep.subr.mxu0 0.0
        %1566 = vmatpush1.msra.mxu0 0.0
        %1567 = vmatprep.subr.mxu0 0.0
        %1568 = vmatpush1.msra.mxu0 0.0
        %1569 = vmatprep.subr.mxu0 0.0
        %1570 = vmatpush1.msra.mxu0 0.0
        %1571 = vmatprep.subr.mxu0 0.0
        %1572 = vmatpush1.msra.mxu0 0.0
        %1573 = vmatprep.subr.mxu0 0.0
        %1574 = vmatpush1.msra.mxu0 0.0
        %1575 = vmatprep.subr.mxu0 0.0
        %1576 = vmatpush1.msra.mxu0 0.0
        %1577 = vmatprep.subr.mxu0 0.0
        %1578 = vmatpush1.msra.mxu0 0.0
        %1579 = vmatprep.subr.mxu0 0.0
        %1580 = vmatpush1.msra.mxu0 0.0
        %1581 = vmatprep.subr.mxu0 0.0
        %1582 = vmatpush1.msra.mxu0 0.0
        %1583 = vmatprep.subr.mxu0 0.0
        %1584 = vmatpush1.msra.mxu0 0.0
        %1585 = vmatprep.subr.mxu0 0.0
        %1586 = vmatpush1.msra.mxu0 0.0
        %1587 = vmatprep.subr.mxu0 0.0
        %1588 = vmatpush1.msra.mxu0 0.0
        %1589 = vmatprep.subr.mxu0 0.0
        %1590 = vmatpush1.msra.mxu0 0.0
        %1591 = vmatprep.subr.mxu0 0.0
        %1592 = vmatpush1.msra.mxu0 0.0
        %1593 = vmatprep.subr.mxu0 0.0
        %1594 = vmatpush1.msra.mxu0 0.0
        %1595 = vmatprep.subr.mxu0 0.0
        %1596 = vmatpush1.msra.mxu0 0.0
        %1597 = vmatprep.mubr.f32.mxu0 0.0
        %1598 = vmatmul.mubr.f32.gmra.mrb[0].mxu0 %v1528
        %v1599 = vpop.f32.mrb[0].mxu0
        %v1600 = vadd.f32 0.0, %v1599
        %v1601 = vpop.f32.mrb[0].mxu0
        %1602 = vmatprep.mubr.f32.mxu0 0.0
        %1603 = vmatmul.mubr.f32.gmra.mrb[0].mxu0 %v1531
        %v1604 = vpop.f32.mrb[0].mxu0
        %v1605 = vadd.f32 0.0, %v1604
        %v1606 = vpop.f32.mrb[0].mxu0
        %1607 = vdwg.mxu0
        %v1609 = vsel %vm1010, %v1197, 0
        %v1612 = vsel %vm1010, %v1198, 0
        %1614 = vmatprep.subr.mxu0 0.0
        %1615 = vmatpush1.msra.mxu0 %v291
        %1616 = vmatprep.subr.mxu0 0.0
        %1617 = vmatpush1.msra.mxu0 %v292
        %1618 = vmatprep.subr.mxu0 0.0
        %1619 = vmatpush1.msra.mxu0 0.0
        %1620 = vmatprep.subr.mxu0 0.0
        %1621 = vmatpush1.msra.mxu0 0.0
        %1622 = vmatprep.subr.mxu0 0.0
        %1623 = vmatpush1.msra.mxu0 0.0
        %1624 = vmatprep.subr.mxu0 0.0
        %1625 = vmatpush1.msra.mxu0 0.0
        %1626 = vmatprep.subr.mxu0 0.0
        %1627 = vmatpush1.msra.mxu0 0.0
        %1628 = vmatprep.subr.mxu0 0.0
        %1629 = vmatpush1.msra.mxu0 0.0
        %1630 = vmatprep.subr.mxu0 0.0
        %1631 = vmatpush1.msra.mxu0 0.0
        %1632 = vmatprep.subr.mxu0 0.0
        %1633 = vmatpush1.msra.mxu0 0.0
        %1634 = vmatprep.subr.mxu0 0.0
        %1635 = vmatpush1.msra.mxu0 0.0
        %1636 = vmatprep.subr.mxu0 0.0
        %1637 = vmatpush1.msra.mxu0 0.0
        %1638 = vmatprep.subr.mxu0 0.0
        %1639 = vmatpush1.msra.mxu0 0.0
        %1640 = vmatprep.subr.mxu0 0.0
        %1641 = vmatpush1.msra.mxu0 0.0
        %1642 = vmatprep.subr.mxu0 0.0
        %1643 = vmatpush1.msra.mxu0 0.0
        %1644 = vmatprep.subr.mxu0 0.0
        %1645 = vmatpush1.msra.mxu0 0.0
        %1646 = vmatprep.subr.mxu0 0.0
        %1647 = vmatpush1.msra.mxu0 0.0
        %1648 = vmatprep.subr.mxu0 0.0
        %1649 = vmatpush1.msra.mxu0 0.0
        %1650 = vmatprep.subr.mxu0 0.0
        %1651 = vmatpush1.msra.mxu0 0.0
        %1652 = vmatprep.subr.mxu0 0.0
        %1653 = vmatpush1.msra.mxu0 0.0
        %1654 = vmatprep.subr.mxu0 0.0
        %1655 = vmatpush1.msra.mxu0 0.0
        %1656 = vmatprep.subr.mxu0 0.0
        %1657 = vmatpush1.msra.mxu0 0.0
        %1658 = vmatprep.subr.mxu0 0.0
        %1659 = vmatpush1.msra.mxu0 0.0
        %1660 = vmatprep.subr.mxu0 0.0
        %1661 = vmatpush1.msra.mxu0 0.0
        %1662 = vmatprep.subr.mxu0 0.0
        %1663 = vmatpush1.msra.mxu0 0.0
        %1664 = vmatprep.subr.mxu0 0.0
        %1665 = vmatpush1.msra.mxu0 0.0
        %1666 = vmatprep.subr.mxu0 0.0
        %1667 = vmatpush1.msra.mxu0 0.0
        %1668 = vmatprep.subr.mxu0 0.0
        %1669 = vmatpush1.msra.mxu0 0.0
        %1670 = vmatprep.subr.mxu0 0.0
        %1671 = vmatpush1.msra.mxu0 0.0
        %1672 = vmatprep.subr.mxu0 0.0
        %1673 = vmatpush1.msra.mxu0 0.0
        %1674 = vmatprep.subr.mxu0 0.0
        %1675 = vmatpush1.msra.mxu0 0.0
        %1676 = vmatprep.subr.mxu0 0.0
        %1677 = vmatpush1.msra.mxu0 0.0
        %1678 = vmatprep.mubr.f32.mxu0 0.0
        %1679 = vmatmul.mubr.f32.gmra.mrb[0].mxu0 %v1609
        %v1680 = vpop.f32.mrb[0].mxu0
        %v1681 = vadd.f32 0.0, %v1680
        %v1682 = vpop.f32.mrb[0].mxu0
        %1683 = vmatprep.mubr.f32.mxu0 0.0
        %1684 = vmatmul.mubr.f32.gmra.mrb[0].mxu0 %v1612
        %v1685 = vpop.f32.mrb[0].mxu0
        %v1686 = vadd.f32 0.0, %v1685
        %v1687 = vpop.f32.mrb[0].mxu0
        %1688 = vdwg.mxu0
        %v1690 = vsel %vm1010, %v1199, 0
        %v1693 = vsel %vm1010, %v1200, 0
        %1695 = vmatprep.subr.mxu0 0.0
        %1696 = vmatpush1.msra.mxu0 %v293
        %1697 = vmatprep.subr.mxu0 0.0
        %1698 = vmatpush1.msra.mxu0 %v294
        %1699 = vmatprep.subr.mxu0 0.0
        %1700 = vmatpush1.msra.mxu0 0.0
        %1701 = vmatprep.subr.mxu0 0.0
        %1702 = vmatpush1.msra.mxu0 0.0
        %1703 = vmatprep.subr.mxu0 0.0
        %1704 = vmatpush1.msra.mxu0 0.0
        %1705 = vmatprep.subr.mxu0 0.0
        %1706 = vmatpush1.msra.mxu0 0.0
        %1707 = vmatprep.subr.mxu0 0.0
        %1708 = vmatpush1.msra.mxu0 0.0
        %1709 = vmatprep.subr.mxu0 0.0
        %1710 = vmatpush1.msra.mxu0 0.0
        %1711 = vmatprep.subr.mxu0 0.0
        %1712 = vmatpush1.msra.mxu0 0.0
        %1713 = vmatprep.subr.mxu0 0.0
        %1714 = vmatpush1.msra.mxu0 0.0
        %1715 = vmatprep.subr.mxu0 0.0
        %1716 = vmatpush1.msra.mxu0 0.0
        %1717 = vmatprep.subr.mxu0 0.0
        %1718 = vmatpush1.msra.mxu0 0.0
        %1719 = vmatprep.subr.mxu0 0.0
        %1720 = vmatpush1.msra.mxu0 0.0
        %1721 = vmatprep.subr.mxu0 0.0
        %1722 = vmatpush1.msra.mxu0 0.0
        %1723 = vmatprep.subr.mxu0 0.0
        %1724 = vmatpush1.msra.mxu0 0.0
        %1725 = vmatprep.subr.mxu0 0.0
        %1726 = vmatpush1.msra.mxu0 0.0
        %1727 = vmatprep.subr.mxu0 0.0
        %1728 = vmatpush1.msra.mxu0 0.0
        %1729 = vmatprep.subr.mxu0 0.0
        %1730 = vmatpush1.msra.mxu0 0.0
        %1731 = vmatprep.subr.mxu0 0.0
        %1732 = vmatpush1.msra.mxu0 0.0
        %1733 = vmatprep.subr.mxu0 0.0
        %1734 = vmatpush1.msra.mxu0 0.0
        %1735 = vmatprep.subr.mxu0 0.0
        %1736 = vmatpush1.msra.mxu0 0.0
        %1737 = vmatprep.subr.mxu0 0.0
        %1738 = vmatpush1.msra.mxu0 0.0
        %1739 = vmatprep.subr.mxu0 0.0
        %1740 = vmatpush1.msra.mxu0 0.0
        %1741 = vmatprep.subr.mxu0 0.0
        %1742 = vmatpush1.msra.mxu0 0.0
        %1743 = vmatprep.subr.mxu0 0.0
        %1744 = vmatpush1.msra.mxu0 0.0
        %1745 = vmatprep.subr.mxu0 0.0
        %1746 = vmatpush1.msra.mxu0 0.0
        %1747 = vmatprep.subr.mxu0 0.0
        %1748 = vmatpush1.msra.mxu0 0.0
        %1749 = vmatprep.subr.mxu0 0.0
        %1750 = vmatpush1.msra.mxu0 0.0
        %1751 = vmatprep.subr.mxu0 0.0
        %1752 = vmatpush1.msra.mxu0 0.0
        %1753 = vmatprep.subr.mxu0 0.0
        %1754 = vmatpush1.msra.mxu0 0.0
        %1755 = vmatprep.subr.mxu0 0.0
        %1756 = vmatpush1.msra.mxu0 0.0
        %1757 = vmatprep.subr.mxu0 0.0
        %1758 = vmatpush1.msra.mxu0 0.0
        %1759 = vmatprep.mubr.f32.mxu0 0.0
        %1760 = vmatmul.mubr.f32.gmra.mrb[0].mxu0 %v1690
        %v1761 = vpop.f32.mrb[0].mxu0
        %v1762 = vadd.f32 0.0, %v1761
        %v1763 = vpop.f32.mrb[0].mxu0
        %1764 = vmatprep.mubr.f32.mxu0 0.0
        %1765 = vmatmul.mubr.f32.gmra.mrb[0].mxu0 %v1693
        %v1766 = vpop.f32.mrb[0].mxu0
        %v1767 = vadd.f32 0.0, %v1766
        %v1768 = vpop.f32.mrb[0].mxu0
        %1769 = vdwg.mxu0
        %v1771 = vsel %vm1010, %v1201, 0
        %v1774 = vsel %vm1010, %v1202, 0
        %1776 = vmatprep.subr.mxu0 0.0
        %1777 = vmatpush1.msra.mxu0 %v295
        %1778 = vmatprep.subr.mxu0 0.0
        %1779 = vmatpush1.msra.mxu0 %v296
        %1780 = vmatprep.subr.mxu0 0.0
        %1781 = vmatpush1.msra.mxu0 0.0
        %1782 = vmatprep.subr.mxu0 0.0
        %1783 = vmatpush1.msra.mxu0 0.0
        %1784 = vmatprep.subr.mxu0 0.0
        %1785 = vmatpush1.msra.mxu0 0.0
        %1786 = vmatprep.subr.mxu0 0.0
        %1787 = vmatpush1.msra.mxu0 0.0
        %1788 = vmatprep.subr.mxu0 0.0
        %1789 = vmatpush1.msra.mxu0 0.0
        %1790 = vmatprep.subr.mxu0 0.0
        %1791 = vmatpush1.msra.mxu0 0.0
        %1792 = vmatprep.subr.mxu0 0.0
        %1793 = vmatpush1.msra.mxu0 0.0
        %1794 = vmatprep.subr.mxu0 0.0
        %1795 = vmatpush1.msra.mxu0 0.0
        %1796 = vmatprep.subr.mxu0 0.0
        %1797 = vmatpush1.msra.mxu0 0.0
        %1798 = vmatprep.subr.mxu0 0.0
        %1799 = vmatpush1.msra.mxu0 0.0
        %1800 = vmatprep.subr.mxu0 0.0
        %1801 = vmatpush1.msra.mxu0 0.0
        %1802 = vmatprep.subr.mxu0 0.0
        %1803 = vmatpush1.msra.mxu0 0.0
        %1804 = vmatprep.subr.mxu0 0.0
        %1805 = vmatpush1.msra.mxu0 0.0
        %1806 = vmatprep.subr.mxu0 0.0
        %1807 = vmatpush1.msra.mxu0 0.0
        %1808 = vmatprep.subr.mxu0 0.0
        %1809 = vmatpush1.msra.mxu0 0.0
        %1810 = vmatprep.subr.mxu0 0.0
        %1811 = vmatpush1.msra.mxu0 0.0
        %1812 = vmatprep.subr.mxu0 0.0
        %1813 = vmatpush1.msra.mxu0 0.0
        %1814 = vmatprep.subr.mxu0 0.0
        %1815 = vmatpush1.msra.mxu0 0.0
        %1816 = vmatprep.subr.mxu0 0.0
        %1817 = vmatpush1.msra.mxu0 0.0
        %1818 = vmatprep.subr.mxu0 0.0
        %1819 = vmatpush1.msra.mxu0 0.0
        %1820 = vmatprep.subr.mxu0 0.0
        %1821 = vmatpush1.msra.mxu0 0.0
        %1822 = vmatprep.subr.mxu0 0.0
        %1823 = vmatpush1.msra.mxu0 0.0
        %1824 = vmatprep.subr.mxu0 0.0
        %1825 = vmatpush1.msra.mxu0 0.0
        %1826 = vmatprep.subr.mxu0 0.0
        %1827 = vmatpush1.msra.mxu0 0.0
        %1828 = vmatprep.subr.mxu0 0.0
        %1829 = vmatpush1.msra.mxu0 0.0
        %1830 = vmatprep.subr.mxu0 0.0
        %1831 = vmatpush1.msra.mxu0 0.0
        %1832 = vmatprep.subr.mxu0 0.0
        %1833 = vmatpush1.msra.mxu0 0.0
        %1834 = vmatprep.subr.mxu0 0.0
        %1835 = vmatpush1.msra.mxu0 0.0
        %1836 = vmatprep.subr.mxu0 0.0
        %1837 = vmatpush1.msra.mxu0 0.0
        %1838 = vmatprep.subr.mxu0 0.0
        %1839 = vmatpush1.msra.mxu0 0.0
        %1840 = vmatprep.mubr.f32.mxu0 0.0
        %1841 = vmatmul.mubr.f32.gmra.mrb[0].mxu0 %v1771
        %v1842 = vpop.f32.mrb[0].mxu0
        %v1843 = vadd.f32 0.0, %v1842
        %v1844 = vpop.f32.mrb[0].mxu0
        %1845 = vmatprep.mubr.f32.mxu0 0.0
        %1846 = vmatmul.mubr.f32.gmra.mrb[0].mxu0 %v1774
        %v1847 = vpop.f32.mrb[0].mxu0
        %v1848 = vadd.f32 0.0, %v1847
        %v1849 = vpop.f32.mrb[0].mxu0
        %1850 = vdwg.mxu0
        %1851 = vst.msk [vmem:[%s248] sm:$0xff] %vm297, %v1276
        %1852 = vst.msk [vmem:[%s248 + $0x8] sm:$0xff] %vm297, %v1281
        %1853 = vst.msk [vmem:[%s248 + $0x10] sm:$0xff] %vm297, %v1357
        %1854 = vst.msk [vmem:[%s248 + $0x18] sm:$0xff] %vm297, %v1362
        %1855 = vst.msk [vmem:[%s248 + $0x20] sm:$0xff] %vm297, %v1438
        %1856 = vst.msk [vmem:[%s248 + $0x28] sm:$0xff] %vm297, %v1443
        %1857 = vst.msk [vmem:[%s248 + $0x30] sm:$0xff] %vm297, %v1519
        %1858 = vst.msk [vmem:[%s248 + $0x38] sm:$0xff] %vm297, %v1524
        %1859 = vst.msk [vmem:[%s248 + $0x40] sm:$0xff] %vm297, %v1600
        %1860 = vst.msk [vmem:[%s248 + $0x48] sm:$0xff] %vm297, %v1605
        %1861 = vst.msk [vmem:[%s248 + $0x50] sm:$0xff] %vm297, %v1681
        %1862 = vst.msk [vmem:[%s248 + $0x58] sm:$0xff] %vm297, %v1686
        %1863 = vst.msk [vmem:[%s248 + $0x60] sm:$0xff] %vm297, %v1762
        %1864 = vst.msk [vmem:[%s248 + $0x68] sm:$0xff] %vm297, %v1767
        %1865 = vst.msk [vmem:[%s248 + $0x70] sm:$0xff] %vm297, %v1843
        %1866 = vst.msk [vmem:[%s248 + $0x78] sm:$0xff] %vm297, %v1848
        %p1867 = scmp.lt.s32.totalorder %s19, 1
        %s1868 = scalar_select %p1867, %s19, 1
        %s1869 = smul.addr %s1868, 16
        %s1870 = smul.addr %s1869, 8
        %s1871 = scalar_lea.vmem %s3, %s1870
        %s1872 = sand.u32 %s131, 1
        %s1873 = scalar_lea.sflag [#allocation3], %s1872
        %s1874 = sand.u32 %s131, 1
        %s1875 = smul.addr %s1874, 128
        %s1876 = scalar_lea.vmem [#allocation2], %s1875
        // Predicated region
        $region33: #{encoder_forward.6} parent=31 // pred_check
          %p1877 = pneg %p115
        $region34: #{encoder_forward.6} parent=31 // pred_check_branch
          %1879 = sbr.rel (%p1877) target = $region36
        $region35: #{encoder_forward.6} parent=31 // pred_region
          _
        $region36: #{encoder_forward.6} parent=31 // pred_fallthru
          _
        // Predicated region
        $region37: #{encoder_forward.6} parent=31 // pred_check
          %p1880 = pneg %p141
        $region38: #{encoder_forward.6} parent=31 // pred_check_branch
          %1882 = sbr.rel (%p1880) target = $region40
        $region39: #{encoder_forward.6} parent=31 // pred_region
          %s1884 = ssub.s32 2048, 2048
          %1885 = vsyncadd %s1873, %s1884
          %s1886 = smul.addr %s19, 16
          %s1887 = smul.addr %s1886, 128
          %s1888 = scalar_lea.hbm %s4, %s1887
          %s1889 = sshll.u32 %s1876, 4
          %s1890 = int_to_ptr.vmem [resolvable:$true] %s1889
          %1895 = dma.vmem_to_hbm [thread:$0]  %s1890, 2048, %s1888, %s1873, 128, 128, 8
        $region40: #{encoder_forward.6} parent=31 // pred_fallthru
          _
      $region32: #{encoder_forward.6} parent=5 // pred_fallthru
        _
      %p1896 = scmp.le.s32.totalorder 2, %s14
      // Predicated region
      $region41: #{encoder_forward.6} parent=5 // pred_check
        %p1897 = pneg %p1896
      $region42: #{encoder_forward.6} parent=5 // pred_check_branch
        %1899 = sbr.rel (%p1897) target = $region44
      $region43: #{encoder_forward.6} parent=5 // pred_region
        %s1900 = ssub.s32 %s14, 2
        // Predicated region
        $region45: #{encoder_forward.6} parent=43 // pred_check
          %p1901 = pneg %p121
        $region46: #{encoder_forward.6} parent=43 // pred_check_branch
          %1903 = sbr.rel (%p1901) target = $region48
        $region47: #{encoder_forward.6} parent=43 // pred_region
          %p1904 = scmp.lt.s32.totalorder %s20, 1
          %s1905 = scalar_select %p1904, %s20, 1
          %s1906 = smul.addr %s1905, 16
          %s1907 = smul.addr %s1906, 8
          %s1908 = scalar_lea.vmem %s3, %s1907
        $region48: #{encoder_forward.6} parent=43 // pred_fallthru
          _
        // Predicated region
        $region49: #{encoder_forward.6} parent=43 // pred_check
          %p1909 = pneg %p147
        $region50: #{encoder_forward.6} parent=43 // pred_check_branch
          %1911 = sbr.rel (%p1909) target = $region52
        $region51: #{encoder_forward.6} parent=43 // pred_region
          %s1912 = sand.u32 %s132, 1
          %s1913 = scalar_lea.sflag [#allocation3], %s1912
          %s1914 = sand.u32 %s132, 1
          %s1915 = smul.addr %s1914, 128
          %s1916 = scalar_lea.vmem [#allocation2], %s1915
          %1917 = dma.done %s1913, 2048
        $region52: #{encoder_forward.6} parent=43 // pred_fallthru
          _
      $region44: #{encoder_forward.6} parent=5 // pred_fallthru
        _
    $region6: #{encoder_forward.6} parent=1 // loop_footer
      %s18 = sadd.s32 1, %s14
    $region7: #{encoder_forward.6} parent=1 // loop_footer_branch
      %13 = sbr.rel target = $region3
    $region8: #{encoder_forward.6} parent=1 // loop_exit
      _
    %1918 = vsyncpa [#allocation3], 1
    %s1919 = scalar_lea.sflag [#allocation3], 1
    %1920 = vsyncpa %s1919, 1

// kernel: encoder_forward.5
$region0: #{encoder_forward.5}
  #allocation0 [shape = 'u32[]', space=smem, size = 0x4, offset = 0x4, fixed_abs, tag = 'smem constant byte address 0x4 - core index']
  #allocation1 [shape = 'u32[144,128]{1,0:T(1,128)}', space=vmem, size = 0x12000, scoped, tag = 'internal scratch']
  %s0 = inlined_call_operand.vmem [shape: bf16[2,10,18,8], index: 0, kind: input, shape index: {}]
  %s1 = inlined_call_operand.vmem [shape: bf16[9,8,24], index: 1, kind: input, shape index: {}]
  %s2 = inlined_call_operand.vmem [shape: f32[1,24], index: 2, kind: input, shape index: {}]
  %s3 = inlined_call_operand.vmem [shape: f32[1,8], index: 3, kind: input, shape index: {}]
  %s4 = inlined_call_operand.vmem [shape: f32[1,8], index: 4, kind: input, shape index: {}]
  %s5 = inlined_call_operand.vmem [shape: f32[2,8,16,24], index: 5, kind: output, shape index: {}]
  %s6 = sld [smem:[#allocation0]]
  $region53: #{encoder_forward.5} parent=0
    _
  %s8 = ssub.s32 1, %s6
  %s9 = scalar_select 0, %s8, %s6
  loop: start=0, step=1, limit=4
  $region2: #{encoder_forward.5} parent=0 // loop_pre_header
    _
  $region3: #{encoder_forward.5} parent=0 // loop_header
    %s11 = sphi 0, %s15
    %p12 = scmp.ge.s32.totalorder %s11, 4
    %s21 = sphi 0, %s23
    %s24 = sphi 0, %s21
    %s25 = sphi 0, %s24
    %s41 = sphi 0, %s25
    %s45 = sphi 0, %s45
    %s47 = sphi 0, %s45
    %s48 = sphi 0, %s47
    %s62 = sphi 0, %s48
    %s66 = sphi 0, %s66
    %s68 = sphi 0, %s66
    %s69 = sphi 0, %s68
    %s83 = sphi 0, %s69
    %s87 = sphi 0, %s87
    %s89 = sphi 0, %s87
    %s90 = sphi 0, %s89
    %s104 = sphi 0, %s90
    %s108 = sphi 0, %s108
    %s110 = sphi 0, %s108
    %s111 = sphi 0, %s110
    %s125 = sphi 0, %s111
    %s131 = sphi 0, %s133
    %s134 = sphi 0, %s131
    %s135 = sphi 0, %s134
    %s151 = sphi 0, %s135
  $region4: #{encoder_forward.5} parent=0 // loop_header_branch
    %14 = sbr.rel (%p12) target = $region8
  $region5: #{encoder_forward.5} parent=0 // loop_body
    %s16 = ssub.s32 %s11, 1
    %s17 = ssub.s32 %s11, 2
    %s18 = sadd.s32 %s11, 1
    %s19 = ssub.s32 %s11, %s18
    %p20 = scmp.eq.s32.totalorder %s19, 0
    %s22 = sadd.s32 %s21, 1
    %s23 = scalar_select %p20, %s21, %s22
    %p26 = pneg %p20
    %p27 = scmp.eq.s32.totalorder %s11, 1
    %p28 = por %p26, %p27
    %p29 = scmp.ne.s32.totalorder %s21, %s24
    %p30 = scmp.eq.s32.totalorder %s11, 0
    %p31 = por %p29, %p30
    %p32 = scmp.ne.s32.totalorder %s21, %s24
    %p33 = scmp.eq.s32.totalorder %s16, 1
    %p34 = por %p32, %p33
    %p35 = scmp.ne.s32.totalorder %s24, %s25
    %p36 = scmp.eq.s32.totalorder %s16, 0
    %p37 = por %p35, %p36
    %p38 = scmp.ne.s32.totalorder %s24, %s25
    %p39 = scmp.eq.s32.totalorder %s17, 1
    %p40 = por %p38, %p39
    %p42 = scmp.ne.s32.totalorder %s25, %s41
    %p43 = scmp.eq.s32.totalorder %s17, 0
    %p44 = por %p42, %p43
    %s46 = sadd.s32 %s45, 1
    %p49 = scmp.eq.s32.totalorder %s11, 1
    %p50 = scmp.ne.s32.totalorder %s45, %s47
    %p51 = scmp.eq.s32.totalorder %s11, 0
    %p52 = por %p50, %p51
    %p53 = scmp.ne.s32.totalorder %s45, %s47
    %p54 = scmp.eq.s32.totalorder %s16, 1
    %p55 = por %p53, %p54
    %p56 = scmp.ne.s32.totalorder %s47, %s48
    %p57 = scmp.eq.s32.totalorder %s16, 0
    %p58 = por %p56, %p57
    %p59 = scmp.ne.s32.totalorder %s47, %s48
    %p60 = scmp.eq.s32.totalorder %s17, 1
    %p61 = por %p59, %p60
    %p63 = scmp.ne.s32.totalorder %s48, %s62
    %p64 = scmp.eq.s32.totalorder %s17, 0
    %p65 = por %p63, %p64
    %s67 = sadd.s32 %s66, 1
    %p70 = scmp.eq.s32.totalorder %s11, 1
    %p71 = scmp.ne.s32.totalorder %s66, %s68
    %p72 = scmp.eq.s32.totalorder %s11, 0
    %p73 = por %p71, %p72
    %p74 = scmp.ne.s32.totalorder %s66, %s68
    %p75 = scmp.eq.s32.totalorder %s16, 1
    %p76 = por %p74, %p75
    %p77 = scmp.ne.s32.totalorder %s68, %s69
    %p78 = scmp.eq.s32.totalorder %s16, 0
    %p79 = por %p77, %p78
    %p80 = scmp.ne.s32.totalorder %s68, %s69
    %p81 = scmp.eq.s32.totalorder %s17, 1
    %p82 = por %p80, %p81
    %p84 = scmp.ne.s32.totalorder %s69, %s83
    %p85 = scmp.eq.s32.totalorder %s17, 0
    %p86 = por %p84, %p85
    %s88 = sadd.s32 %s87, 1
    %p91 = scmp.eq.s32.totalorder %s11, 1
    %p92 = scmp.ne.s32.totalorder %s87, %s89
    %p93 = scmp.eq.s32.totalorder %s11, 0
    %p94 = por %p92, %p93
    %p95 = scmp.ne.s32.totalorder %s87, %s89
    %p96 = scmp.eq.s32.totalorder %s16, 1
    %p97 = por %p95, %p96
    %p98 = scmp.ne.s32.totalorder %s89, %s90
    %p99 = scmp.eq.s32.totalorder %s16, 0
    %p100 = por %p98, %p99
    %p101 = scmp.ne.s32.totalorder %s89, %s90
    %p102 = scmp.eq.s32.totalorder %s17, 1
    %p103 = por %p101, %p102
    %p105 = scmp.ne.s32.totalorder %s90, %s104
    %p106 = scmp.eq.s32.totalorder %s17, 0
    %p107 = por %p105, %p106
    %s109 = sadd.s32 %s108, 1
    %p112 = scmp.eq.s32.totalorder %s11, 1
    %p113 = scmp.ne.s32.totalorder %s108, %s110
    %p114 = scmp.eq.s32.totalorder %s11, 0
    %p115 = por %p113, %p114
    %p116 = scmp.ne.s32.totalorder %s108, %s110
    %p117 = scmp.eq.s32.totalorder %s16, 1
    %p118 = por %p116, %p117
    %p119 = scmp.ne.s32.totalorder %s110, %s111
    %p120 = scmp.eq.s32.totalorder %s16, 0
    %p121 = por %p119, %p120
    %p122 = scmp.ne.s32.totalorder %s110, %s111
    %p123 = scmp.eq.s32.totalorder %s17, 1
    %p124 = por %p122, %p123
    %p126 = scmp.ne.s32.totalorder %s111, %s125
    %p127 = scmp.eq.s32.totalorder %s17, 0
    %p128 = por %p126, %p127
    %s129 = ssub.s32 %s11, %s18
    %p130 = scmp.eq.s32.totalorder %s129, 0
    %s132 = sadd.s32 %s131, 1
    %s133 = scalar_select %p130, %s131, %s132
    %p136 = pneg %p130
    %p137 = scmp.eq.s32.totalorder %s11, 1
    %p138 = por %p136, %p137
    %p139 = scmp.ne.s32.totalorder %s131, %s134
    %p140 = scmp.eq.s32.totalorder %s11, 0
    %p141 = por %p139, %p140
    %p142 = scmp.ne.s32.totalorder %s131, %s134
    %p143 = scmp.eq.s32.totalorder %s16, 1
    %p144 = por %p142, %p143
    %p145 = scmp.ne.s32.totalorder %s134, %s135
    %p146 = scmp.eq.s32.totalorder %s16, 0
    %p147 = por %p145, %p146
    %p148 = scmp.ne.s32.totalorder %s134, %s135
    %p149 = scmp.eq.s32.totalorder %s17, 1
    %p150 = por %p148, %p149
    %p152 = scmp.ne.s32.totalorder %s135, %s151
    %p153 = scmp.eq.s32.totalorder %s17, 0
    %p154 = por %p152, %p153
    %p155 = scmp.le.s32.totalorder 1, %s11
    %p156 = scmp.lt.s32.totalorder %s11, 3
    %p157 = pnand %p155, %p156
    %p158 = pneg %p157
    // Predicated region
    $region9: #{encoder_forward.5} parent=5 // pred_check
      _
    $region10: #{encoder_forward.5} parent=5 // pred_check_branch
      %160 = sbr.rel (%p157) target = $region12
    $region11: #{encoder_forward.5} parent=5 // pred_region
      %s161 = ssub.s32 %s11, 1
      // Predicated region
      $region13: #{encoder_forward.5} parent=11 // pred_check
        %p162 = pneg %p58
      $region14: #{encoder_forward.5} parent=11 // pred_check_branch
        %164 = sbr.rel (%p162) target = $region16
      $region15: #{encoder_forward.5} parent=11 // pred_region
        _
      $region16: #{encoder_forward.5} parent=11 // pred_fallthru
        _
      // Predicated region
      $region17: #{encoder_forward.5} parent=11 // pred_check
        %p165 = pneg %p79
      $region18: #{encoder_forward.5} parent=11 // pred_check_branch
        %167 = sbr.rel (%p165) target = $region20
      $region19: #{encoder_forward.5} parent=11 // pred_region
        _
      $region20: #{encoder_forward.5} parent=11 // pred_fallthru
        _
      // Predicated region
      $region21: #{encoder_forward.5} parent=11 // pred_check
        %p168 = pneg %p100
      $region22: #{encoder_forward.5} parent=11 // pred_check_branch
        %170 = sbr.rel (%p168) target = $region24
      $region23: #{encoder_forward.5} parent=11 // pred_region
        _
      $region24: #{encoder_forward.5} parent=11 // pred_fallthru
        _
      // Predicated region
      $region25: #{encoder_forward.5} parent=11 // pred_check
        %p171 = pneg %p121
      $region26: #{encoder_forward.5} parent=11 // pred_check_branch
        %173 = sbr.rel (%p171) target = $region28
      $region27: #{encoder_forward.5} parent=11 // pred_region
        _
      $region28: #{encoder_forward.5} parent=11 // pred_fallthru
        _
    $region12: #{encoder_forward.5} parent=5 // pred_fallthru
      _
    %p174 = scmp.lt.s32.totalorder %s11, 2
    // Predicated region
    $region29: #{encoder_forward.5} parent=5 // pred_check
      %p175 = pneg %p174
    $region30: #{encoder_forward.5} parent=5 // pred_check_branch
      %177 = sbr.rel (%p175) target = $region32
    $region31: #{encoder_forward.5} parent=5 // pred_region
      // Predicated region
      $region33: #{encoder_forward.5} parent=31 // pred_check
        %p178 = pneg %p31
      $region34: #{encoder_forward.5} parent=31 // pred_check_branch
        %180 = sbr.rel (%p178) target = $region36
      $region35: #{encoder_forward.5} parent=31 // pred_region
        %p181 = scmp.lt.s32.totalorder %s11, 1
        %s182 = scalar_select %p181, %s11, 1
        %s183 = smul.addr %s182, 30
        %s184 = smul.addr %s183, 4
        %s185 = scalar_lea.vmem %s0, %s184
      $region36: #{encoder_forward.5} parent=31 // pred_fallthru
        _
    $region32: #{encoder_forward.5} parent=5 // pred_fallthru
      _
    %p186 = scmp.le.s32.totalorder 1, %s11
    %p187 = scmp.lt.s32.totalorder %s11, 3
    %p188 = pnand %p186, %p187
    %p189 = pneg %p188
    // Predicated region
    $region37: #{encoder_forward.5} parent=5 // pred_check
      _
    $region38: #{encoder_forward.5} parent=5 // pred_check_branch
      %191 = sbr.rel (%p188) target = $region40
    $region39: #{encoder_forward.5} parent=5 // pred_region
      %s192 = ssub.s32 %s11, 1
      %p193 = scmp.lt.s32.totalorder %s16, 1
      %s194 = scalar_select %p193, %s16, 1
      %s195 = smul.addr %s194, 30
      %s196 = smul.addr %s195, 4
      %s197 = scalar_lea.vmem %s0, %s196
      %p198 = pneg %p37
      %p199 = pneg %p34
      %p200 = pneg %p58
      %p201 = pneg %p55
      %p202 = pneg %p79
      %p203 = pneg %p76
      %p204 = pneg %p100
      %p205 = pneg %p97
      %p206 = pneg %p121
      %p207 = pneg %p118
      %p208 = pneg %p147
      %p209 = pneg %p144
      %p210 = scmp.lt.s32.totalorder %s16, 1
      %s211 = scalar_select %p210, %s16, 1
      %s212 = smul.addr %s211, 16
      %s213 = smul.addr %s212, 8
      %s214 = scalar_lea.vmem %s5, %s213
      %p215 = scmp.lt.s32.totalorder %s16, 1
      %s216 = scalar_select %p215, %s16, 1
      %s217 = smul.addr %s216, 30
      %s218 = smul.addr %s217, 4
      %s219 = scalar_lea.vmem %s0, %s218
      %p220 = scmp.lt.s32.totalorder %s16, 1
      %s221 = scalar_select %p220, %s16, 1
      %s222 = smul.addr %s221, 16
      %s223 = smul.addr %s222, 8
      %s224 = scalar_lea.vmem %s5, %s223
      %v226 = vld [vmem:[%s219] sm:$0xf]
      %v227 = vld [vmem:[%s219 + $0x4] sm:$0xf]
      %v228 = vld [vmem:[%s219 + $0x8] sm:$0x1]
      %v229 = vld [vmem:[%s219 + $0xc] sm:$0xf]
      %v230 = vld [vmem:[%s219 + $0x10] sm:$0xf]
      %v231 = vld [vmem:[%s219 + $0x14] sm:$0x1]
      %v232 = vld [vmem:[%s219 + $0x18] sm:$0xf]
      %v233 = vld [vmem:[%s219 + $0x1c] sm:$0xf]
      %v234 = vld [vmem:[%s219 + $0x20] sm:$0x1]
      %v235 = vld [vmem:[%s219 + $0x24] sm:$0xf]
      %v236 = vld [vmem:[%s219 + $0x28] sm:$0xf]
      %v237 = vld [vmem:[%s219 + $0x2c] sm:$0x1]
      %v238 = vld [vmem:[%s219 + $0x30] sm:$0xf]
      %v239 = vld [vmem:[%s219 + $0x34] sm:$0xf]
      %v240 = vld [vmem:[%s219 + $0x38] sm:$0x1]
      %v241 = vld [vmem:[%s219 + $0x3c] sm:$0xf]
      %v242 = vld [vmem:[%s219 + $0x40] sm:$0xf]
      %v243 = vld [vmem:[%s219 + $0x44] sm:$0x1]
      %v244 = vld [vmem:[%s219 + $0x48] sm:$0xf]
      %v245 = vld [vmem:[%s219 + $0x4c] sm:$0xf]
      %v246 = vld [vmem:[%s219 + $0x50] sm:$0x1]
      %v247 = vld [vmem:[%s219 + $0x54] sm:$0xf]
      %v248 = vld [vmem:[%s219 + $0x58] sm:$0xf]
      %v249 = vld [vmem:[%s219 + $0x5c] sm:$0x1]
      %v250 = vld [vmem:[%s219 + $0x60] sm:$0xf]
      %v251 = vld [vmem:[%s219 + $0x64] sm:$0xf]
      %v252 = vld [vmem:[%s219 + $0x68] sm:$0x1]
      %v253 = vld [vmem:[%s219 + $0x6c] sm:$0xf]
      %v254 = vld [vmem:[%s219 + $0x70] sm:$0xf]
      %v255 = vld [vmem:[%s219 + $0x74] sm:$0x1]
      %v256 = vunpack.c.l.bf16 %v226
      %v257 = vunpack.c.l.bf16 %v227
      %v258 = vunpack.c.l.bf16 %v228
      %v259 = vunpack.c.l.bf16 %v229
      %v260 = vunpack.c.l.bf16 %v230
      %v261 = vunpack.c.l.bf16 %v231
      %v262 = vunpack.c.l.bf16 %v232
      %v263 = vunpack.c.l.bf16 %v233
      %v264 = vunpack.c.l.bf16 %v234
      %v265 = vunpack.c.l.bf16 %v235
      %v266 = vunpack.c.l.bf16 %v236
      %v267 = vunpack.c.l.bf16 %v237
      %v268 = vunpack.c.l.bf16 %v238
      %v269 = vunpack.c.l.bf16 %v239
      %v270 = vunpack.c.l.bf16 %v240
      %v271 = vunpack.c.l.bf16 %v241
      %v272 = vunpack.c.l.bf16 %v242
      %v273 = vunpack.c.l.bf16 %v243
      %v274 = vunpack.c.l.bf16 %v244
      %v275 = vunpack.c.l.bf16 %v245
      %v276 = vunpack.c.l.bf16 %v246
      %v277 = vunpack.c.l.bf16 %v247
      %v278 = vunpack.c.l.bf16 %v248
      %v279 = vunpack.c.l.bf16 %v249
      %v280 = vunpack.c.l.bf16 %v250
      %v281 = vunpack.c.l.bf16 %v251
      %v282 = vunpack.c.l.bf16 %v252
      %v283 = vunpack.c.l.bf16 %v253
      %v284 = vunpack.c.l.bf16 %v254
      %v285 = vunpack.c.l.bf16 %v255
      %vm286 = vcmask 64512
      %v287 = vsel %vm286, %v256, 0.0
      %288 = vadd.xlane.f32.xlu0 %v287
      %v289 = vpop.xlane.xlu0 %288
      %v290 = vsel %vm286, %v257, 0.0
      %291 = vadd.xlane.f32.xlu0 %v290
      %v292 = vpop.xlane.xlu0 %291
      %vm293 = vcmask 58368
      %v294 = vsel %vm293, %v258, 0.0
      %295 = vadd.xlane.f32.xlu0 %v294
      %v296 = vpop.xlane.xlu0 %295
      %v297 = vsel %vm286, %v259, 0.0
      %298 = vadd.xlane.f32.xlu0 %v297
      %v299 = vpop.xlane.xlu0 %298
      %v300 = vsel %vm286, %v260, 0.0
      %301 = vadd.xlane.f32.xlu0 %v300
      %v302 = vpop.xlane.xlu0 %301
      %v303 = vsel %vm293, %v261, 0.0
      %304 = vadd.xlane.f32.xlu0 %v303
      %v305 = vpop.xlane.xlu0 %304
      %v306 = vsel %vm286, %v262, 0.0
      %307 = vadd.xlane.f32.xlu0 %v306
      %v308 = vpop.xlane.xlu0 %307
      %v309 = vsel %vm286, %v263, 0.0
      %310 = vadd.xlane.f32.xlu0 %v309
      %v311 = vpop.xlane.xlu0 %310
      %v312 = vsel %vm293, %v264, 0.0
      %313 = vadd.xlane.f32.xlu0 %v312
      %v314 = vpop.xlane.xlu0 %313
      %v315 = vsel %vm286, %v265, 0.0
      %316 = vadd.xlane.f32.xlu0 %v315
      %v317 = vpop.xlane.xlu0 %316
      %v318 = vsel %vm286, %v266, 0.0
      %319 = vadd.xlane.f32.xlu0 %v318
      %v320 = vpop.xlane.xlu0 %319
      %v321 = vsel %vm293, %v267, 0.0
      %322 = vadd.xlane.f32.xlu0 %v321
      %v323 = vpop.xlane.xlu0 %322
      %v324 = vsel %vm286, %v268, 0.0
      %325 = vadd.xlane.f32.xlu0 %v324
      %v326 = vpop.xlane.xlu0 %325
      %v327 = vsel %vm286, %v269, 0.0
      %328 = vadd.xlane.f32.xlu0 %v327
      %v329 = vpop.xlane.xlu0 %328
      %v330 = vsel %vm293, %v270, 0.0
      %331 = vadd.xlane.f32.xlu0 %v330
      %v332 = vpop.xlane.xlu0 %331
      %v333 = vsel %vm286, %v271, 0.0
      %334 = vadd.xlane.f32.xlu0 %v333
      %v335 = vpop.xlane.xlu0 %334
      %v336 = vsel %vm286, %v272, 0.0
      %337 = vadd.xlane.f32.xlu0 %v336
      %v338 = vpop.xlane.xlu0 %337
      %v339 = vsel %vm293, %v273, 0.0
      %340 = vadd.xlane.f32.xlu0 %v339
      %v341 = vpop.xlane.xlu0 %340
      %v342 = vsel %vm286, %v274, 0.0
      %343 = vadd.xlane.f32.xlu0 %v342
      %v344 = vpop.xlane.xlu0 %343
      %v345 = vsel %vm286, %v275, 0.0
      %346 = vadd.xlane.f32.xlu0 %v345
      %v347 = vpop.xlane.xlu0 %346
      %v348 = vsel %vm293, %v276, 0.0
      %349 = vadd.xlane.f32.xlu0 %v348
      %v350 = vpop.xlane.xlu0 %349
      %v351 = vsel %vm286, %v277, 0.0
      %352 = vadd.xlane.f32.xlu0 %v351
      %v353 = vpop.xlane.xlu0 %352
      %v354 = vsel %vm286, %v278, 0.0
      %355 = vadd.xlane.f32.xlu0 %v354
      %v356 = vpop.xlane.xlu0 %355
      %v357 = vsel %vm293, %v279, 0.0
      %358 = vadd.xlane.f32.xlu0 %v357
      %v359 = vpop.xlane.xlu0 %358
      %v360 = vsel %vm286, %v280, 0.0
      %361 = vadd.xlane.f32.xlu0 %v360
      %v362 = vpop.xlane.xlu0 %361
      %v363 = vsel %vm286, %v281, 0.0
      %364 = vadd.xlane.f32.xlu0 %v363
      %v365 = vpop.xlane.xlu0 %364
      %v366 = vsel %vm293, %v282, 0.0
      %367 = vadd.xlane.f32.xlu0 %v366
      %v368 = vpop.xlane.xlu0 %367
      %v369 = vsel %vm286, %v283, 0.0
      %370 = vadd.xlane.f32.xlu0 %v369
      %v371 = vpop.xlane.xlu0 %370
      %v372 = vsel %vm286, %v284, 0.0
      %373 = vadd.xlane.f32.xlu0 %v372
      %v374 = vpop.xlane.xlu0 %373
      %v375 = vsel %vm293, %v285, 0.0
      %376 = vadd.xlane.f32.xlu0 %v375
      %v377 = vpop.xlane.xlu0 %376
      %v378 = vrcp.pop 8.0
      %v379 = vmul.f32 %v289, %v378
      %v380 = vmul.f32 %v292, %v378
      %v381 = vmul.f32 %v296, %v378
      %v382 = vmul.f32 %v299, %v378
      %v383 = vmul.f32 %v302, %v378
      %v384 = vmul.f32 %v305, %v378
      %v385 = vmul.f32 %v308, %v378
      %v386 = vmul.f32 %v311, %v378
      %v387 = vmul.f32 %v314, %v378
      %v388 = vmul.f32 %v317, %v378
      %v389 = vmul.f32 %v320, %v378
      %v390 = vmul.f32 %v323, %v378
      %v391 = vmul.f32 %v326, %v378
      %v392 = vmul.f32 %v329, %v378
      %v393 = vmul.f32 %v332, %v378
      %v394 = vmul.f32 %v335, %v378
      %v395 = vmul.f32 %v338, %v378
      %v396 = vmul.f32 %v341, %v378
      %v397 = vmul.f32 %v344, %v378
      %v398 = vmul.f32 %v347, %v378
      %v399 = vmul.f32 %v350, %v378
      %v400 = vmul.f32 %v353, %v378
      %v401 = vmul.f32 %v356, %v378
      %v402 = vmul.f32 %v359, %v378
      %v403 = vmul.f32 %v362, %v378
      %v404 = vmul.f32 %v365, %v378
      %v405 = vmul.f32 %v368, %v378
      %v406 = vmul.f32 %v371, %v378
      %v407 = vmul.f32 %v374, %v378
      %v408 = vmul.f32 %v377, %v378
      %v409 = vsub.f32 %v256, %v379
      %v410 = vsub.f32 %v257, %v380
      %v411 = vsub.f32 %v258, %v381
      %v412 = vsub.f32 %v259, %v382
      %v413 = vsub.f32 %v260, %v383
      %v414 = vsub.f32 %v261, %v384
      %v415 = vsub.f32 %v262, %v385
      %v416 = vsub.f32 %v263, %v386
      %v417 = vsub.f32 %v264, %v387
      %v418 = vsub.f32 %v265, %v388
      %v419 = vsub.f32 %v266, %v389
      %v420 = vsub.f32 %v267, %v390
      %v421 = vsub.f32 %v268, %v391
      %v422 = vsub.f32 %v269, %v392
      %v423 = vsub.f32 %v270, %v393
      %v424 = vsub.f32 %v271, %v394
      %v425 = vsub.f32 %v272, %v395
      %v426 = vsub.f32 %v273, %v396
      %v427 = vsub.f32 %v274, %v397
      %v428 = vsub.f32 %v275, %v398
      %v429 = vsub.f32 %v276, %v399
      %v430 = vsub.f32 %v277, %v400
      %v431 = vsub.f32 %v278, %v401
      %v432 = vsub.f32 %v279, %v402
      %v433 = vsub.f32 %v280, %v403
      %v434 = vsub.f32 %v281, %v404
      %v435 = vsub.f32 %v282, %v405
      %v436 = vsub.f32 %v283, %v406
      %v437 = vsub.f32 %v284, %v407
      %v438 = vsub.f32 %v285, %v408
      %v439 = vmul.f32 %v409, %v409
      %v440 = vmul.f32 %v410, %v410
      %v441 = vmul.f32 %v411, %v411
      %v442 = vmul.f32 %v412, %v412
      %v443 = vmul.f32 %v413, %v413
      %v444 = vmul.f32 %v414, %v414
      %v445 = vmul.f32 %v415, %v415
      %v446 = vmul.f32 %v416, %v416
      %v447 = vmul.f32 %v417, %v417
      %v448 = vmul.f32 %v418, %v418
      %v449 = vmul.f32 %v419, %v419
      %v450 = vmul.f32 %v420, %v420
      %v451 = vmul.f32 %v421, %v421
      %v452 = vmul.f32 %v422, %v422
      %v453 = vmul.f32 %v423, %v423
      %v454 = vmul.f32 %v424, %v424
      %v455 = vmul.f32 %v425, %v425
      %v456 = vmul.f32 %v426, %v426
      %v457 = vmul.f32 %v427, %v427
      %v458 = vmul.f32 %v428, %v428
      %v459 = vmul.f32 %v429, %v429
      %v460 = vmul.f32 %v430, %v430
      %v461 = vmul.f32 %v431, %v431
      %v462 = vmul.f32 %v432, %v432
      %v463 = vmul.f32 %v433, %v433
      %v464 = vmul.f32 %v434, %v434
      %v465 = vmul.f32 %v435, %v435
      %v466 = vmul.f32 %v436, %v436
      %v467 = vmul.f32 %v437, %v437
      %v468 = vmul.f32 %v438, %v438
      %v469 = vsel %vm286, %v439, 0.0
      %470 = vadd.xlane.f32.xlu0 %v469
      %v471 = vpop.xlane.xlu0 %470
      %v472 = vsel %vm286, %v440, 0.0
      %473 = vadd.xlane.f32.xlu0 %v472
      %v474 = vpop.xlane.xlu0 %473
      %v475 = vsel %vm293, %v441, 0.0
      %476 = vadd.xlane.f32.xlu0 %v475
      %v477 = vpop.xlane.xlu0 %476
      %v478 = vsel %vm286, %v442, 0.0
      %479 = vadd.xlane.f32.xlu0 %v478
      %v480 = vpop.xlane.xlu0 %479
      %v481 = vsel %vm286, %v443, 0.0
      %482 = vadd.xlane.f32.xlu0 %v481
      %v483 = vpop.xlane.xlu0 %482
      %v484 = vsel %vm293, %v444, 0.0
      %485 = vadd.xlane.f32.xlu0 %v484
      %v486 = vpop.xlane.xlu0 %485
      %v487 = vsel %vm286, %v445, 0.0
      %488 = vadd.xlane.f32.xlu0 %v487
      %v489 = vpop.xlane.xlu0 %488
      %v490 = vsel %vm286, %v446, 0.0
      %491 = vadd.xlane.f32.xlu0 %v490
      %v492 = vpop.xlane.xlu0 %491
      %v493 = vsel %vm293, %v447, 0.0
      %494 = vadd.xlane.f32.xlu0 %v493
      %v495 = vpop.xlane.xlu0 %494
      %v496 = vsel %vm286, %v448, 0.0
      %497 = vadd.xlane.f32.xlu0 %v496
      %v498 = vpop.xlane.xlu0 %497
      %v499 = vsel %vm286, %v449, 0.0
      %500 = vadd.xlane.f32.xlu0 %v499
      %v501 = vpop.xlane.xlu0 %500
      %v502 = vsel %vm293, %v450, 0.0
      %503 = vadd.xlane.f32.xlu0 %v502
      %v504 = vpop.xlane.xlu0 %503
      %v505 = vsel %vm286, %v451, 0.0
      %506 = vadd.xlane.f32.xlu0 %v505
      %v507 = vpop.xlane.xlu0 %506
      %v508 = vsel %vm286, %v452, 0.0
      %509 = vadd.xlane.f32.xlu0 %v508
      %v510 = vpop.xlane.xlu0 %509
      %v511 = vsel %vm293, %v453, 0.0
      %512 = vadd.xlane.f32.xlu0 %v511
      %v513 = vpop.xlane.xlu0 %512
      %v514 = vsel %vm286, %v454, 0.0
      %515 = vadd.xlane.f32.xlu0 %v514
      %v516 = vpop.xlane.xlu0 %515
      %v517 = vsel %vm286, %v455, 0.0
      %518 = vadd.xlane.f32.xlu0 %v517
      %v519 = vpop.xlane.xlu0 %518
      %v520 = vsel %vm293, %v456, 0.0
      %521 = vadd.xlane.f32.xlu0 %v520
      %v522 = vpop.xlane.xlu0 %521
      %v523 = vsel %vm286, %v457, 0.0
      %524 = vadd.xlane.f32.xlu0 %v523
      %v525 = vpop.xlane.xlu0 %524
      %v526 = vsel %vm286, %v458, 0.0
      %527 = vadd.xlane.f32.xlu0 %v526
      %v528 = vpop.xlane.xlu0 %527
      %v529 = vsel %vm293, %v459, 0.0
      %530 = vadd.xlane.f32.xlu0 %v529
      %v531 = vpop.xlane.xlu0 %530
      %v532 = vsel %vm286, %v460, 0.0
      %533 = vadd.xlane.f32.xlu0 %v532
      %v534 = vpop.xlane.xlu0 %533
      %v535 = vsel %vm286, %v461, 0.0
      %536 = vadd.xlane.f32.xlu0 %v535
      %v537 = vpop.xlane.xlu0 %536
      %v538 = vsel %vm293, %v462, 0.0
      %539 = vadd.xlane.f32.xlu0 %v538
      %v540 = vpop.xlane.xlu0 %539
      %v541 = vsel %vm286, %v463, 0.0
      %542 = vadd.xlane.f32.xlu0 %v541
      %v543 = vpop.xlane.xlu0 %542
      %v544 = vsel %vm286, %v464, 0.0
      %545 = vadd.xlane.f32.xlu0 %v544
      %v546 = vpop.xlane.xlu0 %545
      %v547 = vsel %vm293, %v465, 0.0
      %548 = vadd.xlane.f32.xlu0 %v547
      %v549 = vpop.xlane.xlu0 %548
      %v550 = vsel %vm286, %v466, 0.0
      %551 = vadd.xlane.f32.xlu0 %v550
      %v552 = vpop.xlane.xlu0 %551
      %v553 = vsel %vm286, %v467, 0.0
      %554 = vadd.xlane.f32.xlu0 %v553
      %v555 = vpop.xlane.xlu0 %554
      %v556 = vsel %vm293, %v468, 0.0
      %557 = vadd.xlane.f32.xlu0 %v556
      %v558 = vpop.xlane.xlu0 %557
      %v559 = vmul.f32 %v471, %v378
      %v560 = vmul.f32 %v474, %v378
      %v561 = vmul.f32 %v477, %v378
      %v562 = vmul.f32 %v480, %v378
      %v563 = vmul.f32 %v483, %v378
      %v564 = vmul.f32 %v486, %v378
      %v565 = vmul.f32 %v489, %v378
      %v566 = vmul.f32 %v492, %v378
      %v567 = vmul.f32 %v495, %v378
      %v568 = vmul.f32 %v498, %v378
      %v569 = vmul.f32 %v501, %v378
      %v570 = vmul.f32 %v504, %v378
      %v571 = vmul.f32 %v507, %v378
      %v572 = vmul.f32 %v510, %v378
      %v573 = vmul.f32 %v513, %v378
      %v574 = vmul.f32 %v516, %v378
      %v575 = vmul.f32 %v519, %v378
      %v576 = vmul.f32 %v522, %v378
      %v577 = vmul.f32 %v525, %v378
      %v578 = vmul.f32 %v528, %v378
      %v579 = vmul.f32 %v531, %v378
      %v580 = vmul.f32 %v534, %v378
      %v581 = vmul.f32 %v537, %v378
      %v582 = vmul.f32 %v540, %v378
      %v583 = vmul.f32 %v543, %v378
      %v584 = vmul.f32 %v546, %v378
      %v585 = vmul.f32 %v549, %v378
      %v586 = vmul.f32 %v552, %v378
      %v587 = vmul.f32 %v555, %v378
      %v588 = vmul.f32 %v558, %v378
      %v589 = vadd.f32 %v559, 1e-05
      %v590 = vadd.f32 %v560, 1e-05
      %v591 = vadd.f32 %v561, 1e-05
      %v592 = vadd.f32 %v562, 1e-05
      %v593 = vadd.f32 %v563, 1e-05
      %v594 = vadd.f32 %v564, 1e-05
      %v595 = vadd.f32 %v565, 1e-05
      %v596 = vadd.f32 %v566, 1e-05
      %v597 = vadd.f32 %v567, 1e-05
      %v598 = vadd.f32 %v568, 1e-05
      %v599 = vadd.f32 %v569, 1e-05
      %v600 = vadd.f32 %v570, 1e-05
      %v601 = vadd.f32 %v571, 1e-05
      %v602 = vadd.f32 %v572, 1e-05
      %v603 = vadd.f32 %v573, 1e-05
      %v604 = vadd.f32 %v574, 1e-05
      %v605 = vadd.f32 %v575, 1e-05
      %v606 = vadd.f32 %v576, 1e-05
      %v607 = vadd.f32 %v577, 1e-05
      %v608 = vadd.f32 %v578, 1e-05
      %v609 = vadd.f32 %v579, 1e-05
      %v610 = vadd.f32 %v580, 1e-05
      %v611 = vadd.f32 %v581, 1e-05
      %v612 = vadd.f32 %v582, 1e-05
      %v613 = vadd.f32 %v583, 1e-05
      %v614 = vadd.f32 %v584, 1e-05
      %v615 = vadd.f32 %v585, 1e-05
      %v616 = vadd.f32 %v586, 1e-05
      %v617 = vadd.f32 %v587, 1e-05
      %v618 = vadd.f32 %v588, 1e-05
      %v619 = vrsqrt.pop %v589
      %v620 = vrsqrt.pop %v590
      %v621 = vrsqrt.pop %v591
      %v622 = vrsqrt.pop %v592
      %v623 = vrsqrt.pop %v593
      %v624 = vrsqrt.pop %v594
      %v625 = vrsqrt.pop %v595
      %v626 = vrsqrt.pop %v596
      %v627 = vrsqrt.pop %v597
      %v628 = vrsqrt.pop %v598
      %v629 = vrsqrt.pop %v599
      %v630 = vrsqrt.pop %v600
      %v631 = vrsqrt.pop %v601
      %v632 = vrsqrt.pop %v602
      %v633 = vrsqrt.pop %v603
      %v634 = vrsqrt.pop %v604
      %v635 = vrsqrt.pop %v605
      %v636 = vrsqrt.pop %v606
      %v637 = vrsqrt.pop %v607
      %v638 = vrsqrt.pop %v608
      %v639 = vrsqrt.pop %v609
      %v640 = vrsqrt.pop %v610
      %v641 = vrsqrt.pop %v611
      %v642 = vrsqrt.pop %v612
      %v643 = vrsqrt.pop %v613
      %v644 = vrsqrt.pop %v614
      %v645 = vrsqrt.pop %v615
      %v646 = vrsqrt.pop %v616
      %v647 = vrsqrt.pop %v617
      %v648 = vrsqrt.pop %v618
      %v649 = vmul.f32 %v409, %v619
      %v650 = vmul.f32 %v410, %v620
      %v651 = vmul.f32 %v411, %v621
      %v652 = vmul.f32 %v412, %v622
      %v653 = vmul.f32 %v413, %v623
      %v654 = vmul.f32 %v414, %v624
      %v655 = vmul.f32 %v415, %v625
      %v656 = vmul.f32 %v416, %v626
      %v657 = vmul.f32 %v417, %v627
      %v658 = vmul.f32 %v418, %v628
      %v659 = vmul.f32 %v419, %v629
      %v660 = vmul.f32 %v420, %v630
      %v661 = vmul.f32 %v421, %v631
      %v662 = vmul.f32 %v422, %v632
      %v663 = vmul.f32 %v423, %v633
      %v664 = vmul.f32 %v424, %v634
      %v665 = vmul.f32 %v425, %v635
      %v666 = vmul.f32 %v426, %v636
      %v667 = vmul.f32 %v427, %v637
      %v668 = vmul.f32 %v428, %v638
      %v669 = vmul.f32 %v429, %v639
      %v670 = vmul.f32 %v430, %v640
      %v671 = vmul.f32 %v431, %v641
      %v672 = vmul.f32 %v432, %v642
      %v673 = vmul.f32 %v433, %v643
      %v674 = vmul.f32 %v434, %v644
      %v675 = vmul.f32 %v435, %v645
      %v676 = vmul.f32 %v436, %v646
      %v677 = vmul.f32 %v437, %v647
      %v678 = vmul.f32 %v438, %v648
      %v679 = vld [vmem:[%s3] sm:$0x1]
      %v681 = vlaneseq
      %v682 = vshrl.u32 %v681, 7
      %v683 = vsub.s32 0, %v682
      %v684 = vrot.slane %v679, %v683
      %v686 = vmul.f32 %v649, %v684
      %v687 = vmul.f32 %v650, %v684
      %v688 = vmul.f32 %v651, %v684
      %v689 = vmul.f32 %v652, %v684
      %v690 = vmul.f32 %v653, %v684
      %v691 = vmul.f32 %v654, %v684
      %v692 = vmul.f32 %v655, %v684
      %v693 = vmul.f32 %v656, %v684
      %v694 = vmul.f32 %v657, %v684
      %v695 = vmul.f32 %v658, %v684
      %v696 = vmul.f32 %v659, %v684
      %v697 = vmul.f32 %v660, %v684
      %v698 = vmul.f32 %v661, %v684
      %v699 = vmul.f32 %v662, %v684
      %v700 = vmul.f32 %v663, %v684
      %v701 = vmul.f32 %v664, %v684
      %v702 = vmul.f32 %v665, %v684
      %v703 = vmul.f32 %v666, %v684
      %v704 = vmul.f32 %v667, %v684
      %v705 = vmul.f32 %v668, %v684
      %v706 = vmul.f32 %v669, %v684
      %v707 = vmul.f32 %v670, %v684
      %v708 = vmul.f32 %v671, %v684
      %v709 = vmul.f32 %v672, %v684
      %v710 = vmul.f32 %v673, %v684
      %v711 = vmul.f32 %v674, %v684
      %v712 = vmul.f32 %v675, %v684
      %v713 = vmul.f32 %v676, %v684
      %v714 = vmul.f32 %v677, %v684
      %v715 = vmul.f32 %v678, %v684
      %v716 = vld [vmem:[%s4] sm:$0x1]
      %v718 = vlaneseq
      %v719 = vshrl.u32 %v718, 7
      %v720 = vsub.s32 0, %v719
      %v721 = vrot.slane %v716, %v720
      %v723 = vadd.f32 %v686, %v721
      %v724 = vadd.f32 %v687, %v721
      %v725 = vadd.f32 %v688, %v721
      %v726 = vadd.f32 %v689, %v721
      %v727 = vadd.f32 %v690, %v721
      %v728 = vadd.f32 %v691, %v721
      %v729 = vadd.f32 %v692, %v721
      %v730 = vadd.f32 %v693, %v721
      %v731 = vadd.f32 %v694, %v721
      %v732 = vadd.f32 %v695, %v721
      %v733 = vadd.f32 %v696, %v721
      %v734 = vadd.f32 %v697, %v721
      %v735 = vadd.f32 %v698, %v721
      %v736 = vadd.f32 %v699, %v721
      %v737 = vadd.f32 %v700, %v721
      %v738 = vadd.f32 %v701, %v721
      %v739 = vadd.f32 %v702, %v721
      %v740 = vadd.f32 %v703, %v721
      %v741 = vadd.f32 %v704, %v721
      %v742 = vadd.f32 %v705, %v721
      %v743 = vadd.f32 %v706, %v721
      %v744 = vadd.f32 %v707, %v721
      %v745 = vadd.f32 %v708, %v721
      %v746 = vadd.f32 %v709, %v721
      %v747 = vadd.f32 %v710, %v721
      %v748 = vadd.f32 %v711, %v721
      %v749 = vadd.f32 %v712, %v721
      %v750 = vadd.f32 %v713, %v721
      %v751 = vadd.f32 %v714, %v721
      %v752 = vadd.f32 %v715, %v721
      %v753 = vlaneseq
      %v754 = vshrl.u32 %v753, 7
      %v755 = vadd.s32 %v754, 8
      %v756 = vadd.s32 %v754, 16
      %vm757 = vcmp.ge.s32.totalorder %v754, 1
      %vm758 = vcmp.ge.s32.totalorder %v755, 1
      %vm759 = vcmp.ge.s32.totalorder %v756, 1
      %vm760 = vmand 0, %vm757
      %vm761 = vmand 0, %vm758
      %vm762 = vmand 0, %vm759
      %vm763 = vmand 1, %vm757
      %vm764 = vmand 1, %vm758
      %vm765 = vmand 1, %vm759
      %vm766 = vcmp.le.s32.totalorder %v754, 16
      %vm767 = vcmp.le.s32.totalorder %v755, 16
      %vm768 = vcmp.le.s32.totalorder %v756, 16
      %vm769 = vmand %vm760, %vm766
      %vm770 = vmand %vm761, %vm767
      %vm771 = vmand %vm762, %vm768
      %vm772 = vmand %vm763, %vm766
      %vm773 = vmand %vm764, %vm767
      %vm774 = vmand %vm765, %vm768
      %v775 = vsel %vm769, %v723, 0.0
      %v776 = vsel %vm770, %v724, 0.0
      %v777 = vsel %vm771, %v725, 0.0
      %v778 = vsel %vm772, %v726, 0.0
      %v779 = vsel %vm773, %v727, 0.0
      %v780 = vsel %vm774, %v728, 0.0
      %v781 = vsel %vm772, %v729, 0.0
      %v782 = vsel %vm773, %v730, 0.0
      %v783 = vsel %vm774, %v731, 0.0
      %v784 = vsel %vm772, %v732, 0.0
      %v785 = vsel %vm773, %v733, 0.0
      %v786 = vsel %vm774, %v734, 0.0
      %v787 = vsel %vm772, %v735, 0.0
      %v788 = vsel %vm773, %v736, 0.0
      %v789 = vsel %vm774, %v737, 0.0
      %v790 = vsel %vm772, %v738, 0.0
      %v791 = vsel %vm773, %v739, 0.0
      %v792 = vsel %vm774, %v740, 0.0
      %v793 = vsel %vm772, %v741, 0.0
      %v794 = vsel %vm773, %v742, 0.0
      %v795 = vsel %vm774, %v743, 0.0
      %v796 = vsel %vm772, %v744, 0.0
      %v797 = vsel %vm773, %v745, 0.0
      %v798 = vsel %vm774, %v746, 0.0
      %v799 = vsel %vm772, %v747, 0.0
      %v800 = vsel %vm773, %v748, 0.0
      %v801 = vsel %vm774, %v749, 0.0
      %v802 = vsel %vm769, %v750, 0.0
      %v803 = vsel %vm770, %v751, 0.0
      %v804 = vsel %vm771, %v752, 0.0
      %v805 = vpack.c.bf16 %v776, %v775
      %v806 = vpack.c.bf16 %v779, %v778
      %v807 = vpack.c.bf16 %v782, %v781
      %v808 = vpack.c.bf16 %v785, %v784
      %v809 = vpack.c.bf16 %v788, %v787
      %v810 = vpack.c.bf16 %v791, %v790
      %v811 = vpack.c.bf16 %v794, %v793
      %v812 = vpack.c.bf16 %v797, %v796
      %v813 = vld [vmem:[%s1] sm:$0xf]
      %vm838 = vcmask 1046528
      %v839 = vrot.slane %v775, 1
      %v840 = vrot.slane %v776, 1
      %v841 = vsel %vm838, %v839, %v840
      %v842 = vrot.slane %v777, 1
      %v843 = vsel %vm838, %v840, %v842
      %v844 = vrot.slane %v778, 1
      %v845 = vrot.slane %v779, 1
      %v846 = vsel %vm838, %v844, %v845
      %v847 = vrot.slane %v780, 1
      %v848 = vsel %vm838, %v845, %v847
      %v849 = vrot.slane %v781, 1
      %v850 = vrot.slane %v782, 1
      %v851 = vsel %vm838, %v849, %v850
      %v852 = vrot.slane %v783, 1
      %v853 = vsel %vm838, %v850, %v852
      %v854 = vrot.slane %v784, 1
      %v855 = vrot.slane %v785, 1
      %v856 = vsel %vm838, %v854, %v855
      %v857 = vrot.slane %v786, 1
      %v858 = vsel %vm838, %v855, %v857
      %v859 = vrot.slane %v787, 1
      %v860 = vrot.slane %v788, 1
      %v861 = vsel %vm838, %v859, %v860
      %v862 = vrot.slane %v789, 1
      %v863 = vsel %vm838, %v860, %v862
      %v864 = vrot.slane %v790, 1
      %v865 = vrot.slane %v791, 1
      %v866 = vsel %vm838, %v864, %v865
      %v867 = vrot.slane %v792, 1
      %v868 = vsel %vm838, %v865, %v867
      %v869 = vrot.slane %v793, 1
      %v870 = vrot.slane %v794, 1
      %v871 = vsel %vm838, %v869, %v870
      %v872 = vrot.slane %v795, 1
      %v873 = vsel %vm838, %v870, %v872
      %v874 = vrot.slane %v796, 1
      %v875 = vrot.slane %v797, 1
      %v876 = vsel %vm838, %v874, %v875
      %v877 = vrot.slane %v798, 1
      %v878 = vsel %vm838, %v875, %v877
      %v895 = vpack.c.bf16 %v843, %v841
      %v896 = vpack.c.bf16 %v848, %v846
      %v897 = vpack.c.bf16 %v853, %v851
      %v898 = vpack.c.bf16 %v858, %v856
      %v899 = vpack.c.bf16 %v863, %v861
      %v900 = vpack.c.bf16 %v868, %v866
      %v901 = vpack.c.bf16 %v873, %v871
      %v902 = vpack.c.bf16 %v878, %v876
      %s903 = scalar_lea.vmem %s1, 4
      %v904 = vld [vmem:[%s903] sm:$0xf]
      %v906 = vsel %vm286, %v895, 0
      %v909 = vsel %vm286, %v896, 0
      %v912 = vsel %vm286, %v897, 0
      %v915 = vsel %vm286, %v898, 0
      %v918 = vsel %vm286, %v899, 0
      %v921 = vsel %vm286, %v900, 0
      %v924 = vsel %vm286, %v901, 0
      %v927 = vsel %vm286, %v902, 0
      %vm929 = vcmask 1043456
      %v931 = vsel %vm929, %v904, 0
      %933 = vmatprep.subr.bf16.mxu0 0
      %934 = vmatpush1.bf16.msra.mxu0 %v931
      %935 = vmatprep.subr.bf16.mxu0 0
      %936 = vmatpush1.bf16.msra.mxu0 0
      %937 = vmatprep.subr.bf16.mxu0 0
      %938 = vmatpush1.bf16.msra.mxu0 0
      %939 = vmatprep.subr.bf16.mxu0 0
      %940 = vmatpush1.bf16.msra.mxu0 0
      %941 = vmatprep.subr.bf16.mxu0 0
      %942 = vmatpush1.bf16.msra.mxu0 0
      %943 = vmatprep.subr.bf16.mxu0 0
      %944 = vmatpush1.bf16.msra.mxu0 0
      %945 = vmatprep.subr.bf16.mxu0 0
      %946 = vmatpush1.bf16.msra.mxu0 0
      %947 = vmatprep.subr.bf16.mxu0 0
      %948 = vmatpush1.bf16.msra.mxu0 0
      %949 = vmatprep.subr.bf16.mxu0 0
      %950 = vmatpush1.bf16.msra.mxu0 0
      %951 = vmatprep.subr.bf16.mxu0 0
      %952 = vmatpush1.bf16.msra.mxu0 0
      %953 = vmatprep.subr.bf16.mxu0 0
      %954 = vmatpush1.bf16.msra.mxu0 0
      %955 = vmatprep.subr.bf16.mxu0 0
      %956 = vmatpush1.bf16.msra.mxu0 0
      %957 = vmatprep.subr.bf16.mxu0 0
      %958 = vmatpush1.bf16.msra.mxu0 0
      %959 = vmatprep.subr.bf16.mxu0 0
      %960 = vmatpush1.bf16.msra.mxu0 0
      %961 = vmatprep.subr.bf16.mxu0 0
      %962 = vmatpush1.bf16.msra.mxu0 0
      %963 = vmatprep.subr.bf16.mxu0 0
      %964 = vmatpush1.bf16.msra.mxu0 0
      %965 = vmatprep.mubr.bf16.mxu0 0
      %966 = vmatmul.mubr.bf16.gmra.mrb[0].mxu0 %v906
      %v967 = vpop.f32.mrb[0].mxu0
      %v968 = vadd.f32 0.0, %v967
      %v969 = vpop.f32.mrb[0].mxu0
      %v970 = vpop.f32.mrb[0].mxu0
      %v971 = vadd.f32 0.0, %v970
      %v972 = vpop.f32.mrb[0].mxu0
      %973 = vmatprep.mubr.bf16.mxu0 0
      %974 = vmatmul.mubr.bf16.gmra.mrb[0].mxu0 %v909
      %v975 = vpop.f32.mrb[0].mxu0
      %v976 = vadd.f32 0.0, %v975
      %v977 = vpop.f32.mrb[0].mxu0
      %v978 = vpop.f32.mrb[0].mxu0
      %v979 = vadd.f32 0.0, %v978
      %v980 = vpop.f32.mrb[0].mxu0
      %981 = vmatprep.mubr.bf16.mxu0 0
      %982 = vmatmul.mubr.bf16.gmra.mrb[0].mxu0 %v912
      %v983 = vpop.f32.mrb[0].mxu0
      %v984 = vadd.f32 0.0, %v983
      %v985 = vpop.f32.mrb[0].mxu0
      %v986 = vpop.f32.mrb[0].mxu0
      %v987 = vadd.f32 0.0, %v986
      %v988 = vpop.f32.mrb[0].mxu0
      %989 = vmatprep.mubr.bf16.mxu0 0
      %990 = vmatmul.mubr.bf16.gmra.mrb[0].mxu0 %v915
      %v991 = vpop.f32.mrb[0].mxu0
      %v992 = vadd.f32 0.0, %v991
      %v993 = vpop.f32.mrb[0].mxu0
      %v994 = vpop.f32.mrb[0].mxu0
      %v995 = vadd.f32 0.0, %v994
      %v996 = vpop.f32.mrb[0].mxu0
      %997 = vmatprep.mubr.bf16.mxu0 0
      %998 = vmatmul.mubr.bf16.gmra.mrb[0].mxu0 %v918
      %v999 = vpop.f32.mrb[0].mxu0
      %v1000 = vadd.f32 0.0, %v999
      %v1001 = vpop.f32.mrb[0].mxu0
      %v1002 = vpop.f32.mrb[0].mxu0
      %v1003 = vadd.f32 0.0, %v1002
      %v1004 = vpop.f32.mrb[0].mxu0
      %1005 = vmatprep.mubr.bf16.mxu0 0
      %1006 = vmatmul.mubr.bf16.gmra.mrb[0].mxu0 %v921
      %v1007 = vpop.f32.mrb[0].mxu0
      %v1008 = vadd.f32 0.0, %v1007
      %v1009 = vpop.f32.mrb[0].mxu0
      %v1010 = vpop.f32.mrb[0].mxu0
      %v1011 = vadd.f32 0.0, %v1010
      %v1012 = vpop.f32.mrb[0].mxu0
      %1013 = vmatprep.mubr.bf16.mxu0 0
      %1014 = vmatmul.mubr.bf16.gmra.mrb[0].mxu0 %v924
      %v1015 = vpop.f32.mrb[0].mxu0
      %v1016 = vadd.f32 0.0, %v1015
      %v1017 = vpop.f32.mrb[0].mxu0
      %v1018 = vpop.f32.mrb[0].mxu0
      %v1019 = vadd.f32 0.0, %v1018
      %v1020 = vpop.f32.mrb[0].mxu0
      %1021 = vmatprep.mubr.bf16.mxu0 0
      %1022 = vmatmul.mubr.bf16.gmra.mrb[0].mxu0 %v927
      %v1023 = vpop.f32.mrb[0].mxu0
      %v1024 = vadd.f32 0.0, %v1023
      %v1025 = vpop.f32.mrb[0].mxu0
      %v1026 = vpop.f32.mrb[0].mxu0
      %v1027 = vadd.f32 0.0, %v1026
      %v1028 = vpop.f32.mrb[0].mxu0
      %1029 = vdwg.mxu0
      %v1031 = vsel %vm286, %v805, 0
      %v1034 = vsel %vm286, %v806, 0
      %v1037 = vsel %vm286, %v807, 0
      %v1040 = vsel %vm286, %v808, 0
      %v1043 = vsel %vm286, %v809, 0
      %v1046 = vsel %vm286, %v810, 0
      %v1049 = vsel %vm286, %v811, 0
      %v1052 = vsel %vm286, %v812, 0
      %v1055 = vsel %vm929, %v813, 0
      %1057 = vmatprep.subr.bf16.mxu0 0
      %1058 = vmatpush1.bf16.msra.mxu0 %v1055
      %1059 = vmatprep.subr.bf16.mxu0 0
      %1060 = vmatpush1.bf16.msra.mxu0 0
      %1061 = vmatprep.subr.bf16.mxu0 0
      %1062 = vmatpush1.bf16.msra.mxu0 0
      %1063 = vmatprep.subr.bf16.mxu0 0
      %1064 = vmatpush1.bf16.msra.mxu0 0
      %1065 = vmatprep.subr.bf16.mxu0 0
      %1066 = vmatpush1.bf16.msra.mxu0 0
      %1067 = vmatprep.subr.bf16.mxu0 0
      %1068 = vmatpush1.bf16.msra.mxu0 0
      %1069 = vmatprep.subr.bf16.mxu0 0
      %1070 = vmatpush1.bf16.msra.mxu0 0
      %1071 = vmatprep.subr.bf16.mxu0 0
      %1072 = vmatpush1.bf16.msra.mxu0 0
      %1073 = vmatprep.subr.bf16.mxu0 0
      %1074 = vmatpush1.bf16.msra.mxu0 0
      %1075 = vmatprep.subr.bf16.mxu0 0
      %1076 = vmatpush1.bf16.msra.mxu0 0
      %1077 = vmatprep.subr.bf16.mxu0 0
      %1078 = vmatpush1.bf16.msra.mxu0 0
      %1079 = vmatprep.subr.bf16.mxu0 0
      %1080 = vmatpush1.bf16.msra.mxu0 0
      %1081 = vmatprep.subr.bf16.mxu0 0
      %1082 = vmatpush1.bf16.msra.mxu0 0
      %1083 = vmatprep.subr.bf16.mxu0 0
      %1084 = vmatpush1.bf16.msra.mxu0 0
      %1085 = vmatprep.subr.bf16.mxu0 0
      %1086 = vmatpush1.bf16.msra.mxu0 0
      %1087 = vmatprep.subr.bf16.mxu0 0
      %1088 = vmatpush1.bf16.msra.mxu0 0
      %1089 = vmatprep.mubr.bf16.mxu0 0
      %1090 = vmatmul.mubr.bf16.gmra.mrb[0].mxu0 %v1031
      %v1091 = vpop.f32.mrb[0].mxu0
      %v1092 = vadd.f32 %v968, %v1091
      %v1093 = vpop.f32.mrb[0].mxu0
      %v1094 = vpop.f32.mrb[0].mxu0
      %v1095 = vadd.f32 %v971, %v1094
      %v1096 = vpop.f32.mrb[0].mxu0
      %1097 = vmatprep.mubr.bf16.mxu0 0
      %1098 = vmatmul.mubr.bf16.gmra.mrb[0].mxu0 %v1034
      %v1099 = vpop.f32.mrb[0].mxu0
      %v1100 = vadd.f32 %v976, %v1099
      %v1101 = vpop.f32.mrb[0].mxu0
      %v1102 = vpop.f32.mrb[0].mxu0
      %v1103 = vadd.f32 %v979, %v1102
      %v1104 = vpop.f32.mrb[0].mxu0
      %1105 = vmatprep.mubr.bf16.mxu0 0
      %1106 = vmatmul.mubr.bf16.gmra.mrb[0].mxu0 %v1037
      %v1107 = vpop.f32.mrb[0].mxu0
      %v1108 = vadd.f32 %v984, %v1107
      %v1109 = vpop.f32.mrb[0].mxu0
      %v1110 = vpop.f32.mrb[0].mxu0
      %v1111 = vadd.f32 %v987, %v1110
      %v1112 = vpop.f32.mrb[0].mxu0
      %1113 = vmatprep.mubr.bf16.mxu0 0
      %1114 = vmatmul.mubr.bf16.gmra.mrb[0].mxu0 %v1040
      %v1115 = vpop.f32.mrb[0].mxu0
      %v1116 = vadd.f32 %v992, %v1115
      %v1117 = vpop.f32.mrb[0].mxu0
      %v1118 = vpop.f32.mrb[0].mxu0
      %v1119 = vadd.f32 %v995, %v1118
      %v1120 = vpop.f32.mrb[0].mxu0
      %1121 = vmatprep.mubr.bf16.mxu0 0
      %1122 = vmatmul.mubr.bf16.gmra.mrb[0].mxu0 %v1043
      %v1123 = vpop.f32.mrb[0].mxu0
      %v1124 = vadd.f32 %v1000, %v1123
      %v1125 = vpop.f32.mrb[0].mxu0
      %v1126 = vpop.f32.mrb[0].mxu0
      %v1127 = vadd.f32 %v1003, %v1126
      %v1128 = vpop.f32.mrb[0].mxu0
      %1129 = vmatprep.mubr.bf16.mxu0 0
      %1130 = vmatmul.mubr.bf16.gmra.mrb[0].mxu0 %v1046
      %v1131 = vpop.f32.mrb[0].mxu0
      %v1132 = vadd.f32 %v1008, %v1131
      %v1133 = vpop.f32.mrb[0].mxu0
      %v1134 = vpop.f32.mrb[0].mxu0
      %v1135 = vadd.f32 %v1011, %v1134
      %v1136 = vpop.f32.mrb[0].mxu0
      %1137 = vmatprep.mubr.bf16.mxu0 0
      %1138 = vmatmul.mubr.bf16.gmra.mrb[0].mxu0 %v1049
      %v1139 = vpop.f32.mrb[0].mxu0
      %v1140 = vadd.f32 %v1016, %v1139
      %v1141 = vpop.f32.mrb[0].mxu0
      %v1142 = vpop.f32.mrb[0].mxu0
      %v1143 = vadd.f32 %v1019, %v1142
      %v1144 = vpop.f32.mrb[0].mxu0
      %1145 = vmatprep.mubr.bf16.mxu0 0
      %1146 = vmatmul.mubr.bf16.gmra.mrb[0].mxu0 %v1052
      %v1147 = vpop.f32.mrb[0].mxu0
      %v1148 = vadd.f32 %v1024, %v1147
      %v1149 = vpop.f32.mrb[0].mxu0
      %v1150 = vpop.f32.mrb[0].mxu0
      %v1151 = vadd.f32 %v1027, %v1150
      %v1152 = vpop.f32.mrb[0].mxu0
      %1153 = vdwg.mxu0
      %vm1154 = vcmask 1045504
      %v1155 = vrot.slane %v775, 2
      %v1156 = vrot.slane %v776, 2
      %v1157 = vsel %vm1154, %v1155, %v1156
      %v1158 = vrot.slane %v777, 2
      %v1159 = vsel %vm1154, %v1156, %v1158
      %v1160 = vrot.slane %v778, 2
      %v1161 = vrot.slane %v779, 2
      %v1162 = vsel %vm1154, %v1160, %v1161
      %v1163 = vrot.slane %v780, 2
      %v1164 = vsel %vm1154, %v1161, %v1163
      %v1165 = vrot.slane %v781, 2
      %v1166 = vrot.slane %v782, 2
      %v1167 = vsel %vm1154, %v1165, %v1166
      %v1168 = vrot.slane %v783, 2
      %v1169 = vsel %vm1154, %v1166, %v1168
      %v1170 = vrot.slane %v784, 2
      %v1171 = vrot.slane %v785, 2
      %v1172 = vsel %vm1154, %v1170, %v1171
      %v1173 = vrot.slane %v786, 2
      %v1174 = vsel %vm1154, %v1171, %v1173
      %v1175 = vrot.slane %v787, 2
      %v1176 = vrot.slane %v788, 2
      %v1177 = vsel %vm1154, %v1175, %v1176
      %v1178 = vrot.slane %v789, 2
      %v1179 = vsel %vm1154, %v1176, %v1178
      %v1180 = vrot.slane %v790, 2
      %v1181 = vrot.slane %v791, 2
      %v1182 = vsel %vm1154, %v1180, %v1181
      %v1183 = vrot.slane %v792, 2
      %v1184 = vsel %vm1154, %v1181, %v1183
      %v1185 = vrot.slane %v793, 2
      %v1186 = vrot.slane %v794, 2
      %v1187 = vsel %vm1154, %v1185, %v1186
      %v1188 = vrot.slane %v795, 2
      %v1189 = vsel %vm1154, %v1186, %v1188
      %v1190 = vrot.slane %v796, 2
      %v1191 = vrot.slane %v797, 2
      %v1192 = vsel %vm1154, %v1190, %v1191
      %v1193 = vrot.slane %v798, 2
      %v1194 = vsel %vm1154, %v1191, %v1193
      %v1211 = vpack.c.bf16 %v1159, %v1157
      %v1212 = vpack.c.bf16 %v1164, %v1162
      %v1213 = vpack.c.bf16 %v1169, %v1167
      %v1214 = vpack.c.bf16 %v1174, %v1172
      %v1215 = vpack.c.bf16 %v1179, %v1177
      %v1216 = vpack.c.bf16 %v1184, %v1182
      %v1217 = vpack.c.bf16 %v1189, %v1187
      %v1218 = vpack.c.bf16 %v1194, %v1192
      %s1219 = scalar_lea.vmem %s1, 8
      %v1220 = vld [vmem:[%s1219] sm:$0xf]
      %v1222 = vsel %vm286, %v1211, 0
      %v1225 = vsel %vm286, %v1212, 0
      %v1228 = vsel %vm286, %v1213, 0
      %v1231 = vsel %vm286, %v1214, 0
      %v1234 = vsel %vm286, %v1215, 0
      %v1237 = vsel %vm286, %v1216, 0
      %v1240 = vsel %vm286, %v1217, 0
      %v1243 = vsel %vm286, %v1218, 0
      %v1246 = vsel %vm929, %v1220, 0
      %1248 = vmatprep.subr.bf16.mxu0 0
      %1249 = vmatpush1.bf16.msra.mxu0 %v1246
      %1250 = vmatprep.subr.bf16.mxu0 0
      %1251 = vmatpush1.bf16.msra.mxu0 0
      %1252 = vmatprep.subr.bf16.mxu0 0
      %1253 = vmatpush1.bf16.msra.mxu0 0
      %1254 = vmatprep.subr.bf16.mxu0 0
      %1255 = vmatpush1.bf16.msra.mxu0 0
      %1256 = vmatprep.subr.bf16.mxu0 0
      %1257 = vmatpush1.bf16.msra.mxu0 0
      %1258 = vmatprep.subr.bf16.mxu0 0
      %1259 = vmatpush1.bf16.msra.mxu0 0
      %1260 = vmatprep.subr.bf16.mxu0 0
      %1261 = vmatpush1.bf16.msra.mxu0 0
      %1262 = vmatprep.subr.bf16.mxu0 0
      %1263 = vmatpush1.bf16.msra.mxu0 0
      %1264 = vmatprep.subr.bf16.mxu0 0
      %1265 = vmatpush1.bf16.msra.mxu0 0
      %1266 = vmatprep.subr.bf16.mxu0 0
      %1267 = vmatpush1.bf16.msra.mxu0 0
      %1268 = vmatprep.subr.bf16.mxu0 0
      %1269 = vmatpush1.bf16.msra.mxu0 0
      %1270 = vmatprep.subr.bf16.mxu0 0
      %1271 = vmatpush1.bf16.msra.mxu0 0
      %1272 = vmatprep.subr.bf16.mxu0 0
      %1273 = vmatpush1.bf16.msra.mxu0 0
      %1274 = vmatprep.subr.bf16.mxu0 0
      %1275 = vmatpush1.bf16.msra.mxu0 0
      %1276 = vmatprep.subr.bf16.mxu0 0
      %1277 = vmatpush1.bf16.msra.mxu0 0
      %1278 = vmatprep.subr.bf16.mxu0 0
      %1279 = vmatpush1.bf16.msra.mxu0 0
      %1280 = vmatprep.mubr.bf16.mxu0 0
      %1281 = vmatmul.mubr.bf16.gmra.mrb[0].mxu0 %v1222
      %v1282 = vpop.f32.mrb[0].mxu0
      %v1283 = vadd.f32 0.0, %v1282
      %v1284 = vpop.f32.mrb[0].mxu0
      %v1285 = vpop.f32.mrb[0].mxu0
      %v1286 = vadd.f32 0.0, %v1285
      %v1287 = vpop.f32.mrb[0].mxu0
      %1288 = vmatprep.mubr.bf16.mxu0 0
      %1289 = vmatmul.mubr.bf16.gmra.mrb[0].mxu0 %v1225
      %v1290 = vpop.f32.mrb[0].mxu0
      %v1291 = vadd.f32 0.0, %v1290
      %v1292 = vpop.f32.mrb[0].mxu0
      %v1293 = vpop.f32.mrb[0].mxu0
      %v1294 = vadd.f32 0.0, %v1293
      %v1295 = vpop.f32.mrb[0].mxu0
      %1296 = vmatprep.mubr.bf16.mxu0 0
      %1297 = vmatmul.mubr.bf16.gmra.mrb[0].mxu0 %v1228
      %v1298 = vpop.f32.mrb[0].mxu0
      %v1299 = vadd.f32 0.0, %v1298
      %v1300 = vpop.f32.mrb[0].mxu0
      %v1301 = vpop.f32.mrb[0].mxu0
      %v1302 = vadd.f32 0.0, %v1301
      %v1303 = vpop.f32.mrb[0].mxu0
      %1304 = vmatprep.mubr.bf16.mxu0 0
      %1305 = vmatmul.mubr.bf16.gmra.mrb[0].mxu0 %v1231
      %v1306 = vpop.f32.mrb[0].mxu0
      %v1307 = vadd.f32 0.0, %v1306
      %v1308 = vpop.f32.mrb[0].mxu0
      %v1309 = vpop.f32.mrb[0].mxu0
      %v1310 = vadd.f32 0.0, %v1309
      %v1311 = vpop.f32.mrb[0].mxu0
      %1312 = vmatprep.mubr.bf16.mxu0 0
      %1313 = vmatmul.mubr.bf16.gmra.mrb[0].mxu0 %v1234
      %v1314 = vpop.f32.mrb[0].mxu0
      %v1315 = vadd.f32 0.0, %v1314
      %v1316 = vpop.f32.mrb[0].mxu0
      %v1317 = vpop.f32.mrb[0].mxu0
      %v1318 = vadd.f32 0.0, %v1317
      %v1319 = vpop.f32.mrb[0].mxu0
      %1320 = vmatprep.mubr.bf16.mxu0 0
      %1321 = vmatmul.mubr.bf16.gmra.mrb[0].mxu0 %v1237
      %v1322 = vpop.f32.mrb[0].mxu0
      %v1323 = vadd.f32 0.0, %v1322
      %v1324 = vpop.f32.mrb[0].mxu0
      %v1325 = vpop.f32.mrb[0].mxu0
      %v1326 = vadd.f32 0.0, %v1325
      %v1327 = vpop.f32.mrb[0].mxu0
      %1328 = vmatprep.mubr.bf16.mxu0 0
      %1329 = vmatmul.mubr.bf16.gmra.mrb[0].mxu0 %v1240
      %v1330 = vpop.f32.mrb[0].mxu0
      %v1331 = vadd.f32 0.0, %v1330
      %v1332 = vpop.f32.mrb[0].mxu0
      %v1333 = vpop.f32.mrb[0].mxu0
      %v1334 = vadd.f32 0.0, %v1333
      %v1335 = vpop.f32.mrb[0].mxu0
      %1336 = vmatprep.mubr.bf16.mxu0 0
      %1337 = vmatmul.mubr.bf16.gmra.mrb[0].mxu0 %v1243
      %v1338 = vpop.f32.mrb[0].mxu0
      %v1339 = vadd.f32 0.0, %v1338
      %v1340 = vpop.f32.mrb[0].mxu0
      %v1341 = vpop.f32.mrb[0].mxu0
      %v1342 = vadd.f32 0.0, %v1341
      %v1343 = vpop.f32.mrb[0].mxu0
      %1344 = vdwg.mxu0
      %v1345 = vadd.f32 %v1092, %v1283
      %v1346 = vadd.f32 %v1095, %v1286
      %v1347 = vadd.f32 %v1100, %v1291
      %v1348 = vadd.f32 %v1103, %v1294
      %v1349 = vadd.f32 %v1108, %v1299
      %v1350 = vadd.f32 %v1111, %v1302
      %v1351 = vadd.f32 %v1116, %v1307
      %v1352 = vadd.f32 %v1119, %v1310
      %v1353 = vadd.f32 %v1124, %v1315
      %v1354 = vadd.f32 %v1127, %v1318
      %v1355 = vadd.f32 %v1132, %v1323
      %v1356 = vadd.f32 %v1135, %v1326
      %v1357 = vadd.f32 %v1140, %v1331
      %v1358 = vadd.f32 %v1143, %v1334
      %v1359 = vadd.f32 %v1148, %v1339
      %v1360 = vadd.f32 %v1151, %v1342
      %v1361 = vpack.c.bf16 %v800, %v799
      %s1362 = scalar_lea.vmem %s1, 12
      %v1363 = vld [vmem:[%s1362] sm:$0xf]
      %v1365 = vsel %vm286, %v1361, 0
      %v1368 = vsel %vm929, %v1363, 0
      %1370 = vmatprep.subr.bf16.mxu0 0
      %1371 = vmatpush1.bf16.msra.mxu0 %v1368
      %1372 = vmatprep.subr.bf16.mxu0 0
      %1373 = vmatpush1.bf16.msra.mxu0 0
      %1374 = vmatprep.subr.bf16.mxu0 0
      %1375 = vmatpush1.bf16.msra.mxu0 0
      %1376 = vmatprep.subr.bf16.mxu0 0
      %1377 = vmatpush1.bf16.msra.mxu0 0
      %1378 = vmatprep.subr.bf16.mxu0 0
      %1379 = vmatpush1.bf16.msra.mxu0 0
      %1380 = vmatprep.subr.bf16.mxu0 0
      %1381 = vmatpush1.bf16.msra.mxu0 0
      %1382 = vmatprep.subr.bf16.mxu0 0
      %1383 = vmatpush1.bf16.msra.mxu0 0
      %1384 = vmatprep.subr.bf16.mxu0 0
      %1385 = vmatpush1.bf16.msra.mxu0 0
      %1386 = vmatprep.subr.bf16.mxu0 0
      %1387 = vmatpush1.bf16.msra.mxu0 0
      %1388 = vmatprep.subr.bf16.mxu0 0
      %1389 = vmatpush1.bf16.msra.mxu0 0
      %1390 = vmatprep.subr.bf16.mxu0 0
      %1391 = vmatpush1.bf16.msra.mxu0 0
      %1392 = vmatprep.subr.bf16.mxu0 0
      %1393 = vmatpush1.bf16.msra.mxu0 0
      %1394 = vmatprep.subr.bf16.mxu0 0
      %1395 = vmatpush1.bf16.msra.mxu0 0
      %1396 = vmatprep.subr.bf16.mxu0 0
      %1397 = vmatpush1.bf16.msra.mxu0 0
      %1398 = vmatprep.subr.bf16.mxu0 0
      %1399 = vmatpush1.bf16.msra.mxu0 0
      %1400 = vmatprep.subr.bf16.mxu0 0
      %1401 = vmatpush1.bf16.msra.mxu0 0
      %1402 = vmatprep.mubr.bf16.mxu0 0
      %1403 = vmatmul.mubr.bf16.gmra.mrb[0].mxu0 %v1034
      %v1404 = vpop.f32.mrb[0].mxu0
      %v1405 = vadd.f32 0.0, %v1404
      %v1406 = vpop.f32.mrb[0].mxu0
      %v1407 = vpop.f32.mrb[0].mxu0
      %v1408 = vadd.f32 0.0, %v1407
      %v1409 = vpop.f32.mrb[0].mxu0
      %1410 = vmatprep.mubr.bf16.mxu0 0
      %1411 = vmatmul.mubr.bf16.gmra.mrb[0].mxu0 %v1037
      %v1412 = vpop.f32.mrb[0].mxu0
      %v1413 = vadd.f32 0.0, %v1412
      %v1414 = vpop.f32.mrb[0].mxu0
      %v1415 = vpop.f32.mrb[0].mxu0
      %v1416 = vadd.f32 0.0, %v1415
      %v1417 = vpop.f32.mrb[0].mxu0
      %1418 = vmatprep.mubr.bf16.mxu0 0
      %1419 = vmatmul.mubr.bf16.gmra.mrb[0].mxu0 %v1040
      %v1420 = vpop.f32.mrb[0].mxu0
      %v1421 = vadd.f32 0.0, %v1420
      %v1422 = vpop.f32.mrb[0].mxu0
      %v1423 = vpop.f32.mrb[0].mxu0
      %v1424 = vadd.f32 0.0, %v1423
      %v1425 = vpop.f32.mrb[0].mxu0
      %1426 = vmatprep.mubr.bf16.mxu0 0
      %1427 = vmatmul.mubr.bf16.gmra.mrb[0].mxu0 %v1043
      %v1428 = vpop.f32.mrb[0].mxu0
      %v1429 = vadd.f32 0.0, %v1428
      %v1430 = vpop.f32.mrb[0].mxu0
      %v1431 = vpop.f32.mrb[0].mxu0
      %v1432 = vadd.f32 0.0, %v1431
      %v1433 = vpop.f32.mrb[0].mxu0
      %1434 = vmatprep.mubr.bf16.mxu0 0
      %1435 = vmatmul.mubr.bf16.gmra.mrb[0].mxu0 %v1046
      %v1436 = vpop.f32.mrb[0].mxu0
      %v1437 = vadd.f32 0.0, %v1436
      %v1438 = vpop.f32.mrb[0].mxu0
      %v1439 = vpop.f32.mrb[0].mxu0
      %v1440 = vadd.f32 0.0, %v1439
      %v1441 = vpop.f32.mrb[0].mxu0
      %1442 = vmatprep.mubr.bf16.mxu0 0
      %1443 = vmatmul.mubr.bf16.gmra.mrb[0].mxu0 %v1049
      %v1444 = vpop.f32.mrb[0].mxu0
      %v1445 = vadd.f32 0.0, %v1444
      %v1446 = vpop.f32.mrb[0].mxu0
      %v1447 = vpop.f32.mrb[0].mxu0
      %v1448 = vadd.f32 0.0, %v1447
      %v1449 = vpop.f32.mrb[0].mxu0
      %1450 = vmatprep.mubr.bf16.mxu0 0
      %1451 = vmatmul.mubr.bf16.gmra.mrb[0].mxu0 %v1052
      %v1452 = vpop.f32.mrb[0].mxu0
      %v1453 = vadd.f32 0.0, %v1452
      %v1454 = vpop.f32.mrb[0].mxu0
      %v1455 = vpop.f32.mrb[0].mxu0
      %v1456 = vadd.f32 0.0, %v1455
      %v1457 = vpop.f32.mrb[0].mxu0
      %1458 = vmatprep.mubr.bf16.mxu0 0
      %1459 = vmatmul.mubr.bf16.gmra.mrb[0].mxu0 %v1365
      %v1460 = vpop.f32.mrb[0].mxu0
      %v1461 = vadd.f32 0.0, %v1460
      %v1462 = vpop.f32.mrb[0].mxu0
      %v1463 = vpop.f32.mrb[0].mxu0
      %v1464 = vadd.f32 0.0, %v1463
      %v1465 = vpop.f32.mrb[0].mxu0
      %1466 = vdwg.mxu0
      %v1467 = vadd.f32 %v1345, %v1405
      %v1468 = vadd.f32 %v1346, %v1408
      %v1469 = vadd.f32 %v1347, %v1413
      %v1470 = vadd.f32 %v1348, %v1416
      %v1471 = vadd.f32 %v1349, %v1421
      %v1472 = vadd.f32 %v1350, %v1424
      %v1473 = vadd.f32 %v1351, %v1429
      %v1474 = vadd.f32 %v1352, %v1432
      %v1475 = vadd.f32 %v1353, %v1437
      %v1476 = vadd.f32 %v1354, %v1440
      %v1477 = vadd.f32 %v1355, %v1445
      %v1478 = vadd.f32 %v1356, %v1448
      %v1479 = vadd.f32 %v1357, %v1453
      %v1480 = vadd.f32 %v1358, %v1456
      %v1481 = vadd.f32 %v1359, %v1461
      %v1482 = vadd.f32 %v1360, %v1464
      %v1486 = vrot.slane %v799, 1
      %v1487 = vrot.slane %v800, 1
      %v1488 = vsel %vm838, %v1486, %v1487
      %v1489 = vrot.slane %v801, 1
      %v1490 = vsel %vm838, %v1487, %v1489
      %v1493 = vpack.c.bf16 %v1490, %v1488
      %s1494 = scalar_lea.vmem %s1, 16
      %v1495 = vld [vmem:[%s1494] sm:$0xf]
      %v1497 = vsel %vm286, %v1493, 0
      %v1500 = vsel %vm929, %v1495, 0
      %1502 = vmatprep.subr.bf16.mxu0 0
      %1503 = vmatpush1.bf16.msra.mxu0 %v1500
      %1504 = vmatprep.subr.bf16.mxu0 0
      %1505 = vmatpush1.bf16.msra.mxu0 0
      %1506 = vmatprep.subr.bf16.mxu0 0
      %1507 = vmatpush1.bf16.msra.mxu0 0
      %1508 = vmatprep.subr.bf16.mxu0 0
      %1509 = vmatpush1.bf16.msra.mxu0 0
      %1510 = vmatprep.subr.bf16.mxu0 0
      %1511 = vmatpush1.bf16.msra.mxu0 0
      %1512 = vmatprep.subr.bf16.mxu0 0
      %1513 = vmatpush1.bf16.msra.mxu0 0
      %1514 = vmatprep.subr.bf16.mxu0 0
      %1515 = vmatpush1.bf16.msra.mxu0 0
      %1516 = vmatprep.subr.bf16.mxu0 0
      %1517 = vmatpush1.bf16.msra.mxu0 0
      %1518 = vmatprep.subr.bf16.mxu0 0
      %1519 = vmatpush1.bf16.msra.mxu0 0
      %1520 = vmatprep.subr.bf16.mxu0 0
      %1521 = vmatpush1.bf16.msra.mxu0 0
      %1522 = vmatprep.subr.bf16.mxu0 0
      %1523 = vmatpush1.bf16.msra.mxu0 0
      %1524 = vmatprep.subr.bf16.mxu0 0
      %1525 = vmatpush1.bf16.msra.mxu0 0
      %1526 = vmatprep.subr.bf16.mxu0 0
      %1527 = vmatpush1.bf16.msra.mxu0 0
      %1528 = vmatprep.subr.bf16.mxu0 0
      %1529 = vmatpush1.bf16.msra.mxu0 0
      %1530 = vmatprep.subr.bf16.mxu0 0
      %1531 = vmatpush1.bf16.msra.mxu0 0
      %1532 = vmatprep.subr.bf16.mxu0 0
      %1533 = vmatpush1.bf16.msra.mxu0 0
      %1534 = vmatprep.mubr.bf16.mxu0 0
      %1535 = vmatmul.mubr.bf16.gmra.mrb[0].mxu0 %v909
      %v1536 = vpop.f32.mrb[0].mxu0
      %v1537 = vadd.f32 0.0, %v1536
      %v1538 = vpop.f32.mrb[0].mxu0
      %v1539 = vpop.f32.mrb[0].mxu0
      %v1540 = vadd.f32 0.0, %v1539
      %v1541 = vpop.f32.mrb[0].mxu0
      %1542 = vmatprep.mubr.bf16.mxu0 0
      %1543 = vmatmul.mubr.bf16.gmra.mrb[0].mxu0 %v912
      %v1544 = vpop.f32.mrb[0].mxu0
      %v1545 = vadd.f32 0.0, %v1544
      %v1546 = vpop.f32.mrb[0].mxu0
      %v1547 = vpop.f32.mrb[0].mxu0
      %v1548 = vadd.f32 0.0, %v1547
      %v1549 = vpop.f32.mrb[0].mxu0
      %1550 = vmatprep.mubr.bf16.mxu0 0
      %1551 = vmatmul.mubr.bf16.gmra.mrb[0].mxu0 %v915
      %v1552 = vpop.f32.mrb[0].mxu0
      %v1553 = vadd.f32 0.0, %v1552
      %v1554 = vpop.f32.mrb[0].mxu0
      %v1555 = vpop.f32.mrb[0].mxu0
      %v1556 = vadd.f32 0.0, %v1555
      %v1557 = vpop.f32.mrb[0].mxu0
      %1558 = vmatprep.mubr.bf16.mxu0 0
      %1559 = vmatmul.mubr.bf16.gmra.mrb[0].mxu0 %v918
      %v1560 = vpop.f32.mrb[0].mxu0
      %v1561 = vadd.f32 0.0, %v1560
      %v1562 = vpop.f32.mrb[0].mxu0
      %v1563 = vpop.f32.mrb[0].mxu0
      %v1564 = vadd.f32 0.0, %v1563
      %v1565 = vpop.f32.mrb[0].mxu0
      %1566 = vmatprep.mubr.bf16.mxu0 0
      %1567 = vmatmul.mubr.bf16.gmra.mrb[0].mxu0 %v921
      %v1568 = vpop.f32.mrb[0].mxu0
      %v1569 = vadd.f32 0.0, %v1568
      %v1570 = vpop.f32.mrb[0].mxu0
      %v1571 = vpop.f32.mrb[0].mxu0
      %v1572 = vadd.f32 0.0, %v1571
      %v1573 = vpop.f32.mrb[0].mxu0
      %1574 = vmatprep.mubr.bf16.mxu0 0
      %1575 = vmatmul.mubr.bf16.gmra.mrb[0].mxu0 %v924
      %v1576 = vpop.f32.mrb[0].mxu0
      %v1577 = vadd.f32 0.0, %v1576
      %v1578 = vpop.f32.mrb[0].mxu0
      %v1579 = vpop.f32.mrb[0].mxu0
      %v1580 = vadd.f32 0.0, %v1579
      %v1581 = vpop.f32.mrb[0].mxu0
      %1582 = vmatprep.mubr.bf16.mxu0 0
      %1583 = vmatmul.mubr.bf16.gmra.mrb[0].mxu0 %v927
      %v1584 = vpop.f32.mrb[0].mxu0
      %v1585 = vadd.f32 0.0, %v1584
      %v1586 = vpop.f32.mrb[0].mxu0
      %v1587 = vpop.f32.mrb[0].mxu0
      %v1588 = vadd.f32 0.0, %v1587
      %v1589 = vpop.f32.mrb[0].mxu0
      %1590 = vmatprep.mubr.bf16.mxu0 0
      %1591 = vmatmul.mubr.bf16.gmra.mrb[0].mxu0 %v1497
      %v1592 = vpop.f32.mrb[0].mxu0
      %v1593 = vadd.f32 0.0, %v1592
      %v1594 = vpop.f32.mrb[0].mxu0
      %v1595 = vpop.f32.mrb[0].mxu0
      %v1596 = vadd.f32 0.0, %v1595
      %v1597 = vpop.f32.mrb[0].mxu0
      %1598 = vdwg.mxu0
      %v1599 = vadd.f32 %v1467, %v1537
      %v1600 = vadd.f32 %v1468, %v1540
      %v1601 = vadd.f32 %v1469, %v1545
      %v1602 = vadd.f32 %v1470, %v1548
      %v1603 = vadd.f32 %v1471, %v1553
      %v1604 = vadd.f32 %v1472, %v1556
      %v1605 = vadd.f32 %v1473, %v1561
      %v1606 = vadd.f32 %v1474, %v1564
      %v1607 = vadd.f32 %v1475, %v1569
      %v1608 = vadd.f32 %v1476, %v1572
      %v1609 = vadd.f32 %v1477, %v1577
      %v1610 = vadd.f32 %v1478, %v1580
      %v1611 = vadd.f32 %v1479, %v1585
      %v1612 = vadd.f32 %v1480, %v1588
      %v1613 = vadd.f32 %v1481, %v1593
      %v1614 = vadd.f32 %v1482, %v1596
      %v1615 = vrot.slane %v799, 2
      %v1616 = vrot.slane %v800, 2
      %v1617 = vsel %vm1154, %v1615, %v1616
      %v1618 = vrot.slane %v801, 2
      %v1619 = vsel %vm1154, %v1616, %v1618
      %v1622 = vpack.c.bf16 %v1619, %v1617
      %s1623 = scalar_lea.vmem %s1, 20
      %v1624 = vld [vmem:[%s1623] sm:$0xf]
      %v1626 = vsel %vm286, %v1622, 0
      %v1629 = vsel %vm929, %v1624, 0
      %1631 = vmatprep.subr.bf16.mxu0 0
      %1632 = vmatpush1.bf16.msra.mxu0 %v1629
      %1633 = vmatprep.subr.bf16.mxu0 0
      %1634 = vmatpush1.bf16.msra.mxu0 0
      %1635 = vmatprep.subr.bf16.mxu0 0
      %1636 = vmatpush1.bf16.msra.mxu0 0
      %1637 = vmatprep.subr.bf16.mxu0 0
      %1638 = vmatpush1.bf16.msra.mxu0 0
      %1639 = vmatprep.subr.bf16.mxu0 0
      %1640 = vmatpush1.bf16.msra.mxu0 0
      %1641 = vmatprep.subr.bf16.mxu0 0
      %1642 = vmatpush1.bf16.msra.mxu0 0
      %1643 = vmatprep.subr.bf16.mxu0 0
      %1644 = vmatpush1.bf16.msra.mxu0 0
      %1645 = vmatprep.subr.bf16.mxu0 0
      %1646 = vmatpush1.bf16.msra.mxu0 0
      %1647 = vmatprep.subr.bf16.mxu0 0
      %1648 = vmatpush1.bf16.msra.mxu0 0
      %1649 = vmatprep.subr.bf16.mxu0 0
      %1650 = vmatpush1.bf16.msra.mxu0 0
      %1651 = vmatprep.subr.bf16.mxu0 0
      %1652 = vmatpush1.bf16.msra.mxu0 0
      %1653 = vmatprep.subr.bf16.mxu0 0
      %1654 = vmatpush1.bf16.msra.mxu0 0
      %1655 = vmatprep.subr.bf16.mxu0 0
      %1656 = vmatpush1.bf16.msra.mxu0 0
      %1657 = vmatprep.subr.bf16.mxu0 0
      %1658 = vmatpush1.bf16.msra.mxu0 0
      %1659 = vmatprep.subr.bf16.mxu0 0
      %1660 = vmatpush1.bf16.msra.mxu0 0
      %1661 = vmatprep.subr.bf16.mxu0 0
      %1662 = vmatpush1.bf16.msra.mxu0 0
      %1663 = vmatprep.mubr.bf16.mxu0 0
      %1664 = vmatmul.mubr.bf16.gmra.mrb[0].mxu0 %v1225
      %v1665 = vpop.f32.mrb[0].mxu0
      %v1666 = vadd.f32 0.0, %v1665
      %v1667 = vpop.f32.mrb[0].mxu0
      %v1668 = vpop.f32.mrb[0].mxu0
      %v1669 = vadd.f32 0.0, %v1668
      %v1670 = vpop.f32.mrb[0].mxu0
      %1671 = vmatprep.mubr.bf16.mxu0 0
      %1672 = vmatmul.mubr.bf16.gmra.mrb[0].mxu0 %v1228
      %v1673 = vpop.f32.mrb[0].mxu0
      %v1674 = vadd.f32 0.0, %v1673
      %v1675 = vpop.f32.mrb[0].mxu0
      %v1676 = vpop.f32.mrb[0].mxu0
      %v1677 = vadd.f32 0.0, %v1676
      %v1678 = vpop.f32.mrb[0].mxu0
      %1679 = vmatprep.mubr.bf16.mxu0 0
      %1680 = vmatmul.mubr.bf16.gmra.mrb[0].mxu0 %v1231
      %v1681 = vpop.f32.mrb[0].mxu0
      %v1682 = vadd.f32 0.0, %v1681
      %v1683 = vpop.f32.mrb[0].mxu0
      %v1684 = vpop.f32.mrb[0].mxu0
      %v1685 = vadd.f32 0.0, %v1684
      %v1686 = vpop.f32.mrb[0].mxu0
      %1687 = vmatprep.mubr.bf16.mxu0 0
      %1688 = vmatmul.mubr.bf16.gmra.mrb[0].mxu0 %v1234
      %v1689 = vpop.f32.mrb[0].mxu0
      %v1690 = vadd.f32 0.0, %v1689
      %v1691 = vpop.f32.mrb[0].mxu0
      %v1692 = vpop.f32.mrb[0].mxu0
      %v1693 = vadd.f32 0.0, %v1692
      %v1694 = vpop.f32.mrb[0].mxu0
      %1695 = vmatprep.mubr.bf16.mxu0 0
      %1696 = vmatmul.mubr.bf16.gmra.mrb[0].mxu0 %v1237
      %v1697 = vpop.f32.mrb[0].mxu0
      %v1698 = vadd.f32 0.0, %v1697
      %v1699 = vpop.f32.mrb[0].mxu0
      %v1700 = vpop.f32.mrb[0].mxu0
      %v1701 = vadd.f32 0.0, %v1700
      %v1702 = vpop.f32.mrb[0].mxu0
      %1703 = vmatprep.mubr.bf16.mxu0 0
      %1704 = vmatmul.mubr.bf16.gmra.mrb[0].mxu0 %v1240
      %v1705 = vpop.f32.mrb[0].mxu0
      %v1706 = vadd.f32 0.0, %v1705
      %v1707 = vpop.f32.mrb[0].mxu0
      %v1708 = vpop.f32.mrb[0].mxu0
      %v1709 = vadd.f32 0.0, %v1708
      %v1710 = vpop.f32.mrb[0].mxu0
      %1711 = vmatprep.mubr.bf16.mxu0 0
      %1712 = vmatmul.mubr.bf16.gmra.mrb[0].mxu0 %v1243
      %v1713 = vpop.f32.mrb[0].mxu0
      %v1714 = vadd.f32 0.0, %v1713
      %v1715 = vpop.f32.mrb[0].mxu0
      %v1716 = vpop.f32.mrb[0].mxu0
      %v1717 = vadd.f32 0.0, %v1716
      %v1718 = vpop.f32.mrb[0].mxu0
      %1719 = vmatprep.mubr.bf16.mxu0 0
      %1720 = vmatmul.mubr.bf16.gmra.mrb[0].mxu0 %v1626
      %v1721 = vpop.f32.mrb[0].mxu0
      %v1722 = vadd.f32 0.0, %v1721
      %v1723 = vpop.f32.mrb[0].mxu0
      %v1724 = vpop.f32.mrb[0].mxu0
      %v1725 = vadd.f32 0.0, %v1724
      %v1726 = vpop.f32.mrb[0].mxu0
      %1727 = vdwg.mxu0
      %v1728 = vadd.f32 %v1599, %v1666
      %v1729 = vadd.f32 %v1600, %v1669
      %v1730 = vadd.f32 %v1601, %v1674
      %v1731 = vadd.f32 %v1602, %v1677
      %v1732 = vadd.f32 %v1603, %v1682
      %v1733 = vadd.f32 %v1604, %v1685
      %v1734 = vadd.f32 %v1605, %v1690
      %v1735 = vadd.f32 %v1606, %v1693
      %v1736 = vadd.f32 %v1607, %v1698
      %v1737 = vadd.f32 %v1608, %v1701
      %v1738 = vadd.f32 %v1609, %v1706
      %v1739 = vadd.f32 %v1610, %v1709
      %v1740 = vadd.f32 %v1611, %v1714
      %v1741 = vadd.f32 %v1612, %v1717
      %v1742 = vadd.f32 %v1613, %v1722
      %v1743 = vadd.f32 %v1614, %v1725
      %v1744 = vpack.c.bf16 %v803, %v802
      %s1745 = scalar_lea.vmem %s1, 24
      %v1746 = vld [vmem:[%s1745] sm:$0xf]
      %v1748 = vsel %vm286, %v1744, 0
      %v1751 = vsel %vm929, %v1746, 0
      %1753 = vmatprep.subr.bf16.mxu0 0
      %1754 = vmatpush1.bf16.msra.mxu0 %v1751
      %1755 = vmatprep.subr.bf16.mxu0 0
      %1756 = vmatpush1.bf16.msra.mxu0 0
      %1757 = vmatprep.subr.bf16.mxu0 0
      %1758 = vmatpush1.bf16.msra.mxu0 0
      %1759 = vmatprep.subr.bf16.mxu0 0
      %1760 = vmatpush1.bf16.msra.mxu0 0
      %1761 = vmatprep.subr.bf16.mxu0 0
      %1762 = vmatpush1.bf16.msra.mxu0 0
      %1763 = vmatprep.subr.bf16.mxu0 0
      %1764 = vmatpush1.bf16.msra.mxu0 0
      %1765 = vmatprep.subr.bf16.mxu0 0
      %1766 = vmatpush1.bf16.msra.mxu0 0
      %1767 = vmatprep.subr.bf16.mxu0 0
      %1768 = vmatpush1.bf16.msra.mxu0 0
      %1769 = vmatprep.subr.bf16.mxu0 0
      %1770 = vmatpush1.bf16.msra.mxu0 0
      %1771 = vmatprep.subr.bf16.mxu0 0
      %1772 = vmatpush1.bf16.msra.mxu0 0
      %1773 = vmatprep.subr.bf16.mxu0 0
      %1774 = vmatpush1.bf16.msra.mxu0 0
      %1775 = vmatprep.subr.bf16.mxu0 0
      %1776 = vmatpush1.bf16.msra.mxu0 0
      %1777 = vmatprep.subr.bf16.mxu0 0
      %1778 = vmatpush1.bf16.msra.mxu0 0
      %1779 = vmatprep.subr.bf16.mxu0 0
      %1780 = vmatpush1.bf16.msra.mxu0 0
      %1781 = vmatprep.subr.bf16.mxu0 0
      %1782 = vmatpush1.bf16.msra.mxu0 0
      %1783 = vmatprep.subr.bf16.mxu0 0
      %1784 = vmatpush1.bf16.msra.mxu0 0
      %1785 = vmatprep.mubr.bf16.mxu0 0
      %1786 = vmatmul.mubr.bf16.gmra.mrb[0].mxu0 %v1037
      %v1787 = vpop.f32.mrb[0].mxu0
      %v1788 = vadd.f32 0.0, %v1787
      %v1789 = vpop.f32.mrb[0].mxu0
      %v1790 = vpop.f32.mrb[0].mxu0
      %v1791 = vadd.f32 0.0, %v1790
      %v1792 = vpop.f32.mrb[0].mxu0
      %1793 = vmatprep.mubr.bf16.mxu0 0
      %1794 = vmatmul.mubr.bf16.gmra.mrb[0].mxu0 %v1040
      %v1795 = vpop.f32.mrb[0].mxu0
      %v1796 = vadd.f32 0.0, %v1795
      %v1797 = vpop.f32.mrb[0].mxu0
      %v1798 = vpop.f32.mrb[0].mxu0
      %v1799 = vadd.f32 0.0, %v1798
      %v1800 = vpop.f32.mrb[0].mxu0
      %1801 = vmatprep.mubr.bf16.mxu0 0
      %1802 = vmatmul.mubr.bf16.gmra.mrb[0].mxu0 %v1043
      %v1803 = vpop.f32.mrb[0].mxu0
      %v1804 = vadd.f32 0.0, %v1803
      %v1805 = vpop.f32.mrb[0].mxu0
      %v1806 = vpop.f32.mrb[0].mxu0
      %v1807 = vadd.f32 0.0, %v1806
      %v1808 = vpop.f32.mrb[0].mxu0
      %1809 = vmatprep.mubr.bf16.mxu0 0
      %1810 = vmatmul.mubr.bf16.gmra.mrb[0].mxu0 %v1046
      %v1811 = vpop.f32.mrb[0].mxu0
      %v1812 = vadd.f32 0.0, %v1811
      %v1813 = vpop.f32.mrb[0].mxu0
      %v1814 = vpop.f32.mrb[0].mxu0
      %v1815 = vadd.f32 0.0, %v1814
      %v1816 = vpop.f32.mrb[0].mxu0
      %1817 = vmatprep.mubr.bf16.mxu0 0
      %1818 = vmatmul.mubr.bf16.gmra.mrb[0].mxu0 %v1049
      %v1819 = vpop.f32.mrb[0].mxu0
      %v1820 = vadd.f32 0.0, %v1819
      %v1821 = vpop.f32.mrb[0].mxu0
      %v1822 = vpop.f32.mrb[0].mxu0
      %v1823 = vadd.f32 0.0, %v1822
      %v1824 = vpop.f32.mrb[0].mxu0
      %1825 = vmatprep.mubr.bf16.mxu0 0
      %1826 = vmatmul.mubr.bf16.gmra.mrb[0].mxu0 %v1052
      %v1827 = vpop.f32.mrb[0].mxu0
      %v1828 = vadd.f32 0.0, %v1827
      %v1829 = vpop.f32.mrb[0].mxu0
      %v1830 = vpop.f32.mrb[0].mxu0
      %v1831 = vadd.f32 0.0, %v1830
      %v1832 = vpop.f32.mrb[0].mxu0
      %1833 = vmatprep.mubr.bf16.mxu0 0
      %1834 = vmatmul.mubr.bf16.gmra.mrb[0].mxu0 %v1365
      %v1835 = vpop.f32.mrb[0].mxu0
      %v1836 = vadd.f32 0.0, %v1835
      %v1837 = vpop.f32.mrb[0].mxu0
      %v1838 = vpop.f32.mrb[0].mxu0
      %v1839 = vadd.f32 0.0, %v1838
      %v1840 = vpop.f32.mrb[0].mxu0
      %1841 = vmatprep.mubr.bf16.mxu0 0
      %1842 = vmatmul.mubr.bf16.gmra.mrb[0].mxu0 %v1748
      %v1843 = vpop.f32.mrb[0].mxu0
      %v1844 = vadd.f32 0.0, %v1843
      %v1845 = vpop.f32.mrb[0].mxu0
      %v1846 = vpop.f32.mrb[0].mxu0
      %v1847 = vadd.f32 0.0, %v1846
      %v1848 = vpop.f32.mrb[0].mxu0
      %1849 = vdwg.mxu0
      %v1850 = vadd.f32 %v1728, %v1788
      %v1851 = vadd.f32 %v1729, %v1791
      %v1852 = vadd.f32 %v1730, %v1796
      %v1853 = vadd.f32 %v1731, %v1799
      %v1854 = vadd.f32 %v1732, %v1804
      %v1855 = vadd.f32 %v1733, %v1807
      %v1856 = vadd.f32 %v1734, %v1812
      %v1857 = vadd.f32 %v1735, %v1815
      %v1858 = vadd.f32 %v1736, %v1820
      %v1859 = vadd.f32 %v1737, %v1823
      %v1860 = vadd.f32 %v1738, %v1828
      %v1861 = vadd.f32 %v1739, %v1831
      %v1862 = vadd.f32 %v1740, %v1836
      %v1863 = vadd.f32 %v1741, %v1839
      %v1864 = vadd.f32 %v1742, %v1844
      %v1865 = vadd.f32 %v1743, %v1847
      %v1869 = vrot.slane %v802, 1
      %v1870 = vrot.slane %v803, 1
      %v1871 = vsel %vm838, %v1869, %v1870
      %v1872 = vrot.slane %v804, 1
      %v1873 = vsel %vm838, %v1870, %v1872
      %v1876 = vpack.c.bf16 %v1873, %v1871
      %s1877 = scalar_lea.vmem %s1, 28
      %v1878 = vld [vmem:[%s1877] sm:$0xf]
      %v1880 = vsel %vm286, %v1876, 0
      %v1883 = vsel %vm929, %v1878, 0
      %1885 = vmatprep.subr.bf16.mxu0 0
      %1886 = vmatpush1.bf16.msra.mxu0 %v1883
      %1887 = vmatprep.subr.bf16.mxu0 0
      %1888 = vmatpush1.bf16.msra.mxu0 0
      %1889 = vmatprep.subr.bf16.mxu0 0
      %1890 = vmatpush1.bf16.msra.mxu0 0
      %1891 = vmatprep.subr.bf16.mxu0 0
      %1892 = vmatpush1.bf16.msra.mxu0 0
      %1893 = vmatprep.subr.bf16.mxu0 0
      %1894 = vmatpush1.bf16.msra.mxu0 0
      %1895 = vmatprep.subr.bf16.mxu0 0
      %1896 = vmatpush1.bf16.msra.mxu0 0
      %1897 = vmatprep.subr.bf16.mxu0 0
      %1898 = vmatpush1.bf16.msra.mxu0 0
      %1899 = vmatprep.subr.bf16.mxu0 0
      %1900 = vmatpush1.bf16.msra.mxu0 0
      %1901 = vmatprep.subr.bf16.mxu0 0
      %1902 = vmatpush1.bf16.msra.mxu0 0
      %1903 = vmatprep.subr.bf16.mxu0 0
      %1904 = vmatpush1.bf16.msra.mxu0 0
      %1905 = vmatprep.subr.bf16.mxu0 0
      %1906 = vmatpush1.bf16.msra.mxu0 0
      %1907 = vmatprep.subr.bf16.mxu0 0
      %1908 = vmatpush1.bf16.msra.mxu0 0
      %1909 = vmatprep.subr.bf16.mxu0 0
      %1910 = vmatpush1.bf16.msra.mxu0 0
      %1911 = vmatprep.subr.bf16.mxu0 0
      %1912 = vmatpush1.bf16.msra.mxu0 0
      %1913 = vmatprep.subr.bf16.mxu0 0
      %1914 = vmatpush1.bf16.msra.mxu0 0
      %1915 = vmatprep.subr.bf16.mxu0 0
      %1916 = vmatpush1.bf16.msra.mxu0 0
      %1917 = vmatprep.mubr.bf16.mxu0 0
      %1918 = vmatmul.mubr.bf16.gmra.mrb[0].mxu0 %v912
      %v1919 = vpop.f32.mrb[0].mxu0
      %v1920 = vadd.f32 0.0, %v1919
      %v1921 = vpop.f32.mrb[0].mxu0
      %v1922 = vpop.f32.mrb[0].mxu0
      %v1923 = vadd.f32 0.0, %v1922
      %v1924 = vpop.f32.mrb[0].mxu0
      %1925 = vmatprep.mubr.bf16.mxu0 0
      %1926 = vmatmul.mubr.bf16.gmra.mrb[0].mxu0 %v915
      %v1927 = vpop.f32.mrb[0].mxu0
      %v1928 = vadd.f32 0.0, %v1927
      %v1929 = vpop.f32.mrb[0].mxu0
      %v1930 = vpop.f32.mrb[0].mxu0
      %v1931 = vadd.f32 0.0, %v1930
      %v1932 = vpop.f32.mrb[0].mxu0
      %1933 = vmatprep.mubr.bf16.mxu0 0
      %1934 = vmatmul.mubr.bf16.gmra.mrb[0].mxu0 %v918
      %v1935 = vpop.f32.mrb[0].mxu0
      %v1936 = vadd.f32 0.0, %v1935
      %v1937 = vpop.f32.mrb[0].mxu0
      %v1938 = vpop.f32.mrb[0].mxu0
      %v1939 = vadd.f32 0.0, %v1938
      %v1940 = vpop.f32.mrb[0].mxu0
      %1941 = vmatprep.mubr.bf16.mxu0 0
      %1942 = vmatmul.mubr.bf16.gmra.mrb[0].mxu0 %v921
      %v1943 = vpop.f32.mrb[0].mxu0
      %v1944 = vadd.f32 0.0, %v1943
      %v1945 = vpop.f32.mrb[0].mxu0
      %v1946 = vpop.f32.mrb[0].mxu0
      %v1947 = vadd.f32 0.0, %v1946
      %v1948 = vpop.f32.mrb[0].mxu0
      %1949 = vmatprep.mubr.bf16.mxu0 0
      %1950 = vmatmul.mubr.bf16.gmra.mrb[0].mxu0 %v924
      %v1951 = vpop.f32.mrb[0].mxu0
      %v1952 = vadd.f32 0.0, %v1951
      %v1953 = vpop.f32.mrb[0].mxu0
      %v1954 = vpop.f32.mrb[0].mxu0
      %v1955 = vadd.f32 0.0, %v1954
      %v1956 = vpop.f32.mrb[0].mxu0
      %1957 = vmatprep.mubr.bf16.mxu0 0
      %1958 = vmatmul.mubr.bf16.gmra.mrb[0].mxu0 %v927
      %v1959 = vpop.f32.mrb[0].mxu0
      %v1960 = vadd.f32 0.0, %v1959
      %v1961 = vpop.f32.mrb[0].mxu0
      %v1962 = vpop.f32.mrb[0].mxu0
      %v1963 = vadd.f32 0.0, %v1962
      %v1964 = vpop.f32.mrb[0].mxu0
      %1965 = vmatprep.mubr.bf16.mxu0 0
      %1966 = vmatmul.mubr.bf16.gmra.mrb[0].mxu0 %v1497
      %v1967 = vpop.f32.mrb[0].mxu0
      %v1968 = vadd.f32 0.0, %v1967
      %v1969 = vpop.f32.mrb[0].mxu0
      %v1970 = vpop.f32.mrb[0].mxu0
      %v1971 = vadd.f32 0.0, %v1970
      %v1972 = vpop.f32.mrb[0].mxu0
      %1973 = vmatprep.mubr.bf16.mxu0 0
      %1974 = vmatmul.mubr.bf16.gmra.mrb[0].mxu0 %v1880
      %v1975 = vpop.f32.mrb[0].mxu0
      %v1976 = vadd.f32 0.0, %v1975
      %v1977 = vpop.f32.mrb[0].mxu0
      %v1978 = vpop.f32.mrb[0].mxu0
      %v1979 = vadd.f32 0.0, %v1978
      %v1980 = vpop.f32.mrb[0].mxu0
      %1981 = vdwg.mxu0
      %v1982 = vadd.f32 %v1850, %v1920
      %v1983 = vadd.f32 %v1851, %v1923
      %v1984 = vadd.f32 %v1852, %v1928
      %v1985 = vadd.f32 %v1853, %v1931
      %v1986 = vadd.f32 %v1854, %v1936
      %v1987 = vadd.f32 %v1855, %v1939
      %v1988 = vadd.f32 %v1856, %v1944
      %v1989 = vadd.f32 %v1857, %v1947
      %v1990 = vadd.f32 %v1858, %v1952
      %v1991 = vadd.f32 %v1859, %v1955
      %v1992 = vadd.f32 %v1860, %v1960
      %v1993 = vadd.f32 %v1861, %v1963
      %v1994 = vadd.f32 %v1862, %v1968
      %v1995 = vadd.f32 %v1863, %v1971
      %v1996 = vadd.f32 %v1864, %v1976
      %v1997 = vadd.f32 %v1865, %v1979
      %v1998 = vrot.slane %v802, 2
      %v1999 = vrot.slane %v803, 2
      %v2000 = vsel %vm1154, %v1998, %v1999
      %v2001 = vrot.slane %v804, 2
      %v2002 = vsel %vm1154, %v1999, %v2001
      %v2005 = vpack.c.bf16 %v2002, %v2000
      %s2006 = scalar_lea.vmem %s1, 32
      %v2007 = vld [vmem:[%s2006] sm:$0xf]
      %v2009 = vsel %vm286, %v2005, 0
      %v2012 = vsel %vm929, %v2007, 0
      %2014 = vmatprep.subr.bf16.mxu0 0
      %2015 = vmatpush1.bf16.msra.mxu0 %v2012
      %2016 = vmatprep.subr.bf16.mxu0 0
      %2017 = vmatpush1.bf16.msra.mxu0 0
      %2018 = vmatprep.subr.bf16.mxu0 0
      %2019 = vmatpush1.bf16.msra.mxu0 0
      %2020 = vmatprep.subr.bf16.mxu0 0
      %2021 = vmatpush1.bf16.msra.mxu0 0
      %2022 = vmatprep.subr.bf16.mxu0 0
      %2023 = vmatpush1.bf16.msra.mxu0 0
      %2024 = vmatprep.subr.bf16.mxu0 0
      %2025 = vmatpush1.bf16.msra.mxu0 0
      %2026 = vmatprep.subr.bf16.mxu0 0
      %2027 = vmatpush1.bf16.msra.mxu0 0
      %2028 = vmatprep.subr.bf16.mxu0 0
      %2029 = vmatpush1.bf16.msra.mxu0 0
      %2030 = vmatprep.subr.bf16.mxu0 0
      %2031 = vmatpush1.bf16.msra.mxu0 0
      %2032 = vmatprep.subr.bf16.mxu0 0
      %2033 = vmatpush1.bf16.msra.mxu0 0
      %2034 = vmatprep.subr.bf16.mxu0 0
      %2035 = vmatpush1.bf16.msra.mxu0 0
      %2036 = vmatprep.subr.bf16.mxu0 0
      %2037 = vmatpush1.bf16.msra.mxu0 0
      %2038 = vmatprep.subr.bf16.mxu0 0
      %2039 = vmatpush1.bf16.msra.mxu0 0
      %2040 = vmatprep.subr.bf16.mxu0 0
      %2041 = vmatpush1.bf16.msra.mxu0 0
      %2042 = vmatprep.subr.bf16.mxu0 0
      %2043 = vmatpush1.bf16.msra.mxu0 0
      %2044 = vmatprep.subr.bf16.mxu0 0
      %2045 = vmatpush1.bf16.msra.mxu0 0
      %2046 = vmatprep.mubr.bf16.mxu0 0
      %2047 = vmatmul.mubr.bf16.gmra.mrb[0].mxu0 %v1228
      %v2048 = vpop.f32.mrb[0].mxu0
      %v2049 = vadd.f32 0.0, %v2048
      %v2050 = vpop.f32.mrb[0].mxu0
      %v2051 = vpop.f32.mrb[0].mxu0
      %v2052 = vadd.f32 0.0, %v2051
      %v2053 = vpop.f32.mrb[0].mxu0
      %2054 = vmatprep.mubr.bf16.mxu0 0
      %2055 = vmatmul.mubr.bf16.gmra.mrb[0].mxu0 %v1231
      %v2056 = vpop.f32.mrb[0].mxu0
      %v2057 = vadd.f32 0.0, %v2056
      %v2058 = vpop.f32.mrb[0].mxu0
      %v2059 = vpop.f32.mrb[0].mxu0
      %v2060 = vadd.f32 0.0, %v2059
      %v2061 = vpop.f32.mrb[0].mxu0
      %2062 = vmatprep.mubr.bf16.mxu0 0
      %2063 = vmatmul.mubr.bf16.gmra.mrb[0].mxu0 %v1234
      %v2064 = vpop.f32.mrb[0].mxu0
      %v2065 = vadd.f32 0.0, %v2064
      %v2066 = vpop.f32.mrb[0].mxu0
      %v2067 = vpop.f32.mrb[0].mxu0
      %v2068 = vadd.f32 0.0, %v2067
      %v2069 = vpop.f32.mrb[0].mxu0
      %2070 = vmatprep.mubr.bf16.mxu0 0
      %2071 = vmatmul.mubr.bf16.gmra.mrb[0].mxu0 %v1237
      %v2072 = vpop.f32.mrb[0].mxu0
      %v2073 = vadd.f32 0.0, %v2072
      %v2074 = vpop.f32.mrb[0].mxu0
      %v2075 = vpop.f32.mrb[0].mxu0
      %v2076 = vadd.f32 0.0, %v2075
      %v2077 = vpop.f32.mrb[0].mxu0
      %2078 = vmatprep.mubr.bf16.mxu0 0
      %2079 = vmatmul.mubr.bf16.gmra.mrb[0].mxu0 %v1240
      %v2080 = vpop.f32.mrb[0].mxu0
      %v2081 = vadd.f32 0.0, %v2080
      %v2082 = vpop.f32.mrb[0].mxu0
      %v2083 = vpop.f32.mrb[0].mxu0
      %v2084 = vadd.f32 0.0, %v2083
      %v2085 = vpop.f32.mrb[0].mxu0
      %2086 = vmatprep.mubr.bf16.mxu0 0
      %2087 = vmatmul.mubr.bf16.gmra.mrb[0].mxu0 %v1243
      %v2088 = vpop.f32.mrb[0].mxu0
      %v2089 = vadd.f32 0.0, %v2088
      %v2090 = vpop.f32.mrb[0].mxu0
      %v2091 = vpop.f32.mrb[0].mxu0
      %v2092 = vadd.f32 0.0, %v2091
      %v2093 = vpop.f32.mrb[0].mxu0
      %2094 = vmatprep.mubr.bf16.mxu0 0
      %2095 = vmatmul.mubr.bf16.gmra.mrb[0].mxu0 %v1626
      %v2096 = vpop.f32.mrb[0].mxu0
      %v2097 = vadd.f32 0.0, %v2096
      %v2098 = vpop.f32.mrb[0].mxu0
      %v2099 = vpop.f32.mrb[0].mxu0
      %v2100 = vadd.f32 0.0, %v2099
      %v2101 = vpop.f32.mrb[0].mxu0
      %2102 = vmatprep.mubr.bf16.mxu0 0
      %2103 = vmatmul.mubr.bf16.gmra.mrb[0].mxu0 %v2009
      %v2104 = vpop.f32.mrb[0].mxu0
      %v2105 = vadd.f32 0.0, %v2104
      %v2106 = vpop.f32.mrb[0].mxu0
      %v2107 = vpop.f32.mrb[0].mxu0
      %v2108 = vadd.f32 0.0, %v2107
      %v2109 = vpop.f32.mrb[0].mxu0
      %2110 = vdwg.mxu0
      %v2111 = vadd.f32 %v1982, %v2049
      %v2112 = vadd.f32 %v1983, %v2052
      %v2113 = vadd.f32 %v1984, %v2057
      %v2114 = vadd.f32 %v1985, %v2060
      %v2115 = vadd.f32 %v1986, %v2065
      %v2116 = vadd.f32 %v1987, %v2068
      %v2117 = vadd.f32 %v1988, %v2073
      %v2118 = vadd.f32 %v1989, %v2076
      %v2119 = vadd.f32 %v1990, %v2081
      %v2120 = vadd.f32 %v1991, %v2084
      %v2121 = vadd.f32 %v1992, %v2089
      %v2122 = vadd.f32 %v1993, %v2092
      %v2123 = vadd.f32 %v1994, %v2097
      %v2124 = vadd.f32 %v1995, %v2100
      %v2125 = vadd.f32 %v1996, %v2105
      %v2126 = vadd.f32 %v1997, %v2108
      %v2127 = vld [vmem:[%s2] sm:$0x1]
      %v2129 = vlaneseq
      %v2130 = vshrl.u32 %v2129, 7
      %v2131 = vsub.s32 0, %v2130
      %v2132 = vrot.slane %v2127, %v2131
      %v2134 = vadd.f32 %v2111, %v2132
      %v2135 = vadd.f32 %v2112, %v2132
      %v2136 = vadd.f32 %v2113, %v2132
      %v2137 = vadd.f32 %v2114, %v2132
      %v2138 = vadd.f32 %v2115, %v2132
      %v2139 = vadd.f32 %v2116, %v2132
      %v2140 = vadd.f32 %v2117, %v2132
      %v2141 = vadd.f32 %v2118, %v2132
      %v2142 = vadd.f32 %v2119, %v2132
      %v2143 = vadd.f32 %v2120, %v2132
      %v2144 = vadd.f32 %v2121, %v2132
      %v2145 = vadd.f32 %v2122, %v2132
      %v2146 = vadd.f32 %v2123, %v2132
      %v2147 = vadd.f32 %v2124, %v2132
      %v2148 = vadd.f32 %v2125, %v2132
      %v2149 = vadd.f32 %v2126, %v2132
      %vm2150 = vcmask 195584
      %2151 = vst.msk [vmem:[%s224] sm:$0xff] %vm2150, %v2134
      %2152 = vst.msk [vmem:[%s224 + $0x8] sm:$0xff] %vm2150, %v2135
      %2153 = vst.msk [vmem:[%s224 + $0x10] sm:$0xff] %vm2150, %v2136
      %2154 = vst.msk [vmem:[%s224 + $0x18] sm:$0xff] %vm2150, %v2137
      %2155 = vst.msk [vmem:[%s224 + $0x20] sm:$0xff] %vm2150, %v2138
      %2156 = vst.msk [vmem:[%s224 + $0x28] sm:$0xff] %vm2150, %v2139
      %2157 = vst.msk [vmem:[%s224 + $0x30] sm:$0xff] %vm2150, %v2140
      %2158 = vst.msk [vmem:[%s224 + $0x38] sm:$0xff] %vm2150, %v2141
      %2159 = vst.msk [vmem:[%s224 + $0x40] sm:$0xff] %vm2150, %v2142
      %2160 = vst.msk [vmem:[%s224 + $0x48] sm:$0xff] %vm2150, %v2143
      %2161 = vst.msk [vmem:[%s224 + $0x50] sm:$0xff] %vm2150, %v2144
      %2162 = vst.msk [vmem:[%s224 + $0x58] sm:$0xff] %vm2150, %v2145
      %2163 = vst.msk [vmem:[%s224 + $0x60] sm:$0xff] %vm2150, %v2146
      %2164 = vst.msk [vmem:[%s224 + $0x68] sm:$0xff] %vm2150, %v2147
      %2165 = vst.msk [vmem:[%s224 + $0x70] sm:$0xff] %vm2150, %v2148
      %2166 = vst.msk [vmem:[%s224 + $0x78] sm:$0xff] %vm2150, %v2149
      %p2167 = scmp.lt.s32.totalorder %s16, 1
      %s2168 = scalar_select %p2167, %s16, 1
      %s2169 = smul.addr %s2168, 16
      %s2170 = smul.addr %s2169, 8
      %s2171 = scalar_lea.vmem %s5, %s2170
      // Predicated region
      $region41: #{encoder_forward.5} parent=39 // pred_check
        %p2172 = pneg %p144
      $region42: #{encoder_forward.5} parent=39 // pred_check_branch
        %2174 = sbr.rel (%p2172) target = $region44
      $region43: #{encoder_forward.5} parent=39 // pred_region
        _
      $region44: #{encoder_forward.5} parent=39 // pred_fallthru
        _
    $region40: #{encoder_forward.5} parent=5 // pred_fallthru
      _
    %p2175 = scmp.le.s32.totalorder 2, %s11
    // Predicated region
    $region45: #{encoder_forward.5} parent=5 // pred_check
      %p2176 = pneg %p2175
    $region46: #{encoder_forward.5} parent=5 // pred_check_branch
      %2178 = sbr.rel (%p2176) target = $region48
    $region47: #{encoder_forward.5} parent=5 // pred_region
      %s2179 = ssub.s32 %s11, 2
      // Predicated region
      $region49: #{encoder_forward.5} parent=47 // pred_check
        %p2180 = pneg %p150
      $region50: #{encoder_forward.5} parent=47 // pred_check_branch
        %2182 = sbr.rel (%p2180) target = $region52
      $region51: #{encoder_forward.5} parent=47 // pred_region
        %p2183 = scmp.lt.s32.totalorder %s17, 1
        %s2184 = scalar_select %p2183, %s17, 1
        %s2185 = smul.addr %s2184, 16
        %s2186 = smul.addr %s2185, 8
        %s2187 = scalar_lea.vmem %s5, %s2186
      $region52: #{encoder_forward.5} parent=47 // pred_fallthru
        _
    $region48: #{encoder_forward.5} parent=5 // pred_fallthru
      _
  $region6: #{encoder_forward.5} parent=0 // loop_footer
    %s15 = sadd.s32 1, %s11
  $region7: #{encoder_forward.5} parent=0 // loop_footer_branch
    %10 = sbr.rel target = $region3
  $region8: #{encoder_forward.5} parent=0 // loop_exit
    _

// kernel: encoder_forward.7
$region0: #{encoder_forward.7}
  #allocation0 [shape = 'u32[]', space=smem, size = 0x4, offset = 0x4, fixed_abs, tag = 'smem constant byte address 0x4 - core index']
  #allocation1 [shape = 'u32[144,128]{1,0:T(1,128)}', space=vmem, size = 0x12000, scoped, tag = 'internal scratch']
  %s0 = inlined_call_operand.vmem [shape: bf16[2,10,18,8], index: 0, kind: input, shape index: {}]
  %s1 = inlined_call_operand.vmem [shape: bf16[9,8,8], index: 1, kind: input, shape index: {}]
  %s2 = inlined_call_operand.vmem [shape: f32[1,8], index: 2, kind: input, shape index: {}]
  %s3 = inlined_call_operand.vmem [shape: f32[2,8,16,8], index: 3, kind: input, shape index: {}]
  %s4 = inlined_call_operand.vmem [shape: f32[2,8,16,8], index: 4, kind: output, shape index: {}]
  %s5 = sld [smem:[#allocation0]]
  $region49: #{encoder_forward.7} parent=0
    _
  %s7 = ssub.s32 1, %s5
  %s8 = scalar_select 0, %s7, %s5
  loop: start=0, step=1, limit=4
  $region2: #{encoder_forward.7} parent=0 // loop_pre_header
    _
  $region3: #{encoder_forward.7} parent=0 // loop_header
    %s10 = sphi 0, %s14
    %p11 = scmp.ge.s32.totalorder %s10, 4
    %s20 = sphi 0, %s22
    %s23 = sphi 0, %s20
    %s24 = sphi 0, %s23
    %s40 = sphi 0, %s24
    %s44 = sphi 0, %s44
    %s46 = sphi 0, %s44
    %s47 = sphi 0, %s46
    %s61 = sphi 0, %s47
    %s65 = sphi 0, %s65
    %s67 = sphi 0, %s65
    %s68 = sphi 0, %s67
    %s82 = sphi 0, %s68
    %s88 = sphi 0, %s90
    %s91 = sphi 0, %s88
    %s92 = sphi 0, %s91
    %s108 = sphi 0, %s92
    %s114 = sphi 0, %s116
    %s117 = sphi 0, %s114
    %s118 = sphi 0, %s117
    %s134 = sphi 0, %s118
  $region4: #{encoder_forward.7} parent=0 // loop_header_branch
    %13 = sbr.rel (%p11) target = $region8
  $region5: #{encoder_forward.7} parent=0 // loop_body
    %s15 = ssub.s32 %s10, 1
    %s16 = ssub.s32 %s10, 2
    %s17 = sadd.s32 %s10, 1
    %s18 = ssub.s32 %s10, %s17
    %p19 = scmp.eq.s32.totalorder %s18, 0
    %s21 = sadd.s32 %s20, 1
    %s22 = scalar_select %p19, %s20, %s21
    %p25 = pneg %p19
    %p26 = scmp.eq.s32.totalorder %s10, 1
    %p27 = por %p25, %p26
    %p28 = scmp.ne.s32.totalorder %s20, %s23
    %p29 = scmp.eq.s32.totalorder %s10, 0
    %p30 = por %p28, %p29
    %p31 = scmp.ne.s32.totalorder %s20, %s23
    %p32 = scmp.eq.s32.totalorder %s15, 1
    %p33 = por %p31, %p32
    %p34 = scmp.ne.s32.totalorder %s23, %s24
    %p35 = scmp.eq.s32.totalorder %s15, 0
    %p36 = por %p34, %p35
    %p37 = scmp.ne.s32.totalorder %s23, %s24
    %p38 = scmp.eq.s32.totalorder %s16, 1
    %p39 = por %p37, %p38
    %p41 = scmp.ne.s32.totalorder %s24, %s40
    %p42 = scmp.eq.s32.totalorder %s16, 0
    %p43 = por %p41, %p42
    %s45 = sadd.s32 %s44, 1
    %p48 = scmp.eq.s32.totalorder %s10, 1
    %p49 = scmp.ne.s32.totalorder %s44, %s46
    %p50 = scmp.eq.s32.totalorder %s10, 0
    %p51 = por %p49, %p50
    %p52 = scmp.ne.s32.totalorder %s44, %s46
    %p53 = scmp.eq.s32.totalorder %s15, 1
    %p54 = por %p52, %p53
    %p55 = scmp.ne.s32.totalorder %s46, %s47
    %p56 = scmp.eq.s32.totalorder %s15, 0
    %p57 = por %p55, %p56
    %p58 = scmp.ne.s32.totalorder %s46, %s47
    %p59 = scmp.eq.s32.totalorder %s16, 1
    %p60 = por %p58, %p59
    %p62 = scmp.ne.s32.totalorder %s47, %s61
    %p63 = scmp.eq.s32.totalorder %s16, 0
    %p64 = por %p62, %p63
    %s66 = sadd.s32 %s65, 1
    %p69 = scmp.eq.s32.totalorder %s10, 1
    %p70 = scmp.ne.s32.totalorder %s65, %s67
    %p71 = scmp.eq.s32.totalorder %s10, 0
    %p72 = por %p70, %p71
    %p73 = scmp.ne.s32.totalorder %s65, %s67
    %p74 = scmp.eq.s32.totalorder %s15, 1
    %p75 = por %p73, %p74
    %p76 = scmp.ne.s32.totalorder %s67, %s68
    %p77 = scmp.eq.s32.totalorder %s15, 0
    %p78 = por %p76, %p77
    %p79 = scmp.ne.s32.totalorder %s67, %s68
    %p80 = scmp.eq.s32.totalorder %s16, 1
    %p81 = por %p79, %p80
    %p83 = scmp.ne.s32.totalorder %s68, %s82
    %p84 = scmp.eq.s32.totalorder %s16, 0
    %p85 = por %p83, %p84
    %s86 = ssub.s32 %s10, %s17
    %p87 = scmp.eq.s32.totalorder %s86, 0
    %s89 = sadd.s32 %s88, 1
    %s90 = scalar_select %p87, %s88, %s89
    %p93 = pneg %p87
    %p94 = scmp.eq.s32.totalorder %s10, 1
    %p95 = por %p93, %p94
    %p96 = scmp.ne.s32.totalorder %s88, %s91
    %p97 = scmp.eq.s32.totalorder %s10, 0
    %p98 = por %p96, %p97
    %p99 = scmp.ne.s32.totalorder %s88, %s91
    %p100 = scmp.eq.s32.totalorder %s15, 1
    %p101 = por %p99, %p100
    %p102 = scmp.ne.s32.totalorder %s91, %s92
    %p103 = scmp.eq.s32.totalorder %s15, 0
    %p104 = por %p102, %p103
    %p105 = scmp.ne.s32.totalorder %s91, %s92
    %p106 = scmp.eq.s32.totalorder %s16, 1
    %p107 = por %p105, %p106
    %p109 = scmp.ne.s32.totalorder %s92, %s108
    %p110 = scmp.eq.s32.totalorder %s16, 0
    %p111 = por %p109, %p110
    %s112 = ssub.s32 %s10, %s17
    %p113 = scmp.eq.s32.totalorder %s112, 0
    %s115 = sadd.s32 %s114, 1
    %s116 = scalar_select %p113, %s114, %s115
    %p119 = pneg %p113
    %p120 = scmp.eq.s32.totalorder %s10, 1
    %p121 = por %p119, %p120
    %p122 = scmp.ne.s32.totalorder %s114, %s117
    %p123 = scmp.eq.s32.totalorder %s10, 0
    %p124 = por %p122, %p123
    %p125 = scmp.ne.s32.totalorder %s114, %s117
    %p126 = scmp.eq.s32.totalorder %s15, 1
    %p127 = por %p125, %p126
    %p128 = scmp.ne.s32.totalorder %s117, %s118
    %p129 = scmp.eq.s32.totalorder %s15, 0
    %p130 = por %p128, %p129
    %p131 = scmp.ne.s32.totalorder %s117, %s118
    %p132 = scmp.eq.s32.totalorder %s16, 1
    %p133 = por %p131, %p132
    %p135 = scmp.ne.s32.totalorder %s118, %s134
    %p136 = scmp.eq.s32.totalorder %s16, 0
    %p137 = por %p135, %p136
    %p138 = scmp.le.s32.totalorder 1, %s10
    %p139 = scmp.lt.s32.totalorder %s10, 3
    %p140 = pnand %p138, %p139
    %p141 = pneg %p140
    // Predicated region
    $region9: #{encoder_forward.7} parent=5 // pred_check
      _
    $region10: #{encoder_forward.7} parent=5 // pred_check_branch
      %143 = sbr.rel (%p140) target = $region12
    $region11: #{encoder_forward.7} parent=5 // pred_region
      %s144 = ssub.s32 %s10, 1
      // Predicated region
      $region13: #{encoder_forward.7} parent=11 // pred_check
        %p145 = pneg %p57
      $region14: #{encoder_forward.7} parent=11 // pred_check_branch
        %147 = sbr.rel (%p145) target = $region16
      $region15: #{encoder_forward.7} parent=11 // pred_region
        _
      $region16: #{encoder_forward.7} parent=11 // pred_fallthru
        _
      // Predicated region
      $region17: #{encoder_forward.7} parent=11 // pred_check
        %p148 = pneg %p78
      $region18: #{encoder_forward.7} parent=11 // pred_check_branch
        %150 = sbr.rel (%p148) target = $region20
      $region19: #{encoder_forward.7} parent=11 // pred_region
        _
      $region20: #{encoder_forward.7} parent=11 // pred_fallthru
        _
    $region12: #{encoder_forward.7} parent=5 // pred_fallthru
      _
    %p151 = scmp.lt.s32.totalorder %s10, 2
    // Predicated region
    $region21: #{encoder_forward.7} parent=5 // pred_check
      %p152 = pneg %p151
    $region22: #{encoder_forward.7} parent=5 // pred_check_branch
      %154 = sbr.rel (%p152) target = $region24
    $region23: #{encoder_forward.7} parent=5 // pred_region
      // Predicated region
      $region25: #{encoder_forward.7} parent=23 // pred_check
        %p155 = pneg %p30
      $region26: #{encoder_forward.7} parent=23 // pred_check_branch
        %157 = sbr.rel (%p155) target = $region28
      $region27: #{encoder_forward.7} parent=23 // pred_region
        %p158 = scmp.lt.s32.totalorder %s10, 1
        %s159 = scalar_select %p158, %s10, 1
        %s160 = smul.addr %s159, 30
        %s161 = smul.addr %s160, 4
        %s162 = scalar_lea.vmem %s0, %s161
      $region28: #{encoder_forward.7} parent=23 // pred_fallthru
        _
      // Predicated region
      $region29: #{encoder_forward.7} parent=23 // pred_check
        %p163 = pneg %p98
      $region30: #{encoder_forward.7} parent=23 // pred_check_branch
        %165 = sbr.rel (%p163) target = $region32
      $region31: #{encoder_forward.7} parent=23 // pred_region
        %p166 = scmp.lt.s32.totalorder %s10, 1
        %s167 = scalar_select %p166, %s10, 1
        %s168 = smul.addr %s167, 16
        %s169 = smul.addr %s168, 8
        %s170 = scalar_lea.vmem %s3, %s169
      $region32: #{encoder_forward.7} parent=23 // pred_fallthru
        _
    $region24: #{encoder_forward.7} parent=5 // pred_fallthru
      _
    %p171 = scmp.le.s32.totalorder 1, %s10
    %p172 = scmp.lt.s32.totalorder %s10, 3
    %p173 = pnand %p171, %p172
    %p174 = pneg %p173
    // Predicated region
    $region33: #{encoder_forward.7} parent=5 // pred_check
      _
    $region34: #{encoder_forward.7} parent=5 // pred_check_branch
      %176 = sbr.rel (%p173) target = $region36
    $region35: #{encoder_forward.7} parent=5 // pred_region
      %s177 = ssub.s32 %s10, 1
      %p178 = scmp.lt.s32.totalorder %s15, 1
      %s179 = scalar_select %p178, %s15, 1
      %s180 = smul.addr %s179, 30
      %s181 = smul.addr %s180, 4
      %s182 = scalar_lea.vmem %s0, %s181
      %p183 = pneg %p36
      %p184 = pneg %p33
      %p185 = pneg %p57
      %p186 = pneg %p54
      %p187 = pneg %p78
      %p188 = pneg %p75
      %p189 = scmp.lt.s32.totalorder %s15, 1
      %s190 = scalar_select %p189, %s15, 1
      %s191 = smul.addr %s190, 16
      %s192 = smul.addr %s191, 8
      %s193 = scalar_lea.vmem %s3, %s192
      %p194 = pneg %p104
      %p195 = pneg %p101
      %p196 = pneg %p130
      %p197 = pneg %p127
      %p198 = scmp.lt.s32.totalorder %s15, 1
      %s199 = scalar_select %p198, %s15, 1
      %s200 = smul.addr %s199, 16
      %s201 = smul.addr %s200, 8
      %s202 = scalar_lea.vmem %s4, %s201
      %p203 = scmp.lt.s32.totalorder %s15, 1
      %s204 = scalar_select %p203, %s15, 1
      %s205 = smul.addr %s204, 30
      %s206 = smul.addr %s205, 4
      %s207 = scalar_lea.vmem %s0, %s206
      %p208 = scmp.lt.s32.totalorder %s15, 1
      %s209 = scalar_select %p208, %s15, 1
      %s210 = smul.addr %s209, 16
      %s211 = smul.addr %s210, 8
      %s212 = scalar_lea.vmem %s3, %s211
      %p213 = scmp.lt.s32.totalorder %s15, 1
      %s214 = scalar_select %p213, %s15, 1
      %s215 = smul.addr %s214, 16
      %s216 = smul.addr %s215, 8
      %s217 = scalar_lea.vmem %s4, %s216
      %v219 = vld [vmem:[%s207] sm:$0xf]
      %v220 = vld [vmem:[%s207 + $0x4] sm:$0xf]
      %v221 = vld [vmem:[%s207 + $0x8] sm:$0x1]
      %v222 = vld [vmem:[%s207 + $0xc] sm:$0xf]
      %v223 = vld [vmem:[%s207 + $0x10] sm:$0xf]
      %v224 = vld [vmem:[%s207 + $0x14] sm:$0x1]
      %v225 = vld [vmem:[%s207 + $0x18] sm:$0xf]
      %v226 = vld [vmem:[%s207 + $0x1c] sm:$0xf]
      %v227 = vld [vmem:[%s207 + $0x20] sm:$0x1]
      %v228 = vld [vmem:[%s207 + $0x24] sm:$0xf]
      %v229 = vld [vmem:[%s207 + $0x28] sm:$0xf]
      %v230 = vld [vmem:[%s207 + $0x2c] sm:$0x1]
      %v231 = vld [vmem:[%s207 + $0x30] sm:$0xf]
      %v232 = vld [vmem:[%s207 + $0x34] sm:$0xf]
      %v233 = vld [vmem:[%s207 + $0x38] sm:$0x1]
      %v234 = vld [vmem:[%s207 + $0x3c] sm:$0xf]
      %v235 = vld [vmem:[%s207 + $0x40] sm:$0xf]
      %v236 = vld [vmem:[%s207 + $0x44] sm:$0x1]
      %v237 = vld [vmem:[%s207 + $0x48] sm:$0xf]
      %v238 = vld [vmem:[%s207 + $0x4c] sm:$0xf]
      %v239 = vld [vmem:[%s207 + $0x50] sm:$0x1]
      %v240 = vld [vmem:[%s207 + $0x54] sm:$0xf]
      %v241 = vld [vmem:[%s207 + $0x58] sm:$0xf]
      %v242 = vld [vmem:[%s207 + $0x5c] sm:$0x1]
      %v243 = vld [vmem:[%s207 + $0x60] sm:$0xf]
      %v244 = vld [vmem:[%s207 + $0x64] sm:$0xf]
      %v245 = vld [vmem:[%s207 + $0x68] sm:$0x1]
      %v246 = vld [vmem:[%s207 + $0x6c] sm:$0xf]
      %v247 = vld [vmem:[%s207 + $0x70] sm:$0xf]
      %v248 = vld [vmem:[%s207 + $0x74] sm:$0x1]
      %v249 = vunpack.c.l.bf16 %v219
      %v250 = vunpack.c.l.bf16 %v220
      %v251 = vunpack.c.l.bf16 %v221
      %v252 = vunpack.c.l.bf16 %v222
      %v253 = vunpack.c.l.bf16 %v223
      %v254 = vunpack.c.l.bf16 %v224
      %v255 = vunpack.c.l.bf16 %v225
      %v256 = vunpack.c.l.bf16 %v226
      %v257 = vunpack.c.l.bf16 %v227
      %v258 = vunpack.c.l.bf16 %v228
      %v259 = vunpack.c.l.bf16 %v229
      %v260 = vunpack.c.l.bf16 %v230
      %v261 = vunpack.c.l.bf16 %v231
      %v262 = vunpack.c.l.bf16 %v232
      %v263 = vunpack.c.l.bf16 %v233
      %v264 = vunpack.c.l.bf16 %v234
      %v265 = vunpack.c.l.bf16 %v235
      %v266 = vunpack.c.l.bf16 %v236
      %v267 = vunpack.c.l.bf16 %v237
      %v268 = vunpack.c.l.bf16 %v238
      %v269 = vunpack.c.l.bf16 %v239
      %v270 = vunpack.c.l.bf16 %v240
      %v271 = vunpack.c.l.bf16 %v241
      %v272 = vunpack.c.l.bf16 %v242
      %v273 = vunpack.c.l.bf16 %v243
      %v274 = vunpack.c.l.bf16 %v244
      %v275 = vunpack.c.l.bf16 %v245
      %v276 = vunpack.c.l.bf16 %v246
      %v277 = vunpack.c.l.bf16 %v247
      %v278 = vunpack.c.l.bf16 %v248
      %v279 = vpack.c.bf16 %v250, %v249
      %v280 = vpack.c.bf16 %v253, %v252
      %v281 = vpack.c.bf16 %v256, %v255
      %v282 = vpack.c.bf16 %v259, %v258
      %v283 = vpack.c.bf16 %v262, %v261
      %v284 = vpack.c.bf16 %v265, %v264
      %v285 = vpack.c.bf16 %v268, %v267
      %v286 = vpack.c.bf16 %v271, %v270
      %v287 = vld [vmem:[%s1] sm:$0xf]
      %vm312 = vcmask 1046528
      %v313 = vrot.slane %v249, 1
      %v314 = vrot.slane %v250, 1
      %v315 = vsel %vm312, %v313, %v314
      %v316 = vrot.slane %v251, 1
      %v317 = vsel %vm312, %v314, %v316
      %v318 = vrot.slane %v252, 1
      %v319 = vrot.slane %v253, 1
      %v320 = vsel %vm312, %v318, %v319
      %v321 = vrot.slane %v254, 1
      %v322 = vsel %vm312, %v319, %v321
      %v323 = vrot.slane %v255, 1
      %v324 = vrot.slane %v256, 1
      %v325 = vsel %vm312, %v323, %v324
      %v326 = vrot.slane %v257, 1
      %v327 = vsel %vm312, %v324, %v326
      %v328 = vrot.slane %v258, 1
      %v329 = vrot.slane %v259, 1
      %v330 = vsel %vm312, %v328, %v329
      %v331 = vrot.slane %v260, 1
      %v332 = vsel %vm312, %v329, %v331
      %v333 = vrot.slane %v261, 1
      %v334 = vrot.slane %v262, 1
      %v335 = vsel %vm312, %v333, %v334
      %v336 = vrot.slane %v263, 1
      %v337 = vsel %vm312, %v334, %v336
      %v338 = vrot.slane %v264, 1
      %v339 = vrot.slane %v265, 1
      %v340 = vsel %vm312, %v338, %v339
      %v341 = vrot.slane %v266, 1
      %v342 = vsel %vm312, %v339, %v341
      %v343 = vrot.slane %v267, 1
      %v344 = vrot.slane %v268, 1
      %v345 = vsel %vm312, %v343, %v344
      %v346 = vrot.slane %v269, 1
      %v347 = vsel %vm312, %v344, %v346
      %v348 = vrot.slane %v270, 1
      %v349 = vrot.slane %v271, 1
      %v350 = vsel %vm312, %v348, %v349
      %v351 = vrot.slane %v272, 1
      %v352 = vsel %vm312, %v349, %v351
      %v369 = vpack.c.bf16 %v317, %v315
      %v370 = vpack.c.bf16 %v322, %v320
      %v371 = vpack.c.bf16 %v327, %v325
      %v372 = vpack.c.bf16 %v332, %v330
      %v373 = vpack.c.bf16 %v337, %v335
      %v374 = vpack.c.bf16 %v342, %v340
      %v375 = vpack.c.bf16 %v347, %v345
      %v376 = vpack.c.bf16 %v352, %v350
      %s377 = scalar_lea.vmem %s1, 4
      %v378 = vld [vmem:[%s377] sm:$0xf]
      %vm379 = vcmask 64512
      %v381 = vsel %vm379, %v369, 0
      %v384 = vsel %vm379, %v370, 0
      %v387 = vsel %vm379, %v371, 0
      %v390 = vsel %vm379, %v372, 0
      %v393 = vsel %vm379, %v373, 0
      %v396 = vsel %vm379, %v374, 0
      %v399 = vsel %vm379, %v375, 0
      %v402 = vsel %vm379, %v376, 0
      %vm404 = vcmask 1043456
      %v406 = vsel %vm404, %v378, 0
      %408 = vmatprep.subr.bf16.mxu0 0
      %409 = vmatpush1.bf16.msra.mxu0 %v406
      %410 = vmatprep.subr.bf16.mxu0 0
      %411 = vmatpush1.bf16.msra.mxu0 0
      %412 = vmatprep.subr.bf16.mxu0 0
      %413 = vmatpush1.bf16.msra.mxu0 0
      %414 = vmatprep.subr.bf16.mxu0 0
      %415 = vmatpush1.bf16.msra.mxu0 0
      %416 = vmatprep.subr.bf16.mxu0 0
      %417 = vmatpush1.bf16.msra.mxu0 0
      %418 = vmatprep.subr.bf16.mxu0 0
      %419 = vmatpush1.bf16.msra.mxu0 0
      %420 = vmatprep.subr.bf16.mxu0 0
      %421 = vmatpush1.bf16.msra.mxu0 0
      %422 = vmatprep.subr.bf16.mxu0 0
      %423 = vmatpush1.bf16.msra.mxu0 0
      %424 = vmatprep.subr.bf16.mxu0 0
      %425 = vmatpush1.bf16.msra.mxu0 0
      %426 = vmatprep.subr.bf16.mxu0 0
      %427 = vmatpush1.bf16.msra.mxu0 0
      %428 = vmatprep.subr.bf16.mxu0 0
      %429 = vmatpush1.bf16.msra.mxu0 0
      %430 = vmatprep.subr.bf16.mxu0 0
      %431 = vmatpush1.bf16.msra.mxu0 0
      %432 = vmatprep.subr.bf16.mxu0 0
      %433 = vmatpush1.bf16.msra.mxu0 0
      %434 = vmatprep.subr.bf16.mxu0 0
      %435 = vmatpush1.bf16.msra.mxu0 0
      %436 = vmatprep.subr.bf16.mxu0 0
      %437 = vmatpush1.bf16.msra.mxu0 0
      %438 = vmatprep.subr.bf16.mxu0 0
      %439 = vmatpush1.bf16.msra.mxu0 0
      %440 = vmatprep.mubr.bf16.mxu0 0
      %441 = vmatmul.mubr.bf16.gmra.mrb[0].mxu0 %v381
      %v442 = vpop.f32.mrb[0].mxu0
      %v443 = vadd.f32 0.0, %v442
      %v444 = vpop.f32.mrb[0].mxu0
      %v445 = vpop.f32.mrb[0].mxu0
      %v446 = vadd.f32 0.0, %v445
      %v447 = vpop.f32.mrb[0].mxu0
      %448 = vmatprep.mubr.bf16.mxu0 0
      %449 = vmatmul.mubr.bf16.gmra.mrb[0].mxu0 %v384
      %v450 = vpop.f32.mrb[0].mxu0
      %v451 = vadd.f32 0.0, %v450
      %v452 = vpop.f32.mrb[0].mxu0
      %v453 = vpop.f32.mrb[0].mxu0
      %v454 = vadd.f32 0.0, %v453
      %v455 = vpop.f32.mrb[0].mxu0
      %456 = vmatprep.mubr.bf16.mxu0 0
      %457 = vmatmul.mubr.bf16.gmra.mrb[0].mxu0 %v387
      %v458 = vpop.f32.mrb[0].mxu0
      %v459 = vadd.f32 0.0, %v458
      %v460 = vpop.f32.mrb[0].mxu0
      %v461 = vpop.f32.mrb[0].mxu0
      %v462 = vadd.f32 0.0, %v461
      %v463 = vpop.f32.mrb[0].mxu0
      %464 = vmatprep.mubr.bf16.mxu0 0
      %465 = vmatmul.mubr.bf16.gmra.mrb[0].mxu0 %v390
      %v466 = vpop.f32.mrb[0].mxu0
      %v467 = vadd.f32 0.0, %v466
      %v468 = vpop.f32.mrb[0].mxu0
      %v469 = vpop.f32.mrb[0].mxu0
      %v470 = vadd.f32 0.0, %v469
      %v471 = vpop.f32.mrb[0].mxu0
      %472 = vmatprep.mubr.bf16.mxu0 0
      %473 = vmatmul.mubr.bf16.gmra.mrb[0].mxu0 %v393
      %v474 = vpop.f32.mrb[0].mxu0
      %v475 = vadd.f32 0.0, %v474
      %v476 = vpop.f32.mrb[0].mxu0
      %v477 = vpop.f32.mrb[0].mxu0
      %v478 = vadd.f32 0.0, %v477
      %v479 = vpop.f32.mrb[0].mxu0
      %480 = vmatprep.mubr.bf16.mxu0 0
      %481 = vmatmul.mubr.bf16.gmra.mrb[0].mxu0 %v396
      %v482 = vpop.f32.mrb[0].mxu0
      %v483 = vadd.f32 0.0, %v482
      %v484 = vpop.f32.mrb[0].mxu0
      %v485 = vpop.f32.mrb[0].mxu0
      %v486 = vadd.f32 0.0, %v485
      %v487 = vpop.f32.mrb[0].mxu0
      %488 = vmatprep.mubr.bf16.mxu0 0
      %489 = vmatmul.mubr.bf16.gmra.mrb[0].mxu0 %v399
      %v490 = vpop.f32.mrb[0].mxu0
      %v491 = vadd.f32 0.0, %v490
      %v492 = vpop.f32.mrb[0].mxu0
      %v493 = vpop.f32.mrb[0].mxu0
      %v494 = vadd.f32 0.0, %v493
      %v495 = vpop.f32.mrb[0].mxu0
      %496 = vmatprep.mubr.bf16.mxu0 0
      %497 = vmatmul.mubr.bf16.gmra.mrb[0].mxu0 %v402
      %v498 = vpop.f32.mrb[0].mxu0
      %v499 = vadd.f32 0.0, %v498
      %v500 = vpop.f32.mrb[0].mxu0
      %v501 = vpop.f32.mrb[0].mxu0
      %v502 = vadd.f32 0.0, %v501
      %v503 = vpop.f32.mrb[0].mxu0
      %504 = vdwg.mxu0
      %v506 = vsel %vm379, %v279, 0
      %v509 = vsel %vm379, %v280, 0
      %v512 = vsel %vm379, %v281, 0
      %v515 = vsel %vm379, %v282, 0
      %v518 = vsel %vm379, %v283, 0
      %v521 = vsel %vm379, %v284, 0
      %v524 = vsel %vm379, %v285, 0
      %v527 = vsel %vm379, %v286, 0
      %v530 = vsel %vm404, %v287, 0
      %532 = vmatprep.subr.bf16.mxu0 0
      %533 = vmatpush1.bf16.msra.mxu0 %v530
      %534 = vmatprep.subr.bf16.mxu0 0
      %535 = vmatpush1.bf16.msra.mxu0 0
      %536 = vmatprep.subr.bf16.mxu0 0
      %537 = vmatpush1.bf16.msra.mxu0 0
      %538 = vmatprep.subr.bf16.mxu0 0
      %539 = vmatpush1.bf16.msra.mxu0 0
      %540 = vmatprep.subr.bf16.mxu0 0
      %541 = vmatpush1.bf16.msra.mxu0 0
      %542 = vmatprep.subr.bf16.mxu0 0
      %543 = vmatpush1.bf16.msra.mxu0 0
      %544 = vmatprep.subr.bf16.mxu0 0
      %545 = vmatpush1.bf16.msra.mxu0 0
      %546 = vmatprep.subr.bf16.mxu0 0
      %547 = vmatpush1.bf16.msra.mxu0 0
      %548 = vmatprep.subr.bf16.mxu0 0
      %549 = vmatpush1.bf16.msra.mxu0 0
      %550 = vmatprep.subr.bf16.mxu0 0
      %551 = vmatpush1.bf16.msra.mxu0 0
      %552 = vmatprep.subr.bf16.mxu0 0
      %553 = vmatpush1.bf16.msra.mxu0 0
      %554 = vmatprep.subr.bf16.mxu0 0
      %555 = vmatpush1.bf16.msra.mxu0 0
      %556 = vmatprep.subr.bf16.mxu0 0
      %557 = vmatpush1.bf16.msra.mxu0 0
      %558 = vmatprep.subr.bf16.mxu0 0
      %559 = vmatpush1.bf16.msra.mxu0 0
      %560 = vmatprep.subr.bf16.mxu0 0
      %561 = vmatpush1.bf16.msra.mxu0 0
      %562 = vmatprep.subr.bf16.mxu0 0
      %563 = vmatpush1.bf16.msra.mxu0 0
      %564 = vmatprep.mubr.bf16.mxu0 0
      %565 = vmatmul.mubr.bf16.gmra.mrb[0].mxu0 %v506
      %v566 = vpop.f32.mrb[0].mxu0
      %v567 = vadd.f32 %v443, %v566
      %v568 = vpop.f32.mrb[0].mxu0
      %v569 = vpop.f32.mrb[0].mxu0
      %v570 = vadd.f32 %v446, %v569
      %v571 = vpop.f32.mrb[0].mxu0
      %572 = vmatprep.mubr.bf16.mxu0 0
      %573 = vmatmul.mubr.bf16.gmra.mrb[0].mxu0 %v509
      %v574 = vpop.f32.mrb[0].mxu0
      %v575 = vadd.f32 %v451, %v574
      %v576 = vpop.f32.mrb[0].mxu0
      %v577 = vpop.f32.mrb[0].mxu0
      %v578 = vadd.f32 %v454, %v577
      %v579 = vpop.f32.mrb[0].mxu0
      %580 = vmatprep.mubr.bf16.mxu0 0
      %581 = vmatmul.mubr.bf16.gmra.mrb[0].mxu0 %v512
      %v582 = vpop.f32.mrb[0].mxu0
      %v583 = vadd.f32 %v459, %v582
      %v584 = vpop.f32.mrb[0].mxu0
      %v585 = vpop.f32.mrb[0].mxu0
      %v586 = vadd.f32 %v462, %v585
      %v587 = vpop.f32.mrb[0].mxu0
      %588 = vmatprep.mubr.bf16.mxu0 0
      %589 = vmatmul.mubr.bf16.gmra.mrb[0].mxu0 %v515
      %v590 = vpop.f32.mrb[0].mxu0
      %v591 = vadd.f32 %v467, %v590
      %v592 = vpop.f32.mrb[0].mxu0
      %v593 = vpop.f32.mrb[0].mxu0
      %v594 = vadd.f32 %v470, %v593
      %v595 = vpop.f32.mrb[0].mxu0
      %596 = vmatprep.mubr.bf16.mxu0 0
      %597 = vmatmul.mubr.bf16.gmra.mrb[0].mxu0 %v518
      %v598 = vpop.f32.mrb[0].mxu0
      %v599 = vadd.f32 %v475, %v598
      %v600 = vpop.f32.mrb[0].mxu0
      %v601 = vpop.f32.mrb[0].mxu0
      %v602 = vadd.f32 %v478, %v601
      %v603 = vpop.f32.mrb[0].mxu0
      %604 = vmatprep.mubr.bf16.mxu0 0
      %605 = vmatmul.mubr.bf16.gmra.mrb[0].mxu0 %v521
      %v606 = vpop.f32.mrb[0].mxu0
      %v607 = vadd.f32 %v483, %v606
      %v608 = vpop.f32.mrb[0].mxu0
      %v609 = vpop.f32.mrb[0].mxu0
      %v610 = vadd.f32 %v486, %v609
      %v611 = vpop.f32.mrb[0].mxu0
      %612 = vmatprep.mubr.bf16.mxu0 0
      %613 = vmatmul.mubr.bf16.gmra.mrb[0].mxu0 %v524
      %v614 = vpop.f32.mrb[0].mxu0
      %v615 = vadd.f32 %v491, %v614
      %v616 = vpop.f32.mrb[0].mxu0
      %v617 = vpop.f32.mrb[0].mxu0
      %v618 = vadd.f32 %v494, %v617
      %v619 = vpop.f32.mrb[0].mxu0
      %620 = vmatprep.mubr.bf16.mxu0 0
      %621 = vmatmul.mubr.bf16.gmra.mrb[0].mxu0 %v527
      %v622 = vpop.f32.mrb[0].mxu0
      %v623 = vadd.f32 %v499, %v622
      %v624 = vpop.f32.mrb[0].mxu0
      %v625 = vpop.f32.mrb[0].mxu0
      %v626 = vadd.f32 %v502, %v625
      %v627 = vpop.f32.mrb[0].mxu0
      %628 = vdwg.mxu0
      %vm629 = vcmask 1045504
      %v630 = vrot.slane %v249, 2
      %v631 = vrot.slane %v250, 2
      %v632 = vsel %vm629, %v630, %v631
      %v633 = vrot.slane %v251, 2
      %v634 = vsel %vm629, %v631, %v633
      %v635 = vrot.slane %v252, 2
      %v636 = vrot.slane %v253, 2
      %v637 = vsel %vm629, %v635, %v636
      %v638 = vrot.slane %v254, 2
      %v639 = vsel %vm629, %v636, %v638
      %v640 = vrot.slane %v255, 2
      %v641 = vrot.slane %v256, 2
      %v642 = vsel %vm629, %v640, %v641
      %v643 = vrot.slane %v257, 2
      %v644 = vsel %vm629, %v641, %v643
      %v645 = vrot.slane %v258, 2
      %v646 = vrot.slane %v259, 2
      %v647 = vsel %vm629, %v645, %v646
      %v648 = vrot.slane %v260, 2
      %v649 = vsel %vm629, %v646, %v648
      %v650 = vrot.slane %v261, 2
      %v651 = vrot.slane %v262, 2
      %v652 = vsel %vm629, %v650, %v651
      %v653 = vrot.slane %v263, 2
      %v654 = vsel %vm629, %v651, %v653
      %v655 = vrot.slane %v264, 2
      %v656 = vrot.slane %v265, 2
      %v657 = vsel %vm629, %v655, %v656
      %v658 = vrot.slane %v266, 2
      %v659 = vsel %vm629, %v656, %v658
      %v660 = vrot.slane %v267, 2
      %v661 = vrot.slane %v268, 2
      %v662 = vsel %vm629, %v660, %v661
      %v663 = vrot.slane %v269, 2
      %v664 = vsel %vm629, %v661, %v663
      %v665 = vrot.slane %v270, 2
      %v666 = vrot.slane %v271, 2
      %v667 = vsel %vm629, %v665, %v666
      %v668 = vrot.slane %v272, 2
      %v669 = vsel %vm629, %v666, %v668
      %v686 = vpack.c.bf16 %v634, %v632
      %v687 = vpack.c.bf16 %v639, %v637
      %v688 = vpack.c.bf16 %v644, %v642
      %v689 = vpack.c.bf16 %v649, %v647
      %v690 = vpack.c.bf16 %v654, %v652
      %v691 = vpack.c.bf16 %v659, %v657
      %v692 = vpack.c.bf16 %v664, %v662
      %v693 = vpack.c.bf16 %v669, %v667
      %s694 = scalar_lea.vmem %s1, 8
      %v695 = vld [vmem:[%s694] sm:$0xf]
      %v697 = vsel %vm379, %v686, 0
      %v700 = vsel %vm379, %v687, 0
      %v703 = vsel %vm379, %v688, 0
      %v706 = vsel %vm379, %v689, 0
      %v709 = vsel %vm379, %v690, 0
      %v712 = vsel %vm379, %v691, 0
      %v715 = vsel %vm379, %v692, 0
      %v718 = vsel %vm379, %v693, 0
      %v721 = vsel %vm404, %v695, 0
      %723 = vmatprep.subr.bf16.mxu0 0
      %724 = vmatpush1.bf16.msra.mxu0 %v721
      %725 = vmatprep.subr.bf16.mxu0 0
      %726 = vmatpush1.bf16.msra.mxu0 0
      %727 = vmatprep.subr.bf16.mxu0 0
      %728 = vmatpush1.bf16.msra.mxu0 0
      %729 = vmatprep.subr.bf16.mxu0 0
      %730 = vmatpush1.bf16.msra.mxu0 0
      %731 = vmatprep.subr.bf16.mxu0 0
      %732 = vmatpush1.bf16.msra.mxu0 0
      %733 = vmatprep.subr.bf16.mxu0 0
      %734 = vmatpush1.bf16.msra.mxu0 0
      %735 = vmatprep.subr.bf16.mxu0 0
      %736 = vmatpush1.bf16.msra.mxu0 0
      %737 = vmatprep.subr.bf16.mxu0 0
      %738 = vmatpush1.bf16.msra.mxu0 0
      %739 = vmatprep.subr.bf16.mxu0 0
      %740 = vmatpush1.bf16.msra.mxu0 0
      %741 = vmatprep.subr.bf16.mxu0 0
      %742 = vmatpush1.bf16.msra.mxu0 0
      %743 = vmatprep.subr.bf16.mxu0 0
      %744 = vmatpush1.bf16.msra.mxu0 0
      %745 = vmatprep.subr.bf16.mxu0 0
      %746 = vmatpush1.bf16.msra.mxu0 0
      %747 = vmatprep.subr.bf16.mxu0 0
      %748 = vmatpush1.bf16.msra.mxu0 0
      %749 = vmatprep.subr.bf16.mxu0 0
      %750 = vmatpush1.bf16.msra.mxu0 0
      %751 = vmatprep.subr.bf16.mxu0 0
      %752 = vmatpush1.bf16.msra.mxu0 0
      %753 = vmatprep.subr.bf16.mxu0 0
      %754 = vmatpush1.bf16.msra.mxu0 0
      %755 = vmatprep.mubr.bf16.mxu0 0
      %756 = vmatmul.mubr.bf16.gmra.mrb[0].mxu0 %v697
      %v757 = vpop.f32.mrb[0].mxu0
      %v758 = vadd.f32 0.0, %v757
      %v759 = vpop.f32.mrb[0].mxu0
      %v760 = vpop.f32.mrb[0].mxu0
      %v761 = vadd.f32 0.0, %v760
      %v762 = vpop.f32.mrb[0].mxu0
      %763 = vmatprep.mubr.bf16.mxu0 0
      %764 = vmatmul.mubr.bf16.gmra.mrb[0].mxu0 %v700
      %v765 = vpop.f32.mrb[0].mxu0
      %v766 = vadd.f32 0.0, %v765
      %v767 = vpop.f32.mrb[0].mxu0
      %v768 = vpop.f32.mrb[0].mxu0
      %v769 = vadd.f32 0.0, %v768
      %v770 = vpop.f32.mrb[0].mxu0
      %771 = vmatprep.mubr.bf16.mxu0 0
      %772 = vmatmul.mubr.bf16.gmra.mrb[0].mxu0 %v703
      %v773 = vpop.f32.mrb[0].mxu0
      %v774 = vadd.f32 0.0, %v773
      %v775 = vpop.f32.mrb[0].mxu0
      %v776 = vpop.f32.mrb[0].mxu0
      %v777 = vadd.f32 0.0, %v776
      %v778 = vpop.f32.mrb[0].mxu0
      %779 = vmatprep.mubr.bf16.mxu0 0
      %780 = vmatmul.mubr.bf16.gmra.mrb[0].mxu0 %v706
      %v781 = vpop.f32.mrb[0].mxu0
      %v782 = vadd.f32 0.0, %v781
      %v783 = vpop.f32.mrb[0].mxu0
      %v784 = vpop.f32.mrb[0].mxu0
      %v785 = vadd.f32 0.0, %v784
      %v786 = vpop.f32.mrb[0].mxu0
      %787 = vmatprep.mubr.bf16.mxu0 0
      %788 = vmatmul.mubr.bf16.gmra.mrb[0].mxu0 %v709
      %v789 = vpop.f32.mrb[0].mxu0
      %v790 = vadd.f32 0.0, %v789
      %v791 = vpop.f32.mrb[0].mxu0
      %v792 = vpop.f32.mrb[0].mxu0
      %v793 = vadd.f32 0.0, %v792
      %v794 = vpop.f32.mrb[0].mxu0
      %795 = vmatprep.mubr.bf16.mxu0 0
      %796 = vmatmul.mubr.bf16.gmra.mrb[0].mxu0 %v712
      %v797 = vpop.f32.mrb[0].mxu0
      %v798 = vadd.f32 0.0, %v797
      %v799 = vpop.f32.mrb[0].mxu0
      %v800 = vpop.f32.mrb[0].mxu0
      %v801 = vadd.f32 0.0, %v800
      %v802 = vpop.f32.mrb[0].mxu0
      %803 = vmatprep.mubr.bf16.mxu0 0
      %804 = vmatmul.mubr.bf16.gmra.mrb[0].mxu0 %v715
      %v805 = vpop.f32.mrb[0].mxu0
      %v806 = vadd.f32 0.0, %v805
      %v807 = vpop.f32.mrb[0].mxu0
      %v808 = vpop.f32.mrb[0].mxu0
      %v809 = vadd.f32 0.0, %v808
      %v810 = vpop.f32.mrb[0].mxu0
      %811 = vmatprep.mubr.bf16.mxu0 0
      %812 = vmatmul.mubr.bf16.gmra.mrb[0].mxu0 %v718
      %v813 = vpop.f32.mrb[0].mxu0
      %v814 = vadd.f32 0.0, %v813
      %v815 = vpop.f32.mrb[0].mxu0
      %v816 = vpop.f32.mrb[0].mxu0
      %v817 = vadd.f32 0.0, %v816
      %v818 = vpop.f32.mrb[0].mxu0
      %819 = vdwg.mxu0
      %v820 = vadd.f32 %v567, %v758
      %v821 = vadd.f32 %v570, %v761
      %v822 = vadd.f32 %v575, %v766
      %v823 = vadd.f32 %v578, %v769
      %v824 = vadd.f32 %v583, %v774
      %v825 = vadd.f32 %v586, %v777
      %v826 = vadd.f32 %v591, %v782
      %v827 = vadd.f32 %v594, %v785
      %v828 = vadd.f32 %v599, %v790
      %v829 = vadd.f32 %v602, %v793
      %v830 = vadd.f32 %v607, %v798
      %v831 = vadd.f32 %v610, %v801
      %v832 = vadd.f32 %v615, %v806
      %v833 = vadd.f32 %v618, %v809
      %v834 = vadd.f32 %v623, %v814
      %v835 = vadd.f32 %v626, %v817
      %v836 = vpack.c.bf16 %v274, %v273
      %s837 = scalar_lea.vmem %s1, 12
      %v838 = vld [vmem:[%s837] sm:$0xf]
      %v840 = vsel %vm379, %v836, 0
      %v843 = vsel %vm404, %v838, 0
      %845 = vmatprep.subr.bf16.mxu0 0
      %846 = vmatpush1.bf16.msra.mxu0 %v843
      %847 = vmatprep.subr.bf16.mxu0 0
      %848 = vmatpush1.bf16.msra.mxu0 0
      %849 = vmatprep.subr.bf16.mxu0 0
      %850 = vmatpush1.bf16.msra.mxu0 0
      %851 = vmatprep.subr.bf16.mxu0 0
      %852 = vmatpush1.bf16.msra.mxu0 0
      %853 = vmatprep.subr.bf16.mxu0 0
      %854 = vmatpush1.bf16.msra.mxu0 0
      %855 = vmatprep.subr.bf16.mxu0 0
      %856 = vmatpush1.bf16.msra.mxu0 0
      %857 = vmatprep.subr.bf16.mxu0 0
      %858 = vmatpush1.bf16.msra.mxu0 0
      %859 = vmatprep.subr.bf16.mxu0 0
      %860 = vmatpush1.bf16.msra.mxu0 0
      %861 = vmatprep.subr.bf16.mxu0 0
      %862 = vmatpush1.bf16.msra.mxu0 0
      %863 = vmatprep.subr.bf16.mxu0 0
      %864 = vmatpush1.bf16.msra.mxu0 0
      %865 = vmatprep.subr.bf16.mxu0 0
      %866 = vmatpush1.bf16.msra.mxu0 0
      %867 = vmatprep.subr.bf16.mxu0 0
      %868 = vmatpush1.bf16.msra.mxu0 0
      %869 = vmatprep.subr.bf16.mxu0 0
      %870 = vmatpush1.bf16.msra.mxu0 0
      %871 = vmatprep.subr.bf16.mxu0 0
      %872 = vmatpush1.bf16.msra.mxu0 0
      %873 = vmatprep.subr.bf16.mxu0 0
      %874 = vmatpush1.bf16.msra.mxu0 0
      %875 = vmatprep.subr.bf16.mxu0 0
      %876 = vmatpush1.bf16.msra.mxu0 0
      %877 = vmatprep.mubr.bf16.mxu0 0
      %878 = vmatmul.mubr.bf16.gmra.mrb[0].mxu0 %v509
      %v879 = vpop.f32.mrb[0].mxu0
      %v880 = vadd.f32 0.0, %v879
      %v881 = vpop.f32.mrb[0].mxu0
      %v882 = vpop.f32.mrb[0].mxu0
      %v883 = vadd.f32 0.0, %v882
      %v884 = vpop.f32.mrb[0].mxu0
      %885 = vmatprep.mubr.bf16.mxu0 0
      %886 = vmatmul.mubr.bf16.gmra.mrb[0].mxu0 %v512
      %v887 = vpop.f32.mrb[0].mxu0
      %v888 = vadd.f32 0.0, %v887
      %v889 = vpop.f32.mrb[0].mxu0
      %v890 = vpop.f32.mrb[0].mxu0
      %v891 = vadd.f32 0.0, %v890
      %v892 = vpop.f32.mrb[0].mxu0
      %893 = vmatprep.mubr.bf16.mxu0 0
      %894 = vmatmul.mubr.bf16.gmra.mrb[0].mxu0 %v515
      %v895 = vpop.f32.mrb[0].mxu0
      %v896 = vadd.f32 0.0, %v895
      %v897 = vpop.f32.mrb[0].mxu0
      %v898 = vpop.f32.mrb[0].mxu0
      %v899 = vadd.f32 0.0, %v898
      %v900 = vpop.f32.mrb[0].mxu0
      %901 = vmatprep.mubr.bf16.mxu0 0
      %902 = vmatmul.mubr.bf16.gmra.mrb[0].mxu0 %v518
      %v903 = vpop.f32.mrb[0].mxu0
      %v904 = vadd.f32 0.0, %v903
      %v905 = vpop.f32.mrb[0].mxu0
      %v906 = vpop.f32.mrb[0].mxu0
      %v907 = vadd.f32 0.0, %v906
      %v908 = vpop.f32.mrb[0].mxu0
      %909 = vmatprep.mubr.bf16.mxu0 0
      %910 = vmatmul.mubr.bf16.gmra.mrb[0].mxu0 %v521
      %v911 = vpop.f32.mrb[0].mxu0
      %v912 = vadd.f32 0.0, %v911
      %v913 = vpop.f32.mrb[0].mxu0
      %v914 = vpop.f32.mrb[0].mxu0
      %v915 = vadd.f32 0.0, %v914
      %v916 = vpop.f32.mrb[0].mxu0
      %917 = vmatprep.mubr.bf16.mxu0 0
      %918 = vmatmul.mubr.bf16.gmra.mrb[0].mxu0 %v524
      %v919 = vpop.f32.mrb[0].mxu0
      %v920 = vadd.f32 0.0, %v919
      %v921 = vpop.f32.mrb[0].mxu0
      %v922 = vpop.f32.mrb[0].mxu0
      %v923 = vadd.f32 0.0, %v922
      %v924 = vpop.f32.mrb[0].mxu0
      %925 = vmatprep.mubr.bf16.mxu0 0
      %926 = vmatmul.mubr.bf16.gmra.mrb[0].mxu0 %v527
      %v927 = vpop.f32.mrb[0].mxu0
      %v928 = vadd.f32 0.0, %v927
      %v929 = vpop.f32.mrb[0].mxu0
      %v930 = vpop.f32.mrb[0].mxu0
      %v931 = vadd.f32 0.0, %v930
      %v932 = vpop.f32.mrb[0].mxu0
      %933 = vmatprep.mubr.bf16.mxu0 0
      %934 = vmatmul.mubr.bf16.gmra.mrb[0].mxu0 %v840
      %v935 = vpop.f32.mrb[0].mxu0
      %v936 = vadd.f32 0.0, %v935
      %v937 = vpop.f32.mrb[0].mxu0
      %v938 = vpop.f32.mrb[0].mxu0
      %v939 = vadd.f32 0.0, %v938
      %v940 = vpop.f32.mrb[0].mxu0
      %941 = vdwg.mxu0
      %v942 = vadd.f32 %v820, %v880
      %v943 = vadd.f32 %v821, %v883
      %v944 = vadd.f32 %v822, %v888
      %v945 = vadd.f32 %v823, %v891
      %v946 = vadd.f32 %v824, %v896
      %v947 = vadd.f32 %v825, %v899
      %v948 = vadd.f32 %v826, %v904
      %v949 = vadd.f32 %v827, %v907
      %v950 = vadd.f32 %v828, %v912
      %v951 = vadd.f32 %v829, %v915
      %v952 = vadd.f32 %v830, %v920
      %v953 = vadd.f32 %v831, %v923
      %v954 = vadd.f32 %v832, %v928
      %v955 = vadd.f32 %v833, %v931
      %v956 = vadd.f32 %v834, %v936
      %v957 = vadd.f32 %v835, %v939
      %v961 = vrot.slane %v273, 1
      %v962 = vrot.slane %v274, 1
      %v963 = vsel %vm312, %v961, %v962
      %v964 = vrot.slane %v275, 1
      %v965 = vsel %vm312, %v962, %v964
      %v968 = vpack.c.bf16 %v965, %v963
      %s969 = scalar_lea.vmem %s1, 16
      %v970 = vld [vmem:[%s969] sm:$0xf]
      %v972 = vsel %vm379, %v968, 0
      %v975 = vsel %vm404, %v970, 0
      %977 = vmatprep.subr.bf16.mxu0 0
      %978 = vmatpush1.bf16.msra.mxu0 %v975
      %979 = vmatprep.subr.bf16.mxu0 0
      %980 = vmatpush1.bf16.msra.mxu0 0
      %981 = vmatprep.subr.bf16.mxu0 0
      %982 = vmatpush1.bf16.msra.mxu0 0
      %983 = vmatprep.subr.bf16.mxu0 0
      %984 = vmatpush1.bf16.msra.mxu0 0
      %985 = vmatprep.subr.bf16.mxu0 0
      %986 = vmatpush1.bf16.msra.mxu0 0
      %987 = vmatprep.subr.bf16.mxu0 0
      %988 = vmatpush1.bf16.msra.mxu0 0
      %989 = vmatprep.subr.bf16.mxu0 0
      %990 = vmatpush1.bf16.msra.mxu0 0
      %991 = vmatprep.subr.bf16.mxu0 0
      %992 = vmatpush1.bf16.msra.mxu0 0
      %993 = vmatprep.subr.bf16.mxu0 0
      %994 = vmatpush1.bf16.msra.mxu0 0
      %995 = vmatprep.subr.bf16.mxu0 0
      %996 = vmatpush1.bf16.msra.mxu0 0
      %997 = vmatprep.subr.bf16.mxu0 0
      %998 = vmatpush1.bf16.msra.mxu0 0
      %999 = vmatprep.subr.bf16.mxu0 0
      %1000 = vmatpush1.bf16.msra.mxu0 0
      %1001 = vmatprep.subr.bf16.mxu0 0
      %1002 = vmatpush1.bf16.msra.mxu0 0
      %1003 = vmatprep.subr.bf16.mxu0 0
      %1004 = vmatpush1.bf16.msra.mxu0 0
      %1005 = vmatprep.subr.bf16.mxu0 0
      %1006 = vmatpush1.bf16.msra.mxu0 0
      %1007 = vmatprep.subr.bf16.mxu0 0
      %1008 = vmatpush1.bf16.msra.mxu0 0
      %1009 = vmatprep.mubr.bf16.mxu0 0
      %1010 = vmatmul.mubr.bf16.gmra.mrb[0].mxu0 %v384
      %v1011 = vpop.f32.mrb[0].mxu0
      %v1012 = vadd.f32 0.0, %v1011
      %v1013 = vpop.f32.mrb[0].mxu0
      %v1014 = vpop.f32.mrb[0].mxu0
      %v1015 = vadd.f32 0.0, %v1014
      %v1016 = vpop.f32.mrb[0].mxu0
      %1017 = vmatprep.mubr.bf16.mxu0 0
      %1018 = vmatmul.mubr.bf16.gmra.mrb[0].mxu0 %v387
      %v1019 = vpop.f32.mrb[0].mxu0
      %v1020 = vadd.f32 0.0, %v1019
      %v1021 = vpop.f32.mrb[0].mxu0
      %v1022 = vpop.f32.mrb[0].mxu0
      %v1023 = vadd.f32 0.0, %v1022
      %v1024 = vpop.f32.mrb[0].mxu0
      %1025 = vmatprep.mubr.bf16.mxu0 0
      %1026 = vmatmul.mubr.bf16.gmra.mrb[0].mxu0 %v390
      %v1027 = vpop.f32.mrb[0].mxu0
      %v1028 = vadd.f32 0.0, %v1027
      %v1029 = vpop.f32.mrb[0].mxu0
      %v1030 = vpop.f32.mrb[0].mxu0
      %v1031 = vadd.f32 0.0, %v1030
      %v1032 = vpop.f32.mrb[0].mxu0
      %1033 = vmatprep.mubr.bf16.mxu0 0
      %1034 = vmatmul.mubr.bf16.gmra.mrb[0].mxu0 %v393
      %v1035 = vpop.f32.mrb[0].mxu0
      %v1036 = vadd.f32 0.0, %v1035
      %v1037 = vpop.f32.mrb[0].mxu0
      %v1038 = vpop.f32.mrb[0].mxu0
      %v1039 = vadd.f32 0.0, %v1038
      %v1040 = vpop.f32.mrb[0].mxu0
      %1041 = vmatprep.mubr.bf16.mxu0 0
      %1042 = vmatmul.mubr.bf16.gmra.mrb[0].mxu0 %v396
      %v1043 = vpop.f32.mrb[0].mxu0
      %v1044 = vadd.f32 0.0, %v1043
      %v1045 = vpop.f32.mrb[0].mxu0
      %v1046 = vpop.f32.mrb[0].mxu0
      %v1047 = vadd.f32 0.0, %v1046
      %v1048 = vpop.f32.mrb[0].mxu0
      %1049 = vmatprep.mubr.bf16.mxu0 0
      %1050 = vmatmul.mubr.bf16.gmra.mrb[0].mxu0 %v399
      %v1051 = vpop.f32.mrb[0].mxu0
      %v1052 = vadd.f32 0.0, %v1051
      %v1053 = vpop.f32.mrb[0].mxu0
      %v1054 = vpop.f32.mrb[0].mxu0
      %v1055 = vadd.f32 0.0, %v1054
      %v1056 = vpop.f32.mrb[0].mxu0
      %1057 = vmatprep.mubr.bf16.mxu0 0
      %1058 = vmatmul.mubr.bf16.gmra.mrb[0].mxu0 %v402
      %v1059 = vpop.f32.mrb[0].mxu0
      %v1060 = vadd.f32 0.0, %v1059
      %v1061 = vpop.f32.mrb[0].mxu0
      %v1062 = vpop.f32.mrb[0].mxu0
      %v1063 = vadd.f32 0.0, %v1062
      %v1064 = vpop.f32.mrb[0].mxu0
      %1065 = vmatprep.mubr.bf16.mxu0 0
      %1066 = vmatmul.mubr.bf16.gmra.mrb[0].mxu0 %v972
      %v1067 = vpop.f32.mrb[0].mxu0
      %v1068 = vadd.f32 0.0, %v1067
      %v1069 = vpop.f32.mrb[0].mxu0
      %v1070 = vpop.f32.mrb[0].mxu0
      %v1071 = vadd.f32 0.0, %v1070
      %v1072 = vpop.f32.mrb[0].mxu0
      %1073 = vdwg.mxu0
      %v1074 = vadd.f32 %v942, %v1012
      %v1075 = vadd.f32 %v943, %v1015
      %v1076 = vadd.f32 %v944, %v1020
      %v1077 = vadd.f32 %v945, %v1023
      %v1078 = vadd.f32 %v946, %v1028
      %v1079 = vadd.f32 %v947, %v1031
      %v1080 = vadd.f32 %v948, %v1036
      %v1081 = vadd.f32 %v949, %v1039
      %v1082 = vadd.f32 %v950, %v1044
      %v1083 = vadd.f32 %v951, %v1047
      %v1084 = vadd.f32 %v952, %v1052
      %v1085 = vadd.f32 %v953, %v1055
      %v1086 = vadd.f32 %v954, %v1060
      %v1087 = vadd.f32 %v955, %v1063
      %v1088 = vadd.f32 %v956, %v1068
      %v1089 = vadd.f32 %v957, %v1071
      %v1090 = vrot.slane %v273, 2
      %v1091 = vrot.slane %v274, 2
      %v1092 = vsel %vm629, %v1090, %v1091
      %v1093 = vrot.slane %v275, 2
      %v1094 = vsel %vm629, %v1091, %v1093
      %v1097 = vpack.c.bf16 %v1094, %v1092
      %s1098 = scalar_lea.vmem %s1, 20
      %v1099 = vld [vmem:[%s1098] sm:$0xf]
      %v1101 = vsel %vm379, %v1097, 0
      %v1104 = vsel %vm404, %v1099, 0
      %1106 = vmatprep.subr.bf16.mxu0 0
      %1107 = vmatpush1.bf16.msra.mxu0 %v1104
      %1108 = vmatprep.subr.bf16.mxu0 0
      %1109 = vmatpush1.bf16.msra.mxu0 0
      %1110 = vmatprep.subr.bf16.mxu0 0
      %1111 = vmatpush1.bf16.msra.mxu0 0
      %1112 = vmatprep.subr.bf16.mxu0 0
      %1113 = vmatpush1.bf16.msra.mxu0 0
      %1114 = vmatprep.subr.bf16.mxu0 0
      %1115 = vmatpush1.bf16.msra.mxu0 0
      %1116 = vmatprep.subr.bf16.mxu0 0
      %1117 = vmatpush1.bf16.msra.mxu0 0
      %1118 = vmatprep.subr.bf16.mxu0 0
      %1119 = vmatpush1.bf16.msra.mxu0 0
      %1120 = vmatprep.subr.bf16.mxu0 0
      %1121 = vmatpush1.bf16.msra.mxu0 0
      %1122 = vmatprep.subr.bf16.mxu0 0
      %1123 = vmatpush1.bf16.msra.mxu0 0
      %1124 = vmatprep.subr.bf16.mxu0 0
      %1125 = vmatpush1.bf16.msra.mxu0 0
      %1126 = vmatprep.subr.bf16.mxu0 0
      %1127 = vmatpush1.bf16.msra.mxu0 0
      %1128 = vmatprep.subr.bf16.mxu0 0
      %1129 = vmatpush1.bf16.msra.mxu0 0
      %1130 = vmatprep.subr.bf16.mxu0 0
      %1131 = vmatpush1.bf16.msra.mxu0 0
      %1132 = vmatprep.subr.bf16.mxu0 0
      %1133 = vmatpush1.bf16.msra.mxu0 0
      %1134 = vmatprep.subr.bf16.mxu0 0
      %1135 = vmatpush1.bf16.msra.mxu0 0
      %1136 = vmatprep.subr.bf16.mxu0 0
      %1137 = vmatpush1.bf16.msra.mxu0 0
      %1138 = vmatprep.mubr.bf16.mxu0 0
      %1139 = vmatmul.mubr.bf16.gmra.mrb[0].mxu0 %v700
      %v1140 = vpop.f32.mrb[0].mxu0
      %v1141 = vadd.f32 0.0, %v1140
      %v1142 = vpop.f32.mrb[0].mxu0
      %v1143 = vpop.f32.mrb[0].mxu0
      %v1144 = vadd.f32 0.0, %v1143
      %v1145 = vpop.f32.mrb[0].mxu0
      %1146 = vmatprep.mubr.bf16.mxu0 0
      %1147 = vmatmul.mubr.bf16.gmra.mrb[0].mxu0 %v703
      %v1148 = vpop.f32.mrb[0].mxu0
      %v1149 = vadd.f32 0.0, %v1148
      %v1150 = vpop.f32.mrb[0].mxu0
      %v1151 = vpop.f32.mrb[0].mxu0
      %v1152 = vadd.f32 0.0, %v1151
      %v1153 = vpop.f32.mrb[0].mxu0
      %1154 = vmatprep.mubr.bf16.mxu0 0
      %1155 = vmatmul.mubr.bf16.gmra.mrb[0].mxu0 %v706
      %v1156 = vpop.f32.mrb[0].mxu0
      %v1157 = vadd.f32 0.0, %v1156
      %v1158 = vpop.f32.mrb[0].mxu0
      %v1159 = vpop.f32.mrb[0].mxu0
      %v1160 = vadd.f32 0.0, %v1159
      %v1161 = vpop.f32.mrb[0].mxu0
      %1162 = vmatprep.mubr.bf16.mxu0 0
      %1163 = vmatmul.mubr.bf16.gmra.mrb[0].mxu0 %v709
      %v1164 = vpop.f32.mrb[0].mxu0
      %v1165 = vadd.f32 0.0, %v1164
      %v1166 = vpop.f32.mrb[0].mxu0
      %v1167 = vpop.f32.mrb[0].mxu0
      %v1168 = vadd.f32 0.0, %v1167
      %v1169 = vpop.f32.mrb[0].mxu0
      %1170 = vmatprep.mubr.bf16.mxu0 0
      %1171 = vmatmul.mubr.bf16.gmra.mrb[0].mxu0 %v712
      %v1172 = vpop.f32.mrb[0].mxu0
      %v1173 = vadd.f32 0.0, %v1172
      %v1174 = vpop.f32.mrb[0].mxu0
      %v1175 = vpop.f32.mrb[0].mxu0
      %v1176 = vadd.f32 0.0, %v1175
      %v1177 = vpop.f32.mrb[0].mxu0
      %1178 = vmatprep.mubr.bf16.mxu0 0
      %1179 = vmatmul.mubr.bf16.gmra.mrb[0].mxu0 %v715
      %v1180 = vpop.f32.mrb[0].mxu0
      %v1181 = vadd.f32 0.0, %v1180
      %v1182 = vpop.f32.mrb[0].mxu0
      %v1183 = vpop.f32.mrb[0].mxu0
      %v1184 = vadd.f32 0.0, %v1183
      %v1185 = vpop.f32.mrb[0].mxu0
      %1186 = vmatprep.mubr.bf16.mxu0 0
      %1187 = vmatmul.mubr.bf16.gmra.mrb[0].mxu0 %v718
      %v1188 = vpop.f32.mrb[0].mxu0
      %v1189 = vadd.f32 0.0, %v1188
      %v1190 = vpop.f32.mrb[0].mxu0
      %v1191 = vpop.f32.mrb[0].mxu0
      %v1192 = vadd.f32 0.0, %v1191
      %v1193 = vpop.f32.mrb[0].mxu0
      %1194 = vmatprep.mubr.bf16.mxu0 0
      %1195 = vmatmul.mubr.bf16.gmra.mrb[0].mxu0 %v1101
      %v1196 = vpop.f32.mrb[0].mxu0
      %v1197 = vadd.f32 0.0, %v1196
      %v1198 = vpop.f32.mrb[0].mxu0
      %v1199 = vpop.f32.mrb[0].mxu0
      %v1200 = vadd.f32 0.0, %v1199
      %v1201 = vpop.f32.mrb[0].mxu0
      %1202 = vdwg.mxu0
      %v1203 = vadd.f32 %v1074, %v1141
      %v1204 = vadd.f32 %v1075, %v1144
      %v1205 = vadd.f32 %v1076, %v1149
      %v1206 = vadd.f32 %v1077, %v1152
      %v1207 = vadd.f32 %v1078, %v1157
      %v1208 = vadd.f32 %v1079, %v1160
      %v1209 = vadd.f32 %v1080, %v1165
      %v1210 = vadd.f32 %v1081, %v1168
      %v1211 = vadd.f32 %v1082, %v1173
      %v1212 = vadd.f32 %v1083, %v1176
      %v1213 = vadd.f32 %v1084, %v1181
      %v1214 = vadd.f32 %v1085, %v1184
      %v1215 = vadd.f32 %v1086, %v1189
      %v1216 = vadd.f32 %v1087, %v1192
      %v1217 = vadd.f32 %v1088, %v1197
      %v1218 = vadd.f32 %v1089, %v1200
      %v1219 = vpack.c.bf16 %v277, %v276
      %s1220 = scalar_lea.vmem %s1, 24
      %v1221 = vld [vmem:[%s1220] sm:$0xf]
      %v1223 = vsel %vm379, %v1219, 0
      %v1226 = vsel %vm404, %v1221, 0
      %1228 = vmatprep.subr.bf16.mxu0 0
      %1229 = vmatpush1.bf16.msra.mxu0 %v1226
      %1230 = vmatprep.subr.bf16.mxu0 0
      %1231 = vmatpush1.bf16.msra.mxu0 0
      %1232 = vmatprep.subr.bf16.mxu0 0
      %1233 = vmatpush1.bf16.msra.mxu0 0
      %1234 = vmatprep.subr.bf16.mxu0 0
      %1235 = vmatpush1.bf16.msra.mxu0 0
      %1236 = vmatprep.subr.bf16.mxu0 0
      %1237 = vmatpush1.bf16.msra.mxu0 0
      %1238 = vmatprep.subr.bf16.mxu0 0
      %1239 = vmatpush1.bf16.msra.mxu0 0
      %1240 = vmatprep.subr.bf16.mxu0 0
      %1241 = vmatpush1.bf16.msra.mxu0 0
      %1242 = vmatprep.subr.bf16.mxu0 0
      %1243 = vmatpush1.bf16.msra.mxu0 0
      %1244 = vmatprep.subr.bf16.mxu0 0
      %1245 = vmatpush1.bf16.msra.mxu0 0
      %1246 = vmatprep.subr.bf16.mxu0 0
      %1247 = vmatpush1.bf16.msra.mxu0 0
      %1248 = vmatprep.subr.bf16.mxu0 0
      %1249 = vmatpush1.bf16.msra.mxu0 0
      %1250 = vmatprep.subr.bf16.mxu0 0
      %1251 = vmatpush1.bf16.msra.mxu0 0
      %1252 = vmatprep.subr.bf16.mxu0 0
      %1253 = vmatpush1.bf16.msra.mxu0 0
      %1254 = vmatprep.subr.bf16.mxu0 0
      %1255 = vmatpush1.bf16.msra.mxu0 0
      %1256 = vmatprep.subr.bf16.mxu0 0
      %1257 = vmatpush1.bf16.msra.mxu0 0
      %1258 = vmatprep.subr.bf16.mxu0 0
      %1259 = vmatpush1.bf16.msra.mxu0 0
      %1260 = vmatprep.mubr.bf16.mxu0 0
      %1261 = vmatmul.mubr.bf16.gmra.mrb[0].mxu0 %v512
      %v1262 = vpop.f32.mrb[0].mxu0
      %v1263 = vadd.f32 0.0, %v1262
      %v1264 = vpop.f32.mrb[0].mxu0
      %v1265 = vpop.f32.mrb[0].mxu0
      %v1266 = vadd.f32 0.0, %v1265
      %v1267 = vpop.f32.mrb[0].mxu0
      %1268 = vmatprep.mubr.bf16.mxu0 0
      %1269 = vmatmul.mubr.bf16.gmra.mrb[0].mxu0 %v515
      %v1270 = vpop.f32.mrb[0].mxu0
      %v1271 = vadd.f32 0.0, %v1270
      %v1272 = vpop.f32.mrb[0].mxu0
      %v1273 = vpop.f32.mrb[0].mxu0
      %v1274 = vadd.f32 0.0, %v1273
      %v1275 = vpop.f32.mrb[0].mxu0
      %1276 = vmatprep.mubr.bf16.mxu0 0
      %1277 = vmatmul.mubr.bf16.gmra.mrb[0].mxu0 %v518
      %v1278 = vpop.f32.mrb[0].mxu0
      %v1279 = vadd.f32 0.0, %v1278
      %v1280 = vpop.f32.mrb[0].mxu0
      %v1281 = vpop.f32.mrb[0].mxu0
      %v1282 = vadd.f32 0.0, %v1281
      %v1283 = vpop.f32.mrb[0].mxu0
      %1284 = vmatprep.mubr.bf16.mxu0 0
      %1285 = vmatmul.mubr.bf16.gmra.mrb[0].mxu0 %v521
      %v1286 = vpop.f32.mrb[0].mxu0
      %v1287 = vadd.f32 0.0, %v1286
      %v1288 = vpop.f32.mrb[0].mxu0
      %v1289 = vpop.f32.mrb[0].mxu0
      %v1290 = vadd.f32 0.0, %v1289
      %v1291 = vpop.f32.mrb[0].mxu0
      %1292 = vmatprep.mubr.bf16.mxu0 0
      %1293 = vmatmul.mubr.bf16.gmra.mrb[0].mxu0 %v524
      %v1294 = vpop.f32.mrb[0].mxu0
      %v1295 = vadd.f32 0.0, %v1294
      %v1296 = vpop.f32.mrb[0].mxu0
      %v1297 = vpop.f32.mrb[0].mxu0
      %v1298 = vadd.f32 0.0, %v1297
      %v1299 = vpop.f32.mrb[0].mxu0
      %1300 = vmatprep.mubr.bf16.mxu0 0
      %1301 = vmatmul.mubr.bf16.gmra.mrb[0].mxu0 %v527
      %v1302 = vpop.f32.mrb[0].mxu0
      %v1303 = vadd.f32 0.0, %v1302
      %v1304 = vpop.f32.mrb[0].mxu0
      %v1305 = vpop.f32.mrb[0].mxu0
      %v1306 = vadd.f32 0.0, %v1305
      %v1307 = vpop.f32.mrb[0].mxu0
      %1308 = vmatprep.mubr.bf16.mxu0 0
      %1309 = vmatmul.mubr.bf16.gmra.mrb[0].mxu0 %v840
      %v1310 = vpop.f32.mrb[0].mxu0
      %v1311 = vadd.f32 0.0, %v1310
      %v1312 = vpop.f32.mrb[0].mxu0
      %v1313 = vpop.f32.mrb[0].mxu0
      %v1314 = vadd.f32 0.0, %v1313
      %v1315 = vpop.f32.mrb[0].mxu0
      %1316 = vmatprep.mubr.bf16.mxu0 0
      %1317 = vmatmul.mubr.bf16.gmra.mrb[0].mxu0 %v1223
      %v1318 = vpop.f32.mrb[0].mxu0
      %v1319 = vadd.f32 0.0, %v1318
      %v1320 = vpop.f32.mrb[0].mxu0
      %v1321 = vpop.f32.mrb[0].mxu0
      %v1322 = vadd.f32 0.0, %v1321
      %v1323 = vpop.f32.mrb[0].mxu0
      %1324 = vdwg.mxu0
      %v1325 = vadd.f32 %v1203, %v1263
      %v1326 = vadd.f32 %v1204, %v1266
      %v1327 = vadd.f32 %v1205, %v1271
      %v1328 = vadd.f32 %v1206, %v1274
      %v1329 = vadd.f32 %v1207, %v1279
      %v1330 = vadd.f32 %v1208, %v1282
      %v1331 = vadd.f32 %v1209, %v1287
      %v1332 = vadd.f32 %v1210, %v1290
      %v1333 = vadd.f32 %v1211, %v1295
      %v1334 = vadd.f32 %v1212, %v1298
      %v1335 = vadd.f32 %v1213, %v1303
      %v1336 = vadd.f32 %v1214, %v1306
      %v1337 = vadd.f32 %v1215, %v1311
      %v1338 = vadd.f32 %v1216, %v1314
      %v1339 = vadd.f32 %v1217, %v1319
      %v1340 = vadd.f32 %v1218, %v1322
      %v1344 = vrot.slane %v276, 1
      %v1345 = vrot.slane %v277, 1
      %v1346 = vsel %vm312, %v1344, %v1345
      %v1347 = vrot.slane %v278, 1
      %v1348 = vsel %vm312, %v1345, %v1347
      %v1351 = vpack.c.bf16 %v1348, %v1346
      %s1352 = scalar_lea.vmem %s1, 28
      %v1353 = vld [vmem:[%s1352] sm:$0xf]
      %v1355 = vsel %vm379, %v1351, 0
      %v1358 = vsel %vm404, %v1353, 0
      %1360 = vmatprep.subr.bf16.mxu0 0
      %1361 = vmatpush1.bf16.msra.mxu0 %v1358
      %1362 = vmatprep.subr.bf16.mxu0 0
      %1363 = vmatpush1.bf16.msra.mxu0 0
      %1364 = vmatprep.subr.bf16.mxu0 0
      %1365 = vmatpush1.bf16.msra.mxu0 0
      %1366 = vmatprep.subr.bf16.mxu0 0
      %1367 = vmatpush1.bf16.msra.mxu0 0
      %1368 = vmatprep.subr.bf16.mxu0 0
      %1369 = vmatpush1.bf16.msra.mxu0 0
      %1370 = vmatprep.subr.bf16.mxu0 0
      %1371 = vmatpush1.bf16.msra.mxu0 0
      %1372 = vmatprep.subr.bf16.mxu0 0
      %1373 = vmatpush1.bf16.msra.mxu0 0
      %1374 = vmatprep.subr.bf16.mxu0 0
      %1375 = vmatpush1.bf16.msra.mxu0 0
      %1376 = vmatprep.subr.bf16.mxu0 0
      %1377 = vmatpush1.bf16.msra.mxu0 0
      %1378 = vmatprep.subr.bf16.mxu0 0
      %1379 = vmatpush1.bf16.msra.mxu0 0
      %1380 = vmatprep.subr.bf16.mxu0 0
      %1381 = vmatpush1.bf16.msra.mxu0 0
      %1382 = vmatprep.subr.bf16.mxu0 0
      %1383 = vmatpush1.bf16.msra.mxu0 0
      %1384 = vmatprep.subr.bf16.mxu0 0
      %1385 = vmatpush1.bf16.msra.mxu0 0
      %1386 = vmatprep.subr.bf16.mxu0 0
      %1387 = vmatpush1.bf16.msra.mxu0 0
      %1388 = vmatprep.subr.bf16.mxu0 0
      %1389 = vmatpush1.bf16.msra.mxu0 0
      %1390 = vmatprep.subr.bf16.mxu0 0
      %1391 = vmatpush1.bf16.msra.mxu0 0
      %1392 = vmatprep.mubr.bf16.mxu0 0
      %1393 = vmatmul.mubr.bf16.gmra.mrb[0].mxu0 %v387
      %v1394 = vpop.f32.mrb[0].mxu0
      %v1395 = vadd.f32 0.0, %v1394
      %v1396 = vpop.f32.mrb[0].mxu0
      %v1397 = vpop.f32.mrb[0].mxu0
      %v1398 = vadd.f32 0.0, %v1397
      %v1399 = vpop.f32.mrb[0].mxu0
      %1400 = vmatprep.mubr.bf16.mxu0 0
      %1401 = vmatmul.mubr.bf16.gmra.mrb[0].mxu0 %v390
      %v1402 = vpop.f32.mrb[0].mxu0
      %v1403 = vadd.f32 0.0, %v1402
      %v1404 = vpop.f32.mrb[0].mxu0
      %v1405 = vpop.f32.mrb[0].mxu0
      %v1406 = vadd.f32 0.0, %v1405
      %v1407 = vpop.f32.mrb[0].mxu0
      %1408 = vmatprep.mubr.bf16.mxu0 0
      %1409 = vmatmul.mubr.bf16.gmra.mrb[0].mxu0 %v393
      %v1410 = vpop.f32.mrb[0].mxu0
      %v1411 = vadd.f32 0.0, %v1410
      %v1412 = vpop.f32.mrb[0].mxu0
      %v1413 = vpop.f32.mrb[0].mxu0
      %v1414 = vadd.f32 0.0, %v1413
      %v1415 = vpop.f32.mrb[0].mxu0
      %1416 = vmatprep.mubr.bf16.mxu0 0
      %1417 = vmatmul.mubr.bf16.gmra.mrb[0].mxu0 %v396
      %v1418 = vpop.f32.mrb[0].mxu0
      %v1419 = vadd.f32 0.0, %v1418
      %v1420 = vpop.f32.mrb[0].mxu0
      %v1421 = vpop.f32.mrb[0].mxu0
      %v1422 = vadd.f32 0.0, %v1421
      %v1423 = vpop.f32.mrb[0].mxu0
      %1424 = vmatprep.mubr.bf16.mxu0 0
      %1425 = vmatmul.mubr.bf16.gmra.mrb[0].mxu0 %v399
      %v1426 = vpop.f32.mrb[0].mxu0
      %v1427 = vadd.f32 0.0, %v1426
      %v1428 = vpop.f32.mrb[0].mxu0
      %v1429 = vpop.f32.mrb[0].mxu0
      %v1430 = vadd.f32 0.0, %v1429
      %v1431 = vpop.f32.mrb[0].mxu0
      %1432 = vmatprep.mubr.bf16.mxu0 0
      %1433 = vmatmul.mubr.bf16.gmra.mrb[0].mxu0 %v402
      %v1434 = vpop.f32.mrb[0].mxu0
      %v1435 = vadd.f32 0.0, %v1434
      %v1436 = vpop.f32.mrb[0].mxu0
      %v1437 = vpop.f32.mrb[0].mxu0
      %v1438 = vadd.f32 0.0, %v1437
      %v1439 = vpop.f32.mrb[0].mxu0
      %1440 = vmatprep.mubr.bf16.mxu0 0
      %1441 = vmatmul.mubr.bf16.gmra.mrb[0].mxu0 %v972
      %v1442 = vpop.f32.mrb[0].mxu0
      %v1443 = vadd.f32 0.0, %v1442
      %v1444 = vpop.f32.mrb[0].mxu0
      %v1445 = vpop.f32.mrb[0].mxu0
      %v1446 = vadd.f32 0.0, %v1445
      %v1447 = vpop.f32.mrb[0].mxu0
      %1448 = vmatprep.mubr.bf16.mxu0 0
      %1449 = vmatmul.mubr.bf16.gmra.mrb[0].mxu0 %v1355
      %v1450 = vpop.f32.mrb[0].mxu0
      %v1451 = vadd.f32 0.0, %v1450
      %v1452 = vpop.f32.mrb[0].mxu0
      %v1453 = vpop.f32.mrb[0].mxu0
      %v1454 = vadd.f32 0.0, %v1453
      %v1455 = vpop.f32.mrb[0].mxu0
      %1456 = vdwg.mxu0
      %v1457 = vadd.f32 %v1325, %v1395
      %v1458 = vadd.f32 %v1326, %v1398
      %v1459 = vadd.f32 %v1327, %v1403
      %v1460 = vadd.f32 %v1328, %v1406
      %v1461 = vadd.f32 %v1329, %v1411
      %v1462 = vadd.f32 %v1330, %v1414
      %v1463 = vadd.f32 %v1331, %v1419
      %v1464 = vadd.f32 %v1332, %v1422
      %v1465 = vadd.f32 %v1333, %v1427
      %v1466 = vadd.f32 %v1334, %v1430
      %v1467 = vadd.f32 %v1335, %v1435
      %v1468 = vadd.f32 %v1336, %v1438
      %v1469 = vadd.f32 %v1337, %v1443
      %v1470 = vadd.f32 %v1338, %v1446
      %v1471 = vadd.f32 %v1339, %v1451
      %v1472 = vadd.f32 %v1340, %v1454
      %v1473 = vrot.slane %v276, 2
      %v1474 = vrot.slane %v277, 2
      %v1475 = vsel %vm629, %v1473, %v1474
      %v1476 = vrot.slane %v278, 2
      %v1477 = vsel %vm629, %v1474, %v1476
      %v1480 = vpack.c.bf16 %v1477, %v1475
      %s1481 = scalar_lea.vmem %s1, 32
      %v1482 = vld [vmem:[%s1481] sm:$0xf]
      %v1484 = vsel %vm379, %v1480, 0
      %v1487 = vsel %vm404, %v1482, 0
      %1489 = vmatprep.subr.bf16.mxu0 0
      %1490 = vmatpush1.bf16.msra.mxu0 %v1487
      %1491 = vmatprep.subr.bf16.mxu0 0
      %1492 = vmatpush1.bf16.msra.mxu0 0
      %1493 = vmatprep.subr.bf16.mxu0 0
      %1494 = vmatpush1.bf16.msra.mxu0 0
      %1495 = vmatprep.subr.bf16.mxu0 0
      %1496 = vmatpush1.bf16.msra.mxu0 0
      %1497 = vmatprep.subr.bf16.mxu0 0
      %1498 = vmatpush1.bf16.msra.mxu0 0
      %1499 = vmatprep.subr.bf16.mxu0 0
      %1500 = vmatpush1.bf16.msra.mxu0 0
      %1501 = vmatprep.subr.bf16.mxu0 0
      %1502 = vmatpush1.bf16.msra.mxu0 0
      %1503 = vmatprep.subr.bf16.mxu0 0
      %1504 = vmatpush1.bf16.msra.mxu0 0
      %1505 = vmatprep.subr.bf16.mxu0 0
      %1506 = vmatpush1.bf16.msra.mxu0 0
      %1507 = vmatprep.subr.bf16.mxu0 0
      %1508 = vmatpush1.bf16.msra.mxu0 0
      %1509 = vmatprep.subr.bf16.mxu0 0
      %1510 = vmatpush1.bf16.msra.mxu0 0
      %1511 = vmatprep.subr.bf16.mxu0 0
      %1512 = vmatpush1.bf16.msra.mxu0 0
      %1513 = vmatprep.subr.bf16.mxu0 0
      %1514 = vmatpush1.bf16.msra.mxu0 0
      %1515 = vmatprep.subr.bf16.mxu0 0
      %1516 = vmatpush1.bf16.msra.mxu0 0
      %1517 = vmatprep.subr.bf16.mxu0 0
      %1518 = vmatpush1.bf16.msra.mxu0 0
      %1519 = vmatprep.subr.bf16.mxu0 0
      %1520 = vmatpush1.bf16.msra.mxu0 0
      %1521 = vmatprep.mubr.bf16.mxu0 0
      %1522 = vmatmul.mubr.bf16.gmra.mrb[0].mxu0 %v703
      %v1523 = vpop.f32.mrb[0].mxu0
      %v1524 = vadd.f32 0.0, %v1523
      %v1525 = vpop.f32.mrb[0].mxu0
      %v1526 = vpop.f32.mrb[0].mxu0
      %v1527 = vadd.f32 0.0, %v1526
      %v1528 = vpop.f32.mrb[0].mxu0
      %1529 = vmatprep.mubr.bf16.mxu0 0
      %1530 = vmatmul.mubr.bf16.gmra.mrb[0].mxu0 %v706
      %v1531 = vpop.f32.mrb[0].mxu0
      %v1532 = vadd.f32 0.0, %v1531
      %v1533 = vpop.f32.mrb[0].mxu0
      %v1534 = vpop.f32.mrb[0].mxu0
      %v1535 = vadd.f32 0.0, %v1534
      %v1536 = vpop.f32.mrb[0].mxu0
      %1537 = vmatprep.mubr.bf16.mxu0 0
      %1538 = vmatmul.mubr.bf16.gmra.mrb[0].mxu0 %v709
      %v1539 = vpop.f32.mrb[0].mxu0
      %v1540 = vadd.f32 0.0, %v1539
      %v1541 = vpop.f32.mrb[0].mxu0
      %v1542 = vpop.f32.mrb[0].mxu0
      %v1543 = vadd.f32 0.0, %v1542
      %v1544 = vpop.f32.mrb[0].mxu0
      %1545 = vmatprep.mubr.bf16.mxu0 0
      %1546 = vmatmul.mubr.bf16.gmra.mrb[0].mxu0 %v712
      %v1547 = vpop.f32.mrb[0].mxu0
      %v1548 = vadd.f32 0.0, %v1547
      %v1549 = vpop.f32.mrb[0].mxu0
      %v1550 = vpop.f32.mrb[0].mxu0
      %v1551 = vadd.f32 0.0, %v1550
      %v1552 = vpop.f32.mrb[0].mxu0
      %1553 = vmatprep.mubr.bf16.mxu0 0
      %1554 = vmatmul.mubr.bf16.gmra.mrb[0].mxu0 %v715
      %v1555 = vpop.f32.mrb[0].mxu0
      %v1556 = vadd.f32 0.0, %v1555
      %v1557 = vpop.f32.mrb[0].mxu0
      %v1558 = vpop.f32.mrb[0].mxu0
      %v1559 = vadd.f32 0.0, %v1558
      %v1560 = vpop.f32.mrb[0].mxu0
      %1561 = vmatprep.mubr.bf16.mxu0 0
      %1562 = vmatmul.mubr.bf16.gmra.mrb[0].mxu0 %v718
      %v1563 = vpop.f32.mrb[0].mxu0
      %v1564 = vadd.f32 0.0, %v1563
      %v1565 = vpop.f32.mrb[0].mxu0
      %v1566 = vpop.f32.mrb[0].mxu0
      %v1567 = vadd.f32 0.0, %v1566
      %v1568 = vpop.f32.mrb[0].mxu0
      %1569 = vmatprep.mubr.bf16.mxu0 0
      %1570 = vmatmul.mubr.bf16.gmra.mrb[0].mxu0 %v1101
      %v1571 = vpop.f32.mrb[0].mxu0
      %v1572 = vadd.f32 0.0, %v1571
      %v1573 = vpop.f32.mrb[0].mxu0
      %v1574 = vpop.f32.mrb[0].mxu0
      %v1575 = vadd.f32 0.0, %v1574
      %v1576 = vpop.f32.mrb[0].mxu0
      %1577 = vmatprep.mubr.bf16.mxu0 0
      %1578 = vmatmul.mubr.bf16.gmra.mrb[0].mxu0 %v1484
      %v1579 = vpop.f32.mrb[0].mxu0
      %v1580 = vadd.f32 0.0, %v1579
      %v1581 = vpop.f32.mrb[0].mxu0
      %v1582 = vpop.f32.mrb[0].mxu0
      %v1583 = vadd.f32 0.0, %v1582
      %v1584 = vpop.f32.mrb[0].mxu0
      %1585 = vdwg.mxu0
      %v1586 = vadd.f32 %v1457, %v1524
      %v1587 = vadd.f32 %v1458, %v1527
      %v1588 = vadd.f32 %v1459, %v1532
      %v1589 = vadd.f32 %v1460, %v1535
      %v1590 = vadd.f32 %v1461, %v1540
      %v1591 = vadd.f32 %v1462, %v1543
      %v1592 = vadd.f32 %v1463, %v1548
      %v1593 = vadd.f32 %v1464, %v1551
      %v1594 = vadd.f32 %v1465, %v1556
      %v1595 = vadd.f32 %v1466, %v1559
      %v1596 = vadd.f32 %v1467, %v1564
      %v1597 = vadd.f32 %v1468, %v1567
      %v1598 = vadd.f32 %v1469, %v1572
      %v1599 = vadd.f32 %v1470, %v1575
      %v1600 = vadd.f32 %v1471, %v1580
      %v1601 = vadd.f32 %v1472, %v1583
      %v1602 = vld [vmem:[%s2] sm:$0x1]
      %v1604 = vlaneseq
      %v1605 = vshrl.u32 %v1604, 7
      %v1606 = vsub.s32 0, %v1605
      %v1607 = vrot.slane %v1602, %v1606
      %v1609 = vadd.f32 %v1586, %v1607
      %v1610 = vadd.f32 %v1587, %v1607
      %v1611 = vadd.f32 %v1588, %v1607
      %v1612 = vadd.f32 %v1589, %v1607
      %v1613 = vadd.f32 %v1590, %v1607
      %v1614 = vadd.f32 %v1591, %v1607
      %v1615 = vadd.f32 %v1592, %v1607
      %v1616 = vadd.f32 %v1593, %v1607
      %v1617 = vadd.f32 %v1594, %v1607
      %v1618 = vadd.f32 %v1595, %v1607
      %v1619 = vadd.f32 %v1596, %v1607
      %v1620 = vadd.f32 %v1597, %v1607
      %v1621 = vadd.f32 %v1598, %v1607
      %v1622 = vadd.f32 %v1599, %v1607
      %v1623 = vadd.f32 %v1600, %v1607
      %v1624 = vadd.f32 %v1601, %v1607
      %v1625 = vld [vmem:[%s212] sm:$0xff]
      %v1626 = vld [vmem:[%s212 + $0x8] sm:$0xff]
      %v1627 = vld [vmem:[%s212 + $0x10] sm:$0xff]
      %v1628 = vld [vmem:[%s212 + $0x18] sm:$0xff]
      %v1629 = vld [vmem:[%s212 + $0x20] sm:$0xff]
      %v1630 = vld [vmem:[%s212 + $0x28] sm:$0xff]
      %v1631 = vld [vmem:[%s212 + $0x30] sm:$0xff]
      %v1632 = vld [vmem:[%s212 + $0x38] sm:$0xff]
      %v1633 = vld [vmem:[%s212 + $0x40] sm:$0xff]
      %v1634 = vld [vmem:[%s212 + $0x48] sm:$0xff]
      %v1635 = vld [vmem:[%s212 + $0x50] sm:$0xff]
      %v1636 = vld [vmem:[%s212 + $0x58] sm:$0xff]
      %v1637 = vld [vmem:[%s212 + $0x60] sm:$0xff]
      %v1638 = vld [vmem:[%s212 + $0x68] sm:$0xff]
      %v1639 = vld [vmem:[%s212 + $0x70] sm:$0xff]
      %v1640 = vld [vmem:[%s212 + $0x78] sm:$0xff]
      %v1641 = vadd.f32 %v1609, %v1625
      %v1642 = vadd.f32 %v1610, %v1626
      %v1643 = vadd.f32 %v1611, %v1627
      %v1644 = vadd.f32 %v1612, %v1628
      %v1645 = vadd.f32 %v1613, %v1629
      %v1646 = vadd.f32 %v1614, %v1630
      %v1647 = vadd.f32 %v1615, %v1631
      %v1648 = vadd.f32 %v1616, %v1632
      %v1649 = vadd.f32 %v1617, %v1633
      %v1650 = vadd.f32 %v1618, %v1634
      %v1651 = vadd.f32 %v1619, %v1635
      %v1652 = vadd.f32 %v1620, %v1636
      %v1653 = vadd.f32 %v1621, %v1637
      %v1654 = vadd.f32 %v1622, %v1638
      %v1655 = vadd.f32 %v1623, %v1639
      %v1656 = vadd.f32 %v1624, %v1640
      %1657 = vst.msk [vmem:[%s217] sm:$0xff] %vm379, %v1641
      %1658 = vst.msk [vmem:[%s217 + $0x8] sm:$0xff] %vm379, %v1642
      %1659 = vst.msk [vmem:[%s217 + $0x10] sm:$0xff] %vm379, %v1643
      %1660 = vst.msk [vmem:[%s217 + $0x18] sm:$0xff] %vm379, %v1644
      %1661 = vst.msk [vmem:[%s217 + $0x20] sm:$0xff] %vm379, %v1645
      %1662 = vst.msk [vmem:[%s217 + $0x28] sm:$0xff] %vm379, %v1646
      %1663 = vst.msk [vmem:[%s217 + $0x30] sm:$0xff] %vm379, %v1647
      %1664 = vst.msk [vmem:[%s217 + $0x38] sm:$0xff] %vm379, %v1648
      %1665 = vst.msk [vmem:[%s217 + $0x40] sm:$0xff] %vm379, %v1649
      %1666 = vst.msk [vmem:[%s217 + $0x48] sm:$0xff] %vm379, %v1650
      %1667 = vst.msk [vmem:[%s217 + $0x50] sm:$0xff] %vm379, %v1651
      %1668 = vst.msk [vmem:[%s217 + $0x58] sm:$0xff] %vm379, %v1652
      %1669 = vst.msk [vmem:[%s217 + $0x60] sm:$0xff] %vm379, %v1653
      %1670 = vst.msk [vmem:[%s217 + $0x68] sm:$0xff] %vm379, %v1654
      %1671 = vst.msk [vmem:[%s217 + $0x70] sm:$0xff] %vm379, %v1655
      %1672 = vst.msk [vmem:[%s217 + $0x78] sm:$0xff] %vm379, %v1656
      %p1673 = scmp.lt.s32.totalorder %s15, 1
      %s1674 = scalar_select %p1673, %s15, 1
      %s1675 = smul.addr %s1674, 16
      %s1676 = smul.addr %s1675, 8
      %s1677 = scalar_lea.vmem %s4, %s1676
      // Predicated region
      $region37: #{encoder_forward.7} parent=35 // pred_check
        %p1678 = pneg %p127
      $region38: #{encoder_forward.7} parent=35 // pred_check_branch
        %1680 = sbr.rel (%p1678) target = $region40
      $region39: #{encoder_forward.7} parent=35 // pred_region
        _
      $region40: #{encoder_forward.7} parent=35 // pred_fallthru
        _
    $region36: #{encoder_forward.7} parent=5 // pred_fallthru
      _
    %p1681 = scmp.le.s32.totalorder 2, %s10
    // Predicated region
    $region41: #{encoder_forward.7} parent=5 // pred_check
      %p1682 = pneg %p1681
    $region42: #{encoder_forward.7} parent=5 // pred_check_branch
      %1684 = sbr.rel (%p1682) target = $region44
    $region43: #{encoder_forward.7} parent=5 // pred_region
      %s1685 = ssub.s32 %s10, 2
      // Predicated region
      $region45: #{encoder_forward.7} parent=43 // pred_check
        %p1686 = pneg %p133
      $region46: #{encoder_forward.7} parent=43 // pred_check_branch
        %1688 = sbr.rel (%p1686) target = $region48
      $region47: #{encoder_forward.7} parent=43 // pred_region
        %p1689 = scmp.lt.s32.totalorder %s16, 1
        %s1690 = scalar_select %p1689, %s16, 1
        %s1691 = smul.addr %s1690, 16
        %s1692 = smul.addr %s1691, 8
        %s1693 = scalar_lea.vmem %s4, %s1692
      $region48: #{encoder_forward.7} parent=43 // pred_fallthru
        _
    $region44: #{encoder_forward.7} parent=5 // pred_fallthru
      _
  $region6: #{encoder_forward.7} parent=0 // loop_footer
    %s14 = sadd.s32 1, %s10
  $region7: #{encoder_forward.7} parent=0 // loop_footer_branch
    %9 = sbr.rel target = $region3
  $region8: #{encoder_forward.7} parent=0 // loop_exit
    _

// kernel: encoder_forward.8
$region0: #{encoder_forward.8}
  #allocation0 [shape = 'u32[]', space=smem, size = 0x4, offset = 0x4, fixed_abs, tag = 'smem constant byte address 0x4 - core index']
  #allocation1 [shape = 'u32[144,128]{1,0:T(1,128)}', space=vmem, size = 0x12000, scoped, tag = 'internal scratch']
  %s0 = inlined_call_operand.vmem [shape: bf16[2,10,18,8], index: 0, kind: input, shape index: {}]
  %s1 = inlined_call_operand.vmem [shape: bf16[9,8,32], index: 1, kind: input, shape index: {}]
  %s2 = inlined_call_operand.vmem [shape: f32[1,32], index: 2, kind: input, shape index: {}]
  %s3 = inlined_call_operand.vmem [shape: f32[1,8], index: 3, kind: input, shape index: {}]
  %s4 = inlined_call_operand.vmem [shape: f32[1,8], index: 4, kind: input, shape index: {}]
  %s5 = inlined_call_operand.vmem [shape: f32[2,8,16,32], index: 5, kind: output, shape index: {}]
  %s6 = sld [smem:[#allocation0]]
  $region53: #{encoder_forward.8} parent=0
    _
  %s8 = ssub.s32 1, %s6
  %s9 = scalar_select 0, %s8, %s6
  loop: start=0, step=1, limit=4
  $region2: #{encoder_forward.8} parent=0 // loop_pre_header
    _
  $region3: #{encoder_forward.8} parent=0 // loop_header
    %s11 = sphi 0, %s15
    %p12 = scmp.ge.s32.totalorder %s11, 4
    %s21 = sphi 0, %s23
    %s24 = sphi 0, %s21
    %s25 = sphi 0, %s24
    %s41 = sphi 0, %s25
    %s45 = sphi 0, %s45
    %s47 = sphi 0, %s45
    %s48 = sphi 0, %s47
    %s62 = sphi 0, %s48
    %s66 = sphi 0, %s66
    %s68 = sphi 0, %s66
    %s69 = sphi 0, %s68
    %s83 = sphi 0, %s69
    %s87 = sphi 0, %s87
    %s89 = sphi 0, %s87
    %s90 = sphi 0, %s89
    %s104 = sphi 0, %s90
    %s108 = sphi 0, %s108
    %s110 = sphi 0, %s108
    %s111 = sphi 0, %s110
    %s125 = sphi 0, %s111
    %s131 = sphi 0, %s133
    %s134 = sphi 0, %s131
    %s135 = sphi 0, %s134
    %s151 = sphi 0, %s135
  $region4: #{encoder_forward.8} parent=0 // loop_header_branch
    %14 = sbr.rel (%p12) target = $region8
  $region5: #{encoder_forward.8} parent=0 // loop_body
    %s16 = ssub.s32 %s11, 1
    %s17 = ssub.s32 %s11, 2
    %s18 = sadd.s32 %s11, 1
    %s19 = ssub.s32 %s11, %s18
    %p20 = scmp.eq.s32.totalorder %s19, 0
    %s22 = sadd.s32 %s21, 1
    %s23 = scalar_select %p20, %s21, %s22
    %p26 = pneg %p20
    %p27 = scmp.eq.s32.totalorder %s11, 1
    %p28 = por %p26, %p27
    %p29 = scmp.ne.s32.totalorder %s21, %s24
    %p30 = scmp.eq.s32.totalorder %s11, 0
    %p31 = por %p29, %p30
    %p32 = scmp.ne.s32.totalorder %s21, %s24
    %p33 = scmp.eq.s32.totalorder %s16, 1
    %p34 = por %p32, %p33
    %p35 = scmp.ne.s32.totalorder %s24, %s25
    %p36 = scmp.eq.s32.totalorder %s16, 0
    %p37 = por %p35, %p36
    %p38 = scmp.ne.s32.totalorder %s24, %s25
    %p39 = scmp.eq.s32.totalorder %s17, 1
    %p40 = por %p38, %p39
    %p42 = scmp.ne.s32.totalorder %s25, %s41
    %p43 = scmp.eq.s32.totalorder %s17, 0
    %p44 = por %p42, %p43
    %s46 = sadd.s32 %s45, 1
    %p49 = scmp.eq.s32.totalorder %s11, 1
    %p50 = scmp.ne.s32.totalorder %s45, %s47
    %p51 = scmp.eq.s32.totalorder %s11, 0
    %p52 = por %p50, %p51
    %p53 = scmp.ne.s32.totalorder %s45, %s47
    %p54 = scmp.eq.s32.totalorder %s16, 1
    %p55 = por %p53, %p54
    %p56 = scmp.ne.s32.totalorder %s47, %s48
    %p57 = scmp.eq.s32.totalorder %s16, 0
    %p58 = por %p56, %p57
    %p59 = scmp.ne.s32.totalorder %s47, %s48
    %p60 = scmp.eq.s32.totalorder %s17, 1
    %p61 = por %p59, %p60
    %p63 = scmp.ne.s32.totalorder %s48, %s62
    %p64 = scmp.eq.s32.totalorder %s17, 0
    %p65 = por %p63, %p64
    %s67 = sadd.s32 %s66, 1
    %p70 = scmp.eq.s32.totalorder %s11, 1
    %p71 = scmp.ne.s32.totalorder %s66, %s68
    %p72 = scmp.eq.s32.totalorder %s11, 0
    %p73 = por %p71, %p72
    %p74 = scmp.ne.s32.totalorder %s66, %s68
    %p75 = scmp.eq.s32.totalorder %s16, 1
    %p76 = por %p74, %p75
    %p77 = scmp.ne.s32.totalorder %s68, %s69
    %p78 = scmp.eq.s32.totalorder %s16, 0
    %p79 = por %p77, %p78
    %p80 = scmp.ne.s32.totalorder %s68, %s69
    %p81 = scmp.eq.s32.totalorder %s17, 1
    %p82 = por %p80, %p81
    %p84 = scmp.ne.s32.totalorder %s69, %s83
    %p85 = scmp.eq.s32.totalorder %s17, 0
    %p86 = por %p84, %p85
    %s88 = sadd.s32 %s87, 1
    %p91 = scmp.eq.s32.totalorder %s11, 1
    %p92 = scmp.ne.s32.totalorder %s87, %s89
    %p93 = scmp.eq.s32.totalorder %s11, 0
    %p94 = por %p92, %p93
    %p95 = scmp.ne.s32.totalorder %s87, %s89
    %p96 = scmp.eq.s32.totalorder %s16, 1
    %p97 = por %p95, %p96
    %p98 = scmp.ne.s32.totalorder %s89, %s90
    %p99 = scmp.eq.s32.totalorder %s16, 0
    %p100 = por %p98, %p99
    %p101 = scmp.ne.s32.totalorder %s89, %s90
    %p102 = scmp.eq.s32.totalorder %s17, 1
    %p103 = por %p101, %p102
    %p105 = scmp.ne.s32.totalorder %s90, %s104
    %p106 = scmp.eq.s32.totalorder %s17, 0
    %p107 = por %p105, %p106
    %s109 = sadd.s32 %s108, 1
    %p112 = scmp.eq.s32.totalorder %s11, 1
    %p113 = scmp.ne.s32.totalorder %s108, %s110
    %p114 = scmp.eq.s32.totalorder %s11, 0
    %p115 = por %p113, %p114
    %p116 = scmp.ne.s32.totalorder %s108, %s110
    %p117 = scmp.eq.s32.totalorder %s16, 1
    %p118 = por %p116, %p117
    %p119 = scmp.ne.s32.totalorder %s110, %s111
    %p120 = scmp.eq.s32.totalorder %s16, 0
    %p121 = por %p119, %p120
    %p122 = scmp.ne.s32.totalorder %s110, %s111
    %p123 = scmp.eq.s32.totalorder %s17, 1
    %p124 = por %p122, %p123
    %p126 = scmp.ne.s32.totalorder %s111, %s125
    %p127 = scmp.eq.s32.totalorder %s17, 0
    %p128 = por %p126, %p127
    %s129 = ssub.s32 %s11, %s18
    %p130 = scmp.eq.s32.totalorder %s129, 0
    %s132 = sadd.s32 %s131, 1
    %s133 = scalar_select %p130, %s131, %s132
    %p136 = pneg %p130
    %p137 = scmp.eq.s32.totalorder %s11, 1
    %p138 = por %p136, %p137
    %p139 = scmp.ne.s32.totalorder %s131, %s134
    %p140 = scmp.eq.s32.totalorder %s11, 0
    %p141 = por %p139, %p140
    %p142 = scmp.ne.s32.totalorder %s131, %s134
    %p143 = scmp.eq.s32.totalorder %s16, 1
    %p144 = por %p142, %p143
    %p145 = scmp.ne.s32.totalorder %s134, %s135
    %p146 = scmp.eq.s32.totalorder %s16, 0
    %p147 = por %p145, %p146
    %p148 = scmp.ne.s32.totalorder %s134, %s135
    %p149 = scmp.eq.s32.totalorder %s17, 1
    %p150 = por %p148, %p149
    %p152 = scmp.ne.s32.totalorder %s135, %s151
    %p153 = scmp.eq.s32.totalorder %s17, 0
    %p154 = por %p152, %p153
    %p155 = scmp.le.s32.totalorder 1, %s11
    %p156 = scmp.lt.s32.totalorder %s11, 3
    %p157 = pnand %p155, %p156
    %p158 = pneg %p157
    // Predicated region
    $region9: #{encoder_forward.8} parent=5 // pred_check
      _
    $region10: #{encoder_forward.8} parent=5 // pred_check_branch
      %160 = sbr.rel (%p157) target = $region12
    $region11: #{encoder_forward.8} parent=5 // pred_region
      %s161 = ssub.s32 %s11, 1
      // Predicated region
      $region13: #{encoder_forward.8} parent=11 // pred_check
        %p162 = pneg %p58
      $region14: #{encoder_forward.8} parent=11 // pred_check_branch
        %164 = sbr.rel (%p162) target = $region16
      $region15: #{encoder_forward.8} parent=11 // pred_region
        _
      $region16: #{encoder_forward.8} parent=11 // pred_fallthru
        _
      // Predicated region
      $region17: #{encoder_forward.8} parent=11 // pred_check
        %p165 = pneg %p79
      $region18: #{encoder_forward.8} parent=11 // pred_check_branch
        %167 = sbr.rel (%p165) target = $region20
      $region19: #{encoder_forward.8} parent=11 // pred_region
        _
      $region20: #{encoder_forward.8} parent=11 // pred_fallthru
        _
      // Predicated region
      $region21: #{encoder_forward.8} parent=11 // pred_check
        %p168 = pneg %p100
      $region22: #{encoder_forward.8} parent=11 // pred_check_branch
        %170 = sbr.rel (%p168) target = $region24
      $region23: #{encoder_forward.8} parent=11 // pred_region
        _
      $region24: #{encoder_forward.8} parent=11 // pred_fallthru
        _
      // Predicated region
      $region25: #{encoder_forward.8} parent=11 // pred_check
        %p171 = pneg %p121
      $region26: #{encoder_forward.8} parent=11 // pred_check_branch
        %173 = sbr.rel (%p171) target = $region28
      $region27: #{encoder_forward.8} parent=11 // pred_region
        _
      $region28: #{encoder_forward.8} parent=11 // pred_fallthru
        _
    $region12: #{encoder_forward.8} parent=5 // pred_fallthru
      _
    %p174 = scmp.lt.s32.totalorder %s11, 2
    // Predicated region
    $region29: #{encoder_forward.8} parent=5 // pred_check
      %p175 = pneg %p174
    $region30: #{encoder_forward.8} parent=5 // pred_check_branch
      %177 = sbr.rel (%p175) target = $region32
    $region31: #{encoder_forward.8} parent=5 // pred_region
      // Predicated region
      $region33: #{encoder_forward.8} parent=31 // pred_check
        %p178 = pneg %p31
      $region34: #{encoder_forward.8} parent=31 // pred_check_branch
        %180 = sbr.rel (%p178) target = $region36
      $region35: #{encoder_forward.8} parent=31 // pred_region
        %p181 = scmp.lt.s32.totalorder %s11, 1
        %s182 = scalar_select %p181, %s11, 1
        %s183 = smul.addr %s182, 30
        %s184 = smul.addr %s183, 4
        %s185 = scalar_lea.vmem %s0, %s184
      $region36: #{encoder_forward.8} parent=31 // pred_fallthru
        _
    $region32: #{encoder_forward.8} parent=5 // pred_fallthru
      _
    %p186 = scmp.le.s32.totalorder 1, %s11
    %p187 = scmp.lt.s32.totalorder %s11, 3
    %p188 = pnand %p186, %p187
    %p189 = pneg %p188
    // Predicated region
    $region37: #{encoder_forward.8} parent=5 // pred_check
      _
    $region38: #{encoder_forward.8} parent=5 // pred_check_branch
      %191 = sbr.rel (%p188) target = $region40
    $region39: #{encoder_forward.8} parent=5 // pred_region
      %s192 = ssub.s32 %s11, 1
      %p193 = scmp.lt.s32.totalorder %s16, 1
      %s194 = scalar_select %p193, %s16, 1
      %s195 = smul.addr %s194, 30
      %s196 = smul.addr %s195, 4
      %s197 = scalar_lea.vmem %s0, %s196
      %p198 = pneg %p37
      %p199 = pneg %p34
      %p200 = pneg %p58
      %p201 = pneg %p55
      %p202 = pneg %p79
      %p203 = pneg %p76
      %p204 = pneg %p100
      %p205 = pneg %p97
      %p206 = pneg %p121
      %p207 = pneg %p118
      %p208 = pneg %p147
      %p209 = pneg %p144
      %p210 = scmp.lt.s32.totalorder %s16, 1
      %s211 = scalar_select %p210, %s16, 1
      %s212 = smul.addr %s211, 16
      %s213 = smul.addr %s212, 8
      %s214 = scalar_lea.vmem %s5, %s213
      %p215 = scmp.lt.s32.totalorder %s16, 1
      %s216 = scalar_select %p215, %s16, 1
      %s217 = smul.addr %s216, 30
      %s218 = smul.addr %s217, 4
      %s219 = scalar_lea.vmem %s0, %s218
      %p220 = scmp.lt.s32.totalorder %s16, 1
      %s221 = scalar_select %p220, %s16, 1
      %s222 = smul.addr %s221, 16
      %s223 = smul.addr %s222, 8
      %s224 = scalar_lea.vmem %s5, %s223
      %v226 = vld [vmem:[%s219] sm:$0xf]
      %v227 = vld [vmem:[%s219 + $0x4] sm:$0xf]
      %v228 = vld [vmem:[%s219 + $0x8] sm:$0x1]
      %v229 = vld [vmem:[%s219 + $0xc] sm:$0xf]
      %v230 = vld [vmem:[%s219 + $0x10] sm:$0xf]
      %v231 = vld [vmem:[%s219 + $0x14] sm:$0x1]
      %v232 = vld [vmem:[%s219 + $0x18] sm:$0xf]
      %v233 = vld [vmem:[%s219 + $0x1c] sm:$0xf]
      %v234 = vld [vmem:[%s219 + $0x20] sm:$0x1]
      %v235 = vld [vmem:[%s219 + $0x24] sm:$0xf]
      %v236 = vld [vmem:[%s219 + $0x28] sm:$0xf]
      %v237 = vld [vmem:[%s219 + $0x2c] sm:$0x1]
      %v238 = vld [vmem:[%s219 + $0x30] sm:$0xf]
      %v239 = vld [vmem:[%s219 + $0x34] sm:$0xf]
      %v240 = vld [vmem:[%s219 + $0x38] sm:$0x1]
      %v241 = vld [vmem:[%s219 + $0x3c] sm:$0xf]
      %v242 = vld [vmem:[%s219 + $0x40] sm:$0xf]
      %v243 = vld [vmem:[%s219 + $0x44] sm:$0x1]
      %v244 = vld [vmem:[%s219 + $0x48] sm:$0xf]
      %v245 = vld [vmem:[%s219 + $0x4c] sm:$0xf]
      %v246 = vld [vmem:[%s219 + $0x50] sm:$0x1]
      %v247 = vld [vmem:[%s219 + $0x54] sm:$0xf]
      %v248 = vld [vmem:[%s219 + $0x58] sm:$0xf]
      %v249 = vld [vmem:[%s219 + $0x5c] sm:$0x1]
      %v250 = vld [vmem:[%s219 + $0x60] sm:$0xf]
      %v251 = vld [vmem:[%s219 + $0x64] sm:$0xf]
      %v252 = vld [vmem:[%s219 + $0x68] sm:$0x1]
      %v253 = vld [vmem:[%s219 + $0x6c] sm:$0xf]
      %v254 = vld [vmem:[%s219 + $0x70] sm:$0xf]
      %v255 = vld [vmem:[%s219 + $0x74] sm:$0x1]
      %v256 = vunpack.c.l.bf16 %v226
      %v257 = vunpack.c.l.bf16 %v227
      %v258 = vunpack.c.l.bf16 %v228
      %v259 = vunpack.c.l.bf16 %v229
      %v260 = vunpack.c.l.bf16 %v230
      %v261 = vunpack.c.l.bf16 %v231
      %v262 = vunpack.c.l.bf16 %v232
      %v263 = vunpack.c.l.bf16 %v233
      %v264 = vunpack.c.l.bf16 %v234
      %v265 = vunpack.c.l.bf16 %v235
      %v266 = vunpack.c.l.bf16 %v236
      %v267 = vunpack.c.l.bf16 %v237
      %v268 = vunpack.c.l.bf16 %v238
      %v269 = vunpack.c.l.bf16 %v239
      %v270 = vunpack.c.l.bf16 %v240
      %v271 = vunpack.c.l.bf16 %v241
      %v272 = vunpack.c.l.bf16 %v242
      %v273 = vunpack.c.l.bf16 %v243
      %v274 = vunpack.c.l.bf16 %v244
      %v275 = vunpack.c.l.bf16 %v245
      %v276 = vunpack.c.l.bf16 %v246
      %v277 = vunpack.c.l.bf16 %v247
      %v278 = vunpack.c.l.bf16 %v248
      %v279 = vunpack.c.l.bf16 %v249
      %v280 = vunpack.c.l.bf16 %v250
      %v281 = vunpack.c.l.bf16 %v251
      %v282 = vunpack.c.l.bf16 %v252
      %v283 = vunpack.c.l.bf16 %v253
      %v284 = vunpack.c.l.bf16 %v254
      %v285 = vunpack.c.l.bf16 %v255
      %vm286 = vcmask 64512
      %v287 = vsel %vm286, %v256, 0.0
      %288 = vadd.xlane.f32.xlu0 %v287
      %v289 = vpop.xlane.xlu0 %288
      %v290 = vsel %vm286, %v257, 0.0
      %291 = vadd.xlane.f32.xlu0 %v290
      %v292 = vpop.xlane.xlu0 %291
      %vm293 = vcmask 58368
      %v294 = vsel %vm293, %v258, 0.0
      %295 = vadd.xlane.f32.xlu0 %v294
      %v296 = vpop.xlane.xlu0 %295
      %v297 = vsel %vm286, %v259, 0.0
      %298 = vadd.xlane.f32.xlu0 %v297
      %v299 = vpop.xlane.xlu0 %298
      %v300 = vsel %vm286, %v260, 0.0
      %301 = vadd.xlane.f32.xlu0 %v300
      %v302 = vpop.xlane.xlu0 %301
      %v303 = vsel %vm293, %v261, 0.0
      %304 = vadd.xlane.f32.xlu0 %v303
      %v305 = vpop.xlane.xlu0 %304
      %v306 = vsel %vm286, %v262, 0.0
      %307 = vadd.xlane.f32.xlu0 %v306
      %v308 = vpop.xlane.xlu0 %307
      %v309 = vsel %vm286, %v263, 0.0
      %310 = vadd.xlane.f32.xlu0 %v309
      %v311 = vpop.xlane.xlu0 %310
      %v312 = vsel %vm293, %v264, 0.0
      %313 = vadd.xlane.f32.xlu0 %v312
      %v314 = vpop.xlane.xlu0 %313
      %v315 = vsel %vm286, %v265, 0.0
      %316 = vadd.xlane.f32.xlu0 %v315
      %v317 = vpop.xlane.xlu0 %316
      %v318 = vsel %vm286, %v266, 0.0
      %319 = vadd.xlane.f32.xlu0 %v318
      %v320 = vpop.xlane.xlu0 %319
      %v321 = vsel %vm293, %v267, 0.0
      %322 = vadd.xlane.f32.xlu0 %v321
      %v323 = vpop.xlane.xlu0 %322
      %v324 = vsel %vm286, %v268, 0.0
      %325 = vadd.xlane.f32.xlu0 %v324
      %v326 = vpop.xlane.xlu0 %325
      %v327 = vsel %vm286, %v269, 0.0
      %328 = vadd.xlane.f32.xlu0 %v327
      %v329 = vpop.xlane.xlu0 %328
      %v330 = vsel %vm293, %v270, 0.0
      %331 = vadd.xlane.f32.xlu0 %v330
      %v332 = vpop.xlane.xlu0 %331
      %v333 = vsel %vm286, %v271, 0.0
      %334 = vadd.xlane.f32.xlu0 %v333
      %v335 = vpop.xlane.xlu0 %334
      %v336 = vsel %vm286, %v272, 0.0
      %337 = vadd.xlane.f32.xlu0 %v336
      %v338 = vpop.xlane.xlu0 %337
      %v339 = vsel %vm293, %v273, 0.0
      %340 = vadd.xlane.f32.xlu0 %v339
      %v341 = vpop.xlane.xlu0 %340
      %v342 = vsel %vm286, %v274, 0.0
      %343 = vadd.xlane.f32.xlu0 %v342
      %v344 = vpop.xlane.xlu0 %343
      %v345 = vsel %vm286, %v275, 0.0
      %346 = vadd.xlane.f32.xlu0 %v345
      %v347 = vpop.xlane.xlu0 %346
      %v348 = vsel %vm293, %v276, 0.0
      %349 = vadd.xlane.f32.xlu0 %v348
      %v350 = vpop.xlane.xlu0 %349
      %v351 = vsel %vm286, %v277, 0.0
      %352 = vadd.xlane.f32.xlu0 %v351
      %v353 = vpop.xlane.xlu0 %352
      %v354 = vsel %vm286, %v278, 0.0
      %355 = vadd.xlane.f32.xlu0 %v354
      %v356 = vpop.xlane.xlu0 %355
      %v357 = vsel %vm293, %v279, 0.0
      %358 = vadd.xlane.f32.xlu0 %v357
      %v359 = vpop.xlane.xlu0 %358
      %v360 = vsel %vm286, %v280, 0.0
      %361 = vadd.xlane.f32.xlu0 %v360
      %v362 = vpop.xlane.xlu0 %361
      %v363 = vsel %vm286, %v281, 0.0
      %364 = vadd.xlane.f32.xlu0 %v363
      %v365 = vpop.xlane.xlu0 %364
      %v366 = vsel %vm293, %v282, 0.0
      %367 = vadd.xlane.f32.xlu0 %v366
      %v368 = vpop.xlane.xlu0 %367
      %v369 = vsel %vm286, %v283, 0.0
      %370 = vadd.xlane.f32.xlu0 %v369
      %v371 = vpop.xlane.xlu0 %370
      %v372 = vsel %vm286, %v284, 0.0
      %373 = vadd.xlane.f32.xlu0 %v372
      %v374 = vpop.xlane.xlu0 %373
      %v375 = vsel %vm293, %v285, 0.0
      %376 = vadd.xlane.f32.xlu0 %v375
      %v377 = vpop.xlane.xlu0 %376
      %v378 = vrcp.pop 8.0
      %v379 = vmul.f32 %v289, %v378
      %v380 = vmul.f32 %v292, %v378
      %v381 = vmul.f32 %v296, %v378
      %v382 = vmul.f32 %v299, %v378
      %v383 = vmul.f32 %v302, %v378
      %v384 = vmul.f32 %v305, %v378
      %v385 = vmul.f32 %v308, %v378
      %v386 = vmul.f32 %v311, %v378
      %v387 = vmul.f32 %v314, %v378
      %v388 = vmul.f32 %v317, %v378
      %v389 = vmul.f32 %v320, %v378
      %v390 = vmul.f32 %v323, %v378
      %v391 = vmul.f32 %v326, %v378
      %v392 = vmul.f32 %v329, %v378
      %v393 = vmul.f32 %v332, %v378
      %v394 = vmul.f32 %v335, %v378
      %v395 = vmul.f32 %v338, %v378
      %v396 = vmul.f32 %v341, %v378
      %v397 = vmul.f32 %v344, %v378
      %v398 = vmul.f32 %v347, %v378
      %v399 = vmul.f32 %v350, %v378
      %v400 = vmul.f32 %v353, %v378
      %v401 = vmul.f32 %v356, %v378
      %v402 = vmul.f32 %v359, %v378
      %v403 = vmul.f32 %v362, %v378
      %v404 = vmul.f32 %v365, %v378
      %v405 = vmul.f32 %v368, %v378
      %v406 = vmul.f32 %v371, %v378
      %v407 = vmul.f32 %v374, %v378
      %v408 = vmul.f32 %v377, %v378
      %v409 = vsub.f32 %v256, %v379
      %v410 = vsub.f32 %v257, %v380
      %v411 = vsub.f32 %v258, %v381
      %v412 = vsub.f32 %v259, %v382
      %v413 = vsub.f32 %v260, %v383
      %v414 = vsub.f32 %v261, %v384
      %v415 = vsub.f32 %v262, %v385
      %v416 = vsub.f32 %v263, %v386
      %v417 = vsub.f32 %v264, %v387
      %v418 = vsub.f32 %v265, %v388
      %v419 = vsub.f32 %v266, %v389
      %v420 = vsub.f32 %v267, %v390
      %v421 = vsub.f32 %v268, %v391
      %v422 = vsub.f32 %v269, %v392
      %v423 = vsub.f32 %v270, %v393
      %v424 = vsub.f32 %v271, %v394
      %v425 = vsub.f32 %v272, %v395
      %v426 = vsub.f32 %v273, %v396
      %v427 = vsub.f32 %v274, %v397
      %v428 = vsub.f32 %v275, %v398
      %v429 = vsub.f32 %v276, %v399
      %v430 = vsub.f32 %v277, %v400
      %v431 = vsub.f32 %v278, %v401
      %v432 = vsub.f32 %v279, %v402
      %v433 = vsub.f32 %v280, %v403
      %v434 = vsub.f32 %v281, %v404
      %v435 = vsub.f32 %v282, %v405
      %v436 = vsub.f32 %v283, %v406
      %v437 = vsub.f32 %v284, %v407
      %v438 = vsub.f32 %v285, %v408
      %v439 = vmul.f32 %v409, %v409
      %v440 = vmul.f32 %v410, %v410
      %v441 = vmul.f32 %v411, %v411
      %v442 = vmul.f32 %v412, %v412
      %v443 = vmul.f32 %v413, %v413
      %v444 = vmul.f32 %v414, %v414
      %v445 = vmul.f32 %v415, %v415
      %v446 = vmul.f32 %v416, %v416
      %v447 = vmul.f32 %v417, %v417
      %v448 = vmul.f32 %v418, %v418
      %v449 = vmul.f32 %v419, %v419
      %v450 = vmul.f32 %v420, %v420
      %v451 = vmul.f32 %v421, %v421
      %v452 = vmul.f32 %v422, %v422
      %v453 = vmul.f32 %v423, %v423
      %v454 = vmul.f32 %v424, %v424
      %v455 = vmul.f32 %v425, %v425
      %v456 = vmul.f32 %v426, %v426
      %v457 = vmul.f32 %v427, %v427
      %v458 = vmul.f32 %v428, %v428
      %v459 = vmul.f32 %v429, %v429
      %v460 = vmul.f32 %v430, %v430
      %v461 = vmul.f32 %v431, %v431
      %v462 = vmul.f32 %v432, %v432
      %v463 = vmul.f32 %v433, %v433
      %v464 = vmul.f32 %v434, %v434
      %v465 = vmul.f32 %v435, %v435
      %v466 = vmul.f32 %v436, %v436
      %v467 = vmul.f32 %v437, %v437
      %v468 = vmul.f32 %v438, %v438
      %v469 = vsel %vm286, %v439, 0.0
      %470 = vadd.xlane.f32.xlu0 %v469
      %v471 = vpop.xlane.xlu0 %470
      %v472 = vsel %vm286, %v440, 0.0
      %473 = vadd.xlane.f32.xlu0 %v472
      %v474 = vpop.xlane.xlu0 %473
      %v475 = vsel %vm293, %v441, 0.0
      %476 = vadd.xlane.f32.xlu0 %v475
      %v477 = vpop.xlane.xlu0 %476
      %v478 = vsel %vm286, %v442, 0.0
      %479 = vadd.xlane.f32.xlu0 %v478
      %v480 = vpop.xlane.xlu0 %479
      %v481 = vsel %vm286, %v443, 0.0
      %482 = vadd.xlane.f32.xlu0 %v481
      %v483 = vpop.xlane.xlu0 %482
      %v484 = vsel %vm293, %v444, 0.0
      %485 = vadd.xlane.f32.xlu0 %v484
      %v486 = vpop.xlane.xlu0 %485
      %v487 = vsel %vm286, %v445, 0.0
      %488 = vadd.xlane.f32.xlu0 %v487
      %v489 = vpop.xlane.xlu0 %488
      %v490 = vsel %vm286, %v446, 0.0
      %491 = vadd.xlane.f32.xlu0 %v490
      %v492 = vpop.xlane.xlu0 %491
      %v493 = vsel %vm293, %v447, 0.0
      %494 = vadd.xlane.f32.xlu0 %v493
      %v495 = vpop.xlane.xlu0 %494
      %v496 = vsel %vm286, %v448, 0.0
      %497 = vadd.xlane.f32.xlu0 %v496
      %v498 = vpop.xlane.xlu0 %497
      %v499 = vsel %vm286, %v449, 0.0
      %500 = vadd.xlane.f32.xlu0 %v499
      %v501 = vpop.xlane.xlu0 %500
      %v502 = vsel %vm293, %v450, 0.0
      %503 = vadd.xlane.f32.xlu0 %v502
      %v504 = vpop.xlane.xlu0 %503
      %v505 = vsel %vm286, %v451, 0.0
      %506 = vadd.xlane.f32.xlu0 %v505
      %v507 = vpop.xlane.xlu0 %506
      %v508 = vsel %vm286, %v452, 0.0
      %509 = vadd.xlane.f32.xlu0 %v508
      %v510 = vpop.xlane.xlu0 %509
      %v511 = vsel %vm293, %v453, 0.0
      %512 = vadd.xlane.f32.xlu0 %v511
      %v513 = vpop.xlane.xlu0 %512
      %v514 = vsel %vm286, %v454, 0.0
      %515 = vadd.xlane.f32.xlu0 %v514
      %v516 = vpop.xlane.xlu0 %515
      %v517 = vsel %vm286, %v455, 0.0
      %518 = vadd.xlane.f32.xlu0 %v517
      %v519 = vpop.xlane.xlu0 %518
      %v520 = vsel %vm293, %v456, 0.0
      %521 = vadd.xlane.f32.xlu0 %v520
      %v522 = vpop.xlane.xlu0 %521
      %v523 = vsel %vm286, %v457, 0.0
      %524 = vadd.xlane.f32.xlu0 %v523
      %v525 = vpop.xlane.xlu0 %524
      %v526 = vsel %vm286, %v458, 0.0
      %527 = vadd.xlane.f32.xlu0 %v526
      %v528 = vpop.xlane.xlu0 %527
      %v529 = vsel %vm293, %v459, 0.0
      %530 = vadd.xlane.f32.xlu0 %v529
      %v531 = vpop.xlane.xlu0 %530
      %v532 = vsel %vm286, %v460, 0.0
      %533 = vadd.xlane.f32.xlu0 %v532
      %v534 = vpop.xlane.xlu0 %533
      %v535 = vsel %vm286, %v461, 0.0
      %536 = vadd.xlane.f32.xlu0 %v535
      %v537 = vpop.xlane.xlu0 %536
      %v538 = vsel %vm293, %v462, 0.0
      %539 = vadd.xlane.f32.xlu0 %v538
      %v540 = vpop.xlane.xlu0 %539
      %v541 = vsel %vm286, %v463, 0.0
      %542 = vadd.xlane.f32.xlu0 %v541
      %v543 = vpop.xlane.xlu0 %542
      %v544 = vsel %vm286, %v464, 0.0
      %545 = vadd.xlane.f32.xlu0 %v544
      %v546 = vpop.xlane.xlu0 %545
      %v547 = vsel %vm293, %v465, 0.0
      %548 = vadd.xlane.f32.xlu0 %v547
      %v549 = vpop.xlane.xlu0 %548
      %v550 = vsel %vm286, %v466, 0.0
      %551 = vadd.xlane.f32.xlu0 %v550
      %v552 = vpop.xlane.xlu0 %551
      %v553 = vsel %vm286, %v467, 0.0
      %554 = vadd.xlane.f32.xlu0 %v553
      %v555 = vpop.xlane.xlu0 %554
      %v556 = vsel %vm293, %v468, 0.0
      %557 = vadd.xlane.f32.xlu0 %v556
      %v558 = vpop.xlane.xlu0 %557
      %v559 = vmul.f32 %v471, %v378
      %v560 = vmul.f32 %v474, %v378
      %v561 = vmul.f32 %v477, %v378
      %v562 = vmul.f32 %v480, %v378
      %v563 = vmul.f32 %v483, %v378
      %v564 = vmul.f32 %v486, %v378
      %v565 = vmul.f32 %v489, %v378
      %v566 = vmul.f32 %v492, %v378
      %v567 = vmul.f32 %v495, %v378
      %v568 = vmul.f32 %v498, %v378
      %v569 = vmul.f32 %v501, %v378
      %v570 = vmul.f32 %v504, %v378
      %v571 = vmul.f32 %v507, %v378
      %v572 = vmul.f32 %v510, %v378
      %v573 = vmul.f32 %v513, %v378
      %v574 = vmul.f32 %v516, %v378
      %v575 = vmul.f32 %v519, %v378
      %v576 = vmul.f32 %v522, %v378
      %v577 = vmul.f32 %v525, %v378
      %v578 = vmul.f32 %v528, %v378
      %v579 = vmul.f32 %v531, %v378
      %v580 = vmul.f32 %v534, %v378
      %v581 = vmul.f32 %v537, %v378
      %v582 = vmul.f32 %v540, %v378
      %v583 = vmul.f32 %v543, %v378
      %v584 = vmul.f32 %v546, %v378
      %v585 = vmul.f32 %v549, %v378
      %v586 = vmul.f32 %v552, %v378
      %v587 = vmul.f32 %v555, %v378
      %v588 = vmul.f32 %v558, %v378
      %v589 = vadd.f32 %v559, 1e-05
      %v590 = vadd.f32 %v560, 1e-05
      %v591 = vadd.f32 %v561, 1e-05
      %v592 = vadd.f32 %v562, 1e-05
      %v593 = vadd.f32 %v563, 1e-05
      %v594 = vadd.f32 %v564, 1e-05
      %v595 = vadd.f32 %v565, 1e-05
      %v596 = vadd.f32 %v566, 1e-05
      %v597 = vadd.f32 %v567, 1e-05
      %v598 = vadd.f32 %v568, 1e-05
      %v599 = vadd.f32 %v569, 1e-05
      %v600 = vadd.f32 %v570, 1e-05
      %v601 = vadd.f32 %v571, 1e-05
      %v602 = vadd.f32 %v572, 1e-05
      %v603 = vadd.f32 %v573, 1e-05
      %v604 = vadd.f32 %v574, 1e-05
      %v605 = vadd.f32 %v575, 1e-05
      %v606 = vadd.f32 %v576, 1e-05
      %v607 = vadd.f32 %v577, 1e-05
      %v608 = vadd.f32 %v578, 1e-05
      %v609 = vadd.f32 %v579, 1e-05
      %v610 = vadd.f32 %v580, 1e-05
      %v611 = vadd.f32 %v581, 1e-05
      %v612 = vadd.f32 %v582, 1e-05
      %v613 = vadd.f32 %v583, 1e-05
      %v614 = vadd.f32 %v584, 1e-05
      %v615 = vadd.f32 %v585, 1e-05
      %v616 = vadd.f32 %v586, 1e-05
      %v617 = vadd.f32 %v587, 1e-05
      %v618 = vadd.f32 %v588, 1e-05
      %v619 = vrsqrt.pop %v589
      %v620 = vrsqrt.pop %v590
      %v621 = vrsqrt.pop %v591
      %v622 = vrsqrt.pop %v592
      %v623 = vrsqrt.pop %v593
      %v624 = vrsqrt.pop %v594
      %v625 = vrsqrt.pop %v595
      %v626 = vrsqrt.pop %v596
      %v627 = vrsqrt.pop %v597
      %v628 = vrsqrt.pop %v598
      %v629 = vrsqrt.pop %v599
      %v630 = vrsqrt.pop %v600
      %v631 = vrsqrt.pop %v601
      %v632 = vrsqrt.pop %v602
      %v633 = vrsqrt.pop %v603
      %v634 = vrsqrt.pop %v604
      %v635 = vrsqrt.pop %v605
      %v636 = vrsqrt.pop %v606
      %v637 = vrsqrt.pop %v607
      %v638 = vrsqrt.pop %v608
      %v639 = vrsqrt.pop %v609
      %v640 = vrsqrt.pop %v610
      %v641 = vrsqrt.pop %v611
      %v642 = vrsqrt.pop %v612
      %v643 = vrsqrt.pop %v613
      %v644 = vrsqrt.pop %v614
      %v645 = vrsqrt.pop %v615
      %v646 = vrsqrt.pop %v616
      %v647 = vrsqrt.pop %v617
      %v648 = vrsqrt.pop %v618
      %v649 = vmul.f32 %v409, %v619
      %v650 = vmul.f32 %v410, %v620
      %v651 = vmul.f32 %v411, %v621
      %v652 = vmul.f32 %v412, %v622
      %v653 = vmul.f32 %v413, %v623
      %v654 = vmul.f32 %v414, %v624
      %v655 = vmul.f32 %v415, %v625
      %v656 = vmul.f32 %v416, %v626
      %v657 = vmul.f32 %v417, %v627
      %v658 = vmul.f32 %v418, %v628
      %v659 = vmul.f32 %v419, %v629
      %v660 = vmul.f32 %v420, %v630
      %v661 = vmul.f32 %v421, %v631
      %v662 = vmul.f32 %v422, %v632
      %v663 = vmul.f32 %v423, %v633
      %v664 = vmul.f32 %v424, %v634
      %v665 = vmul.f32 %v425, %v635
      %v666 = vmul.f32 %v426, %v636
      %v667 = vmul.f32 %v427, %v637
      %v668 = vmul.f32 %v428, %v638
      %v669 = vmul.f32 %v429, %v639
      %v670 = vmul.f32 %v430, %v640
      %v671 = vmul.f32 %v431, %v641
      %v672 = vmul.f32 %v432, %v642
      %v673 = vmul.f32 %v433, %v643
      %v674 = vmul.f32 %v434, %v644
      %v675 = vmul.f32 %v435, %v645
      %v676 = vmul.f32 %v436, %v646
      %v677 = vmul.f32 %v437, %v647
      %v678 = vmul.f32 %v438, %v648
      %v679 = vld [vmem:[%s3] sm:$0x1]
      %v681 = vlaneseq
      %v682 = vshrl.u32 %v681, 7
      %v683 = vsub.s32 0, %v682
      %v684 = vrot.slane %v679, %v683
      %v686 = vmul.f32 %v649, %v684
      %v687 = vmul.f32 %v650, %v684
      %v688 = vmul.f32 %v651, %v684
      %v689 = vmul.f32 %v652, %v684
      %v690 = vmul.f32 %v653, %v684
      %v691 = vmul.f32 %v654, %v684
      %v692 = vmul.f32 %v655, %v684
      %v693 = vmul.f32 %v656, %v684
      %v694 = vmul.f32 %v657, %v684
      %v695 = vmul.f32 %v658, %v684
      %v696 = vmul.f32 %v659, %v684
      %v697 = vmul.f32 %v660, %v684
      %v698 = vmul.f32 %v661, %v684
      %v699 = vmul.f32 %v662, %v684
      %v700 = vmul.f32 %v663, %v684
      %v701 = vmul.f32 %v664, %v684
      %v702 = vmul.f32 %v665, %v684
      %v703 = vmul.f32 %v666, %v684
      %v704 = vmul.f32 %v667, %v684
      %v705 = vmul.f32 %v668, %v684
      %v706 = vmul.f32 %v669, %v684
      %v707 = vmul.f32 %v670, %v684
      %v708 = vmul.f32 %v671, %v684
      %v709 = vmul.f32 %v672, %v684
      %v710 = vmul.f32 %v673, %v684
      %v711 = vmul.f32 %v674, %v684
      %v712 = vmul.f32 %v675, %v684
      %v713 = vmul.f32 %v676, %v684
      %v714 = vmul.f32 %v677, %v684
      %v715 = vmul.f32 %v678, %v684
      %v716 = vld [vmem:[%s4] sm:$0x1]
      %v718 = vlaneseq
      %v719 = vshrl.u32 %v718, 7
      %v720 = vsub.s32 0, %v719
      %v721 = vrot.slane %v716, %v720
      %v723 = vadd.f32 %v686, %v721
      %v724 = vadd.f32 %v687, %v721
      %v725 = vadd.f32 %v688, %v721
      %v726 = vadd.f32 %v689, %v721
      %v727 = vadd.f32 %v690, %v721
      %v728 = vadd.f32 %v691, %v721
      %v729 = vadd.f32 %v692, %v721
      %v730 = vadd.f32 %v693, %v721
      %v731 = vadd.f32 %v694, %v721
      %v732 = vadd.f32 %v695, %v721
      %v733 = vadd.f32 %v696, %v721
      %v734 = vadd.f32 %v697, %v721
      %v735 = vadd.f32 %v698, %v721
      %v736 = vadd.f32 %v699, %v721
      %v737 = vadd.f32 %v700, %v721
      %v738 = vadd.f32 %v701, %v721
      %v739 = vadd.f32 %v702, %v721
      %v740 = vadd.f32 %v703, %v721
      %v741 = vadd.f32 %v704, %v721
      %v742 = vadd.f32 %v705, %v721
      %v743 = vadd.f32 %v706, %v721
      %v744 = vadd.f32 %v707, %v721
      %v745 = vadd.f32 %v708, %v721
      %v746 = vadd.f32 %v709, %v721
      %v747 = vadd.f32 %v710, %v721
      %v748 = vadd.f32 %v711, %v721
      %v749 = vadd.f32 %v712, %v721
      %v750 = vadd.f32 %v713, %v721
      %v751 = vadd.f32 %v714, %v721
      %v752 = vadd.f32 %v715, %v721
      %v753 = vlaneseq
      %v754 = vshrl.u32 %v753, 7
      %v755 = vadd.s32 %v754, 8
      %v756 = vadd.s32 %v754, 16
      %vm757 = vcmp.ge.s32.totalorder %v754, 1
      %vm758 = vcmp.ge.s32.totalorder %v755, 1
      %vm759 = vcmp.ge.s32.totalorder %v756, 1
      %vm760 = vmand 0, %vm757
      %vm761 = vmand 0, %vm758
      %vm762 = vmand 0, %vm759
      %vm763 = vmand 1, %vm757
      %vm764 = vmand 1, %vm758
      %vm765 = vmand 1, %vm759
      %vm766 = vcmp.le.s32.totalorder %v754, 16
      %vm767 = vcmp.le.s32.totalorder %v755, 16
      %vm768 = vcmp.le.s32.totalorder %v756, 16
      %vm769 = vmand %vm760, %vm766
      %vm770 = vmand %vm761, %vm767
      %vm771 = vmand %vm762, %vm768
      %vm772 = vmand %vm763, %vm766
      %vm773 = vmand %vm764, %vm767
      %vm774 = vmand %vm765, %vm768
      %v775 = vsel %vm769, %v723, 0.0
      %v776 = vsel %vm770, %v724, 0.0
      %v777 = vsel %vm771, %v725, 0.0
      %v778 = vsel %vm772, %v726, 0.0
      %v779 = vsel %vm773, %v727, 0.0
      %v780 = vsel %vm774, %v728, 0.0
      %v781 = vsel %vm772, %v729, 0.0
      %v782 = vsel %vm773, %v730, 0.0
      %v783 = vsel %vm774, %v731, 0.0
      %v784 = vsel %vm772, %v732, 0.0
      %v785 = vsel %vm773, %v733, 0.0
      %v786 = vsel %vm774, %v734, 0.0
      %v787 = vsel %vm772, %v735, 0.0
      %v788 = vsel %vm773, %v736, 0.0
      %v789 = vsel %vm774, %v737, 0.0
      %v790 = vsel %vm772, %v738, 0.0
      %v791 = vsel %vm773, %v739, 0.0
      %v792 = vsel %vm774, %v740, 0.0
      %v793 = vsel %vm772, %v741, 0.0
      %v794 = vsel %vm773, %v742, 0.0
      %v795 = vsel %vm774, %v743, 0.0
      %v796 = vsel %vm772, %v744, 0.0
      %v797 = vsel %vm773, %v745, 0.0
      %v798 = vsel %vm774, %v746, 0.0
      %v799 = vsel %vm772, %v747, 0.0
      %v800 = vsel %vm773, %v748, 0.0
      %v801 = vsel %vm774, %v749, 0.0
      %v802 = vsel %vm769, %v750, 0.0
      %v803 = vsel %vm770, %v751, 0.0
      %v804 = vsel %vm771, %v752, 0.0
      %v805 = vpack.c.bf16 %v776, %v775
      %v806 = vpack.c.bf16 %v779, %v778
      %v807 = vpack.c.bf16 %v782, %v781
      %v808 = vpack.c.bf16 %v785, %v784
      %v809 = vpack.c.bf16 %v788, %v787
      %v810 = vpack.c.bf16 %v791, %v790
      %v811 = vpack.c.bf16 %v794, %v793
      %v812 = vpack.c.bf16 %v797, %v796
      %v813 = vld [vmem:[%s1] sm:$0xf]
      %vm838 = vcmask 1046528
      %v839 = vrot.slane %v775, 1
      %v840 = vrot.slane %v776, 1
      %v841 = vsel %vm838, %v839, %v840
      %v842 = vrot.slane %v777, 1
      %v843 = vsel %vm838, %v840, %v842
      %v844 = vrot.slane %v778, 1
      %v845 = vrot.slane %v779, 1
      %v846 = vsel %vm838, %v844, %v845
      %v847 = vrot.slane %v780, 1
      %v848 = vsel %vm838, %v845, %v847
      %v849 = vrot.slane %v781, 1
      %v850 = vrot.slane %v782, 1
      %v851 = vsel %vm838, %v849, %v850
      %v852 = vrot.slane %v783, 1
      %v853 = vsel %vm838, %v850, %v852
      %v854 = vrot.slane %v784, 1
      %v855 = vrot.slane %v785, 1
      %v856 = vsel %vm838, %v854, %v855
      %v857 = vrot.slane %v786, 1
      %v858 = vsel %vm838, %v855, %v857
      %v859 = vrot.slane %v787, 1
      %v860 = vrot.slane %v788, 1
      %v861 = vsel %vm838, %v859, %v860
      %v862 = vrot.slane %v789, 1
      %v863 = vsel %vm838, %v860, %v862
      %v864 = vrot.slane %v790, 1
      %v865 = vrot.slane %v791, 1
      %v866 = vsel %vm838, %v864, %v865
      %v867 = vrot.slane %v792, 1
      %v868 = vsel %vm838, %v865, %v867
      %v869 = vrot.slane %v793, 1
      %v870 = vrot.slane %v794, 1
      %v871 = vsel %vm838, %v869, %v870
      %v872 = vrot.slane %v795, 1
      %v873 = vsel %vm838, %v870, %v872
      %v874 = vrot.slane %v796, 1
      %v875 = vrot.slane %v797, 1
      %v876 = vsel %vm838, %v874, %v875
      %v877 = vrot.slane %v798, 1
      %v878 = vsel %vm838, %v875, %v877
      %v895 = vpack.c.bf16 %v843, %v841
      %v896 = vpack.c.bf16 %v848, %v846
      %v897 = vpack.c.bf16 %v853, %v851
      %v898 = vpack.c.bf16 %v858, %v856
      %v899 = vpack.c.bf16 %v863, %v861
      %v900 = vpack.c.bf16 %v868, %v866
      %v901 = vpack.c.bf16 %v873, %v871
      %v902 = vpack.c.bf16 %v878, %v876
      %s903 = scalar_lea.vmem %s1, 4
      %v904 = vld [vmem:[%s903] sm:$0xf]
      %v906 = vsel %vm286, %v895, 0
      %v909 = vsel %vm286, %v896, 0
      %v912 = vsel %vm286, %v897, 0
      %v915 = vsel %vm286, %v898, 0
      %v918 = vsel %vm286, %v899, 0
      %v921 = vsel %vm286, %v900, 0
      %v924 = vsel %vm286, %v901, 0
      %v927 = vsel %vm286, %v902, 0
      %vm929 = vcmask 1043456
      %v931 = vsel %vm929, %v904, 0
      %933 = vmatprep.subr.bf16.mxu0 0
      %934 = vmatpush1.bf16.msra.mxu0 %v931
      %935 = vmatprep.subr.bf16.mxu0 0
      %936 = vmatpush1.bf16.msra.mxu0 0
      %937 = vmatprep.subr.bf16.mxu0 0
      %938 = vmatpush1.bf16.msra.mxu0 0
      %939 = vmatprep.subr.bf16.mxu0 0
      %940 = vmatpush1.bf16.msra.mxu0 0
      %941 = vmatprep.subr.bf16.mxu0 0
      %942 = vmatpush1.bf16.msra.mxu0 0
      %943 = vmatprep.subr.bf16.mxu0 0
      %944 = vmatpush1.bf16.msra.mxu0 0
      %945 = vmatprep.subr.bf16.mxu0 0
      %946 = vmatpush1.bf16.msra.mxu0 0
      %947 = vmatprep.subr.bf16.mxu0 0
      %948 = vmatpush1.bf16.msra.mxu0 0
      %949 = vmatprep.subr.bf16.mxu0 0
      %950 = vmatpush1.bf16.msra.mxu0 0
      %951 = vmatprep.subr.bf16.mxu0 0
      %952 = vmatpush1.bf16.msra.mxu0 0
      %953 = vmatprep.subr.bf16.mxu0 0
      %954 = vmatpush1.bf16.msra.mxu0 0
      %955 = vmatprep.subr.bf16.mxu0 0
      %956 = vmatpush1.bf16.msra.mxu0 0
      %957 = vmatprep.subr.bf16.mxu0 0
      %958 = vmatpush1.bf16.msra.mxu0 0
      %959 = vmatprep.subr.bf16.mxu0 0
      %960 = vmatpush1.bf16.msra.mxu0 0
      %961 = vmatprep.subr.bf16.mxu0 0
      %962 = vmatpush1.bf16.msra.mxu0 0
      %963 = vmatprep.subr.bf16.mxu0 0
      %964 = vmatpush1.bf16.msra.mxu0 0
      %965 = vmatprep.mubr.bf16.mxu0 0
      %966 = vmatmul.mubr.bf16.gmra.mrb[0].mxu0 %v906
      %v967 = vpop.f32.mrb[0].mxu0
      %v968 = vadd.f32 0.0, %v967
      %v969 = vpop.f32.mrb[0].mxu0
      %v970 = vpop.f32.mrb[0].mxu0
      %v971 = vadd.f32 0.0, %v970
      %v972 = vpop.f32.mrb[0].mxu0
      %973 = vmatprep.mubr.bf16.mxu0 0
      %974 = vmatmul.mubr.bf16.gmra.mrb[0].mxu0 %v909
      %v975 = vpop.f32.mrb[0].mxu0
      %v976 = vadd.f32 0.0, %v975
      %v977 = vpop.f32.mrb[0].mxu0
      %v978 = vpop.f32.mrb[0].mxu0
      %v979 = vadd.f32 0.0, %v978
      %v980 = vpop.f32.mrb[0].mxu0
      %981 = vmatprep.mubr.bf16.mxu0 0
      %982 = vmatmul.mubr.bf16.gmra.mrb[0].mxu0 %v912
      %v983 = vpop.f32.mrb[0].mxu0
      %v984 = vadd.f32 0.0, %v983
      %v985 = vpop.f32.mrb[0].mxu0
      %v986 = vpop.f32.mrb[0].mxu0
      %v987 = vadd.f32 0.0, %v986
      %v988 = vpop.f32.mrb[0].mxu0
      %989 = vmatprep.mubr.bf16.mxu0 0
      %990 = vmatmul.mubr.bf16.gmra.mrb[0].mxu0 %v915
      %v991 = vpop.f32.mrb[0].mxu0
      %v992 = vadd.f32 0.0, %v991
      %v993 = vpop.f32.mrb[0].mxu0
      %v994 = vpop.f32.mrb[0].mxu0
      %v995 = vadd.f32 0.0, %v994
      %v996 = vpop.f32.mrb[0].mxu0
      %997 = vmatprep.mubr.bf16.mxu0 0
      %998 = vmatmul.mubr.bf16.gmra.mrb[0].mxu0 %v918
      %v999 = vpop.f32.mrb[0].mxu0
      %v1000 = vadd.f32 0.0, %v999
      %v1001 = vpop.f32.mrb[0].mxu0
      %v1002 = vpop.f32.mrb[0].mxu0
      %v1003 = vadd.f32 0.0, %v1002
      %v1004 = vpop.f32.mrb[0].mxu0
      %1005 = vmatprep.mubr.bf16.mxu0 0
      %1006 = vmatmul.mubr.bf16.gmra.mrb[0].mxu0 %v921
      %v1007 = vpop.f32.mrb[0].mxu0
      %v1008 = vadd.f32 0.0, %v1007
      %v1009 = vpop.f32.mrb[0].mxu0
      %v1010 = vpop.f32.mrb[0].mxu0
      %v1011 = vadd.f32 0.0, %v1010
      %v1012 = vpop.f32.mrb[0].mxu0
      %1013 = vmatprep.mubr.bf16.mxu0 0
      %1014 = vmatmul.mubr.bf16.gmra.mrb[0].mxu0 %v924
      %v1015 = vpop.f32.mrb[0].mxu0
      %v1016 = vadd.f32 0.0, %v1015
      %v1017 = vpop.f32.mrb[0].mxu0
      %v1018 = vpop.f32.mrb[0].mxu0
      %v1019 = vadd.f32 0.0, %v1018
      %v1020 = vpop.f32.mrb[0].mxu0
      %1021 = vmatprep.mubr.bf16.mxu0 0
      %1022 = vmatmul.mubr.bf16.gmra.mrb[0].mxu0 %v927
      %v1023 = vpop.f32.mrb[0].mxu0
      %v1024 = vadd.f32 0.0, %v1023
      %v1025 = vpop.f32.mrb[0].mxu0
      %v1026 = vpop.f32.mrb[0].mxu0
      %v1027 = vadd.f32 0.0, %v1026
      %v1028 = vpop.f32.mrb[0].mxu0
      %1029 = vdwg.mxu0
      %v1031 = vsel %vm286, %v805, 0
      %v1034 = vsel %vm286, %v806, 0
      %v1037 = vsel %vm286, %v807, 0
      %v1040 = vsel %vm286, %v808, 0
      %v1043 = vsel %vm286, %v809, 0
      %v1046 = vsel %vm286, %v810, 0
      %v1049 = vsel %vm286, %v811, 0
      %v1052 = vsel %vm286, %v812, 0
      %v1055 = vsel %vm929, %v813, 0
      %1057 = vmatprep.subr.bf16.mxu0 0
      %1058 = vmatpush1.bf16.msra.mxu0 %v1055
      %1059 = vmatprep.subr.bf16.mxu0 0
      %1060 = vmatpush1.bf16.msra.mxu0 0
      %1061 = vmatprep.subr.bf16.mxu0 0
      %1062 = vmatpush1.bf16.msra.mxu0 0
      %1063 = vmatprep.subr.bf16.mxu0 0
      %1064 = vmatpush1.bf16.msra.mxu0 0
      %1065 = vmatprep.subr.bf16.mxu0 0
      %1066 = vmatpush1.bf16.msra.mxu0 0
      %1067 = vmatprep.subr.bf16.mxu0 0
      %1068 = vmatpush1.bf16.msra.mxu0 0
      %1069 = vmatprep.subr.bf16.mxu0 0
      %1070 = vmatpush1.bf16.msra.mxu0 0
      %1071 = vmatprep.subr.bf16.mxu0 0
      %1072 = vmatpush1.bf16.msra.mxu0 0
      %1073 = vmatprep.subr.bf16.mxu0 0
      %1074 = vmatpush1.bf16.msra.mxu0 0
      %1075 = vmatprep.subr.bf16.mxu0 0
      %1076 = vmatpush1.bf16.msra.mxu0 0
      %1077 = vmatprep.subr.bf16.mxu0 0
      %1078 = vmatpush1.bf16.msra.mxu0 0
      %1079 = vmatprep.subr.bf16.mxu0 0
      %1080 = vmatpush1.bf16.msra.mxu0 0
      %1081 = vmatprep.subr.bf16.mxu0 0
      %1082 = vmatpush1.bf16.msra.mxu0 0
      %1083 = vmatprep.subr.bf16.mxu0 0
      %1084 = vmatpush1.bf16.msra.mxu0 0
      %1085 = vmatprep.subr.bf16.mxu0 0
      %1086 = vmatpush1.bf16.msra.mxu0 0
      %1087 = vmatprep.subr.bf16.mxu0 0
      %1088 = vmatpush1.bf16.msra.mxu0 0
      %1089 = vmatprep.mubr.bf16.mxu0 0
      %1090 = vmatmul.mubr.bf16.gmra.mrb[0].mxu0 %v1031
      %v1091 = vpop.f32.mrb[0].mxu0
      %v1092 = vadd.f32 %v968, %v1091
      %v1093 = vpop.f32.mrb[0].mxu0
      %v1094 = vpop.f32.mrb[0].mxu0
      %v1095 = vadd.f32 %v971, %v1094
      %v1096 = vpop.f32.mrb[0].mxu0
      %1097 = vmatprep.mubr.bf16.mxu0 0
      %1098 = vmatmul.mubr.bf16.gmra.mrb[0].mxu0 %v1034
      %v1099 = vpop.f32.mrb[0].mxu0
      %v1100 = vadd.f32 %v976, %v1099
      %v1101 = vpop.f32.mrb[0].mxu0
      %v1102 = vpop.f32.mrb[0].mxu0
      %v1103 = vadd.f32 %v979, %v1102
      %v1104 = vpop.f32.mrb[0].mxu0
      %1105 = vmatprep.mubr.bf16.mxu0 0
      %1106 = vmatmul.mubr.bf16.gmra.mrb[0].mxu0 %v1037
      %v1107 = vpop.f32.mrb[0].mxu0
      %v1108 = vadd.f32 %v984, %v1107
      %v1109 = vpop.f32.mrb[0].mxu0
      %v1110 = vpop.f32.mrb[0].mxu0
      %v1111 = vadd.f32 %v987, %v1110
      %v1112 = vpop.f32.mrb[0].mxu0
      %1113 = vmatprep.mubr.bf16.mxu0 0
      %1114 = vmatmul.mubr.bf16.gmra.mrb[0].mxu0 %v1040
      %v1115 = vpop.f32.mrb[0].mxu0
      %v1116 = vadd.f32 %v992, %v1115
      %v1117 = vpop.f32.mrb[0].mxu0
      %v1118 = vpop.f32.mrb[0].mxu0
      %v1119 = vadd.f32 %v995, %v1118
      %v1120 = vpop.f32.mrb[0].mxu0
      %1121 = vmatprep.mubr.bf16.mxu0 0
      %1122 = vmatmul.mubr.bf16.gmra.mrb[0].mxu0 %v1043
      %v1123 = vpop.f32.mrb[0].mxu0
      %v1124 = vadd.f32 %v1000, %v1123
      %v1125 = vpop.f32.mrb[0].mxu0
      %v1126 = vpop.f32.mrb[0].mxu0
      %v1127 = vadd.f32 %v1003, %v1126
      %v1128 = vpop.f32.mrb[0].mxu0
      %1129 = vmatprep.mubr.bf16.mxu0 0
      %1130 = vmatmul.mubr.bf16.gmra.mrb[0].mxu0 %v1046
      %v1131 = vpop.f32.mrb[0].mxu0
      %v1132 = vadd.f32 %v1008, %v1131
      %v1133 = vpop.f32.mrb[0].mxu0
      %v1134 = vpop.f32.mrb[0].mxu0
      %v1135 = vadd.f32 %v1011, %v1134
      %v1136 = vpop.f32.mrb[0].mxu0
      %1137 = vmatprep.mubr.bf16.mxu0 0
      %1138 = vmatmul.mubr.bf16.gmra.mrb[0].mxu0 %v1049
      %v1139 = vpop.f32.mrb[0].mxu0
      %v1140 = vadd.f32 %v1016, %v1139
      %v1141 = vpop.f32.mrb[0].mxu0
      %v1142 = vpop.f32.mrb[0].mxu0
      %v1143 = vadd.f32 %v1019, %v1142
      %v1144 = vpop.f32.mrb[0].mxu0
      %1145 = vmatprep.mubr.bf16.mxu0 0
      %1146 = vmatmul.mubr.bf16.gmra.mrb[0].mxu0 %v1052
      %v1147 = vpop.f32.mrb[0].mxu0
      %v1148 = vadd.f32 %v1024, %v1147
      %v1149 = vpop.f32.mrb[0].mxu0
      %v1150 = vpop.f32.mrb[0].mxu0
      %v1151 = vadd.f32 %v1027, %v1150
      %v1152 = vpop.f32.mrb[0].mxu0
      %1153 = vdwg.mxu0
      %vm1154 = vcmask 1045504
      %v1155 = vrot.slane %v775, 2
      %v1156 = vrot.slane %v776, 2
      %v1157 = vsel %vm1154, %v1155, %v1156
      %v1158 = vrot.slane %v777, 2
      %v1159 = vsel %vm1154, %v1156, %v1158
      %v1160 = vrot.slane %v778, 2
      %v1161 = vrot.slane %v779, 2
      %v1162 = vsel %vm1154, %v1160, %v1161
      %v1163 = vrot.slane %v780, 2
      %v1164 = vsel %vm1154, %v1161, %v1163
      %v1165 = vrot.slane %v781, 2
      %v1166 = vrot.slane %v782, 2
      %v1167 = vsel %vm1154, %v1165, %v1166
      %v1168 = vrot.slane %v783, 2
      %v1169 = vsel %vm1154, %v1166, %v1168
      %v1170 = vrot.slane %v784, 2
      %v1171 = vrot.slane %v785, 2
      %v1172 = vsel %vm1154, %v1170, %v1171
      %v1173 = vrot.slane %v786, 2
      %v1174 = vsel %vm1154, %v1171, %v1173
      %v1175 = vrot.slane %v787, 2
      %v1176 = vrot.slane %v788, 2
      %v1177 = vsel %vm1154, %v1175, %v1176
      %v1178 = vrot.slane %v789, 2
      %v1179 = vsel %vm1154, %v1176, %v1178
      %v1180 = vrot.slane %v790, 2
      %v1181 = vrot.slane %v791, 2
      %v1182 = vsel %vm1154, %v1180, %v1181
      %v1183 = vrot.slane %v792, 2
      %v1184 = vsel %vm1154, %v1181, %v1183
      %v1185 = vrot.slane %v793, 2
      %v1186 = vrot.slane %v794, 2
      %v1187 = vsel %vm1154, %v1185, %v1186
      %v1188 = vrot.slane %v795, 2
      %v1189 = vsel %vm1154, %v1186, %v1188
      %v1190 = vrot.slane %v796, 2
      %v1191 = vrot.slane %v797, 2
      %v1192 = vsel %vm1154, %v1190, %v1191
      %v1193 = vrot.slane %v798, 2
      %v1194 = vsel %vm1154, %v1191, %v1193
      %v1211 = vpack.c.bf16 %v1159, %v1157
      %v1212 = vpack.c.bf16 %v1164, %v1162
      %v1213 = vpack.c.bf16 %v1169, %v1167
      %v1214 = vpack.c.bf16 %v1174, %v1172
      %v1215 = vpack.c.bf16 %v1179, %v1177
      %v1216 = vpack.c.bf16 %v1184, %v1182
      %v1217 = vpack.c.bf16 %v1189, %v1187
      %v1218 = vpack.c.bf16 %v1194, %v1192
      %s1219 = scalar_lea.vmem %s1, 8
      %v1220 = vld [vmem:[%s1219] sm:$0xf]
      %v1222 = vsel %vm286, %v1211, 0
      %v1225 = vsel %vm286, %v1212, 0
      %v1228 = vsel %vm286, %v1213, 0
      %v1231 = vsel %vm286, %v1214, 0
      %v1234 = vsel %vm286, %v1215, 0
      %v1237 = vsel %vm286, %v1216, 0
      %v1240 = vsel %vm286, %v1217, 0
      %v1243 = vsel %vm286, %v1218, 0
      %v1246 = vsel %vm929, %v1220, 0
      %1248 = vmatprep.subr.bf16.mxu0 0
      %1249 = vmatpush1.bf16.msra.mxu0 %v1246
      %1250 = vmatprep.subr.bf16.mxu0 0
      %1251 = vmatpush1.bf16.msra.mxu0 0
      %1252 = vmatprep.subr.bf16.mxu0 0
      %1253 = vmatpush1.bf16.msra.mxu0 0
      %1254 = vmatprep.subr.bf16.mxu0 0
      %1255 = vmatpush1.bf16.msra.mxu0 0
      %1256 = vmatprep.subr.bf16.mxu0 0
      %1257 = vmatpush1.bf16.msra.mxu0 0
      %1258 = vmatprep.subr.bf16.mxu0 0
      %1259 = vmatpush1.bf16.msra.mxu0 0
      %1260 = vmatprep.subr.bf16.mxu0 0
      %1261 = vmatpush1.bf16.msra.mxu0 0
      %1262 = vmatprep.subr.bf16.mxu0 0
      %1263 = vmatpush1.bf16.msra.mxu0 0
      %1264 = vmatprep.subr.bf16.mxu0 0
      %1265 = vmatpush1.bf16.msra.mxu0 0
      %1266 = vmatprep.subr.bf16.mxu0 0
      %1267 = vmatpush1.bf16.msra.mxu0 0
      %1268 = vmatprep.subr.bf16.mxu0 0
      %1269 = vmatpush1.bf16.msra.mxu0 0
      %1270 = vmatprep.subr.bf16.mxu0 0
      %1271 = vmatpush1.bf16.msra.mxu0 0
      %1272 = vmatprep.subr.bf16.mxu0 0
      %1273 = vmatpush1.bf16.msra.mxu0 0
      %1274 = vmatprep.subr.bf16.mxu0 0
      %1275 = vmatpush1.bf16.msra.mxu0 0
      %1276 = vmatprep.subr.bf16.mxu0 0
      %1277 = vmatpush1.bf16.msra.mxu0 0
      %1278 = vmatprep.subr.bf16.mxu0 0
      %1279 = vmatpush1.bf16.msra.mxu0 0
      %1280 = vmatprep.mubr.bf16.mxu0 0
      %1281 = vmatmul.mubr.bf16.gmra.mrb[0].mxu0 %v1222
      %v1282 = vpop.f32.mrb[0].mxu0
      %v1283 = vadd.f32 0.0, %v1282
      %v1284 = vpop.f32.mrb[0].mxu0
      %v1285 = vpop.f32.mrb[0].mxu0
      %v1286 = vadd.f32 0.0, %v1285
      %v1287 = vpop.f32.mrb[0].mxu0
      %1288 = vmatprep.mubr.bf16.mxu0 0
      %1289 = vmatmul.mubr.bf16.gmra.mrb[0].mxu0 %v1225
      %v1290 = vpop.f32.mrb[0].mxu0
      %v1291 = vadd.f32 0.0, %v1290
      %v1292 = vpop.f32.mrb[0].mxu0
      %v1293 = vpop.f32.mrb[0].mxu0
      %v1294 = vadd.f32 0.0, %v1293
      %v1295 = vpop.f32.mrb[0].mxu0
      %1296 = vmatprep.mubr.bf16.mxu0 0
      %1297 = vmatmul.mubr.bf16.gmra.mrb[0].mxu0 %v1228
      %v1298 = vpop.f32.mrb[0].mxu0
      %v1299 = vadd.f32 0.0, %v1298
      %v1300 = vpop.f32.mrb[0].mxu0
      %v1301 = vpop.f32.mrb[0].mxu0
      %v1302 = vadd.f32 0.0, %v1301
      %v1303 = vpop.f32.mrb[0].mxu0
      %1304 = vmatprep.mubr.bf16.mxu0 0
      %1305 = vmatmul.mubr.bf16.gmra.mrb[0].mxu0 %v1231
      %v1306 = vpop.f32.mrb[0].mxu0
      %v1307 = vadd.f32 0.0, %v1306
      %v1308 = vpop.f32.mrb[0].mxu0
      %v1309 = vpop.f32.mrb[0].mxu0
      %v1310 = vadd.f32 0.0, %v1309
      %v1311 = vpop.f32.mrb[0].mxu0
      %1312 = vmatprep.mubr.bf16.mxu0 0
      %1313 = vmatmul.mubr.bf16.gmra.mrb[0].mxu0 %v1234
      %v1314 = vpop.f32.mrb[0].mxu0
      %v1315 = vadd.f32 0.0, %v1314
      %v1316 = vpop.f32.mrb[0].mxu0
      %v1317 = vpop.f32.mrb[0].mxu0
      %v1318 = vadd.f32 0.0, %v1317
      %v1319 = vpop.f32.mrb[0].mxu0
      %1320 = vmatprep.mubr.bf16.mxu0 0
      %1321 = vmatmul.mubr.bf16.gmra.mrb[0].mxu0 %v1237
      %v1322 = vpop.f32.mrb[0].mxu0
      %v1323 = vadd.f32 0.0, %v1322
      %v1324 = vpop.f32.mrb[0].mxu0
      %v1325 = vpop.f32.mrb[0].mxu0
      %v1326 = vadd.f32 0.0, %v1325
      %v1327 = vpop.f32.mrb[0].mxu0
      %1328 = vmatprep.mubr.bf16.mxu0 0
      %1329 = vmatmul.mubr.bf16.gmra.mrb[0].mxu0 %v1240
      %v1330 = vpop.f32.mrb[0].mxu0
      %v1331 = vadd.f32 0.0, %v1330
      %v1332 = vpop.f32.mrb[0].mxu0
      %v1333 = vpop.f32.mrb[0].mxu0
      %v1334 = vadd.f32 0.0, %v1333
      %v1335 = vpop.f32.mrb[0].mxu0
      %1336 = vmatprep.mubr.bf16.mxu0 0
      %1337 = vmatmul.mubr.bf16.gmra.mrb[0].mxu0 %v1243
      %v1338 = vpop.f32.mrb[0].mxu0
      %v1339 = vadd.f32 0.0, %v1338
      %v1340 = vpop.f32.mrb[0].mxu0
      %v1341 = vpop.f32.mrb[0].mxu0
      %v1342 = vadd.f32 0.0, %v1341
      %v1343 = vpop.f32.mrb[0].mxu0
      %1344 = vdwg.mxu0
      %v1345 = vadd.f32 %v1092, %v1283
      %v1346 = vadd.f32 %v1095, %v1286
      %v1347 = vadd.f32 %v1100, %v1291
      %v1348 = vadd.f32 %v1103, %v1294
      %v1349 = vadd.f32 %v1108, %v1299
      %v1350 = vadd.f32 %v1111, %v1302
      %v1351 = vadd.f32 %v1116, %v1307
      %v1352 = vadd.f32 %v1119, %v1310
      %v1353 = vadd.f32 %v1124, %v1315
      %v1354 = vadd.f32 %v1127, %v1318
      %v1355 = vadd.f32 %v1132, %v1323
      %v1356 = vadd.f32 %v1135, %v1326
      %v1357 = vadd.f32 %v1140, %v1331
      %v1358 = vadd.f32 %v1143, %v1334
      %v1359 = vadd.f32 %v1148, %v1339
      %v1360 = vadd.f32 %v1151, %v1342
      %v1361 = vpack.c.bf16 %v800, %v799
      %s1362 = scalar_lea.vmem %s1, 12
      %v1363 = vld [vmem:[%s1362] sm:$0xf]
      %v1365 = vsel %vm286, %v1361, 0
      %v1368 = vsel %vm929, %v1363, 0
      %1370 = vmatprep.subr.bf16.mxu0 0
      %1371 = vmatpush1.bf16.msra.mxu0 %v1368
      %1372 = vmatprep.subr.bf16.mxu0 0
      %1373 = vmatpush1.bf16.msra.mxu0 0
      %1374 = vmatprep.subr.bf16.mxu0 0
      %1375 = vmatpush1.bf16.msra.mxu0 0
      %1376 = vmatprep.subr.bf16.mxu0 0
      %1377 = vmatpush1.bf16.msra.mxu0 0
      %1378 = vmatprep.subr.bf16.mxu0 0
      %1379 = vmatpush1.bf16.msra.mxu0 0
      %1380 = vmatprep.subr.bf16.mxu0 0
      %1381 = vmatpush1.bf16.msra.mxu0 0
      %1382 = vmatprep.subr.bf16.mxu0 0
      %1383 = vmatpush1.bf16.msra.mxu0 0
      %1384 = vmatprep.subr.bf16.mxu0 0
      %1385 = vmatpush1.bf16.msra.mxu0 0
      %1386 = vmatprep.subr.bf16.mxu0 0
      %1387 = vmatpush1.bf16.msra.mxu0 0
      %1388 = vmatprep.subr.bf16.mxu0 0
      %1389 = vmatpush1.bf16.msra.mxu0 0
      %1390 = vmatprep.subr.bf16.mxu0 0
      %1391 = vmatpush1.bf16.msra.mxu0 0
      %1392 = vmatprep.subr.bf16.mxu0 0
      %1393 = vmatpush1.bf16.msra.mxu0 0
      %1394 = vmatprep.subr.bf16.mxu0 0
      %1395 = vmatpush1.bf16.msra.mxu0 0
      %1396 = vmatprep.subr.bf16.mxu0 0
      %1397 = vmatpush1.bf16.msra.mxu0 0
      %1398 = vmatprep.subr.bf16.mxu0 0
      %1399 = vmatpush1.bf16.msra.mxu0 0
      %1400 = vmatprep.subr.bf16.mxu0 0
      %1401 = vmatpush1.bf16.msra.mxu0 0
      %1402 = vmatprep.mubr.bf16.mxu0 0
      %1403 = vmatmul.mubr.bf16.gmra.mrb[0].mxu0 %v1034
      %v1404 = vpop.f32.mrb[0].mxu0
      %v1405 = vadd.f32 0.0, %v1404
      %v1406 = vpop.f32.mrb[0].mxu0
      %v1407 = vpop.f32.mrb[0].mxu0
      %v1408 = vadd.f32 0.0, %v1407
      %v1409 = vpop.f32.mrb[0].mxu0
      %1410 = vmatprep.mubr.bf16.mxu0 0
      %1411 = vmatmul.mubr.bf16.gmra.mrb[0].mxu0 %v1037
      %v1412 = vpop.f32.mrb[0].mxu0
      %v1413 = vadd.f32 0.0, %v1412
      %v1414 = vpop.f32.mrb[0].mxu0
      %v1415 = vpop.f32.mrb[0].mxu0
      %v1416 = vadd.f32 0.0, %v1415
      %v1417 = vpop.f32.mrb[0].mxu0
      %1418 = vmatprep.mubr.bf16.mxu0 0
      %1419 = vmatmul.mubr.bf16.gmra.mrb[0].mxu0 %v1040
      %v1420 = vpop.f32.mrb[0].mxu0
      %v1421 = vadd.f32 0.0, %v1420
      %v1422 = vpop.f32.mrb[0].mxu0
      %v1423 = vpop.f32.mrb[0].mxu0
      %v1424 = vadd.f32 0.0, %v1423
      %v1425 = vpop.f32.mrb[0].mxu0
      %1426 = vmatprep.mubr.bf16.mxu0 0
      %1427 = vmatmul.mubr.bf16.gmra.mrb[0].mxu0 %v1043
      %v1428 = vpop.f32.mrb[0].mxu0
      %v1429 = vadd.f32 0.0, %v1428
      %v1430 = vpop.f32.mrb[0].mxu0
      %v1431 = vpop.f32.mrb[0].mxu0
      %v1432 = vadd.f32 0.0, %v1431
      %v1433 = vpop.f32.mrb[0].mxu0
      %1434 = vmatprep.mubr.bf16.mxu0 0
      %1435 = vmatmul.mubr.bf16.gmra.mrb[0].mxu0 %v1046
      %v1436 = vpop.f32.mrb[0].mxu0
      %v1437 = vadd.f32 0.0, %v1436
      %v1438 = vpop.f32.mrb[0].mxu0
      %v1439 = vpop.f32.mrb[0].mxu0
      %v1440 = vadd.f32 0.0, %v1439
      %v1441 = vpop.f32.mrb[0].mxu0
      %1442 = vmatprep.mubr.bf16.mxu0 0
      %1443 = vmatmul.mubr.bf16.gmra.mrb[0].mxu0 %v1049
      %v1444 = vpop.f32.mrb[0].mxu0
      %v1445 = vadd.f32 0.0, %v1444
      %v1446 = vpop.f32.mrb[0].mxu0
      %v1447 = vpop.f32.mrb[0].mxu0
      %v1448 = vadd.f32 0.0, %v1447
      %v1449 = vpop.f32.mrb[0].mxu0
      %1450 = vmatprep.mubr.bf16.mxu0 0
      %1451 = vmatmul.mubr.bf16.gmra.mrb[0].mxu0 %v1052
      %v1452 = vpop.f32.mrb[0].mxu0
      %v1453 = vadd.f32 0.0, %v1452
      %v1454 = vpop.f32.mrb[0].mxu0
      %v1455 = vpop.f32.mrb[0].mxu0
      %v1456 = vadd.f32 0.0, %v1455
      %v1457 = vpop.f32.mrb[0].mxu0
      %1458 = vmatprep.mubr.bf16.mxu0 0
      %1459 = vmatmul.mubr.bf16.gmra.mrb[0].mxu0 %v1365
      %v1460 = vpop.f32.mrb[0].mxu0
      %v1461 = vadd.f32 0.0, %v1460
      %v1462 = vpop.f32.mrb[0].mxu0
      %v1463 = vpop.f32.mrb[0].mxu0
      %v1464 = vadd.f32 0.0, %v1463
      %v1465 = vpop.f32.mrb[0].mxu0
      %1466 = vdwg.mxu0
      %v1467 = vadd.f32 %v1345, %v1405
      %v1468 = vadd.f32 %v1346, %v1408
      %v1469 = vadd.f32 %v1347, %v1413
      %v1470 = vadd.f32 %v1348, %v1416
      %v1471 = vadd.f32 %v1349, %v1421
      %v1472 = vadd.f32 %v1350, %v1424
      %v1473 = vadd.f32 %v1351, %v1429
      %v1474 = vadd.f32 %v1352, %v1432
      %v1475 = vadd.f32 %v1353, %v1437
      %v1476 = vadd.f32 %v1354, %v1440
      %v1477 = vadd.f32 %v1355, %v1445
      %v1478 = vadd.f32 %v1356, %v1448
      %v1479 = vadd.f32 %v1357, %v1453
      %v1480 = vadd.f32 %v1358, %v1456
      %v1481 = vadd.f32 %v1359, %v1461
      %v1482 = vadd.f32 %v1360, %v1464
      %v1486 = vrot.slane %v799, 1
      %v1487 = vrot.slane %v800, 1
      %v1488 = vsel %vm838, %v1486, %v1487
      %v1489 = vrot.slane %v801, 1
      %v1490 = vsel %vm838, %v1487, %v1489
      %v1493 = vpack.c.bf16 %v1490, %v1488
      %s1494 = scalar_lea.vmem %s1, 16
      %v1495 = vld [vmem:[%s1494] sm:$0xf]
      %v1497 = vsel %vm286, %v1493, 0
      %v1500 = vsel %vm929, %v1495, 0
      %1502 = vmatprep.subr.bf16.mxu0 0
      %1503 = vmatpush1.bf16.msra.mxu0 %v1500
      %1504 = vmatprep.subr.bf16.mxu0 0
      %1505 = vmatpush1.bf16.msra.mxu0 0
      %1506 = vmatprep.subr.bf16.mxu0 0
      %1507 = vmatpush1.bf16.msra.mxu0 0
      %1508 = vmatprep.subr.bf16.mxu0 0
      %1509 = vmatpush1.bf16.msra.mxu0 0
      %1510 = vmatprep.subr.bf16.mxu0 0
      %1511 = vmatpush1.bf16.msra.mxu0 0
      %1512 = vmatprep.subr.bf16.mxu0 0
      %1513 = vmatpush1.bf16.msra.mxu0 0
      %1514 = vmatprep.subr.bf16.mxu0 0
      %1515 = vmatpush1.bf16.msra.mxu0 0
      %1516 = vmatprep.subr.bf16.mxu0 0
      %1517 = vmatpush1.bf16.msra.mxu0 0
      %1518 = vmatprep.subr.bf16.mxu0 0
      %1519 = vmatpush1.bf16.msra.mxu0 0
      %1520 = vmatprep.subr.bf16.mxu0 0
      %1521 = vmatpush1.bf16.msra.mxu0 0
      %1522 = vmatprep.subr.bf16.mxu0 0
      %1523 = vmatpush1.bf16.msra.mxu0 0
      %1524 = vmatprep.subr.bf16.mxu0 0
      %1525 = vmatpush1.bf16.msra.mxu0 0
      %1526 = vmatprep.subr.bf16.mxu0 0
      %1527 = vmatpush1.bf16.msra.mxu0 0
      %1528 = vmatprep.subr.bf16.mxu0 0
      %1529 = vmatpush1.bf16.msra.mxu0 0
      %1530 = vmatprep.subr.bf16.mxu0 0
      %1531 = vmatpush1.bf16.msra.mxu0 0
      %1532 = vmatprep.subr.bf16.mxu0 0
      %1533 = vmatpush1.bf16.msra.mxu0 0
      %1534 = vmatprep.mubr.bf16.mxu0 0
      %1535 = vmatmul.mubr.bf16.gmra.mrb[0].mxu0 %v909
      %v1536 = vpop.f32.mrb[0].mxu0
      %v1537 = vadd.f32 0.0, %v1536
      %v1538 = vpop.f32.mrb[0].mxu0
      %v1539 = vpop.f32.mrb[0].mxu0
      %v1540 = vadd.f32 0.0, %v1539
      %v1541 = vpop.f32.mrb[0].mxu0
      %1542 = vmatprep.mubr.bf16.mxu0 0
      %1543 = vmatmul.mubr.bf16.gmra.mrb[0].mxu0 %v912
      %v1544 = vpop.f32.mrb[0].mxu0
      %v1545 = vadd.f32 0.0, %v1544
      %v1546 = vpop.f32.mrb[0].mxu0
      %v1547 = vpop.f32.mrb[0].mxu0
      %v1548 = vadd.f32 0.0, %v1547
      %v1549 = vpop.f32.mrb[0].mxu0
      %1550 = vmatprep.mubr.bf16.mxu0 0
      %1551 = vmatmul.mubr.bf16.gmra.mrb[0].mxu0 %v915
      %v1552 = vpop.f32.mrb[0].mxu0
      %v1553 = vadd.f32 0.0, %v1552
      %v1554 = vpop.f32.mrb[0].mxu0
      %v1555 = vpop.f32.mrb[0].mxu0
      %v1556 = vadd.f32 0.0, %v1555
      %v1557 = vpop.f32.mrb[0].mxu0
      %1558 = vmatprep.mubr.bf16.mxu0 0
      %1559 = vmatmul.mubr.bf16.gmra.mrb[0].mxu0 %v918
      %v1560 = vpop.f32.mrb[0].mxu0
      %v1561 = vadd.f32 0.0, %v1560
      %v1562 = vpop.f32.mrb[0].mxu0
      %v1563 = vpop.f32.mrb[0].mxu0
      %v1564 = vadd.f32 0.0, %v1563
      %v1565 = vpop.f32.mrb[0].mxu0
      %1566 = vmatprep.mubr.bf16.mxu0 0
      %1567 = vmatmul.mubr.bf16.gmra.mrb[0].mxu0 %v921
      %v1568 = vpop.f32.mrb[0].mxu0
      %v1569 = vadd.f32 0.0, %v1568
      %v1570 = vpop.f32.mrb[0].mxu0
      %v1571 = vpop.f32.mrb[0].mxu0
      %v1572 = vadd.f32 0.0, %v1571
      %v1573 = vpop.f32.mrb[0].mxu0
      %1574 = vmatprep.mubr.bf16.mxu0 0
      %1575 = vmatmul.mubr.bf16.gmra.mrb[0].mxu0 %v924
      %v1576 = vpop.f32.mrb[0].mxu0
      %v1577 = vadd.f32 0.0, %v1576
      %v1578 = vpop.f32.mrb[0].mxu0
      %v1579 = vpop.f32.mrb[0].mxu0
      %v1580 = vadd.f32 0.0, %v1579
      %v1581 = vpop.f32.mrb[0].mxu0
      %1582 = vmatprep.mubr.bf16.mxu0 0
      %1583 = vmatmul.mubr.bf16.gmra.mrb[0].mxu0 %v927
      %v1584 = vpop.f32.mrb[0].mxu0
      %v1585 = vadd.f32 0.0, %v1584
      %v1586 = vpop.f32.mrb[0].mxu0
      %v1587 = vpop.f32.mrb[0].mxu0
      %v1588 = vadd.f32 0.0, %v1587
      %v1589 = vpop.f32.mrb[0].mxu0
      %1590 = vmatprep.mubr.bf16.mxu0 0
      %1591 = vmatmul.mubr.bf16.gmra.mrb[0].mxu0 %v1497
      %v1592 = vpop.f32.mrb[0].mxu0
      %v1593 = vadd.f32 0.0, %v1592
      %v1594 = vpop.f32.mrb[0].mxu0
      %v1595 = vpop.f32.mrb[0].mxu0
      %v1596 = vadd.f32 0.0, %v1595
      %v1597 = vpop.f32.mrb[0].mxu0
      %1598 = vdwg.mxu0
      %v1599 = vadd.f32 %v1467, %v1537
      %v1600 = vadd.f32 %v1468, %v1540
      %v1601 = vadd.f32 %v1469, %v1545
      %v1602 = vadd.f32 %v1470, %v1548
      %v1603 = vadd.f32 %v1471, %v1553
      %v1604 = vadd.f32 %v1472, %v1556
      %v1605 = vadd.f32 %v1473, %v1561
      %v1606 = vadd.f32 %v1474, %v1564
      %v1607 = vadd.f32 %v1475, %v1569
      %v1608 = vadd.f32 %v1476, %v1572
      %v1609 = vadd.f32 %v1477, %v1577
      %v1610 = vadd.f32 %v1478, %v1580
      %v1611 = vadd.f32 %v1479, %v1585
      %v1612 = vadd.f32 %v1480, %v1588
      %v1613 = vadd.f32 %v1481, %v1593
      %v1614 = vadd.f32 %v1482, %v1596
      %v1615 = vrot.slane %v799, 2
      %v1616 = vrot.slane %v800, 2
      %v1617 = vsel %vm1154, %v1615, %v1616
      %v1618 = vrot.slane %v801, 2
      %v1619 = vsel %vm1154, %v1616, %v1618
      %v1622 = vpack.c.bf16 %v1619, %v1617
      %s1623 = scalar_lea.vmem %s1, 20
      %v1624 = vld [vmem:[%s1623] sm:$0xf]
      %v1626 = vsel %vm286, %v1622, 0
      %v1629 = vsel %vm929, %v1624, 0
      %1631 = vmatprep.subr.bf16.mxu0 0
      %1632 = vmatpush1.bf16.msra.mxu0 %v1629
      %1633 = vmatprep.subr.bf16.mxu0 0
      %1634 = vmatpush1.bf16.msra.mxu0 0
      %1635 = vmatprep.subr.bf16.mxu0 0
      %1636 = vmatpush1.bf16.msra.mxu0 0
      %1637 = vmatprep.subr.bf16.mxu0 0
      %1638 = vmatpush1.bf16.msra.mxu0 0
      %1639 = vmatprep.subr.bf16.mxu0 0
      %1640 = vmatpush1.bf16.msra.mxu0 0
      %1641 = vmatprep.subr.bf16.mxu0 0
      %1642 = vmatpush1.bf16.msra.mxu0 0
      %1643 = vmatprep.subr.bf16.mxu0 0
      %1644 = vmatpush1.bf16.msra.mxu0 0
      %1645 = vmatprep.subr.bf16.mxu0 0
      %1646 = vmatpush1.bf16.msra.mxu0 0
      %1647 = vmatprep.subr.bf16.mxu0 0
      %1648 = vmatpush1.bf16.msra.mxu0 0
      %1649 = vmatprep.subr.bf16.mxu0 0
      %1650 = vmatpush1.bf16.msra.mxu0 0
      %1651 = vmatprep.subr.bf16.mxu0 0
      %1652 = vmatpush1.bf16.msra.mxu0 0
      %1653 = vmatprep.subr.bf16.mxu0 0
      %1654 = vmatpush1.bf16.msra.mxu0 0
      %1655 = vmatprep.subr.bf16.mxu0 0
      %1656 = vmatpush1.bf16.msra.mxu0 0
      %1657 = vmatprep.subr.bf16.mxu0 0
      %1658 = vmatpush1.bf16.msra.mxu0 0
      %1659 = vmatprep.subr.bf16.mxu0 0
      %1660 = vmatpush1.bf16.msra.mxu0 0
      %1661 = vmatprep.subr.bf16.mxu0 0
      %1662 = vmatpush1.bf16.msra.mxu0 0
      %1663 = vmatprep.mubr.bf16.mxu0 0
      %1664 = vmatmul.mubr.bf16.gmra.mrb[0].mxu0 %v1225
      %v1665 = vpop.f32.mrb[0].mxu0
      %v1666 = vadd.f32 0.0, %v1665
      %v1667 = vpop.f32.mrb[0].mxu0
      %v1668 = vpop.f32.mrb[0].mxu0
      %v1669 = vadd.f32 0.0, %v1668
      %v1670 = vpop.f32.mrb[0].mxu0
      %1671 = vmatprep.mubr.bf16.mxu0 0
      %1672 = vmatmul.mubr.bf16.gmra.mrb[0].mxu0 %v1228
      %v1673 = vpop.f32.mrb[0].mxu0
      %v1674 = vadd.f32 0.0, %v1673
      %v1675 = vpop.f32.mrb[0].mxu0
      %v1676 = vpop.f32.mrb[0].mxu0
      %v1677 = vadd.f32 0.0, %v1676
      %v1678 = vpop.f32.mrb[0].mxu0
      %1679 = vmatprep.mubr.bf16.mxu0 0
      %1680 = vmatmul.mubr.bf16.gmra.mrb[0].mxu0 %v1231
      %v1681 = vpop.f32.mrb[0].mxu0
      %v1682 = vadd.f32 0.0, %v1681
      %v1683 = vpop.f32.mrb[0].mxu0
      %v1684 = vpop.f32.mrb[0].mxu0
      %v1685 = vadd.f32 0.0, %v1684
      %v1686 = vpop.f32.mrb[0].mxu0
      %1687 = vmatprep.mubr.bf16.mxu0 0
      %1688 = vmatmul.mubr.bf16.gmra.mrb[0].mxu0 %v1234
      %v1689 = vpop.f32.mrb[0].mxu0
      %v1690 = vadd.f32 0.0, %v1689
      %v1691 = vpop.f32.mrb[0].mxu0
      %v1692 = vpop.f32.mrb[0].mxu0
      %v1693 = vadd.f32 0.0, %v1692
      %v1694 = vpop.f32.mrb[0].mxu0
      %1695 = vmatprep.mubr.bf16.mxu0 0
      %1696 = vmatmul.mubr.bf16.gmra.mrb[0].mxu0 %v1237
      %v1697 = vpop.f32.mrb[0].mxu0
      %v1698 = vadd.f32 0.0, %v1697
      %v1699 = vpop.f32.mrb[0].mxu0
      %v1700 = vpop.f32.mrb[0].mxu0
      %v1701 = vadd.f32 0.0, %v1700
      %v1702 = vpop.f32.mrb[0].mxu0
      %1703 = vmatprep.mubr.bf16.mxu0 0
      %1704 = vmatmul.mubr.bf16.gmra.mrb[0].mxu0 %v1240
      %v1705 = vpop.f32.mrb[0].mxu0
      %v1706 = vadd.f32 0.0, %v1705
      %v1707 = vpop.f32.mrb[0].mxu0
      %v1708 = vpop.f32.mrb[0].mxu0
      %v1709 = vadd.f32 0.0, %v1708
      %v1710 = vpop.f32.mrb[0].mxu0
      %1711 = vmatprep.mubr.bf16.mxu0 0
      %1712 = vmatmul.mubr.bf16.gmra.mrb[0].mxu0 %v1243
      %v1713 = vpop.f32.mrb[0].mxu0
      %v1714 = vadd.f32 0.0, %v1713
      %v1715 = vpop.f32.mrb[0].mxu0
      %v1716 = vpop.f32.mrb[0].mxu0
      %v1717 = vadd.f32 0.0, %v1716
      %v1718 = vpop.f32.mrb[0].mxu0
      %1719 = vmatprep.mubr.bf16.mxu0 0
      %1720 = vmatmul.mubr.bf16.gmra.mrb[0].mxu0 %v1626
      %v1721 = vpop.f32.mrb[0].mxu0
      %v1722 = vadd.f32 0.0, %v1721
      %v1723 = vpop.f32.mrb[0].mxu0
      %v1724 = vpop.f32.mrb[0].mxu0
      %v1725 = vadd.f32 0.0, %v1724
      %v1726 = vpop.f32.mrb[0].mxu0
      %1727 = vdwg.mxu0
      %v1728 = vadd.f32 %v1599, %v1666
      %v1729 = vadd.f32 %v1600, %v1669
      %v1730 = vadd.f32 %v1601, %v1674
      %v1731 = vadd.f32 %v1602, %v1677
      %v1732 = vadd.f32 %v1603, %v1682
      %v1733 = vadd.f32 %v1604, %v1685
      %v1734 = vadd.f32 %v1605, %v1690
      %v1735 = vadd.f32 %v1606, %v1693
      %v1736 = vadd.f32 %v1607, %v1698
      %v1737 = vadd.f32 %v1608, %v1701
      %v1738 = vadd.f32 %v1609, %v1706
      %v1739 = vadd.f32 %v1610, %v1709
      %v1740 = vadd.f32 %v1611, %v1714
      %v1741 = vadd.f32 %v1612, %v1717
      %v1742 = vadd.f32 %v1613, %v1722
      %v1743 = vadd.f32 %v1614, %v1725
      %v1744 = vpack.c.bf16 %v803, %v802
      %s1745 = scalar_lea.vmem %s1, 24
      %v1746 = vld [vmem:[%s1745] sm:$0xf]
      %v1748 = vsel %vm286, %v1744, 0
      %v1751 = vsel %vm929, %v1746, 0
      %1753 = vmatprep.subr.bf16.mxu0 0
      %1754 = vmatpush1.bf16.msra.mxu0 %v1751
      %1755 = vmatprep.subr.bf16.mxu0 0
      %1756 = vmatpush1.bf16.msra.mxu0 0
      %1757 = vmatprep.subr.bf16.mxu0 0
      %1758 = vmatpush1.bf16.msra.mxu0 0
      %1759 = vmatprep.subr.bf16.mxu0 0
      %1760 = vmatpush1.bf16.msra.mxu0 0
      %1761 = vmatprep.subr.bf16.mxu0 0
      %1762 = vmatpush1.bf16.msra.mxu0 0
      %1763 = vmatprep.subr.bf16.mxu0 0
      %1764 = vmatpush1.bf16.msra.mxu0 0
      %1765 = vmatprep.subr.bf16.mxu0 0
      %1766 = vmatpush1.bf16.msra.mxu0 0
      %1767 = vmatprep.subr.bf16.mxu0 0
      %1768 = vmatpush1.bf16.msra.mxu0 0
      %1769 = vmatprep.subr.bf16.mxu0 0
      %1770 = vmatpush1.bf16.msra.mxu0 0
      %1771 = vmatprep.subr.bf16.mxu0 0
      %1772 = vmatpush1.bf16.msra.mxu0 0
      %1773 = vmatprep.subr.bf16.mxu0 0
      %1774 = vmatpush1.bf16.msra.mxu0 0
      %1775 = vmatprep.subr.bf16.mxu0 0
      %1776 = vmatpush1.bf16.msra.mxu0 0
      %1777 = vmatprep.subr.bf16.mxu0 0
      %1778 = vmatpush1.bf16.msra.mxu0 0
      %1779 = vmatprep.subr.bf16.mxu0 0
      %1780 = vmatpush1.bf16.msra.mxu0 0
      %1781 = vmatprep.subr.bf16.mxu0 0
      %1782 = vmatpush1.bf16.msra.mxu0 0
      %1783 = vmatprep.subr.bf16.mxu0 0
      %1784 = vmatpush1.bf16.msra.mxu0 0
      %1785 = vmatprep.mubr.bf16.mxu0 0
      %1786 = vmatmul.mubr.bf16.gmra.mrb[0].mxu0 %v1037
      %v1787 = vpop.f32.mrb[0].mxu0
      %v1788 = vadd.f32 0.0, %v1787
      %v1789 = vpop.f32.mrb[0].mxu0
      %v1790 = vpop.f32.mrb[0].mxu0
      %v1791 = vadd.f32 0.0, %v1790
      %v1792 = vpop.f32.mrb[0].mxu0
      %1793 = vmatprep.mubr.bf16.mxu0 0
      %1794 = vmatmul.mubr.bf16.gmra.mrb[0].mxu0 %v1040
      %v1795 = vpop.f32.mrb[0].mxu0
      %v1796 = vadd.f32 0.0, %v1795
      %v1797 = vpop.f32.mrb[0].mxu0
      %v1798 = vpop.f32.mrb[0].mxu0
      %v1799 = vadd.f32 0.0, %v1798
      %v1800 = vpop.f32.mrb[0].mxu0
      %1801 = vmatprep.mubr.bf16.mxu0 0
      %1802 = vmatmul.mubr.bf16.gmra.mrb[0].mxu0 %v1043
      %v1803 = vpop.f32.mrb[0].mxu0
      %v1804 = vadd.f32 0.0, %v1803
      %v1805 = vpop.f32.mrb[0].mxu0
      %v1806 = vpop.f32.mrb[0].mxu0
      %v1807 = vadd.f32 0.0, %v1806
      %v1808 = vpop.f32.mrb[0].mxu0
      %1809 = vmatprep.mubr.bf16.mxu0 0
      %1810 = vmatmul.mubr.bf16.gmra.mrb[0].mxu0 %v1046
      %v1811 = vpop.f32.mrb[0].mxu0
      %v1812 = vadd.f32 0.0, %v1811
      %v1813 = vpop.f32.mrb[0].mxu0
      %v1814 = vpop.f32.mrb[0].mxu0
      %v1815 = vadd.f32 0.0, %v1814
      %v1816 = vpop.f32.mrb[0].mxu0
      %1817 = vmatprep.mubr.bf16.mxu0 0
      %1818 = vmatmul.mubr.bf16.gmra.mrb[0].mxu0 %v1049
      %v1819 = vpop.f32.mrb[0].mxu0
      %v1820 = vadd.f32 0.0, %v1819
      %v1821 = vpop.f32.mrb[0].mxu0
      %v1822 = vpop.f32.mrb[0].mxu0
      %v1823 = vadd.f32 0.0, %v1822
      %v1824 = vpop.f32.mrb[0].mxu0
      %1825 = vmatprep.mubr.bf16.mxu0 0
      %1826 = vmatmul.mubr.bf16.gmra.mrb[0].mxu0 %v1052
      %v1827 = vpop.f32.mrb[0].mxu0
      %v1828 = vadd.f32 0.0, %v1827
      %v1829 = vpop.f32.mrb[0].mxu0
      %v1830 = vpop.f32.mrb[0].mxu0
      %v1831 = vadd.f32 0.0, %v1830
      %v1832 = vpop.f32.mrb[0].mxu0
      %1833 = vmatprep.mubr.bf16.mxu0 0
      %1834 = vmatmul.mubr.bf16.gmra.mrb[0].mxu0 %v1365
      %v1835 = vpop.f32.mrb[0].mxu0
      %v1836 = vadd.f32 0.0, %v1835
      %v1837 = vpop.f32.mrb[0].mxu0
      %v1838 = vpop.f32.mrb[0].mxu0
      %v1839 = vadd.f32 0.0, %v1838
      %v1840 = vpop.f32.mrb[0].mxu0
      %1841 = vmatprep.mubr.bf16.mxu0 0
      %1842 = vmatmul.mubr.bf16.gmra.mrb[0].mxu0 %v1748
      %v1843 = vpop.f32.mrb[0].mxu0
      %v1844 = vadd.f32 0.0, %v1843
      %v1845 = vpop.f32.mrb[0].mxu0
      %v1846 = vpop.f32.mrb[0].mxu0
      %v1847 = vadd.f32 0.0, %v1846
      %v1848 = vpop.f32.mrb[0].mxu0
      %1849 = vdwg.mxu0
      %v1850 = vadd.f32 %v1728, %v1788
      %v1851 = vadd.f32 %v1729, %v1791
      %v1852 = vadd.f32 %v1730, %v1796
      %v1853 = vadd.f32 %v1731, %v1799
      %v1854 = vadd.f32 %v1732, %v1804
      %v1855 = vadd.f32 %v1733, %v1807
      %v1856 = vadd.f32 %v1734, %v1812
      %v1857 = vadd.f32 %v1735, %v1815
      %v1858 = vadd.f32 %v1736, %v1820
      %v1859 = vadd.f32 %v1737, %v1823
      %v1860 = vadd.f32 %v1738, %v1828
      %v1861 = vadd.f32 %v1739, %v1831
      %v1862 = vadd.f32 %v1740, %v1836
      %v1863 = vadd.f32 %v1741, %v1839
      %v1864 = vadd.f32 %v1742, %v1844
      %v1865 = vadd.f32 %v1743, %v1847
      %v1869 = vrot.slane %v802, 1
      %v1870 = vrot.slane %v803, 1
      %v1871 = vsel %vm838, %v1869, %v1870
      %v1872 = vrot.slane %v804, 1
      %v1873 = vsel %vm838, %v1870, %v1872
      %v1876 = vpack.c.bf16 %v1873, %v1871
      %s1877 = scalar_lea.vmem %s1, 28
      %v1878 = vld [vmem:[%s1877] sm:$0xf]
      %v1880 = vsel %vm286, %v1876, 0
      %v1883 = vsel %vm929, %v1878, 0
      %1885 = vmatprep.subr.bf16.mxu0 0
      %1886 = vmatpush1.bf16.msra.mxu0 %v1883
      %1887 = vmatprep.subr.bf16.mxu0 0
      %1888 = vmatpush1.bf16.msra.mxu0 0
      %1889 = vmatprep.subr.bf16.mxu0 0
      %1890 = vmatpush1.bf16.msra.mxu0 0
      %1891 = vmatprep.subr.bf16.mxu0 0
      %1892 = vmatpush1.bf16.msra.mxu0 0
      %1893 = vmatprep.subr.bf16.mxu0 0
      %1894 = vmatpush1.bf16.msra.mxu0 0
      %1895 = vmatprep.subr.bf16.mxu0 0
      %1896 = vmatpush1.bf16.msra.mxu0 0
      %1897 = vmatprep.subr.bf16.mxu0 0
      %1898 = vmatpush1.bf16.msra.mxu0 0
      %1899 = vmatprep.subr.bf16.mxu0 0
      %1900 = vmatpush1.bf16.msra.mxu0 0
      %1901 = vmatprep.subr.bf16.mxu0 0
      %1902 = vmatpush1.bf16.msra.mxu0 0
      %1903 = vmatprep.subr.bf16.mxu0 0
      %1904 = vmatpush1.bf16.msra.mxu0 0
      %1905 = vmatprep.subr.bf16.mxu0 0
      %1906 = vmatpush1.bf16.msra.mxu0 0
      %1907 = vmatprep.subr.bf16.mxu0 0
      %1908 = vmatpush1.bf16.msra.mxu0 0
      %1909 = vmatprep.subr.bf16.mxu0 0
      %1910 = vmatpush1.bf16.msra.mxu0 0
      %1911 = vmatprep.subr.bf16.mxu0 0
      %1912 = vmatpush1.bf16.msra.mxu0 0
      %1913 = vmatprep.subr.bf16.mxu0 0
      %1914 = vmatpush1.bf16.msra.mxu0 0
      %1915 = vmatprep.subr.bf16.mxu0 0
      %1916 = vmatpush1.bf16.msra.mxu0 0
      %1917 = vmatprep.mubr.bf16.mxu0 0
      %1918 = vmatmul.mubr.bf16.gmra.mrb[0].mxu0 %v912
      %v1919 = vpop.f32.mrb[0].mxu0
      %v1920 = vadd.f32 0.0, %v1919
      %v1921 = vpop.f32.mrb[0].mxu0
      %v1922 = vpop.f32.mrb[0].mxu0
      %v1923 = vadd.f32 0.0, %v1922
      %v1924 = vpop.f32.mrb[0].mxu0
      %1925 = vmatprep.mubr.bf16.mxu0 0
      %1926 = vmatmul.mubr.bf16.gmra.mrb[0].mxu0 %v915
      %v1927 = vpop.f32.mrb[0].mxu0
      %v1928 = vadd.f32 0.0, %v1927
      %v1929 = vpop.f32.mrb[0].mxu0
      %v1930 = vpop.f32.mrb[0].mxu0
      %v1931 = vadd.f32 0.0, %v1930
      %v1932 = vpop.f32.mrb[0].mxu0
      %1933 = vmatprep.mubr.bf16.mxu0 0
      %1934 = vmatmul.mubr.bf16.gmra.mrb[0].mxu0 %v918
      %v1935 = vpop.f32.mrb[0].mxu0
      %v1936 = vadd.f32 0.0, %v1935
      %v1937 = vpop.f32.mrb[0].mxu0
      %v1938 = vpop.f32.mrb[0].mxu0
      %v1939 = vadd.f32 0.0, %v1938
      %v1940 = vpop.f32.mrb[0].mxu0
      %1941 = vmatprep.mubr.bf16.mxu0 0
      %1942 = vmatmul.mubr.bf16.gmra.mrb[0].mxu0 %v921
      %v1943 = vpop.f32.mrb[0].mxu0
      %v1944 = vadd.f32 0.0, %v1943
      %v1945 = vpop.f32.mrb[0].mxu0
      %v1946 = vpop.f32.mrb[0].mxu0
      %v1947 = vadd.f32 0.0, %v1946
      %v1948 = vpop.f32.mrb[0].mxu0
      %1949 = vmatprep.mubr.bf16.mxu0 0
      %1950 = vmatmul.mubr.bf16.gmra.mrb[0].mxu0 %v924
      %v1951 = vpop.f32.mrb[0].mxu0
      %v1952 = vadd.f32 0.0, %v1951
      %v1953 = vpop.f32.mrb[0].mxu0
      %v1954 = vpop.f32.mrb[0].mxu0
      %v1955 = vadd.f32 0.0, %v1954
      %v1956 = vpop.f32.mrb[0].mxu0
      %1957 = vmatprep.mubr.bf16.mxu0 0
      %1958 = vmatmul.mubr.bf16.gmra.mrb[0].mxu0 %v927
      %v1959 = vpop.f32.mrb[0].mxu0
      %v1960 = vadd.f32 0.0, %v1959
      %v1961 = vpop.f32.mrb[0].mxu0
      %v1962 = vpop.f32.mrb[0].mxu0
      %v1963 = vadd.f32 0.0, %v1962
      %v1964 = vpop.f32.mrb[0].mxu0
      %1965 = vmatprep.mubr.bf16.mxu0 0
      %1966 = vmatmul.mubr.bf16.gmra.mrb[0].mxu0 %v1497
      %v1967 = vpop.f32.mrb[0].mxu0
      %v1968 = vadd.f32 0.0, %v1967
      %v1969 = vpop.f32.mrb[0].mxu0
      %v1970 = vpop.f32.mrb[0].mxu0
      %v1971 = vadd.f32 0.0, %v1970
      %v1972 = vpop.f32.mrb[0].mxu0
      %1973 = vmatprep.mubr.bf16.mxu0 0
      %1974 = vmatmul.mubr.bf16.gmra.mrb[0].mxu0 %v1880
      %v1975 = vpop.f32.mrb[0].mxu0
      %v1976 = vadd.f32 0.0, %v1975
      %v1977 = vpop.f32.mrb[0].mxu0
      %v1978 = vpop.f32.mrb[0].mxu0
      %v1979 = vadd.f32 0.0, %v1978
      %v1980 = vpop.f32.mrb[0].mxu0
      %1981 = vdwg.mxu0
      %v1982 = vadd.f32 %v1850, %v1920
      %v1983 = vadd.f32 %v1851, %v1923
      %v1984 = vadd.f32 %v1852, %v1928
      %v1985 = vadd.f32 %v1853, %v1931
      %v1986 = vadd.f32 %v1854, %v1936
      %v1987 = vadd.f32 %v1855, %v1939
      %v1988 = vadd.f32 %v1856, %v1944
      %v1989 = vadd.f32 %v1857, %v1947
      %v1990 = vadd.f32 %v1858, %v1952
      %v1991 = vadd.f32 %v1859, %v1955
      %v1992 = vadd.f32 %v1860, %v1960
      %v1993 = vadd.f32 %v1861, %v1963
      %v1994 = vadd.f32 %v1862, %v1968
      %v1995 = vadd.f32 %v1863, %v1971
      %v1996 = vadd.f32 %v1864, %v1976
      %v1997 = vadd.f32 %v1865, %v1979
      %v1998 = vrot.slane %v802, 2
      %v1999 = vrot.slane %v803, 2
      %v2000 = vsel %vm1154, %v1998, %v1999
      %v2001 = vrot.slane %v804, 2
      %v2002 = vsel %vm1154, %v1999, %v2001
      %v2005 = vpack.c.bf16 %v2002, %v2000
      %s2006 = scalar_lea.vmem %s1, 32
      %v2007 = vld [vmem:[%s2006] sm:$0xf]
      %v2009 = vsel %vm286, %v2005, 0
      %v2012 = vsel %vm929, %v2007, 0
      %2014 = vmatprep.subr.bf16.mxu0 0
      %2015 = vmatpush1.bf16.msra.mxu0 %v2012
      %2016 = vmatprep.subr.bf16.mxu0 0
      %2017 = vmatpush1.bf16.msra.mxu0 0
      %2018 = vmatprep.subr.bf16.mxu0 0
      %2019 = vmatpush1.bf16.msra.mxu0 0
      %2020 = vmatprep.subr.bf16.mxu0 0
      %2021 = vmatpush1.bf16.msra.mxu0 0
      %2022 = vmatprep.subr.bf16.mxu0 0
      %2023 = vmatpush1.bf16.msra.mxu0 0
      %2024 = vmatprep.subr.bf16.mxu0 0
      %2025 = vmatpush1.bf16.msra.mxu0 0
      %2026 = vmatprep.subr.bf16.mxu0 0
      %2027 = vmatpush1.bf16.msra.mxu0 0
      %2028 = vmatprep.subr.bf16.mxu0 0
      %2029 = vmatpush1.bf16.msra.mxu0 0
      %2030 = vmatprep.subr.bf16.mxu0 0
      %2031 = vmatpush1.bf16.msra.mxu0 0
      %2032 = vmatprep.subr.bf16.mxu0 0
      %2033 = vmatpush1.bf16.msra.mxu0 0
      %2034 = vmatprep.subr.bf16.mxu0 0
      %2035 = vmatpush1.bf16.msra.mxu0 0
      %2036 = vmatprep.subr.bf16.mxu0 0
      %2037 = vmatpush1.bf16.msra.mxu0 0
      %2038 = vmatprep.subr.bf16.mxu0 0
      %2039 = vmatpush1.bf16.msra.mxu0 0
      %2040 = vmatprep.subr.bf16.mxu0 0
      %2041 = vmatpush1.bf16.msra.mxu0 0
      %2042 = vmatprep.subr.bf16.mxu0 0
      %2043 = vmatpush1.bf16.msra.mxu0 0
      %2044 = vmatprep.subr.bf16.mxu0 0
      %2045 = vmatpush1.bf16.msra.mxu0 0
      %2046 = vmatprep.mubr.bf16.mxu0 0
      %2047 = vmatmul.mubr.bf16.gmra.mrb[0].mxu0 %v1228
      %v2048 = vpop.f32.mrb[0].mxu0
      %v2049 = vadd.f32 0.0, %v2048
      %v2050 = vpop.f32.mrb[0].mxu0
      %v2051 = vpop.f32.mrb[0].mxu0
      %v2052 = vadd.f32 0.0, %v2051
      %v2053 = vpop.f32.mrb[0].mxu0
      %2054 = vmatprep.mubr.bf16.mxu0 0
      %2055 = vmatmul.mubr.bf16.gmra.mrb[0].mxu0 %v1231
      %v2056 = vpop.f32.mrb[0].mxu0
      %v2057 = vadd.f32 0.0, %v2056
      %v2058 = vpop.f32.mrb[0].mxu0
      %v2059 = vpop.f32.mrb[0].mxu0
      %v2060 = vadd.f32 0.0, %v2059
      %v2061 = vpop.f32.mrb[0].mxu0
      %2062 = vmatprep.mubr.bf16.mxu0 0
      %2063 = vmatmul.mubr.bf16.gmra.mrb[0].mxu0 %v1234
      %v2064 = vpop.f32.mrb[0].mxu0
      %v2065 = vadd.f32 0.0, %v2064
      %v2066 = vpop.f32.mrb[0].mxu0
      %v2067 = vpop.f32.mrb[0].mxu0
      %v2068 = vadd.f32 0.0, %v2067
      %v2069 = vpop.f32.mrb[0].mxu0
      %2070 = vmatprep.mubr.bf16.mxu0 0
      %2071 = vmatmul.mubr.bf16.gmra.mrb[0].mxu0 %v1237
      %v2072 = vpop.f32.mrb[0].mxu0
      %v2073 = vadd.f32 0.0, %v2072
      %v2074 = vpop.f32.mrb[0].mxu0
      %v2075 = vpop.f32.mrb[0].mxu0
      %v2076 = vadd.f32 0.0, %v2075
      %v2077 = vpop.f32.mrb[0].mxu0
      %2078 = vmatprep.mubr.bf16.mxu0 0
      %2079 = vmatmul.mubr.bf16.gmra.mrb[0].mxu0 %v1240
      %v2080 = vpop.f32.mrb[0].mxu0
      %v2081 = vadd.f32 0.0, %v2080
      %v2082 = vpop.f32.mrb[0].mxu0
      %v2083 = vpop.f32.mrb[0].mxu0
      %v2084 = vadd.f32 0.0, %v2083
      %v2085 = vpop.f32.mrb[0].mxu0
      %2086 = vmatprep.mubr.bf16.mxu0 0
      %2087 = vmatmul.mubr.bf16.gmra.mrb[0].mxu0 %v1243
      %v2088 = vpop.f32.mrb[0].mxu0
      %v2089 = vadd.f32 0.0, %v2088
      %v2090 = vpop.f32.mrb[0].mxu0
      %v2091 = vpop.f32.mrb[0].mxu0
      %v2092 = vadd.f32 0.0, %v2091
      %v2093 = vpop.f32.mrb[0].mxu0
      %2094 = vmatprep.mubr.bf16.mxu0 0
      %2095 = vmatmul.mubr.bf16.gmra.mrb[0].mxu0 %v1626
      %v2096 = vpop.f32.mrb[0].mxu0
      %v2097 = vadd.f32 0.0, %v2096
      %v2098 = vpop.f32.mrb[0].mxu0
      %v2099 = vpop.f32.mrb[0].mxu0
      %v2100 = vadd.f32 0.0, %v2099
      %v2101 = vpop.f32.mrb[0].mxu0
      %2102 = vmatprep.mubr.bf16.mxu0 0
      %2103 = vmatmul.mubr.bf16.gmra.mrb[0].mxu0 %v2009
      %v2104 = vpop.f32.mrb[0].mxu0
      %v2105 = vadd.f32 0.0, %v2104
      %v2106 = vpop.f32.mrb[0].mxu0
      %v2107 = vpop.f32.mrb[0].mxu0
      %v2108 = vadd.f32 0.0, %v2107
      %v2109 = vpop.f32.mrb[0].mxu0
      %2110 = vdwg.mxu0
      %v2111 = vadd.f32 %v1982, %v2049
      %v2112 = vadd.f32 %v1983, %v2052
      %v2113 = vadd.f32 %v1984, %v2057
      %v2114 = vadd.f32 %v1985, %v2060
      %v2115 = vadd.f32 %v1986, %v2065
      %v2116 = vadd.f32 %v1987, %v2068
      %v2117 = vadd.f32 %v1988, %v2073
      %v2118 = vadd.f32 %v1989, %v2076
      %v2119 = vadd.f32 %v1990, %v2081
      %v2120 = vadd.f32 %v1991, %v2084
      %v2121 = vadd.f32 %v1992, %v2089
      %v2122 = vadd.f32 %v1993, %v2092
      %v2123 = vadd.f32 %v1994, %v2097
      %v2124 = vadd.f32 %v1995, %v2100
      %v2125 = vadd.f32 %v1996, %v2105
      %v2126 = vadd.f32 %v1997, %v2108
      %v2127 = vld [vmem:[%s2] sm:$0x1]
      %v2129 = vlaneseq
      %v2130 = vshrl.u32 %v2129, 7
      %v2131 = vsub.s32 0, %v2130
      %v2132 = vrot.slane %v2127, %v2131
      %v2134 = vadd.f32 %v2111, %v2132
      %v2135 = vadd.f32 %v2112, %v2132
      %v2136 = vadd.f32 %v2113, %v2132
      %v2137 = vadd.f32 %v2114, %v2132
      %v2138 = vadd.f32 %v2115, %v2132
      %v2139 = vadd.f32 %v2116, %v2132
      %v2140 = vadd.f32 %v2117, %v2132
      %v2141 = vadd.f32 %v2118, %v2132
      %v2142 = vadd.f32 %v2119, %v2132
      %v2143 = vadd.f32 %v2120, %v2132
      %v2144 = vadd.f32 %v2121, %v2132
      %v2145 = vadd.f32 %v2122, %v2132
      %v2146 = vadd.f32 %v2123, %v2132
      %v2147 = vadd.f32 %v2124, %v2132
      %v2148 = vadd.f32 %v2125, %v2132
      %v2149 = vadd.f32 %v2126, %v2132
      %v2150 = vmul.f32 %v2134, 0.5
      %v2151 = vmul.f32 %v2135, 0.5
      %v2152 = vmul.f32 %v2136, 0.5
      %v2153 = vmul.f32 %v2137, 0.5
      %v2154 = vmul.f32 %v2138, 0.5
      %v2155 = vmul.f32 %v2139, 0.5
      %v2156 = vmul.f32 %v2140, 0.5
      %v2157 = vmul.f32 %v2141, 0.5
      %v2158 = vmul.f32 %v2142, 0.5
      %v2159 = vmul.f32 %v2143, 0.5
      %v2160 = vmul.f32 %v2144, 0.5
      %v2161 = vmul.f32 %v2145, 0.5
      %v2162 = vmul.f32 %v2146, 0.5
      %v2163 = vmul.f32 %v2147, 0.5
      %v2164 = vmul.f32 %v2148, 0.5
      %v2165 = vmul.f32 %v2149, 0.5
      %v2166 = vmul.f32 %v2134, 0.70710677
      %v2167 = vmul.f32 %v2135, 0.70710677
      %v2168 = vmul.f32 %v2136, 0.70710677
      %v2169 = vmul.f32 %v2137, 0.70710677
      %v2170 = vmul.f32 %v2138, 0.70710677
      %v2171 = vmul.f32 %v2139, 0.70710677
      %v2172 = vmul.f32 %v2140, 0.70710677
      %v2173 = vmul.f32 %v2141, 0.70710677
      %v2174 = vmul.f32 %v2142, 0.70710677
      %v2175 = vmul.f32 %v2143, 0.70710677
      %v2176 = vmul.f32 %v2144, 0.70710677
      %v2177 = vmul.f32 %v2145, 0.70710677
      %v2178 = vmul.f32 %v2146, 0.70710677
      %v2179 = vmul.f32 %v2147, 0.70710677
      %v2180 = vmul.f32 %v2148, 0.70710677
      %v2181 = vmul.f32 %v2149, 0.70710677
      %v2182 = verf.f32.pop %v2166
      %v2183 = verf.f32.pop %v2167
      %v2184 = verf.f32.pop %v2168
      %v2185 = verf.f32.pop %v2169
      %v2186 = verf.f32.pop %v2170
      %v2187 = verf.f32.pop %v2171
      %v2188 = verf.f32.pop %v2172
      %v2189 = verf.f32.pop %v2173
      %v2190 = verf.f32.pop %v2174
      %v2191 = verf.f32.pop %v2175
      %v2192 = verf.f32.pop %v2176
      %v2193 = verf.f32.pop %v2177
      %v2194 = verf.f32.pop %v2178
      %v2195 = verf.f32.pop %v2179
      %v2196 = verf.f32.pop %v2180
      %v2197 = verf.f32.pop %v2181
      %v2198 = vadd.f32 %v2182, 1.0
      %v2199 = vadd.f32 %v2183, 1.0
      %v2200 = vadd.f32 %v2184, 1.0
      %v2201 = vadd.f32 %v2185, 1.0
      %v2202 = vadd.f32 %v2186, 1.0
      %v2203 = vadd.f32 %v2187, 1.0
      %v2204 = vadd.f32 %v2188, 1.0
      %v2205 = vadd.f32 %v2189, 1.0
      %v2206 = vadd.f32 %v2190, 1.0
      %v2207 = vadd.f32 %v2191, 1.0
      %v2208 = vadd.f32 %v2192, 1.0
      %v2209 = vadd.f32 %v2193, 1.0
      %v2210 = vadd.f32 %v2194, 1.0
      %v2211 = vadd.f32 %v2195, 1.0
      %v2212 = vadd.f32 %v2196, 1.0
      %v2213 = vadd.f32 %v2197, 1.0
      %v2214 = vmul.f32 %v2150, %v2198
      %v2215 = vmul.f32 %v2151, %v2199
      %v2216 = vmul.f32 %v2152, %v2200
      %v2217 = vmul.f32 %v2153, %v2201
      %v2218 = vmul.f32 %v2154, %v2202
      %v2219 = vmul.f32 %v2155, %v2203
      %v2220 = vmul.f32 %v2156, %v2204
      %v2221 = vmul.f32 %v2157, %v2205
      %v2222 = vmul.f32 %v2158, %v2206
      %v2223 = vmul.f32 %v2159, %v2207
      %v2224 = vmul.f32 %v2160, %v2208
      %v2225 = vmul.f32 %v2161, %v2209
      %v2226 = vmul.f32 %v2162, %v2210
      %v2227 = vmul.f32 %v2163, %v2211
      %v2228 = vmul.f32 %v2164, %v2212
      %v2229 = vmul.f32 %v2165, %v2213
      %vm2230 = vcmask 261120
      %2231 = vst.msk [vmem:[%s224] sm:$0xff] %vm2230, %v2214
      %2232 = vst.msk [vmem:[%s224 + $0x8] sm:$0xff] %vm2230, %v2215
      %2233 = vst.msk [vmem:[%s224 + $0x10] sm:$0xff] %vm2230, %v2216
      %2234 = vst.msk [vmem:[%s224 + $0x18] sm:$0xff] %vm2230, %v2217
      %2235 = vst.msk [vmem:[%s224 + $0x20] sm:$0xff] %vm2230, %v2218
      %2236 = vst.msk [vmem:[%s224 + $0x28] sm:$0xff] %vm2230, %v2219
      %2237 = vst.msk [vmem:[%s224 + $0x30] sm:$0xff] %vm2230, %v2220
      %2238 = vst.msk [vmem:[%s224 + $0x38] sm:$0xff] %vm2230, %v2221
      %2239 = vst.msk [vmem:[%s224 + $0x40] sm:$0xff] %vm2230, %v2222
      %2240 = vst.msk [vmem:[%s224 + $0x48] sm:$0xff] %vm2230, %v2223
      %2241 = vst.msk [vmem:[%s224 + $0x50] sm:$0xff] %vm2230, %v2224
      %2242 = vst.msk [vmem:[%s224 + $0x58] sm:$0xff] %vm2230, %v2225
      %2243 = vst.msk [vmem:[%s224 + $0x60] sm:$0xff] %vm2230, %v2226
      %2244 = vst.msk [vmem:[%s224 + $0x68] sm:$0xff] %vm2230, %v2227
      %2245 = vst.msk [vmem:[%s224 + $0x70] sm:$0xff] %vm2230, %v2228
      %2246 = vst.msk [vmem:[%s224 + $0x78] sm:$0xff] %vm2230, %v2229
      %p2247 = scmp.lt.s32.totalorder %s16, 1
      %s2248 = scalar_select %p2247, %s16, 1
      %s2249 = smul.addr %s2248, 16
      %s2250 = smul.addr %s2249, 8
      %s2251 = scalar_lea.vmem %s5, %s2250
      // Predicated region
      $region41: #{encoder_forward.8} parent=39 // pred_check
        %p2252 = pneg %p144
      $region42: #{encoder_forward.8} parent=39 // pred_check_branch
        %2254 = sbr.rel (%p2252) target = $region44
      $region43: #{encoder_forward.8} parent=39 // pred_region
        _
      $region44: #{encoder_forward.8} parent=39 // pred_fallthru
        _
    $region40: #{encoder_forward.8} parent=5 // pred_fallthru
      _
    %p2255 = scmp.le.s32.totalorder 2, %s11
    // Predicated region
    $region45: #{encoder_forward.8} parent=5 // pred_check
      %p2256 = pneg %p2255
    $region46: #{encoder_forward.8} parent=5 // pred_check_branch
      %2258 = sbr.rel (%p2256) target = $region48
    $region47: #{encoder_forward.8} parent=5 // pred_region
      %s2259 = ssub.s32 %s11, 2
      // Predicated region
      $region49: #{encoder_forward.8} parent=47 // pred_check
        %p2260 = pneg %p150
      $region50: #{encoder_forward.8} parent=47 // pred_check_branch
        %2262 = sbr.rel (%p2260) target = $region52
      $region51: #{encoder_forward.8} parent=47 // pred_region
        %p2263 = scmp.lt.s32.totalorder %s17, 1
        %s2264 = scalar_select %p2263, %s17, 1
        %s2265 = smul.addr %s2264, 16
        %s2266 = smul.addr %s2265, 8
        %s2267 = scalar_lea.vmem %s5, %s2266
      $region52: #{encoder_forward.8} parent=47 // pred_fallthru
        _
    $region48: #{encoder_forward.8} parent=5 // pred_fallthru
      _
  $region6: #{encoder_forward.8} parent=0 // loop_footer
    %s15 = sadd.s32 1, %s11
  $region7: #{encoder_forward.8} parent=0 // loop_footer_branch
    %10 = sbr.rel target = $region3
  $region8: #{encoder_forward.8} parent=0 // loop_exit
    _

// kernel: encoder_forward.9
$region0: #{encoder_forward.9}
  #allocation0 [shape = 'u32[]', space=smem, size = 0x4, offset = 0x4, fixed_abs, tag = 'smem constant byte address 0x4 - core index']
  #allocation1 [shape = 'u32[144,128]{1,0:T(1,128)}', space=vmem, size = 0x12000, scoped, tag = 'internal scratch']
  %s0 = inlined_call_operand.vmem [shape: bf16[2,10,18,32], index: 0, kind: input, shape index: {}]
  %s1 = inlined_call_operand.vmem [shape: bf16[9,32,8], index: 1, kind: input, shape index: {}]
  %s2 = inlined_call_operand.vmem [shape: f32[1,8], index: 2, kind: input, shape index: {}]
  %s3 = inlined_call_operand.vmem [shape: f32[2,8,16,8], index: 3, kind: input, shape index: {}]
  %s4 = inlined_call_operand.vmem [shape: f32[2,8,16,8], index: 4, kind: output, shape index: {}]
  %s5 = sld [smem:[#allocation0]]
  $region49: #{encoder_forward.9} parent=0
    _
  %s7 = ssub.s32 1, %s5
  %s8 = scalar_select 0, %s7, %s5
  loop: start=0, step=1, limit=4
  $region2: #{encoder_forward.9} parent=0 // loop_pre_header
    _
  $region3: #{encoder_forward.9} parent=0 // loop_header
    %s10 = sphi 0, %s14
    %p11 = scmp.ge.s32.totalorder %s10, 4
    %s20 = sphi 0, %s22
    %s23 = sphi 0, %s20
    %s24 = sphi 0, %s23
    %s40 = sphi 0, %s24
    %s44 = sphi 0, %s44
    %s46 = sphi 0, %s44
    %s47 = sphi 0, %s46
    %s61 = sphi 0, %s47
    %s65 = sphi 0, %s65
    %s67 = sphi 0, %s65
    %s68 = sphi 0, %s67
    %s82 = sphi 0, %s68
    %s88 = sphi 0, %s90
    %s91 = sphi 0, %s88
    %s92 = sphi 0, %s91
    %s108 = sphi 0, %s92
    %s114 = sphi 0, %s116
    %s117 = sphi 0, %s114
    %s118 = sphi 0, %s117
    %s134 = sphi 0, %s118
  $region4: #{encoder_forward.9} parent=0 // loop_header_branch
    %13 = sbr.rel (%p11) target = $region8
  $region5: #{encoder_forward.9} parent=0 // loop_body
    %s15 = ssub.s32 %s10, 1
    %s16 = ssub.s32 %s10, 2
    %s17 = sadd.s32 %s10, 1
    %s18 = ssub.s32 %s10, %s17
    %p19 = scmp.eq.s32.totalorder %s18, 0
    %s21 = sadd.s32 %s20, 1
    %s22 = scalar_select %p19, %s20, %s21
    %p25 = pneg %p19
    %p26 = scmp.eq.s32.totalorder %s10, 1
    %p27 = por %p25, %p26
    %p28 = scmp.ne.s32.totalorder %s20, %s23
    %p29 = scmp.eq.s32.totalorder %s10, 0
    %p30 = por %p28, %p29
    %p31 = scmp.ne.s32.totalorder %s20, %s23
    %p32 = scmp.eq.s32.totalorder %s15, 1
    %p33 = por %p31, %p32
    %p34 = scmp.ne.s32.totalorder %s23, %s24
    %p35 = scmp.eq.s32.totalorder %s15, 0
    %p36 = por %p34, %p35
    %p37 = scmp.ne.s32.totalorder %s23, %s24
    %p38 = scmp.eq.s32.totalorder %s16, 1
    %p39 = por %p37, %p38
    %p41 = scmp.ne.s32.totalorder %s24, %s40
    %p42 = scmp.eq.s32.totalorder %s16, 0
    %p43 = por %p41, %p42
    %s45 = sadd.s32 %s44, 1
    %p48 = scmp.eq.s32.totalorder %s10, 1
    %p49 = scmp.ne.s32.totalorder %s44, %s46
    %p50 = scmp.eq.s32.totalorder %s10, 0
    %p51 = por %p49, %p50
    %p52 = scmp.ne.s32.totalorder %s44, %s46
    %p53 = scmp.eq.s32.totalorder %s15, 1
    %p54 = por %p52, %p53
    %p55 = scmp.ne.s32.totalorder %s46, %s47
    %p56 = scmp.eq.s32.totalorder %s15, 0
    %p57 = por %p55, %p56
    %p58 = scmp.ne.s32.totalorder %s46, %s47
    %p59 = scmp.eq.s32.totalorder %s16, 1
    %p60 = por %p58, %p59
    %p62 = scmp.ne.s32.totalorder %s47, %s61
    %p63 = scmp.eq.s32.totalorder %s16, 0
    %p64 = por %p62, %p63
    %s66 = sadd.s32 %s65, 1
    %p69 = scmp.eq.s32.totalorder %s10, 1
    %p70 = scmp.ne.s32.totalorder %s65, %s67
    %p71 = scmp.eq.s32.totalorder %s10, 0
    %p72 = por %p70, %p71
    %p73 = scmp.ne.s32.totalorder %s65, %s67
    %p74 = scmp.eq.s32.totalorder %s15, 1
    %p75 = por %p73, %p74
    %p76 = scmp.ne.s32.totalorder %s67, %s68
    %p77 = scmp.eq.s32.totalorder %s15, 0
    %p78 = por %p76, %p77
    %p79 = scmp.ne.s32.totalorder %s67, %s68
    %p80 = scmp.eq.s32.totalorder %s16, 1
    %p81 = por %p79, %p80
    %p83 = scmp.ne.s32.totalorder %s68, %s82
    %p84 = scmp.eq.s32.totalorder %s16, 0
    %p85 = por %p83, %p84
    %s86 = ssub.s32 %s10, %s17
    %p87 = scmp.eq.s32.totalorder %s86, 0
    %s89 = sadd.s32 %s88, 1
    %s90 = scalar_select %p87, %s88, %s89
    %p93 = pneg %p87
    %p94 = scmp.eq.s32.totalorder %s10, 1
    %p95 = por %p93, %p94
    %p96 = scmp.ne.s32.totalorder %s88, %s91
    %p97 = scmp.eq.s32.totalorder %s10, 0
    %p98 = por %p96, %p97
    %p99 = scmp.ne.s32.totalorder %s88, %s91
    %p100 = scmp.eq.s32.totalorder %s15, 1
    %p101 = por %p99, %p100
    %p102 = scmp.ne.s32.totalorder %s91, %s92
    %p103 = scmp.eq.s32.totalorder %s15, 0
    %p104 = por %p102, %p103
    %p105 = scmp.ne.s32.totalorder %s91, %s92
    %p106 = scmp.eq.s32.totalorder %s16, 1
    %p107 = por %p105, %p106
    %p109 = scmp.ne.s32.totalorder %s92, %s108
    %p110 = scmp.eq.s32.totalorder %s16, 0
    %p111 = por %p109, %p110
    %s112 = ssub.s32 %s10, %s17
    %p113 = scmp.eq.s32.totalorder %s112, 0
    %s115 = sadd.s32 %s114, 1
    %s116 = scalar_select %p113, %s114, %s115
    %p119 = pneg %p113
    %p120 = scmp.eq.s32.totalorder %s10, 1
    %p121 = por %p119, %p120
    %p122 = scmp.ne.s32.totalorder %s114, %s117
    %p123 = scmp.eq.s32.totalorder %s10, 0
    %p124 = por %p122, %p123
    %p125 = scmp.ne.s32.totalorder %s114, %s117
    %p126 = scmp.eq.s32.totalorder %s15, 1
    %p127 = por %p125, %p126
    %p128 = scmp.ne.s32.totalorder %s117, %s118
    %p129 = scmp.eq.s32.totalorder %s15, 0
    %p130 = por %p128, %p129
    %p131 = scmp.ne.s32.totalorder %s117, %s118
    %p132 = scmp.eq.s32.totalorder %s16, 1
    %p133 = por %p131, %p132
    %p135 = scmp.ne.s32.totalorder %s118, %s134
    %p136 = scmp.eq.s32.totalorder %s16, 0
    %p137 = por %p135, %p136
    %p138 = scmp.le.s32.totalorder 1, %s10
    %p139 = scmp.lt.s32.totalorder %s10, 3
    %p140 = pnand %p138, %p139
    %p141 = pneg %p140
    // Predicated region
    $region9: #{encoder_forward.9} parent=5 // pred_check
      _
    $region10: #{encoder_forward.9} parent=5 // pred_check_branch
      %143 = sbr.rel (%p140) target = $region12
    $region11: #{encoder_forward.9} parent=5 // pred_region
      %s144 = ssub.s32 %s10, 1
      // Predicated region
      $region13: #{encoder_forward.9} parent=11 // pred_check
        %p145 = pneg %p57
      $region14: #{encoder_forward.9} parent=11 // pred_check_branch
        %147 = sbr.rel (%p145) target = $region16
      $region15: #{encoder_forward.9} parent=11 // pred_region
        _
      $region16: #{encoder_forward.9} parent=11 // pred_fallthru
        _
      // Predicated region
      $region17: #{encoder_forward.9} parent=11 // pred_check
        %p148 = pneg %p78
      $region18: #{encoder_forward.9} parent=11 // pred_check_branch
        %150 = sbr.rel (%p148) target = $region20
      $region19: #{encoder_forward.9} parent=11 // pred_region
        _
      $region20: #{encoder_forward.9} parent=11 // pred_fallthru
        _
    $region12: #{encoder_forward.9} parent=5 // pred_fallthru
      _
    %p151 = scmp.lt.s32.totalorder %s10, 2
    // Predicated region
    $region21: #{encoder_forward.9} parent=5 // pred_check
      %p152 = pneg %p151
    $region22: #{encoder_forward.9} parent=5 // pred_check_branch
      %154 = sbr.rel (%p152) target = $region24
    $region23: #{encoder_forward.9} parent=5 // pred_region
      // Predicated region
      $region25: #{encoder_forward.9} parent=23 // pred_check
        %p155 = pneg %p30
      $region26: #{encoder_forward.9} parent=23 // pred_check_branch
        %157 = sbr.rel (%p155) target = $region28
      $region27: #{encoder_forward.9} parent=23 // pred_region
        %p158 = scmp.lt.s32.totalorder %s10, 1
        %s159 = scalar_select %p158, %s10, 1
        %s160 = smul.addr %s159, 30
        %s161 = smul.addr %s160, 4
        %s162 = scalar_lea.vmem %s0, %s161
      $region28: #{encoder_forward.9} parent=23 // pred_fallthru
        _
      // Predicated region
      $region29: #{encoder_forward.9} parent=23 // pred_check
        %p163 = pneg %p98
      $region30: #{encoder_forward.9} parent=23 // pred_check_branch
        %165 = sbr.rel (%p163) target = $region32
      $region31: #{encoder_forward.9} parent=23 // pred_region
        %p166 = scmp.lt.s32.totalorder %s10, 1
        %s167 = scalar_select %p166, %s10, 1
        %s168 = smul.addr %s167, 16
        %s169 = smul.addr %s168, 8
        %s170 = scalar_lea.vmem %s3, %s169
      $region32: #{encoder_forward.9} parent=23 // pred_fallthru
        _
    $region24: #{encoder_forward.9} parent=5 // pred_fallthru
      _
    %p171 = scmp.le.s32.totalorder 1, %s10
    %p172 = scmp.lt.s32.totalorder %s10, 3
    %p173 = pnand %p171, %p172
    %p174 = pneg %p173
    // Predicated region
    $region33: #{encoder_forward.9} parent=5 // pred_check
      _
    $region34: #{encoder_forward.9} parent=5 // pred_check_branch
      %176 = sbr.rel (%p173) target = $region36
    $region35: #{encoder_forward.9} parent=5 // pred_region
      %s177 = ssub.s32 %s10, 1
      %p178 = scmp.lt.s32.totalorder %s15, 1
      %s179 = scalar_select %p178, %s15, 1
      %s180 = smul.addr %s179, 30
      %s181 = smul.addr %s180, 4
      %s182 = scalar_lea.vmem %s0, %s181
      %p183 = pneg %p36
      %p184 = pneg %p33
      %p185 = pneg %p57
      %p186 = pneg %p54
      %p187 = pneg %p78
      %p188 = pneg %p75
      %p189 = scmp.lt.s32.totalorder %s15, 1
      %s190 = scalar_select %p189, %s15, 1
      %s191 = smul.addr %s190, 16
      %s192 = smul.addr %s191, 8
      %s193 = scalar_lea.vmem %s3, %s192
      %p194 = pneg %p104
      %p195 = pneg %p101
      %p196 = pneg %p130
      %p197 = pneg %p127
      %p198 = scmp.lt.s32.totalorder %s15, 1
      %s199 = scalar_select %p198, %s15, 1
      %s200 = smul.addr %s199, 16
      %s201 = smul.addr %s200, 8
      %s202 = scalar_lea.vmem %s4, %s201
      %p203 = scmp.lt.s32.totalorder %s15, 1
      %s204 = scalar_select %p203, %s15, 1
      %s205 = smul.addr %s204, 30
      %s206 = smul.addr %s205, 4
      %s207 = scalar_lea.vmem %s0, %s206
      %p208 = scmp.lt.s32.totalorder %s15, 1
      %s209 = scalar_select %p208, %s15, 1
      %s210 = smul.addr %s209, 16
      %s211 = smul.addr %s210, 8
      %s212 = scalar_lea.vmem %s3, %s211
      %p213 = scmp.lt.s32.totalorder %s15, 1
      %s214 = scalar_select %p213, %s15, 1
      %s215 = smul.addr %s214, 16
      %s216 = smul.addr %s215, 8
      %s217 = scalar_lea.vmem %s4, %s216
      %v219 = vld [vmem:[%s207] sm:$0xf]
      %v220 = vld [vmem:[%s207 + $0x4] sm:$0xf]
      %v221 = vld [vmem:[%s207 + $0x8] sm:$0x1]
      %v222 = vld [vmem:[%s207 + $0xc] sm:$0xf]
      %v223 = vld [vmem:[%s207 + $0x10] sm:$0xf]
      %v224 = vld [vmem:[%s207 + $0x14] sm:$0x1]
      %v225 = vld [vmem:[%s207 + $0x18] sm:$0xf]
      %v226 = vld [vmem:[%s207 + $0x1c] sm:$0xf]
      %v227 = vld [vmem:[%s207 + $0x20] sm:$0x1]
      %v228 = vld [vmem:[%s207 + $0x24] sm:$0xf]
      %v229 = vld [vmem:[%s207 + $0x28] sm:$0xf]
      %v230 = vld [vmem:[%s207 + $0x2c] sm:$0x1]
      %v231 = vld [vmem:[%s207 + $0x30] sm:$0xf]
      %v232 = vld [vmem:[%s207 + $0x34] sm:$0xf]
      %v233 = vld [vmem:[%s207 + $0x38] sm:$0x1]
      %v234 = vld [vmem:[%s207 + $0x3c] sm:$0xf]
      %v235 = vld [vmem:[%s207 + $0x40] sm:$0xf]
      %v236 = vld [vmem:[%s207 + $0x44] sm:$0x1]
      %v237 = vld [vmem:[%s207 + $0x48] sm:$0xf]
      %v238 = vld [vmem:[%s207 + $0x4c] sm:$0xf]
      %v239 = vld [vmem:[%s207 + $0x50] sm:$0x1]
      %v240 = vld [vmem:[%s207 + $0x54] sm:$0xf]
      %v241 = vld [vmem:[%s207 + $0x58] sm:$0xf]
      %v242 = vld [vmem:[%s207 + $0x5c] sm:$0x1]
      %v243 = vld [vmem:[%s207 + $0x60] sm:$0xf]
      %v244 = vld [vmem:[%s207 + $0x64] sm:$0xf]
      %v245 = vld [vmem:[%s207 + $0x68] sm:$0x1]
      %v246 = vld [vmem:[%s207 + $0x6c] sm:$0xf]
      %v247 = vld [vmem:[%s207 + $0x70] sm:$0xf]
      %v248 = vld [vmem:[%s207 + $0x74] sm:$0x1]
      %v249 = vunpack.c.l.bf16 %v219
      %v250 = vunpack.c.l.bf16 %v220
      %v251 = vunpack.c.l.bf16 %v221
      %v252 = vunpack.c.l.bf16 %v222
      %v253 = vunpack.c.l.bf16 %v223
      %v254 = vunpack.c.l.bf16 %v224
      %v255 = vunpack.c.l.bf16 %v225
      %v256 = vunpack.c.l.bf16 %v226
      %v257 = vunpack.c.l.bf16 %v227
      %v258 = vunpack.c.l.bf16 %v228
      %v259 = vunpack.c.l.bf16 %v229
      %v260 = vunpack.c.l.bf16 %v230
      %v261 = vunpack.c.l.bf16 %v231
      %v262 = vunpack.c.l.bf16 %v232
      %v263 = vunpack.c.l.bf16 %v233
      %v264 = vunpack.c.l.bf16 %v234
      %v265 = vunpack.c.l.bf16 %v235
      %v266 = vunpack.c.l.bf16 %v236
      %v267 = vunpack.c.l.bf16 %v237
      %v268 = vunpack.c.l.bf16 %v238
      %v269 = vunpack.c.l.bf16 %v239
      %v270 = vunpack.c.l.bf16 %v240
      %v271 = vunpack.c.l.bf16 %v241
      %v272 = vunpack.c.l.bf16 %v242
      %v273 = vunpack.c.l.bf16 %v243
      %v274 = vunpack.c.l.bf16 %v244
      %v275 = vunpack.c.l.bf16 %v245
      %v276 = vunpack.c.l.bf16 %v246
      %v277 = vunpack.c.l.bf16 %v247
      %v278 = vunpack.c.l.bf16 %v248
      %v279 = vpack.c.bf16 %v250, %v249
      %v280 = vpack.c.bf16 %v253, %v252
      %v281 = vpack.c.bf16 %v256, %v255
      %v282 = vpack.c.bf16 %v259, %v258
      %v283 = vpack.c.bf16 %v262, %v261
      %v284 = vpack.c.bf16 %v265, %v264
      %v285 = vpack.c.bf16 %v268, %v267
      %v286 = vpack.c.bf16 %v271, %v270
      %v287 = vld [vmem:[%s1] sm:$0xf]
      %v288 = vld [vmem:[%s1 + $0x4] sm:$0xf]
      %v289 = vld [vmem:[%s1 + $0x8] sm:$0xf]
      %v290 = vld [vmem:[%s1 + $0xc] sm:$0xf]
      %vm315 = vcmask 1046528
      %v316 = vrot.slane %v249, 1
      %v317 = vrot.slane %v250, 1
      %v318 = vsel %vm315, %v316, %v317
      %v319 = vrot.slane %v251, 1
      %v320 = vsel %vm315, %v317, %v319
      %v321 = vrot.slane %v252, 1
      %v322 = vrot.slane %v253, 1
      %v323 = vsel %vm315, %v321, %v322
      %v324 = vrot.slane %v254, 1
      %v325 = vsel %vm315, %v322, %v324
      %v326 = vrot.slane %v255, 1
      %v327 = vrot.slane %v256, 1
      %v328 = vsel %vm315, %v326, %v327
      %v329 = vrot.slane %v257, 1
      %v330 = vsel %vm315, %v327, %v329
      %v331 = vrot.slane %v258, 1
      %v332 = vrot.slane %v259, 1
      %v333 = vsel %vm315, %v331, %v332
      %v334 = vrot.slane %v260, 1
      %v335 = vsel %vm315, %v332, %v334
      %v336 = vrot.slane %v261, 1
      %v337 = vrot.slane %v262, 1
      %v338 = vsel %vm315, %v336, %v337
      %v339 = vrot.slane %v263, 1
      %v340 = vsel %vm315, %v337, %v339
      %v341 = vrot.slane %v264, 1
      %v342 = vrot.slane %v265, 1
      %v343 = vsel %vm315, %v341, %v342
      %v344 = vrot.slane %v266, 1
      %v345 = vsel %vm315, %v342, %v344
      %v346 = vrot.slane %v267, 1
      %v347 = vrot.slane %v268, 1
      %v348 = vsel %vm315, %v346, %v347
      %v349 = vrot.slane %v269, 1
      %v350 = vsel %vm315, %v347, %v349
      %v351 = vrot.slane %v270, 1
      %v352 = vrot.slane %v271, 1
      %v353 = vsel %vm315, %v351, %v352
      %v354 = vrot.slane %v272, 1
      %v355 = vsel %vm315, %v352, %v354
      %v372 = vpack.c.bf16 %v320, %v318
      %v373 = vpack.c.bf16 %v325, %v323
      %v374 = vpack.c.bf16 %v330, %v328
      %v375 = vpack.c.bf16 %v335, %v333
      %v376 = vpack.c.bf16 %v340, %v338
      %v377 = vpack.c.bf16 %v345, %v343
      %v378 = vpack.c.bf16 %v350, %v348
      %v379 = vpack.c.bf16 %v355, %v353
      %s380 = scalar_lea.vmem %s1, 16
      %v381 = vld [vmem:[%s380] sm:$0xf]
      %v382 = vld [vmem:[%s380 + $0x4] sm:$0xf]
      %v383 = vld [vmem:[%s380 + $0x8] sm:$0xf]
      %v384 = vld [vmem:[%s380 + $0xc] sm:$0xf]
      %v389 = vunpack.c.l.b16 %v381
      %v390 = vunpack.c.l.b16 %v382
      %v391 = vunpack.c.l.b16 %v383
      %v392 = vunpack.c.l.b16 %v384
      %v393 = vpack.c.b16 %v390, %v389
      %v394 = vpack.c.b16 %v392, %v391
      %vm397 = vcmask 261120
      %v399 = vsel %vm397, %v372, 0
      %v402 = vsel %vm397, %v373, 0
      %v405 = vsel %vm397, %v374, 0
      %v408 = vsel %vm397, %v375, 0
      %v411 = vsel %vm397, %v376, 0
      %v414 = vsel %vm397, %v377, 0
      %v417 = vsel %vm397, %v378, 0
      %v420 = vsel %vm397, %v379, 0
      %422 = vmatprep.subr.bf16.mxu0 0
      %423 = vmatpush1.bf16.msra.mxu0 %v393
      %424 = vmatprep.subr.bf16.mxu0 0
      %425 = vmatpush1.bf16.msra.mxu0 %v394
      %426 = vmatprep.subr.bf16.mxu0 0
      %427 = vmatpush1.bf16.msra.mxu0 0
      %428 = vmatprep.subr.bf16.mxu0 0
      %429 = vmatpush1.bf16.msra.mxu0 0
      %430 = vmatprep.subr.bf16.mxu0 0
      %431 = vmatpush1.bf16.msra.mxu0 0
      %432 = vmatprep.subr.bf16.mxu0 0
      %433 = vmatpush1.bf16.msra.mxu0 0
      %434 = vmatprep.subr.bf16.mxu0 0
      %435 = vmatpush1.bf16.msra.mxu0 0
      %436 = vmatprep.subr.bf16.mxu0 0
      %437 = vmatpush1.bf16.msra.mxu0 0
      %438 = vmatprep.subr.bf16.mxu0 0
      %439 = vmatpush1.bf16.msra.mxu0 0
      %440 = vmatprep.subr.bf16.mxu0 0
      %441 = vmatpush1.bf16.msra.mxu0 0
      %442 = vmatprep.subr.bf16.mxu0 0
      %443 = vmatpush1.bf16.msra.mxu0 0
      %444 = vmatprep.subr.bf16.mxu0 0
      %445 = vmatpush1.bf16.msra.mxu0 0
      %446 = vmatprep.subr.bf16.mxu0 0
      %447 = vmatpush1.bf16.msra.mxu0 0
      %448 = vmatprep.subr.bf16.mxu0 0
      %449 = vmatpush1.bf16.msra.mxu0 0
      %450 = vmatprep.subr.bf16.mxu0 0
      %451 = vmatpush1.bf16.msra.mxu0 0
      %452 = vmatprep.subr.bf16.mxu0 0
      %453 = vmatpush1.bf16.msra.mxu0 0
      %454 = vmatprep.mubr.bf16.mxu0 0
      %455 = vmatmul.mubr.bf16.gmra.mrb[0].mxu0 %v399
      %v456 = vpop.f32.mrb[0].mxu0
      %v457 = vadd.f32 0.0, %v456
      %v458 = vpop.f32.mrb[0].mxu0
      %v459 = vpop.f32.mrb[0].mxu0
      %v460 = vadd.f32 0.0, %v459
      %v461 = vpop.f32.mrb[0].mxu0
      %462 = vmatprep.mubr.bf16.mxu0 0
      %463 = vmatmul.mubr.bf16.gmra.mrb[0].mxu0 %v402
      %v464 = vpop.f32.mrb[0].mxu0
      %v465 = vadd.f32 0.0, %v464
      %v466 = vpop.f32.mrb[0].mxu0
      %v467 = vpop.f32.mrb[0].mxu0
      %v468 = vadd.f32 0.0, %v467
      %v469 = vpop.f32.mrb[0].mxu0
      %470 = vmatprep.mubr.bf16.mxu0 0
      %471 = vmatmul.mubr.bf16.gmra.mrb[0].mxu0 %v405
      %v472 = vpop.f32.mrb[0].mxu0
      %v473 = vadd.f32 0.0, %v472
      %v474 = vpop.f32.mrb[0].mxu0
      %v475 = vpop.f32.mrb[0].mxu0
      %v476 = vadd.f32 0.0, %v475
      %v477 = vpop.f32.mrb[0].mxu0
      %478 = vmatprep.mubr.bf16.mxu0 0
      %479 = vmatmul.mubr.bf16.gmra.mrb[0].mxu0 %v408
      %v480 = vpop.f32.mrb[0].mxu0
      %v481 = vadd.f32 0.0, %v480
      %v482 = vpop.f32.mrb[0].mxu0
      %v483 = vpop.f32.mrb[0].mxu0
      %v484 = vadd.f32 0.0, %v483
      %v485 = vpop.f32.mrb[0].mxu0
      %486 = vmatprep.mubr.bf16.mxu0 0
      %487 = vmatmul.mubr.bf16.gmra.mrb[0].mxu0 %v411
      %v488 = vpop.f32.mrb[0].mxu0
      %v489 = vadd.f32 0.0, %v488
      %v490 = vpop.f32.mrb[0].mxu0
      %v491 = vpop.f32.mrb[0].mxu0
      %v492 = vadd.f32 0.0, %v491
      %v493 = vpop.f32.mrb[0].mxu0
      %494 = vmatprep.mubr.bf16.mxu0 0
      %495 = vmatmul.mubr.bf16.gmra.mrb[0].mxu0 %v414
      %v496 = vpop.f32.mrb[0].mxu0
      %v497 = vadd.f32 0.0, %v496
      %v498 = vpop.f32.mrb[0].mxu0
      %v499 = vpop.f32.mrb[0].mxu0
      %v500 = vadd.f32 0.0, %v499
      %v501 = vpop.f32.mrb[0].mxu0
      %502 = vmatprep.mubr.bf16.mxu0 0
      %503 = vmatmul.mubr.bf16.gmra.mrb[0].mxu0 %v417
      %v504 = vpop.f32.mrb[0].mxu0
      %v505 = vadd.f32 0.0, %v504
      %v506 = vpop.f32.mrb[0].mxu0
      %v507 = vpop.f32.mrb[0].mxu0
      %v508 = vadd.f32 0.0, %v507
      %v509 = vpop.f32.mrb[0].mxu0
      %510 = vmatprep.mubr.bf16.mxu0 0
      %511 = vmatmul.mubr.bf16.gmra.mrb[0].mxu0 %v420
      %v512 = vpop.f32.mrb[0].mxu0
      %v513 = vadd.f32 0.0, %v512
      %v514 = vpop.f32.mrb[0].mxu0
      %v515 = vpop.f32.mrb[0].mxu0
      %v516 = vadd.f32 0.0, %v515
      %v517 = vpop.f32.mrb[0].mxu0
      %518 = vdwg.mxu0
      %v523 = vunpack.c.l.b16 %v287
      %v524 = vunpack.c.l.b16 %v288
      %v525 = vunpack.c.l.b16 %v289
      %v526 = vunpack.c.l.b16 %v290
      %v527 = vpack.c.b16 %v524, %v523
      %v528 = vpack.c.b16 %v526, %v525
      %v532 = vsel %vm397, %v279, 0
      %v535 = vsel %vm397, %v280, 0
      %v538 = vsel %vm397, %v281, 0
      %v541 = vsel %vm397, %v282, 0
      %v544 = vsel %vm397, %v283, 0
      %v547 = vsel %vm397, %v284, 0
      %v550 = vsel %vm397, %v285, 0
      %v553 = vsel %vm397, %v286, 0
      %555 = vmatprep.subr.bf16.mxu0 0
      %556 = vmatpush1.bf16.msra.mxu0 %v527
      %557 = vmatprep.subr.bf16.mxu0 0
      %558 = vmatpush1.bf16.msra.mxu0 %v528
      %559 = vmatprep.subr.bf16.mxu0 0
      %560 = vmatpush1.bf16.msra.mxu0 0
      %561 = vmatprep.subr.bf16.mxu0 0
      %562 = vmatpush1.bf16.msra.mxu0 0
      %563 = vmatprep.subr.bf16.mxu0 0
      %564 = vmatpush1.bf16.msra.mxu0 0
      %565 = vmatprep.subr.bf16.mxu0 0
      %566 = vmatpush1.bf16.msra.mxu0 0
      %567 = vmatprep.subr.bf16.mxu0 0
      %568 = vmatpush1.bf16.msra.mxu0 0
      %569 = vmatprep.subr.bf16.mxu0 0
      %570 = vmatpush1.bf16.msra.mxu0 0
      %571 = vmatprep.subr.bf16.mxu0 0
      %572 = vmatpush1.bf16.msra.mxu0 0
      %573 = vmatprep.subr.bf16.mxu0 0
      %574 = vmatpush1.bf16.msra.mxu0 0
      %575 = vmatprep.subr.bf16.mxu0 0
      %576 = vmatpush1.bf16.msra.mxu0 0
      %577 = vmatprep.subr.bf16.mxu0 0
      %578 = vmatpush1.bf16.msra.mxu0 0
      %579 = vmatprep.subr.bf16.mxu0 0
      %580 = vmatpush1.bf16.msra.mxu0 0
      %581 = vmatprep.subr.bf16.mxu0 0
      %582 = vmatpush1.bf16.msra.mxu0 0
      %583 = vmatprep.subr.bf16.mxu0 0
      %584 = vmatpush1.bf16.msra.mxu0 0
      %585 = vmatprep.subr.bf16.mxu0 0
      %586 = vmatpush1.bf16.msra.mxu0 0
      %587 = vmatprep.mubr.bf16.mxu0 0
      %588 = vmatmul.mubr.bf16.gmra.mrb[0].mxu0 %v532
      %v589 = vpop.f32.mrb[0].mxu0
      %v590 = vadd.f32 %v457, %v589
      %v591 = vpop.f32.mrb[0].mxu0
      %v592 = vpop.f32.mrb[0].mxu0
      %v593 = vadd.f32 %v460, %v592
      %v594 = vpop.f32.mrb[0].mxu0
      %595 = vmatprep.mubr.bf16.mxu0 0
      %596 = vmatmul.mubr.bf16.gmra.mrb[0].mxu0 %v535
      %v597 = vpop.f32.mrb[0].mxu0
      %v598 = vadd.f32 %v465, %v597
      %v599 = vpop.f32.mrb[0].mxu0
      %v600 = vpop.f32.mrb[0].mxu0
      %v601 = vadd.f32 %v468, %v600
      %v602 = vpop.f32.mrb[0].mxu0
      %603 = vmatprep.mubr.bf16.mxu0 0
      %604 = vmatmul.mubr.bf16.gmra.mrb[0].mxu0 %v538
      %v605 = vpop.f32.mrb[0].mxu0
      %v606 = vadd.f32 %v473, %v605
      %v607 = vpop.f32.mrb[0].mxu0
      %v608 = vpop.f32.mrb[0].mxu0
      %v609 = vadd.f32 %v476, %v608
      %v610 = vpop.f32.mrb[0].mxu0
      %611 = vmatprep.mubr.bf16.mxu0 0
      %612 = vmatmul.mubr.bf16.gmra.mrb[0].mxu0 %v541
      %v613 = vpop.f32.mrb[0].mxu0
      %v614 = vadd.f32 %v481, %v613
      %v615 = vpop.f32.mrb[0].mxu0
      %v616 = vpop.f32.mrb[0].mxu0
      %v617 = vadd.f32 %v484, %v616
      %v618 = vpop.f32.mrb[0].mxu0
      %619 = vmatprep.mubr.bf16.mxu0 0
      %620 = vmatmul.mubr.bf16.gmra.mrb[0].mxu0 %v544
      %v621 = vpop.f32.mrb[0].mxu0
      %v622 = vadd.f32 %v489, %v621
      %v623 = vpop.f32.mrb[0].mxu0
      %v624 = vpop.f32.mrb[0].mxu0
      %v625 = vadd.f32 %v492, %v624
      %v626 = vpop.f32.mrb[0].mxu0
      %627 = vmatprep.mubr.bf16.mxu0 0
      %628 = vmatmul.mubr.bf16.gmra.mrb[0].mxu0 %v547
      %v629 = vpop.f32.mrb[0].mxu0
      %v630 = vadd.f32 %v497, %v629
      %v631 = vpop.f32.mrb[0].mxu0
      %v632 = vpop.f32.mrb[0].mxu0
      %v633 = vadd.f32 %v500, %v632
      %v634 = vpop.f32.mrb[0].mxu0
      %635 = vmatprep.mubr.bf16.mxu0 0
      %636 = vmatmul.mubr.bf16.gmra.mrb[0].mxu0 %v550
      %v637 = vpop.f32.mrb[0].mxu0
      %v638 = vadd.f32 %v505, %v637
      %v639 = vpop.f32.mrb[0].mxu0
      %v640 = vpop.f32.mrb[0].mxu0
      %v641 = vadd.f32 %v508, %v640
      %v642 = vpop.f32.mrb[0].mxu0
      %643 = vmatprep.mubr.bf16.mxu0 0
      %644 = vmatmul.mubr.bf16.gmra.mrb[0].mxu0 %v553
      %v645 = vpop.f32.mrb[0].mxu0
      %v646 = vadd.f32 %v513, %v645
      %v647 = vpop.f32.mrb[0].mxu0
      %v648 = vpop.f32.mrb[0].mxu0
      %v649 = vadd.f32 %v516, %v648
      %v650 = vpop.f32.mrb[0].mxu0
      %651 = vdwg.mxu0
      %vm652 = vcmask 1045504
      %v653 = vrot.slane %v249, 2
      %v654 = vrot.slane %v250, 2
      %v655 = vsel %vm652, %v653, %v654
      %v656 = vrot.slane %v251, 2
      %v657 = vsel %vm652, %v654, %v656
      %v658 = vrot.slane %v252, 2
      %v659 = vrot.slane %v253, 2
      %v660 = vsel %vm652, %v658, %v659
      %v661 = vrot.slane %v254, 2
      %v662 = vsel %vm652, %v659, %v661
      %v663 = vrot.slane %v255, 2
      %v664 = vrot.slane %v256, 2
      %v665 = vsel %vm652, %v663, %v664
      %v666 = vrot.slane %v257, 2
      %v667 = vsel %vm652, %v664, %v666
      %v668 = vrot.slane %v258, 2
      %v669 = vrot.slane %v259, 2
      %v670 = vsel %vm652, %v668, %v669
      %v671 = vrot.slane %v260, 2
      %v672 = vsel %vm652, %v669, %v671
      %v673 = vrot.slane %v261, 2
      %v674 = vrot.slane %v262, 2
      %v675 = vsel %vm652, %v673, %v674
      %v676 = vrot.slane %v263, 2
      %v677 = vsel %vm652, %v674, %v676
      %v678 = vrot.slane %v264, 2
      %v679 = vrot.slane %v265, 2
      %v680 = vsel %vm652, %v678, %v679
      %v681 = vrot.slane %v266, 2
      %v682 = vsel %vm652, %v679, %v681
      %v683 = vrot.slane %v267, 2
      %v684 = vrot.slane %v268, 2
      %v685 = vsel %vm652, %v683, %v684
      %v686 = vrot.slane %v269, 2
      %v687 = vsel %vm652, %v684, %v686
      %v688 = vrot.slane %v270, 2
      %v689 = vrot.slane %v271, 2
      %v690 = vsel %vm652, %v688, %v689
      %v691 = vrot.slane %v272, 2
      %v692 = vsel %vm652, %v689, %v691
      %v709 = vpack.c.bf16 %v657, %v655
      %v710 = vpack.c.bf16 %v662, %v660
      %v711 = vpack.c.bf16 %v667, %v665
      %v712 = vpack.c.bf16 %v672, %v670
      %v713 = vpack.c.bf16 %v677, %v675
      %v714 = vpack.c.bf16 %v682, %v680
      %v715 = vpack.c.bf16 %v687, %v685
      %v716 = vpack.c.bf16 %v692, %v690
      %s717 = scalar_lea.vmem %s1, 32
      %v718 = vld [vmem:[%s717] sm:$0xf]
      %v719 = vld [vmem:[%s717 + $0x4] sm:$0xf]
      %v720 = vld [vmem:[%s717 + $0x8] sm:$0xf]
      %v721 = vld [vmem:[%s717 + $0xc] sm:$0xf]
      %v726 = vunpack.c.l.b16 %v718
      %v727 = vunpack.c.l.b16 %v719
      %v728 = vunpack.c.l.b16 %v720
      %v729 = vunpack.c.l.b16 %v721
      %v730 = vpack.c.b16 %v727, %v726
      %v731 = vpack.c.b16 %v729, %v728
      %v735 = vsel %vm397, %v709, 0
      %v738 = vsel %vm397, %v710, 0
      %v741 = vsel %vm397, %v711, 0
      %v744 = vsel %vm397, %v712, 0
      %v747 = vsel %vm397, %v713, 0
      %v750 = vsel %vm397, %v714, 0
      %v753 = vsel %vm397, %v715, 0
      %v756 = vsel %vm397, %v716, 0
      %758 = vmatprep.subr.bf16.mxu0 0
      %759 = vmatpush1.bf16.msra.mxu0 %v730
      %760 = vmatprep.subr.bf16.mxu0 0
      %761 = vmatpush1.bf16.msra.mxu0 %v731
      %762 = vmatprep.subr.bf16.mxu0 0
      %763 = vmatpush1.bf16.msra.mxu0 0
      %764 = vmatprep.subr.bf16.mxu0 0
      %765 = vmatpush1.bf16.msra.mxu0 0
      %766 = vmatprep.subr.bf16.mxu0 0
      %767 = vmatpush1.bf16.msra.mxu0 0
      %768 = vmatprep.subr.bf16.mxu0 0
      %769 = vmatpush1.bf16.msra.mxu0 0
      %770 = vmatprep.subr.bf16.mxu0 0
      %771 = vmatpush1.bf16.msra.mxu0 0
      %772 = vmatprep.subr.bf16.mxu0 0
      %773 = vmatpush1.bf16.msra.mxu0 0
      %774 = vmatprep.subr.bf16.mxu0 0
      %775 = vmatpush1.bf16.msra.mxu0 0
      %776 = vmatprep.subr.bf16.mxu0 0
      %777 = vmatpush1.bf16.msra.mxu0 0
      %778 = vmatprep.subr.bf16.mxu0 0
      %779 = vmatpush1.bf16.msra.mxu0 0
      %780 = vmatprep.subr.bf16.mxu0 0
      %781 = vmatpush1.bf16.msra.mxu0 0
      %782 = vmatprep.subr.bf16.mxu0 0
      %783 = vmatpush1.bf16.msra.mxu0 0
      %784 = vmatprep.subr.bf16.mxu0 0
      %785 = vmatpush1.bf16.msra.mxu0 0
      %786 = vmatprep.subr.bf16.mxu0 0
      %787 = vmatpush1.bf16.msra.mxu0 0
      %788 = vmatprep.subr.bf16.mxu0 0
      %789 = vmatpush1.bf16.msra.mxu0 0
      %790 = vmatprep.mubr.bf16.mxu0 0
      %791 = vmatmul.mubr.bf16.gmra.mrb[0].mxu0 %v735
      %v792 = vpop.f32.mrb[0].mxu0
      %v793 = vadd.f32 0.0, %v792
      %v794 = vpop.f32.mrb[0].mxu0
      %v795 = vpop.f32.mrb[0].mxu0
      %v796 = vadd.f32 0.0, %v795
      %v797 = vpop.f32.mrb[0].mxu0
      %798 = vmatprep.mubr.bf16.mxu0 0
      %799 = vmatmul.mubr.bf16.gmra.mrb[0].mxu0 %v738
      %v800 = vpop.f32.mrb[0].mxu0
      %v801 = vadd.f32 0.0, %v800
      %v802 = vpop.f32.mrb[0].mxu0
      %v803 = vpop.f32.mrb[0].mxu0
      %v804 = vadd.f32 0.0, %v803
      %v805 = vpop.f32.mrb[0].mxu0
      %806 = vmatprep.mubr.bf16.mxu0 0
      %807 = vmatmul.mubr.bf16.gmra.mrb[0].mxu0 %v741
      %v808 = vpop.f32.mrb[0].mxu0
      %v809 = vadd.f32 0.0, %v808
      %v810 = vpop.f32.mrb[0].mxu0
      %v811 = vpop.f32.mrb[0].mxu0
      %v812 = vadd.f32 0.0, %v811
      %v813 = vpop.f32.mrb[0].mxu0
      %814 = vmatprep.mubr.bf16.mxu0 0
      %815 = vmatmul.mubr.bf16.gmra.mrb[0].mxu0 %v744
      %v816 = vpop.f32.mrb[0].mxu0
      %v817 = vadd.f32 0.0, %v816
      %v818 = vpop.f32.mrb[0].mxu0
      %v819 = vpop.f32.mrb[0].mxu0
      %v820 = vadd.f32 0.0, %v819
      %v821 = vpop.f32.mrb[0].mxu0
      %822 = vmatprep.mubr.bf16.mxu0 0
      %823 = vmatmul.mubr.bf16.gmra.mrb[0].mxu0 %v747
      %v824 = vpop.f32.mrb[0].mxu0
      %v825 = vadd.f32 0.0, %v824
      %v826 = vpop.f32.mrb[0].mxu0
      %v827 = vpop.f32.mrb[0].mxu0
      %v828 = vadd.f32 0.0, %v827
      %v829 = vpop.f32.mrb[0].mxu0
      %830 = vmatprep.mubr.bf16.mxu0 0
      %831 = vmatmul.mubr.bf16.gmra.mrb[0].mxu0 %v750
      %v832 = vpop.f32.mrb[0].mxu0
      %v833 = vadd.f32 0.0, %v832
      %v834 = vpop.f32.mrb[0].mxu0
      %v835 = vpop.f32.mrb[0].mxu0
      %v836 = vadd.f32 0.0, %v835
      %v837 = vpop.f32.mrb[0].mxu0
      %838 = vmatprep.mubr.bf16.mxu0 0
      %839 = vmatmul.mubr.bf16.gmra.mrb[0].mxu0 %v753
      %v840 = vpop.f32.mrb[0].mxu0
      %v841 = vadd.f32 0.0, %v840
      %v842 = vpop.f32.mrb[0].mxu0
      %v843 = vpop.f32.mrb[0].mxu0
      %v844 = vadd.f32 0.0, %v843
      %v845 = vpop.f32.mrb[0].mxu0
      %846 = vmatprep.mubr.bf16.mxu0 0
      %847 = vmatmul.mubr.bf16.gmra.mrb[0].mxu0 %v756
      %v848 = vpop.f32.mrb[0].mxu0
      %v849 = vadd.f32 0.0, %v848
      %v850 = vpop.f32.mrb[0].mxu0
      %v851 = vpop.f32.mrb[0].mxu0
      %v852 = vadd.f32 0.0, %v851
      %v853 = vpop.f32.mrb[0].mxu0
      %854 = vdwg.mxu0
      %v855 = vadd.f32 %v590, %v793
      %v856 = vadd.f32 %v593, %v796
      %v857 = vadd.f32 %v598, %v801
      %v858 = vadd.f32 %v601, %v804
      %v859 = vadd.f32 %v606, %v809
      %v860 = vadd.f32 %v609, %v812
      %v861 = vadd.f32 %v614, %v817
      %v862 = vadd.f32 %v617, %v820
      %v863 = vadd.f32 %v622, %v825
      %v864 = vadd.f32 %v625, %v828
      %v865 = vadd.f32 %v630, %v833
      %v866 = vadd.f32 %v633, %v836
      %v867 = vadd.f32 %v638, %v841
      %v868 = vadd.f32 %v641, %v844
      %v869 = vadd.f32 %v646, %v849
      %v870 = vadd.f32 %v649, %v852
      %v871 = vpack.c.bf16 %v274, %v273
      %s872 = scalar_lea.vmem %s1, 48
      %v873 = vld [vmem:[%s872] sm:$0xf]
      %v874 = vld [vmem:[%s872 + $0x4] sm:$0xf]
      %v875 = vld [vmem:[%s872 + $0x8] sm:$0xf]
      %v876 = vld [vmem:[%s872 + $0xc] sm:$0xf]
      %v881 = vunpack.c.l.b16 %v873
      %v882 = vunpack.c.l.b16 %v874
      %v883 = vunpack.c.l.b16 %v875
      %v884 = vunpack.c.l.b16 %v876
      %v885 = vpack.c.b16 %v882, %v881
      %v886 = vpack.c.b16 %v884, %v883
      %v890 = vsel %vm397, %v871, 0
      %892 = vmatprep.subr.bf16.mxu0 0
      %893 = vmatpush1.bf16.msra.mxu0 %v885
      %894 = vmatprep.subr.bf16.mxu0 0
      %895 = vmatpush1.bf16.msra.mxu0 %v886
      %896 = vmatprep.subr.bf16.mxu0 0
      %897 = vmatpush1.bf16.msra.mxu0 0
      %898 = vmatprep.subr.bf16.mxu0 0
      %899 = vmatpush1.bf16.msra.mxu0 0
      %900 = vmatprep.subr.bf16.mxu0 0
      %901 = vmatpush1.bf16.msra.mxu0 0
      %902 = vmatprep.subr.bf16.mxu0 0
      %903 = vmatpush1.bf16.msra.mxu0 0
      %904 = vmatprep.subr.bf16.mxu0 0
      %905 = vmatpush1.bf16.msra.mxu0 0
      %906 = vmatprep.subr.bf16.mxu0 0
      %907 = vmatpush1.bf16.msra.mxu0 0
      %908 = vmatprep.subr.bf16.mxu0 0
      %909 = vmatpush1.bf16.msra.mxu0 0
      %910 = vmatprep.subr.bf16.mxu0 0
      %911 = vmatpush1.bf16.msra.mxu0 0
      %912 = vmatprep.subr.bf16.mxu0 0
      %913 = vmatpush1.bf16.msra.mxu0 0
      %914 = vmatprep.subr.bf16.mxu0 0
      %915 = vmatpush1.bf16.msra.mxu0 0
      %916 = vmatprep.subr.bf16.mxu0 0
      %917 = vmatpush1.bf16.msra.mxu0 0
      %918 = vmatprep.subr.bf16.mxu0 0
      %919 = vmatpush1.bf16.msra.mxu0 0
      %920 = vmatprep.subr.bf16.mxu0 0
      %921 = vmatpush1.bf16.msra.mxu0 0
      %922 = vmatprep.subr.bf16.mxu0 0
      %923 = vmatpush1.bf16.msra.mxu0 0
      %924 = vmatprep.mubr.bf16.mxu0 0
      %925 = vmatmul.mubr.bf16.gmra.mrb[0].mxu0 %v535
      %v926 = vpop.f32.mrb[0].mxu0
      %v927 = vadd.f32 0.0, %v926
      %v928 = vpop.f32.mrb[0].mxu0
      %v929 = vpop.f32.mrb[0].mxu0
      %v930 = vadd.f32 0.0, %v929
      %v931 = vpop.f32.mrb[0].mxu0
      %932 = vmatprep.mubr.bf16.mxu0 0
      %933 = vmatmul.mubr.bf16.gmra.mrb[0].mxu0 %v538
      %v934 = vpop.f32.mrb[0].mxu0
      %v935 = vadd.f32 0.0, %v934
      %v936 = vpop.f32.mrb[0].mxu0
      %v937 = vpop.f32.mrb[0].mxu0
      %v938 = vadd.f32 0.0, %v937
      %v939 = vpop.f32.mrb[0].mxu0
      %940 = vmatprep.mubr.bf16.mxu0 0
      %941 = vmatmul.mubr.bf16.gmra.mrb[0].mxu0 %v541
      %v942 = vpop.f32.mrb[0].mxu0
      %v943 = vadd.f32 0.0, %v942
      %v944 = vpop.f32.mrb[0].mxu0
      %v945 = vpop.f32.mrb[0].mxu0
      %v946 = vadd.f32 0.0, %v945
      %v947 = vpop.f32.mrb[0].mxu0
      %948 = vmatprep.mubr.bf16.mxu0 0
      %949 = vmatmul.mubr.bf16.gmra.mrb[0].mxu0 %v544
      %v950 = vpop.f32.mrb[0].mxu0
      %v951 = vadd.f32 0.0, %v950
      %v952 = vpop.f32.mrb[0].mxu0
      %v953 = vpop.f32.mrb[0].mxu0
      %v954 = vadd.f32 0.0, %v953
      %v955 = vpop.f32.mrb[0].mxu0
      %956 = vmatprep.mubr.bf16.mxu0 0
      %957 = vmatmul.mubr.bf16.gmra.mrb[0].mxu0 %v547
      %v958 = vpop.f32.mrb[0].mxu0
      %v959 = vadd.f32 0.0, %v958
      %v960 = vpop.f32.mrb[0].mxu0
      %v961 = vpop.f32.mrb[0].mxu0
      %v962 = vadd.f32 0.0, %v961
      %v963 = vpop.f32.mrb[0].mxu0
      %964 = vmatprep.mubr.bf16.mxu0 0
      %965 = vmatmul.mubr.bf16.gmra.mrb[0].mxu0 %v550
      %v966 = vpop.f32.mrb[0].mxu0
      %v967 = vadd.f32 0.0, %v966
      %v968 = vpop.f32.mrb[0].mxu0
      %v969 = vpop.f32.mrb[0].mxu0
      %v970 = vadd.f32 0.0, %v969
      %v971 = vpop.f32.mrb[0].mxu0
      %972 = vmatprep.mubr.bf16.mxu0 0
      %973 = vmatmul.mubr.bf16.gmra.mrb[0].mxu0 %v553
      %v974 = vpop.f32.mrb[0].mxu0
      %v975 = vadd.f32 0.0, %v974
      %v976 = vpop.f32.mrb[0].mxu0
      %v977 = vpop.f32.mrb[0].mxu0
      %v978 = vadd.f32 0.0, %v977
      %v979 = vpop.f32.mrb[0].mxu0
      %980 = vmatprep.mubr.bf16.mxu0 0
      %981 = vmatmul.mubr.bf16.gmra.mrb[0].mxu0 %v890
      %v982 = vpop.f32.mrb[0].mxu0
      %v983 = vadd.f32 0.0, %v982
      %v984 = vpop.f32.mrb[0].mxu0
      %v985 = vpop.f32.mrb[0].mxu0
      %v986 = vadd.f32 0.0, %v985
      %v987 = vpop.f32.mrb[0].mxu0
      %988 = vdwg.mxu0
      %v989 = vadd.f32 %v855, %v927
      %v990 = vadd.f32 %v856, %v930
      %v991 = vadd.f32 %v857, %v935
      %v992 = vadd.f32 %v858, %v938
      %v993 = vadd.f32 %v859, %v943
      %v994 = vadd.f32 %v860, %v946
      %v995 = vadd.f32 %v861, %v951
      %v996 = vadd.f32 %v862, %v954
      %v997 = vadd.f32 %v863, %v959
      %v998 = vadd.f32 %v864, %v962
      %v999 = vadd.f32 %v865, %v967
      %v1000 = vadd.f32 %v866, %v970
      %v1001 = vadd.f32 %v867, %v975
      %v1002 = vadd.f32 %v868, %v978
      %v1003 = vadd.f32 %v869, %v983
      %v1004 = vadd.f32 %v870, %v986
      %v1008 = vrot.slane %v273, 1
      %v1009 = vrot.slane %v274, 1
      %v1010 = vsel %vm315, %v1008, %v1009
      %v1011 = vrot.slane %v275, 1
      %v1012 = vsel %vm315, %v1009, %v1011
      %v1015 = vpack.c.bf16 %v1012, %v1010
      %s1016 = scalar_lea.vmem %s1, 64
      %v1017 = vld [vmem:[%s1016] sm:$0xf]
      %v1018 = vld [vmem:[%s1016 + $0x4] sm:$0xf]
      %v1019 = vld [vmem:[%s1016 + $0x8] sm:$0xf]
      %v1020 = vld [vmem:[%s1016 + $0xc] sm:$0xf]
      %v1025 = vunpack.c.l.b16 %v1017
      %v1026 = vunpack.c.l.b16 %v1018
      %v1027 = vunpack.c.l.b16 %v1019
      %v1028 = vunpack.c.l.b16 %v1020
      %v1029 = vpack.c.b16 %v1026, %v1025
      %v1030 = vpack.c.b16 %v1028, %v1027
      %v1034 = vsel %vm397, %v1015, 0
      %1036 = vmatprep.subr.bf16.mxu0 0
      %1037 = vmatpush1.bf16.msra.mxu0 %v1029
      %1038 = vmatprep.subr.bf16.mxu0 0
      %1039 = vmatpush1.bf16.msra.mxu0 %v1030
      %1040 = vmatprep.subr.bf16.mxu0 0
      %1041 = vmatpush1.bf16.msra.mxu0 0
      %1042 = vmatprep.subr.bf16.mxu0 0
      %1043 = vmatpush1.bf16.msra.mxu0 0
      %1044 = vmatprep.subr.bf16.mxu0 0
      %1045 = vmatpush1.bf16.msra.mxu0 0
      %1046 = vmatprep.subr.bf16.mxu0 0
      %1047 = vmatpush1.bf16.msra.mxu0 0
      %1048 = vmatprep.subr.bf16.mxu0 0
      %1049 = vmatpush1.bf16.msra.mxu0 0
      %1050 = vmatprep.subr.bf16.mxu0 0
      %1051 = vmatpush1.bf16.msra.mxu0 0
      %1052 = vmatprep.subr.bf16.mxu0 0
      %1053 = vmatpush1.bf16.msra.mxu0 0
      %1054 = vmatprep.subr.bf16.mxu0 0
      %1055 = vmatpush1.bf16.msra.mxu0 0
      %1056 = vmatprep.subr.bf16.mxu0 0
      %1057 = vmatpush1.bf16.msra.mxu0 0
      %1058 = vmatprep.subr.bf16.mxu0 0
      %1059 = vmatpush1.bf16.msra.mxu0 0
      %1060 = vmatprep.subr.bf16.mxu0 0
      %1061 = vmatpush1.bf16.msra.mxu0 0
      %1062 = vmatprep.subr.bf16.mxu0 0
      %1063 = vmatpush1.bf16.msra.mxu0 0
      %1064 = vmatprep.subr.bf16.mxu0 0
      %1065 = vmatpush1.bf16.msra.mxu0 0
      %1066 = vmatprep.subr.bf16.mxu0 0
      %1067 = vmatpush1.bf16.msra.mxu0 0
      %1068 = vmatprep.mubr.bf16.mxu0 0
      %1069 = vmatmul.mubr.bf16.gmra.mrb[0].mxu0 %v402
      %v1070 = vpop.f32.mrb[0].mxu0
      %v1071 = vadd.f32 0.0, %v1070
      %v1072 = vpop.f32.mrb[0].mxu0
      %v1073 = vpop.f32.mrb[0].mxu0
      %v1074 = vadd.f32 0.0, %v1073
      %v1075 = vpop.f32.mrb[0].mxu0
      %1076 = vmatprep.mubr.bf16.mxu0 0
      %1077 = vmatmul.mubr.bf16.gmra.mrb[0].mxu0 %v405
      %v1078 = vpop.f32.mrb[0].mxu0
      %v1079 = vadd.f32 0.0, %v1078
      %v1080 = vpop.f32.mrb[0].mxu0
      %v1081 = vpop.f32.mrb[0].mxu0
      %v1082 = vadd.f32 0.0, %v1081
      %v1083 = vpop.f32.mrb[0].mxu0
      %1084 = vmatprep.mubr.bf16.mxu0 0
      %1085 = vmatmul.mubr.bf16.gmra.mrb[0].mxu0 %v408
      %v1086 = vpop.f32.mrb[0].mxu0
      %v1087 = vadd.f32 0.0, %v1086
      %v1088 = vpop.f32.mrb[0].mxu0
      %v1089 = vpop.f32.mrb[0].mxu0
      %v1090 = vadd.f32 0.0, %v1089
      %v1091 = vpop.f32.mrb[0].mxu0
      %1092 = vmatprep.mubr.bf16.mxu0 0
      %1093 = vmatmul.mubr.bf16.gmra.mrb[0].mxu0 %v411
      %v1094 = vpop.f32.mrb[0].mxu0
      %v1095 = vadd.f32 0.0, %v1094
      %v1096 = vpop.f32.mrb[0].mxu0
      %v1097 = vpop.f32.mrb[0].mxu0
      %v1098 = vadd.f32 0.0, %v1097
      %v1099 = vpop.f32.mrb[0].mxu0
      %1100 = vmatprep.mubr.bf16.mxu0 0
      %1101 = vmatmul.mubr.bf16.gmra.mrb[0].mxu0 %v414
      %v1102 = vpop.f32.mrb[0].mxu0
      %v1103 = vadd.f32 0.0, %v1102
      %v1104 = vpop.f32.mrb[0].mxu0
      %v1105 = vpop.f32.mrb[0].mxu0
      %v1106 = vadd.f32 0.0, %v1105
      %v1107 = vpop.f32.mrb[0].mxu0
      %1108 = vmatprep.mubr.bf16.mxu0 0
      %1109 = vmatmul.mubr.bf16.gmra.mrb[0].mxu0 %v417
      %v1110 = vpop.f32.mrb[0].mxu0
      %v1111 = vadd.f32 0.0, %v1110
      %v1112 = vpop.f32.mrb[0].mxu0
      %v1113 = vpop.f32.mrb[0].mxu0
      %v1114 = vadd.f32 0.0, %v1113
      %v1115 = vpop.f32.mrb[0].mxu0
      %1116 = vmatprep.mubr.bf16.mxu0 0
      %1117 = vmatmul.mubr.bf16.gmra.mrb[0].mxu0 %v420
      %v1118 = vpop.f32.mrb[0].mxu0
      %v1119 = vadd.f32 0.0, %v1118
      %v1120 = vpop.f32.mrb[0].mxu0
      %v1121 = vpop.f32.mrb[0].mxu0
      %v1122 = vadd.f32 0.0, %v1121
      %v1123 = vpop.f32.mrb[0].mxu0
      %1124 = vmatprep.mubr.bf16.mxu0 0
      %1125 = vmatmul.mubr.bf16.gmra.mrb[0].mxu0 %v1034
      %v1126 = vpop.f32.mrb[0].mxu0
      %v1127 = vadd.f32 0.0, %v1126
      %v1128 = vpop.f32.mrb[0].mxu0
      %v1129 = vpop.f32.mrb[0].mxu0
      %v1130 = vadd.f32 0.0, %v1129
      %v1131 = vpop.f32.mrb[0].mxu0
      %1132 = vdwg.mxu0
      %v1133 = vadd.f32 %v989, %v1071
      %v1134 = vadd.f32 %v990, %v1074
      %v1135 = vadd.f32 %v991, %v1079
      %v1136 = vadd.f32 %v992, %v1082
      %v1137 = vadd.f32 %v993, %v1087
      %v1138 = vadd.f32 %v994, %v1090
      %v1139 = vadd.f32 %v995, %v1095
      %v1140 = vadd.f32 %v996, %v1098
      %v1141 = vadd.f32 %v997, %v1103
      %v1142 = vadd.f32 %v998, %v1106
      %v1143 = vadd.f32 %v999, %v1111
      %v1144 = vadd.f32 %v1000, %v1114
      %v1145 = vadd.f32 %v1001, %v1119
      %v1146 = vadd.f32 %v1002, %v1122
      %v1147 = vadd.f32 %v1003, %v1127
      %v1148 = vadd.f32 %v1004, %v1130
      %v1149 = vrot.slane %v273, 2
      %v1150 = vrot.slane %v274, 2
      %v1151 = vsel %vm652, %v1149, %v1150
      %v1152 = vrot.slane %v275, 2
      %v1153 = vsel %vm652, %v1150, %v1152
      %v1156 = vpack.c.bf16 %v1153, %v1151
      %s1157 = scalar_lea.vmem %s1, 80
      %v1158 = vld [vmem:[%s1157] sm:$0xf]
      %v1159 = vld [vmem:[%s1157 + $0x4] sm:$0xf]
      %v1160 = vld [vmem:[%s1157 + $0x8] sm:$0xf]
      %v1161 = vld [vmem:[%s1157 + $0xc] sm:$0xf]
      %v1166 = vunpack.c.l.b16 %v1158
      %v1167 = vunpack.c.l.b16 %v1159
      %v1168 = vunpack.c.l.b16 %v1160
      %v1169 = vunpack.c.l.b16 %v1161
      %v1170 = vpack.c.b16 %v1167, %v1166
      %v1171 = vpack.c.b16 %v1169, %v1168
      %v1175 = vsel %vm397, %v1156, 0
      %1177 = vmatprep.subr.bf16.mxu0 0
      %1178 = vmatpush1.bf16.msra.mxu0 %v1170
      %1179 = vmatprep.subr.bf16.mxu0 0
      %1180 = vmatpush1.bf16.msra.mxu0 %v1171
      %1181 = vmatprep.subr.bf16.mxu0 0
      %1182 = vmatpush1.bf16.msra.mxu0 0
      %1183 = vmatprep.subr.bf16.mxu0 0
      %1184 = vmatpush1.bf16.msra.mxu0 0
      %1185 = vmatprep.subr.bf16.mxu0 0
      %1186 = vmatpush1.bf16.msra.mxu0 0
      %1187 = vmatprep.subr.bf16.mxu0 0
      %1188 = vmatpush1.bf16.msra.mxu0 0
      %1189 = vmatprep.subr.bf16.mxu0 0
      %1190 = vmatpush1.bf16.msra.mxu0 0
      %1191 = vmatprep.subr.bf16.mxu0 0
      %1192 = vmatpush1.bf16.msra.mxu0 0
      %1193 = vmatprep.subr.bf16.mxu0 0
      %1194 = vmatpush1.bf16.msra.mxu0 0
      %1195 = vmatprep.subr.bf16.mxu0 0
      %1196 = vmatpush1.bf16.msra.mxu0 0
      %1197 = vmatprep.subr.bf16.mxu0 0
      %1198 = vmatpush1.bf16.msra.mxu0 0
      %1199 = vmatprep.subr.bf16.mxu0 0
      %1200 = vmatpush1.bf16.msra.mxu0 0
      %1201 = vmatprep.subr.bf16.mxu0 0
      %1202 = vmatpush1.bf16.msra.mxu0 0
      %1203 = vmatprep.subr.bf16.mxu0 0
      %1204 = vmatpush1.bf16.msra.mxu0 0
      %1205 = vmatprep.subr.bf16.mxu0 0
      %1206 = vmatpush1.bf16.msra.mxu0 0
      %1207 = vmatprep.subr.bf16.mxu0 0
      %1208 = vmatpush1.bf16.msra.mxu0 0
      %1209 = vmatprep.mubr.bf16.mxu0 0
      %1210 = vmatmul.mubr.bf16.gmra.mrb[0].mxu0 %v738
      %v1211 = vpop.f32.mrb[0].mxu0
      %v1212 = vadd.f32 0.0, %v1211
      %v1213 = vpop.f32.mrb[0].mxu0
      %v1214 = vpop.f32.mrb[0].mxu0
      %v1215 = vadd.f32 0.0, %v1214
      %v1216 = vpop.f32.mrb[0].mxu0
      %1217 = vmatprep.mubr.bf16.mxu0 0
      %1218 = vmatmul.mubr.bf16.gmra.mrb[0].mxu0 %v741
      %v1219 = vpop.f32.mrb[0].mxu0
      %v1220 = vadd.f32 0.0, %v1219
      %v1221 = vpop.f32.mrb[0].mxu0
      %v1222 = vpop.f32.mrb[0].mxu0
      %v1223 = vadd.f32 0.0, %v1222
      %v1224 = vpop.f32.mrb[0].mxu0
      %1225 = vmatprep.mubr.bf16.mxu0 0
      %1226 = vmatmul.mubr.bf16.gmra.mrb[0].mxu0 %v744
      %v1227 = vpop.f32.mrb[0].mxu0
      %v1228 = vadd.f32 0.0, %v1227
      %v1229 = vpop.f32.mrb[0].mxu0
      %v1230 = vpop.f32.mrb[0].mxu0
      %v1231 = vadd.f32 0.0, %v1230
      %v1232 = vpop.f32.mrb[0].mxu0
      %1233 = vmatprep.mubr.bf16.mxu0 0
      %1234 = vmatmul.mubr.bf16.gmra.mrb[0].mxu0 %v747
      %v1235 = vpop.f32.mrb[0].mxu0
      %v1236 = vadd.f32 0.0, %v1235
      %v1237 = vpop.f32.mrb[0].mxu0
      %v1238 = vpop.f32.mrb[0].mxu0
      %v1239 = vadd.f32 0.0, %v1238
      %v1240 = vpop.f32.mrb[0].mxu0
      %1241 = vmatprep.mubr.bf16.mxu0 0
      %1242 = vmatmul.mubr.bf16.gmra.mrb[0].mxu0 %v750
      %v1243 = vpop.f32.mrb[0].mxu0
      %v1244 = vadd.f32 0.0, %v1243
      %v1245 = vpop.f32.mrb[0].mxu0
      %v1246 = vpop.f32.mrb[0].mxu0
      %v1247 = vadd.f32 0.0, %v1246
      %v1248 = vpop.f32.mrb[0].mxu0
      %1249 = vmatprep.mubr.bf16.mxu0 0
      %1250 = vmatmul.mubr.bf16.gmra.mrb[0].mxu0 %v753
      %v1251 = vpop.f32.mrb[0].mxu0
      %v1252 = vadd.f32 0.0, %v1251
      %v1253 = vpop.f32.mrb[0].mxu0
      %v1254 = vpop.f32.mrb[0].mxu0
      %v1255 = vadd.f32 0.0, %v1254
      %v1256 = vpop.f32.mrb[0].mxu0
      %1257 = vmatprep.mubr.bf16.mxu0 0
      %1258 = vmatmul.mubr.bf16.gmra.mrb[0].mxu0 %v756
      %v1259 = vpop.f32.mrb[0].mxu0
      %v1260 = vadd.f32 0.0, %v1259
      %v1261 = vpop.f32.mrb[0].mxu0
      %v1262 = vpop.f32.mrb[0].mxu0
      %v1263 = vadd.f32 0.0, %v1262
      %v1264 = vpop.f32.mrb[0].mxu0
      %1265 = vmatprep.mubr.bf16.mxu0 0
      %1266 = vmatmul.mubr.bf16.gmra.mrb[0].mxu0 %v1175
      %v1267 = vpop.f32.mrb[0].mxu0
      %v1268 = vadd.f32 0.0, %v1267
      %v1269 = vpop.f32.mrb[0].mxu0
      %v1270 = vpop.f32.mrb[0].mxu0
      %v1271 = vadd.f32 0.0, %v1270
      %v1272 = vpop.f32.mrb[0].mxu0
      %1273 = vdwg.mxu0
      %v1274 = vadd.f32 %v1133, %v1212
      %v1275 = vadd.f32 %v1134, %v1215
      %v1276 = vadd.f32 %v1135, %v1220
      %v1277 = vadd.f32 %v1136, %v1223
      %v1278 = vadd.f32 %v1137, %v1228
      %v1279 = vadd.f32 %v1138, %v1231
      %v1280 = vadd.f32 %v1139, %v1236
      %v1281 = vadd.f32 %v1140, %v1239
      %v1282 = vadd.f32 %v1141, %v1244
      %v1283 = vadd.f32 %v1142, %v1247
      %v1284 = vadd.f32 %v1143, %v1252
      %v1285 = vadd.f32 %v1144, %v1255
      %v1286 = vadd.f32 %v1145, %v1260
      %v1287 = vadd.f32 %v1146, %v1263
      %v1288 = vadd.f32 %v1147, %v1268
      %v1289 = vadd.f32 %v1148, %v1271
      %v1290 = vpack.c.bf16 %v277, %v276
      %s1291 = scalar_lea.vmem %s1, 96
      %v1292 = vld [vmem:[%s1291] sm:$0xf]
      %v1293 = vld [vmem:[%s1291 + $0x4] sm:$0xf]
      %v1294 = vld [vmem:[%s1291 + $0x8] sm:$0xf]
      %v1295 = vld [vmem:[%s1291 + $0xc] sm:$0xf]
      %v1300 = vunpack.c.l.b16 %v1292
      %v1301 = vunpack.c.l.b16 %v1293
      %v1302 = vunpack.c.l.b16 %v1294
      %v1303 = vunpack.c.l.b16 %v1295
      %v1304 = vpack.c.b16 %v1301, %v1300
      %v1305 = vpack.c.b16 %v1303, %v1302
      %v1309 = vsel %vm397, %v1290, 0
      %1311 = vmatprep.subr.bf16.mxu0 0
      %1312 = vmatpush1.bf16.msra.mxu0 %v1304
      %1313 = vmatprep.subr.bf16.mxu0 0
      %1314 = vmatpush1.bf16.msra.mxu0 %v1305
      %1315 = vmatprep.subr.bf16.mxu0 0
      %1316 = vmatpush1.bf16.msra.mxu0 0
      %1317 = vmatprep.subr.bf16.mxu0 0
      %1318 = vmatpush1.bf16.msra.mxu0 0
      %1319 = vmatprep.subr.bf16.mxu0 0
      %1320 = vmatpush1.bf16.msra.mxu0 0
      %1321 = vmatprep.subr.bf16.mxu0 0
      %1322 = vmatpush1.bf16.msra.mxu0 0
      %1323 = vmatprep.subr.bf16.mxu0 0
      %1324 = vmatpush1.bf16.msra.mxu0 0
      %1325 = vmatprep.subr.bf16.mxu0 0
      %1326 = vmatpush1.bf16.msra.mxu0 0
      %1327 = vmatprep.subr.bf16.mxu0 0
      %1328 = vmatpush1.bf16.msra.mxu0 0
      %1329 = vmatprep.subr.bf16.mxu0 0
      %1330 = vmatpush1.bf16.msra.mxu0 0
      %1331 = vmatprep.subr.bf16.mxu0 0
      %1332 = vmatpush1.bf16.msra.mxu0 0
      %1333 = vmatprep.subr.bf16.mxu0 0
      %1334 = vmatpush1.bf16.msra.mxu0 0
      %1335 = vmatprep.subr.bf16.mxu0 0
      %1336 = vmatpush1.bf16.msra.mxu0 0
      %1337 = vmatprep.subr.bf16.mxu0 0
      %1338 = vmatpush1.bf16.msra.mxu0 0
      %1339 = vmatprep.subr.bf16.mxu0 0
      %1340 = vmatpush1.bf16.msra.mxu0 0
      %1341 = vmatprep.subr.bf16.mxu0 0
      %1342 = vmatpush1.bf16.msra.mxu0 0
      %1343 = vmatprep.mubr.bf16.mxu0 0
      %1344 = vmatmul.mubr.bf16.gmra.mrb[0].mxu0 %v538
      %v1345 = vpop.f32.mrb[0].mxu0
      %v1346 = vadd.f32 0.0, %v1345
      %v1347 = vpop.f32.mrb[0].mxu0
      %v1348 = vpop.f32.mrb[0].mxu0
      %v1349 = vadd.f32 0.0, %v1348
      %v1350 = vpop.f32.mrb[0].mxu0
      %1351 = vmatprep.mubr.bf16.mxu0 0
      %1352 = vmatmul.mubr.bf16.gmra.mrb[0].mxu0 %v541
      %v1353 = vpop.f32.mrb[0].mxu0
      %v1354 = vadd.f32 0.0, %v1353
      %v1355 = vpop.f32.mrb[0].mxu0
      %v1356 = vpop.f32.mrb[0].mxu0
      %v1357 = vadd.f32 0.0, %v1356
      %v1358 = vpop.f32.mrb[0].mxu0
      %1359 = vmatprep.mubr.bf16.mxu0 0
      %1360 = vmatmul.mubr.bf16.gmra.mrb[0].mxu0 %v544
      %v1361 = vpop.f32.mrb[0].mxu0
      %v1362 = vadd.f32 0.0, %v1361
      %v1363 = vpop.f32.mrb[0].mxu0
      %v1364 = vpop.f32.mrb[0].mxu0
      %v1365 = vadd.f32 0.0, %v1364
      %v1366 = vpop.f32.mrb[0].mxu0
      %1367 = vmatprep.mubr.bf16.mxu0 0
      %1368 = vmatmul.mubr.bf16.gmra.mrb[0].mxu0 %v547
      %v1369 = vpop.f32.mrb[0].mxu0
      %v1370 = vadd.f32 0.0, %v1369
      %v1371 = vpop.f32.mrb[0].mxu0
      %v1372 = vpop.f32.mrb[0].mxu0
      %v1373 = vadd.f32 0.0, %v1372
      %v1374 = vpop.f32.mrb[0].mxu0
      %1375 = vmatprep.mubr.bf16.mxu0 0
      %1376 = vmatmul.mubr.bf16.gmra.mrb[0].mxu0 %v550
      %v1377 = vpop.f32.mrb[0].mxu0
      %v1378 = vadd.f32 0.0, %v1377
      %v1379 = vpop.f32.mrb[0].mxu0
      %v1380 = vpop.f32.mrb[0].mxu0
      %v1381 = vadd.f32 0.0, %v1380
      %v1382 = vpop.f32.mrb[0].mxu0
      %1383 = vmatprep.mubr.bf16.mxu0 0
      %1384 = vmatmul.mubr.bf16.gmra.mrb[0].mxu0 %v553
      %v1385 = vpop.f32.mrb[0].mxu0
      %v1386 = vadd.f32 0.0, %v1385
      %v1387 = vpop.f32.mrb[0].mxu0
      %v1388 = vpop.f32.mrb[0].mxu0
      %v1389 = vadd.f32 0.0, %v1388
      %v1390 = vpop.f32.mrb[0].mxu0
      %1391 = vmatprep.mubr.bf16.mxu0 0
      %1392 = vmatmul.mubr.bf16.gmra.mrb[0].mxu0 %v890
      %v1393 = vpop.f32.mrb[0].mxu0
      %v1394 = vadd.f32 0.0, %v1393
      %v1395 = vpop.f32.mrb[0].mxu0
      %v1396 = vpop.f32.mrb[0].mxu0
      %v1397 = vadd.f32 0.0, %v1396
      %v1398 = vpop.f32.mrb[0].mxu0
      %1399 = vmatprep.mubr.bf16.mxu0 0
      %1400 = vmatmul.mubr.bf16.gmra.mrb[0].mxu0 %v1309
      %v1401 = vpop.f32.mrb[0].mxu0
      %v1402 = vadd.f32 0.0, %v1401
      %v1403 = vpop.f32.mrb[0].mxu0
      %v1404 = vpop.f32.mrb[0].mxu0
      %v1405 = vadd.f32 0.0, %v1404
      %v1406 = vpop.f32.mrb[0].mxu0
      %1407 = vdwg.mxu0
      %v1408 = vadd.f32 %v1274, %v1346
      %v1409 = vadd.f32 %v1275, %v1349
      %v1410 = vadd.f32 %v1276, %v1354
      %v1411 = vadd.f32 %v1277, %v1357
      %v1412 = vadd.f32 %v1278, %v1362
      %v1413 = vadd.f32 %v1279, %v1365
      %v1414 = vadd.f32 %v1280, %v1370
      %v1415 = vadd.f32 %v1281, %v1373
      %v1416 = vadd.f32 %v1282, %v1378
      %v1417 = vadd.f32 %v1283, %v1381
      %v1418 = vadd.f32 %v1284, %v1386
      %v1419 = vadd.f32 %v1285, %v1389
      %v1420 = vadd.f32 %v1286, %v1394
      %v1421 = vadd.f32 %v1287, %v1397
      %v1422 = vadd.f32 %v1288, %v1402
      %v1423 = vadd.f32 %v1289, %v1405
      %v1427 = vrot.slane %v276, 1
      %v1428 = vrot.slane %v277, 1
      %v1429 = vsel %vm315, %v1427, %v1428
      %v1430 = vrot.slane %v278, 1
      %v1431 = vsel %vm315, %v1428, %v1430
      %v1434 = vpack.c.bf16 %v1431, %v1429
      %s1435 = scalar_lea.vmem %s1, 112
      %v1436 = vld [vmem:[%s1435] sm:$0xf]
      %v1437 = vld [vmem:[%s1435 + $0x4] sm:$0xf]
      %v1438 = vld [vmem:[%s1435 + $0x8] sm:$0xf]
      %v1439 = vld [vmem:[%s1435 + $0xc] sm:$0xf]
      %v1444 = vunpack.c.l.b16 %v1436
      %v1445 = vunpack.c.l.b16 %v1437
      %v1446 = vunpack.c.l.b16 %v1438
      %v1447 = vunpack.c.l.b16 %v1439
      %v1448 = vpack.c.b16 %v1445, %v1444
      %v1449 = vpack.c.b16 %v1447, %v1446
      %v1453 = vsel %vm397, %v1434, 0
      %1455 = vmatprep.subr.bf16.mxu0 0
      %1456 = vmatpush1.bf16.msra.mxu0 %v1448
      %1457 = vmatprep.subr.bf16.mxu0 0
      %1458 = vmatpush1.bf16.msra.mxu0 %v1449
      %1459 = vmatprep.subr.bf16.mxu0 0
      %1460 = vmatpush1.bf16.msra.mxu0 0
      %1461 = vmatprep.subr.bf16.mxu0 0
      %1462 = vmatpush1.bf16.msra.mxu0 0
      %1463 = vmatprep.subr.bf16.mxu0 0
      %1464 = vmatpush1.bf16.msra.mxu0 0
      %1465 = vmatprep.subr.bf16.mxu0 0
      %1466 = vmatpush1.bf16.msra.mxu0 0
      %1467 = vmatprep.subr.bf16.mxu0 0
      %1468 = vmatpush1.bf16.msra.mxu0 0
      %1469 = vmatprep.subr.bf16.mxu0 0
      %1470 = vmatpush1.bf16.msra.mxu0 0
      %1471 = vmatprep.subr.bf16.mxu0 0
      %1472 = vmatpush1.bf16.msra.mxu0 0
      %1473 = vmatprep.subr.bf16.mxu0 0
      %1474 = vmatpush1.bf16.msra.mxu0 0
      %1475 = vmatprep.subr.bf16.mxu0 0
      %1476 = vmatpush1.bf16.msra.mxu0 0
      %1477 = vmatprep.subr.bf16.mxu0 0
      %1478 = vmatpush1.bf16.msra.mxu0 0
      %1479 = vmatprep.subr.bf16.mxu0 0
      %1480 = vmatpush1.bf16.msra.mxu0 0
      %1481 = vmatprep.subr.bf16.mxu0 0
      %1482 = vmatpush1.bf16.msra.mxu0 0
      %1483 = vmatprep.subr.bf16.mxu0 0
      %1484 = vmatpush1.bf16.msra.mxu0 0
      %1485 = vmatprep.subr.bf16.mxu0 0
      %1486 = vmatpush1.bf16.msra.mxu0 0
      %1487 = vmatprep.mubr.bf16.mxu0 0
      %1488 = vmatmul.mubr.bf16.gmra.mrb[0].mxu0 %v405
      %v1489 = vpop.f32.mrb[0].mxu0
      %v1490 = vadd.f32 0.0, %v1489
      %v1491 = vpop.f32.mrb[0].mxu0
      %v1492 = vpop.f32.mrb[0].mxu0
      %v1493 = vadd.f32 0.0, %v1492
      %v1494 = vpop.f32.mrb[0].mxu0
      %1495 = vmatprep.mubr.bf16.mxu0 0
      %1496 = vmatmul.mubr.bf16.gmra.mrb[0].mxu0 %v408
      %v1497 = vpop.f32.mrb[0].mxu0
      %v1498 = vadd.f32 0.0, %v1497
      %v1499 = vpop.f32.mrb[0].mxu0
      %v1500 = vpop.f32.mrb[0].mxu0
      %v1501 = vadd.f32 0.0, %v1500
      %v1502 = vpop.f32.mrb[0].mxu0
      %1503 = vmatprep.mubr.bf16.mxu0 0
      %1504 = vmatmul.mubr.bf16.gmra.mrb[0].mxu0 %v411
      %v1505 = vpop.f32.mrb[0].mxu0
      %v1506 = vadd.f32 0.0, %v1505
      %v1507 = vpop.f32.mrb[0].mxu0
      %v1508 = vpop.f32.mrb[0].mxu0
      %v1509 = vadd.f32 0.0, %v1508
      %v1510 = vpop.f32.mrb[0].mxu0
      %1511 = vmatprep.mubr.bf16.mxu0 0
      %1512 = vmatmul.mubr.bf16.gmra.mrb[0].mxu0 %v414
      %v1513 = vpop.f32.mrb[0].mxu0
      %v1514 = vadd.f32 0.0, %v1513
      %v1515 = vpop.f32.mrb[0].mxu0
      %v1516 = vpop.f32.mrb[0].mxu0
      %v1517 = vadd.f32 0.0, %v1516
      %v1518 = vpop.f32.mrb[0].mxu0
      %1519 = vmatprep.mubr.bf16.mxu0 0
      %1520 = vmatmul.mubr.bf16.gmra.mrb[0].mxu0 %v417
      %v1521 = vpop.f32.mrb[0].mxu0
      %v1522 = vadd.f32 0.0, %v1521
      %v1523 = vpop.f32.mrb[0].mxu0
      %v1524 = vpop.f32.mrb[0].mxu0
      %v1525 = vadd.f32 0.0, %v1524
      %v1526 = vpop.f32.mrb[0].mxu0
      %1527 = vmatprep.mubr.bf16.mxu0 0
      %1528 = vmatmul.mubr.bf16.gmra.mrb[0].mxu0 %v420
      %v1529 = vpop.f32.mrb[0].mxu0
      %v1530 = vadd.f32 0.0, %v1529
      %v1531 = vpop.f32.mrb[0].mxu0
      %v1532 = vpop.f32.mrb[0].mxu0
      %v1533 = vadd.f32 0.0, %v1532
      %v1534 = vpop.f32.mrb[0].mxu0
      %1535 = vmatprep.mubr.bf16.mxu0 0
      %1536 = vmatmul.mubr.bf16.gmra.mrb[0].mxu0 %v1034
      %v1537 = vpop.f32.mrb[0].mxu0
      %v1538 = vadd.f32 0.0, %v1537
      %v1539 = vpop.f32.mrb[0].mxu0
      %v1540 = vpop.f32.mrb[0].mxu0
      %v1541 = vadd.f32 0.0, %v1540
      %v1542 = vpop.f32.mrb[0].mxu0
      %1543 = vmatprep.mubr.bf16.mxu0 0
      %1544 = vmatmul.mubr.bf16.gmra.mrb[0].mxu0 %v1453
      %v1545 = vpop.f32.mrb[0].mxu0
      %v1546 = vadd.f32 0.0, %v1545
      %v1547 = vpop.f32.mrb[0].mxu0
      %v1548 = vpop.f32.mrb[0].mxu0
      %v1549 = vadd.f32 0.0, %v1548
      %v1550 = vpop.f32.mrb[0].mxu0
      %1551 = vdwg.mxu0
      %v1552 = vadd.f32 %v1408, %v1490
      %v1553 = vadd.f32 %v1409, %v1493
      %v1554 = vadd.f32 %v1410, %v1498
      %v1555 = vadd.f32 %v1411, %v1501
      %v1556 = vadd.f32 %v1412, %v1506
      %v1557 = vadd.f32 %v1413, %v1509
      %v1558 = vadd.f32 %v1414, %v1514
      %v1559 = vadd.f32 %v1415, %v1517
      %v1560 = vadd.f32 %v1416, %v1522
      %v1561 = vadd.f32 %v1417, %v1525
      %v1562 = vadd.f32 %v1418, %v1530
      %v1563 = vadd.f32 %v1419, %v1533
      %v1564 = vadd.f32 %v1420, %v1538
      %v1565 = vadd.f32 %v1421, %v1541
      %v1566 = vadd.f32 %v1422, %v1546
      %v1567 = vadd.f32 %v1423, %v1549
      %v1568 = vrot.slane %v276, 2
      %v1569 = vrot.slane %v277, 2
      %v1570 = vsel %vm652, %v1568, %v1569
      %v1571 = vrot.slane %v278, 2
      %v1572 = vsel %vm652, %v1569, %v1571
      %v1575 = vpack.c.bf16 %v1572, %v1570
      %s1576 = scalar_lea.vmem %s1, 128
      %v1577 = vld [vmem:[%s1576] sm:$0xf]
      %v1578 = vld [vmem:[%s1576 + $0x4] sm:$0xf]
      %v1579 = vld [vmem:[%s1576 + $0x8] sm:$0xf]
      %v1580 = vld [vmem:[%s1576 + $0xc] sm:$0xf]
      %v1585 = vunpack.c.l.b16 %v1577
      %v1586 = vunpack.c.l.b16 %v1578
      %v1587 = vunpack.c.l.b16 %v1579
      %v1588 = vunpack.c.l.b16 %v1580
      %v1589 = vpack.c.b16 %v1586, %v1585
      %v1590 = vpack.c.b16 %v1588, %v1587
      %v1594 = vsel %vm397, %v1575, 0
      %1596 = vmatprep.subr.bf16.mxu0 0
      %1597 = vmatpush1.bf16.msra.mxu0 %v1589
      %1598 = vmatprep.subr.bf16.mxu0 0
      %1599 = vmatpush1.bf16.msra.mxu0 %v1590
      %1600 = vmatprep.subr.bf16.mxu0 0
      %1601 = vmatpush1.bf16.msra.mxu0 0
      %1602 = vmatprep.subr.bf16.mxu0 0
      %1603 = vmatpush1.bf16.msra.mxu0 0
      %1604 = vmatprep.subr.bf16.mxu0 0
      %1605 = vmatpush1.bf16.msra.mxu0 0
      %1606 = vmatprep.subr.bf16.mxu0 0
      %1607 = vmatpush1.bf16.msra.mxu0 0
      %1608 = vmatprep.subr.bf16.mxu0 0
      %1609 = vmatpush1.bf16.msra.mxu0 0
      %1610 = vmatprep.subr.bf16.mxu0 0
      %1611 = vmatpush1.bf16.msra.mxu0 0
      %1612 = vmatprep.subr.bf16.mxu0 0
      %1613 = vmatpush1.bf16.msra.mxu0 0
      %1614 = vmatprep.subr.bf16.mxu0 0
      %1615 = vmatpush1.bf16.msra.mxu0 0
      %1616 = vmatprep.subr.bf16.mxu0 0
      %1617 = vmatpush1.bf16.msra.mxu0 0
      %1618 = vmatprep.subr.bf16.mxu0 0
      %1619 = vmatpush1.bf16.msra.mxu0 0
      %1620 = vmatprep.subr.bf16.mxu0 0
      %1621 = vmatpush1.bf16.msra.mxu0 0
      %1622 = vmatprep.subr.bf16.mxu0 0
      %1623 = vmatpush1.bf16.msra.mxu0 0
      %1624 = vmatprep.subr.bf16.mxu0 0
      %1625 = vmatpush1.bf16.msra.mxu0 0
      %1626 = vmatprep.subr.bf16.mxu0 0
      %1627 = vmatpush1.bf16.msra.mxu0 0
      %1628 = vmatprep.mubr.bf16.mxu0 0
      %1629 = vmatmul.mubr.bf16.gmra.mrb[0].mxu0 %v741
      %v1630 = vpop.f32.mrb[0].mxu0
      %v1631 = vadd.f32 0.0, %v1630
      %v1632 = vpop.f32.mrb[0].mxu0
      %v1633 = vpop.f32.mrb[0].mxu0
      %v1634 = vadd.f32 0.0, %v1633
      %v1635 = vpop.f32.mrb[0].mxu0
      %1636 = vmatprep.mubr.bf16.mxu0 0
      %1637 = vmatmul.mubr.bf16.gmra.mrb[0].mxu0 %v744
      %v1638 = vpop.f32.mrb[0].mxu0
      %v1639 = vadd.f32 0.0, %v1638
      %v1640 = vpop.f32.mrb[0].mxu0
      %v1641 = vpop.f32.mrb[0].mxu0
      %v1642 = vadd.f32 0.0, %v1641
      %v1643 = vpop.f32.mrb[0].mxu0
      %1644 = vmatprep.mubr.bf16.mxu0 0
      %1645 = vmatmul.mubr.bf16.gmra.mrb[0].mxu0 %v747
      %v1646 = vpop.f32.mrb[0].mxu0
      %v1647 = vadd.f32 0.0, %v1646
      %v1648 = vpop.f32.mrb[0].mxu0
      %v1649 = vpop.f32.mrb[0].mxu0
      %v1650 = vadd.f32 0.0, %v1649
      %v1651 = vpop.f32.mrb[0].mxu0
      %1652 = vmatprep.mubr.bf16.mxu0 0
      %1653 = vmatmul.mubr.bf16.gmra.mrb[0].mxu0 %v750
      %v1654 = vpop.f32.mrb[0].mxu0
      %v1655 = vadd.f32 0.0, %v1654
      %v1656 = vpop.f32.mrb[0].mxu0
      %v1657 = vpop.f32.mrb[0].mxu0
      %v1658 = vadd.f32 0.0, %v1657
      %v1659 = vpop.f32.mrb[0].mxu0
      %1660 = vmatprep.mubr.bf16.mxu0 0
      %1661 = vmatmul.mubr.bf16.gmra.mrb[0].mxu0 %v753
      %v1662 = vpop.f32.mrb[0].mxu0
      %v1663 = vadd.f32 0.0, %v1662
      %v1664 = vpop.f32.mrb[0].mxu0
      %v1665 = vpop.f32.mrb[0].mxu0
      %v1666 = vadd.f32 0.0, %v1665
      %v1667 = vpop.f32.mrb[0].mxu0
      %1668 = vmatprep.mubr.bf16.mxu0 0
      %1669 = vmatmul.mubr.bf16.gmra.mrb[0].mxu0 %v756
      %v1670 = vpop.f32.mrb[0].mxu0
      %v1671 = vadd.f32 0.0, %v1670
      %v1672 = vpop.f32.mrb[0].mxu0
      %v1673 = vpop.f32.mrb[0].mxu0
      %v1674 = vadd.f32 0.0, %v1673
      %v1675 = vpop.f32.mrb[0].mxu0
      %1676 = vmatprep.mubr.bf16.mxu0 0
      %1677 = vmatmul.mubr.bf16.gmra.mrb[0].mxu0 %v1175
      %v1678 = vpop.f32.mrb[0].mxu0
      %v1679 = vadd.f32 0.0, %v1678
      %v1680 = vpop.f32.mrb[0].mxu0
      %v1681 = vpop.f32.mrb[0].mxu0
      %v1682 = vadd.f32 0.0, %v1681
      %v1683 = vpop.f32.mrb[0].mxu0
      %1684 = vmatprep.mubr.bf16.mxu0 0
      %1685 = vmatmul.mubr.bf16.gmra.mrb[0].mxu0 %v1594
      %v1686 = vpop.f32.mrb[0].mxu0
      %v1687 = vadd.f32 0.0, %v1686
      %v1688 = vpop.f32.mrb[0].mxu0
      %v1689 = vpop.f32.mrb[0].mxu0
      %v1690 = vadd.f32 0.0, %v1689
      %v1691 = vpop.f32.mrb[0].mxu0
      %1692 = vdwg.mxu0
      %v1693 = vadd.f32 %v1552, %v1631
      %v1694 = vadd.f32 %v1553, %v1634
      %v1695 = vadd.f32 %v1554, %v1639
      %v1696 = vadd.f32 %v1555, %v1642
      %v1697 = vadd.f32 %v1556, %v1647
      %v1698 = vadd.f32 %v1557, %v1650
      %v1699 = vadd.f32 %v1558, %v1655
      %v1700 = vadd.f32 %v1559, %v1658
      %v1701 = vadd.f32 %v1560, %v1663
      %v1702 = vadd.f32 %v1561, %v1666
      %v1703 = vadd.f32 %v1562, %v1671
      %v1704 = vadd.f32 %v1563, %v1674
      %v1705 = vadd.f32 %v1564, %v1679
      %v1706 = vadd.f32 %v1565, %v1682
      %v1707 = vadd.f32 %v1566, %v1687
      %v1708 = vadd.f32 %v1567, %v1690
      %v1709 = vld [vmem:[%s2] sm:$0x1]
      %v1711 = vlaneseq
      %v1712 = vshrl.u32 %v1711, 7
      %v1713 = vsub.s32 0, %v1712
      %v1714 = vrot.slane %v1709, %v1713
      %v1716 = vadd.f32 %v1693, %v1714
      %v1717 = vadd.f32 %v1694, %v1714
      %v1718 = vadd.f32 %v1695, %v1714
      %v1719 = vadd.f32 %v1696, %v1714
      %v1720 = vadd.f32 %v1697, %v1714
      %v1721 = vadd.f32 %v1698, %v1714
      %v1722 = vadd.f32 %v1699, %v1714
      %v1723 = vadd.f32 %v1700, %v1714
      %v1724 = vadd.f32 %v1701, %v1714
      %v1725 = vadd.f32 %v1702, %v1714
      %v1726 = vadd.f32 %v1703, %v1714
      %v1727 = vadd.f32 %v1704, %v1714
      %v1728 = vadd.f32 %v1705, %v1714
      %v1729 = vadd.f32 %v1706, %v1714
      %v1730 = vadd.f32 %v1707, %v1714
      %v1731 = vadd.f32 %v1708, %v1714
      %v1732 = vld [vmem:[%s212] sm:$0xff]
      %v1733 = vld [vmem:[%s212 + $0x8] sm:$0xff]
      %v1734 = vld [vmem:[%s212 + $0x10] sm:$0xff]
      %v1735 = vld [vmem:[%s212 + $0x18] sm:$0xff]
      %v1736 = vld [vmem:[%s212 + $0x20] sm:$0xff]
      %v1737 = vld [vmem:[%s212 + $0x28] sm:$0xff]
      %v1738 = vld [vmem:[%s212 + $0x30] sm:$0xff]
      %v1739 = vld [vmem:[%s212 + $0x38] sm:$0xff]
      %v1740 = vld [vmem:[%s212 + $0x40] sm:$0xff]
      %v1741 = vld [vmem:[%s212 + $0x48] sm:$0xff]
      %v1742 = vld [vmem:[%s212 + $0x50] sm:$0xff]
      %v1743 = vld [vmem:[%s212 + $0x58] sm:$0xff]
      %v1744 = vld [vmem:[%s212 + $0x60] sm:$0xff]
      %v1745 = vld [vmem:[%s212 + $0x68] sm:$0xff]
      %v1746 = vld [vmem:[%s212 + $0x70] sm:$0xff]
      %v1747 = vld [vmem:[%s212 + $0x78] sm:$0xff]
      %v1748 = vadd.f32 %v1716, %v1732
      %v1749 = vadd.f32 %v1717, %v1733
      %v1750 = vadd.f32 %v1718, %v1734
      %v1751 = vadd.f32 %v1719, %v1735
      %v1752 = vadd.f32 %v1720, %v1736
      %v1753 = vadd.f32 %v1721, %v1737
      %v1754 = vadd.f32 %v1722, %v1738
      %v1755 = vadd.f32 %v1723, %v1739
      %v1756 = vadd.f32 %v1724, %v1740
      %v1757 = vadd.f32 %v1725, %v1741
      %v1758 = vadd.f32 %v1726, %v1742
      %v1759 = vadd.f32 %v1727, %v1743
      %v1760 = vadd.f32 %v1728, %v1744
      %v1761 = vadd.f32 %v1729, %v1745
      %v1762 = vadd.f32 %v1730, %v1746
      %v1763 = vadd.f32 %v1731, %v1747
      %vm1764 = vcmask 64512
      %1765 = vst.msk [vmem:[%s217] sm:$0xff] %vm1764, %v1748
      %1766 = vst.msk [vmem:[%s217 + $0x8] sm:$0xff] %vm1764, %v1749
      %1767 = vst.msk [vmem:[%s217 + $0x10] sm:$0xff] %vm1764, %v1750
      %1768 = vst.msk [vmem:[%s217 + $0x18] sm:$0xff] %vm1764, %v1751
      %1769 = vst.msk [vmem:[%s217 + $0x20] sm:$0xff] %vm1764, %v1752
      %1770 = vst.msk [vmem:[%s217 + $0x28] sm:$0xff] %vm1764, %v1753
      %1771 = vst.msk [vmem:[%s217 + $0x30] sm:$0xff] %vm1764, %v1754
      %1772 = vst.msk [vmem:[%s217 + $0x38] sm:$0xff] %vm1764, %v1755
      %1773 = vst.msk [vmem:[%s217 + $0x40] sm:$0xff] %vm1764, %v1756
      %1774 = vst.msk [vmem:[%s217 + $0x48] sm:$0xff] %vm1764, %v1757
      %1775 = vst.msk [vmem:[%s217 + $0x50] sm:$0xff] %vm1764, %v1758
      %1776 = vst.msk [vmem:[%s217 + $0x58] sm:$0xff] %vm1764, %v1759
      %1777 = vst.msk [vmem:[%s217 + $0x60] sm:$0xff] %vm1764, %v1760
      %1778 = vst.msk [vmem:[%s217 + $0x68] sm:$0xff] %vm1764, %v1761
      %1779 = vst.msk [vmem:[%s217 + $0x70] sm:$0xff] %vm1764, %v1762
      %1780 = vst.msk [vmem:[%s217 + $0x78] sm:$0xff] %vm1764, %v1763
      %p1781 = scmp.lt.s32.totalorder %s15, 1
      %s1782 = scalar_select %p1781, %s15, 1
      %s1783 = smul.addr %s1782, 16
      %s1784 = smul.addr %s1783, 8
      %s1785 = scalar_lea.vmem %s4, %s1784
      // Predicated region
      $region37: #{encoder_forward.9} parent=35 // pred_check
        %p1786 = pneg %p127
      $region38: #{encoder_forward.9} parent=35 // pred_check_branch
        %1788 = sbr.rel (%p1786) target = $region40
      $region39: #{encoder_forward.9} parent=35 // pred_region
        _
      $region40: #{encoder_forward.9} parent=35 // pred_fallthru
        _
    $region36: #{encoder_forward.9} parent=5 // pred_fallthru
      _
    %p1789 = scmp.le.s32.totalorder 2, %s10
    // Predicated region
    $region41: #{encoder_forward.9} parent=5 // pred_check
      %p1790 = pneg %p1789
    $region42: #{encoder_forward.9} parent=5 // pred_check_branch
      %1792 = sbr.rel (%p1790) target = $region44
    $region43: #{encoder_forward.9} parent=5 // pred_region
      %s1793 = ssub.s32 %s10, 2
      // Predicated region
      $region45: #{encoder_forward.9} parent=43 // pred_check
        %p1794 = pneg %p133
      $region46: #{encoder_forward.9} parent=43 // pred_check_branch
        %1796 = sbr.rel (%p1794) target = $region48
      $region47: #{encoder_forward.9} parent=43 // pred_region
        %p1797 = scmp.lt.s32.totalorder %s16, 1
        %s1798 = scalar_select %p1797, %s16, 1
        %s1799 = smul.addr %s1798, 16
        %s1800 = smul.addr %s1799, 8
        %s1801 = scalar_lea.vmem %s4, %s1800
      $region48: #{encoder_forward.9} parent=43 // pred_fallthru
        _
    $region44: #{encoder_forward.9} parent=5 // pred_fallthru
      _
  $region6: #{encoder_forward.9} parent=0 // loop_footer
    %s14 = sadd.s32 1, %s10
  $region7: #{encoder_forward.9} parent=0 // loop_footer_branch
    %9 = sbr.rel target = $region3
  $region8: #{encoder_forward.9} parent=0 // loop_exit
    _

</llo_original>
